<compile_context>
chip_gen: v7x
topology: tpu7x:2x2x1
jax: 0.10.0
libtpu: 0.0.40
codegen_flags: <defaults>
</compile_context>

<pallas_src>
import jax
import jax.numpy as jnp
from jax.experimental import pallas as pl
from jax.experimental.pallas import tpu as pltpu

NFEATURES = 8
NCLASSES = 10
H = W = 28
KH = KW = 3
FRAME = H + 2                  # 30: padded conv frame / row stride of flat layout
LANES = 1024                   # 30*30 = 900 rounded up to a multiple of 128
KPAD = NFEATURES * LANES       # 8192: padded FC contraction dim
CPAD = 128                     # classes padded to one full lane group
MAX_TILE = 128                 # MXU row count (v5e); v6e/v7x could use 256


def _round_up(n, m):
    return ((n + m - 1) // m) * m


def _choose_tiling(batch):
    """Pick (padded_batch, batch_tile) honoring the (8,128) block constraint."""
    b8 = _round_up(max(batch, 1), 8)
    if b8 > 2 * MAX_TILE:
        tile = MAX_TILE                    # big batch: MXU-row-sized tiles
    elif b8 >= 16:
        tile = _round_up(b8 // 2, 8)       # >=2 grid steps -> both v7x TCs busy
    else:
        tile = 8                           # one 8-row tile; cannot split further
    return _round_up(b8, tile), tile


# ----------------------------------------------------------------- fused kernel
def fused_kernel(cw_ref, cb_ref, x_ref, w_ref, fb_ref, o_ref, act_ref):
    # cw_ref : SMEM (F, 9)        flattened 3x3 conv filters (f32)
    # cb_ref : SMEM (F,)          conv bias (f32)
    # x_ref  : VMEM (TB, 1024)    zero-padded 30x30 frame, row-major, f32
    # w_ref  : VMEM (8192, 128)   FC weight, rows in (f,30,30) frame order, bf16
    # fb_ref : VMEM (1, 128)      FC bias, classes zero-padded to 128, f32
    # o_ref  : VMEM (TB, 128)     logits, classes zero-padded to 128, f32
    # act_ref: VMEM (TB, 8192)    conv+ReLU activation scratch, bf16
    x = x_ref[...]                                          # (TB, 1024) f32

    # Conv + bias + ReLU, one feature at a time.  Taps are re-rolled inside the
    # loop (lane rotation on the XLU) so only one rolled copy and the f32
    # accumulator are live at any time.
    for f in range(NFEATURES):
        conv = x * cw_ref[f, 0]                             # tap (0,0): offset 0
        for dy in range(KH):
            for dx in range(KW):
                if dy == 0 and dx == 0:
                    continue
                off = dy * FRAME + dx                       # tap (dy,dx) <-> lane shift
                tap = pltpu.roll(x, LANES - off, axis=1)    # tap[p] = x[p + off]
                conv = conv + tap * cw_ref[f, dy * KW + dx]
        conv = jnp.maximum(conv + cb_ref[f], 0.0)           # (TB, 1024) f32
        act_ref[:, f * LANES:(f + 1) * LANES] = conv.astype(jnp.bfloat16)

    # Classifier: single K=8192 bf16 MXU matmul with f32 accumulation
    # (single K-reduction -> MRB in-place accumulate on v7x).
    o_ref[...] = (
        jnp.dot(act_ref[...], w_ref[...], preferred_element_type=jnp.float32)
        + fb_ref[...])


# ----------------------------------------------------------------- params (once)
def prepare_params(conv_w, conv_b, fc_w, fc_b):
    """One-time preprocessing; call at parameter-load time, NOT per forward."""
    cw = conv_w.reshape(NFEATURES, KH * KW).astype(jnp.float32)
    cb = conv_b.astype(jnp.float32)

    # FC weight: permute rows into the (f, y(30), x(30)) frame used by the
    # kernel's lane-dense conv layout; zero rows at the frame padding and the
    # 900..1023 lane tail make the kernel's garbage lanes contribute exactly 0.
    w4 = fc_w.astype(jnp.float32).reshape(NCLASSES, NFEATURES, H, W)    # (C,f,y,x)
    w4 = jnp.transpose(w4, (1, 2, 3, 0))                                # (f,y,x,C)
    w4 = jnp.pad(w4, ((0, 0), (0, FRAME - H), (0, FRAME - W),
                      (0, CPAD - NCLASSES)))                            # (f,30,30,128)
    wpad = w4.reshape(NFEATURES, FRAME * FRAME, CPAD)
    wpad = jnp.pad(wpad, ((0, 0), (0, LANES - FRAME * FRAME), (0, 0)))
    wpad = wpad.reshape(KPAD, CPAD).astype(jnp.bfloat16)                # (8192,128)

    fb = jnp.pad(fc_b.astype(jnp.float32), (0, CPAD - NCLASSES)).reshape(1, CPAD)

    # Invariant: every weight row mapped to a garbage lane (frame-padding
    # rows/cols, 900..1023 tail, roll wraparound region) must be exactly zero.
    lane = jnp.arange(LANES)
    valid = (lane < FRAME * FRAME) & (lane // FRAME < H) & (lane % FRAME < W)
    garbage = jnp.tile(~valid, (NFEATURES,))                            # (8192,)
    assert bool(jnp.all(jnp.where(garbage[:, None], wpad == 0, True))), (
        "zero-row invariant violated: garbage lanes would corrupt logits")

    return cw, cb, wpad, fb


# ----------------------------------------------------------------- forward
def toy_model_forward(x, params):
    # x: (B,1,28,28); params from prepare_params().
    cw, cb, wpad, fb = params
    B = x.shape[0]
    b_pad, tile = _choose_tiling(B)
    n_tiles = b_pad // tile

    # Glue: spatial zero-pad to the 30x30 frame, row-major flatten, lane-pad.
    xp = jnp.pad(x.astype(jnp.float32),
                 ((0, b_pad - B), (0, 0), (1, 1), (1, 1)))              # (Bp,1,30,30)
    xflat = xp.reshape(b_pad, FRAME * FRAME)
    xflat = jnp.pad(xflat, ((0, 0), (0, LANES - FRAME * FRAME)))        # (Bp,1024)

    out = pl.pallas_call(
        fused_kernel,
        out_shape=jax.ShapeDtypeStruct((b_pad, CPAD), jnp.float32),
        grid=(n_tiles,),
        in_specs=[
            pl.BlockSpec(memory_space=pltpu.MemorySpace.SMEM),          # conv weights
            pl.BlockSpec(memory_space=pltpu.MemorySpace.SMEM),          # conv bias
            pl.BlockSpec((tile, LANES), lambda i: (i, 0)),              # input tile
            pl.BlockSpec((KPAD, CPAD), lambda i: (0, 0)),               # fc weight (resident)
            pl.BlockSpec((1, CPAD), lambda i: (0, 0)),                  # fc bias
        ],
        out_specs=pl.BlockSpec((tile, CPAD), lambda i: (i, 0)),
        scratch_shapes=[pltpu.VMEM((tile, KPAD), jnp.bfloat16)],        # activations
        compiler_params=pltpu.CompilerParams(
            dimension_semantics=("parallel",),
            vmem_limit_bytes=32 * 1024 * 1024),
        cost_estimate=pl.CostEstimate(
            flops=2 * b_pad * (KH * KW * NFEATURES * LANES + KPAD * CPAD),
            transcendentals=0,
            bytes_accessed=(b_pad * LANES * 4 + KPAD * CPAD * 2
                            + CPAD * 4 + b_pad * CPAD * 4)),
    )(cw, cb, xflat, wpad, fb)

    return out[:B, :NCLASSES]


# ----------------------------------------------------------------- reference
def toy_model_ref(x, conv_w, conv_b, fc_w, fc_b):
    y = jax.lax.conv_general_dilated(
        x.astype(jnp.float32), conv_w.astype(jnp.float32),
        window_strides=(1, 1), padding="SAME",
        dimension_numbers=("NCHW", "OIHW", "NCHW"))
    y = jnp.maximum(y + conv_b[None, :, None, None], 0.0)
    y = y.reshape(x.shape[0], -1)
    return y @ fc_w.T + fc_b[None, :]


if __name__ == "__main__":
    key = jax.random.PRNGKey(0)
    k_x, k_cw, k_cb, k_fw, k_fb = jax.random.split(key, 5)

    # Synthetic params; shapes match the PyTorch module (fc_w in torch (out,in) layout).
    conv_w = jax.random.normal(k_cw, (NFEATURES, 1, KH, KW), jnp.float32) * 0.2
    conv_b = jax.random.normal(k_cb, (NFEATURES,), jnp.float32) * 0.1
    fc_w = jax.random.normal(k_fw, (NCLASSES, NFEATURES * H * W), jnp.float32) * 0.01
    fc_b = jax.random.normal(k_fb, (NCLASSES,), jnp.float32) * 0.1

    params = prepare_params(conv_w, conv_b, fc_w, fc_b)   # once, at load time

    # B=2   -> tile=8,   1 grid step (tiny-batch path)
    # B=20  -> tile=16,  2 grid steps (multi-tile + batch padding rows)
    # B=260 -> tile=128, 3 grid steps (MXU-row-sized tile path)
    for B in (2, 20, 260):
        xb = jax.random.normal(jax.random.fold_in(k_x, B), (B, 1, H, W), jnp.float32)
        out = jax.block_until_ready(toy_model_forward(xb, params))
        ref = toy_model_ref(xb, conv_w, conv_b, fc_w, fc_b)
        assert out.shape == (B, NCLASSES)
        # FC runs on the MXU with bf16 inputs (f32 accumulate) -> bf16-level tolerance.
        assert jnp.allclose(out, ref, atol=2e-2, rtol=2e-2), f"mismatch vs reference at B={B}"

    print("KERNEL_OK")
</pallas_src>

<mosaic_0001>
module attributes {stable_mosaic.version = 11 : i64} {
  func.func @fused_kernel(%arg0: i32, %arg1: memref<8x9xf32, #tpu.memory_space<smem>>, %arg2: memref<8xf32, #tpu.memory_space<smem>>, %arg3: memref<8x1024xf32, #tpu.memory_space<vmem>>, %arg4: memref<8192x128xbf16, #tpu.memory_space<vmem>>, %arg5: memref<1x128xf32, #tpu.memory_space<vmem>>, %arg6: memref<8x128xf32, #tpu.memory_space<vmem>>, %arg7: memref<8x8192xbf16, #tpu.memory_space<vmem>>) attributes {dimension_semantics = [#tpu.dimension_semantics<parallel>], iteration_bounds = array<i64: 1>, scalar_prefetch = 0 : i64, scratch_operands = 1 : i64, tpu.core_type = #tpu.core_type<tc>, window_params = [{transform_indices = @transform_0, window_bounds = array<i64: 8, 9>}, {transform_indices = @transform_1, window_bounds = array<i64: 8>}, {transform_indices = @transform_2, window_bounds = array<i64: 8, 1024>}, {pipeline_mode = #tpu.pipeline_mode<synchronous>, transform_indices = @transform_3, window_bounds = array<i64: 8192, 128>}, {pipeline_mode = #tpu.pipeline_mode<synchronous>, transform_indices = @transform_4, window_bounds = array<i64: 1, 128>}, {transform_indices = @transform_5, window_bounds = array<i64: 8, 128>}]} {
    %c0 = arith.constant 0 : index
    %c0_0 = arith.constant 0 : index
    %0 = vector.load %arg3[%c0, %c0_0] : memref<8x1024xf32, #tpu.memory_space<vmem>>, vector<8x1024xf32>
    %c0_1 = arith.constant 0 : index
    %c0_2 = arith.constant 0 : index
    %1 = memref.load %arg1[%c0_1, %c0_2] : memref<8x9xf32, #tpu.memory_space<smem>>
    %2 = vector.broadcast %1 : f32 to vector<8x1024xf32>
    %3 = arith.mulf %0, %2 : vector<8x1024xf32>
    %c1023_i32 = arith.constant 1023 : i32
    %4 = tpu.dynamic_rotate %0 by %c1023_i32 dim 1 : vector<8x1024xf32>, i32 -> vector<8x1024xf32>
    %c0_3 = arith.constant 0 : index
    %c1 = arith.constant 1 : index
    %5 = memref.load %arg1[%c0_3, %c1] : memref<8x9xf32, #tpu.memory_space<smem>>
    %6 = vector.broadcast %5 : f32 to vector<8x1024xf32>
    %7 = arith.mulf %4, %6 : vector<8x1024xf32>
    %8 = arith.addf %3, %7 : vector<8x1024xf32>
    %c1022_i32 = arith.constant 1022 : i32
    %9 = tpu.dynamic_rotate %0 by %c1022_i32 dim 1 : vector<8x1024xf32>, i32 -> vector<8x1024xf32>
    %c0_4 = arith.constant 0 : index
    %c2 = arith.constant 2 : index
    %10 = memref.load %arg1[%c0_4, %c2] : memref<8x9xf32, #tpu.memory_space<smem>>
    %11 = vector.broadcast %10 : f32 to vector<8x1024xf32>
    %12 = arith.mulf %9, %11 : vector<8x1024xf32>
    %13 = arith.addf %8, %12 : vector<8x1024xf32>
    %c994_i32 = arith.constant 994 : i32
    %14 = tpu.dynamic_rotate %0 by %c994_i32 dim 1 : vector<8x1024xf32>, i32 -> vector<8x1024xf32>
    %c0_5 = arith.constant 0 : index
    %c3 = arith.constant 3 : index
    %15 = memref.load %arg1[%c0_5, %c3] : memref<8x9xf32, #tpu.memory_space<smem>>
    %16 = vector.broadcast %15 : f32 to vector<8x1024xf32>
    %17 = arith.mulf %14, %16 : vector<8x1024xf32>
    %18 = arith.addf %13, %17 : vector<8x1024xf32>
    %c993_i32 = arith.constant 993 : i32
    %19 = tpu.dynamic_rotate %0 by %c993_i32 dim 1 : vector<8x1024xf32>, i32 -> vector<8x1024xf32>
    %c0_6 = arith.constant 0 : index
    %c4 = arith.constant 4 : index
    %20 = memref.load %arg1[%c0_6, %c4] : memref<8x9xf32, #tpu.memory_space<smem>>
    %21 = vector.broadcast %20 : f32 to vector<8x1024xf32>
    %22 = arith.mulf %19, %21 : vector<8x1024xf32>
    %23 = arith.addf %18, %22 : vector<8x1024xf32>
    %c992_i32 = arith.constant 992 : i32
    %24 = tpu.dynamic_rotate %0 by %c992_i32 dim 1 : vector<8x1024xf32>, i32 -> vector<8x1024xf32>
    %c0_7 = arith.constant 0 : index
    %c5 = arith.constant 5 : index
    %25 = memref.load %arg1[%c0_7, %c5] : memref<8x9xf32, #tpu.memory_space<smem>>
    %26 = vector.broadcast %25 : f32 to vector<8x1024xf32>
    %27 = arith.mulf %24, %26 : vector<8x1024xf32>
    %28 = arith.addf %23, %27 : vector<8x1024xf32>
    %c964_i32 = arith.constant 964 : i32
    %29 = tpu.dynamic_rotate %0 by %c964_i32 dim 1 : vector<8x1024xf32>, i32 -> vector<8x1024xf32>
    %c0_8 = arith.constant 0 : index
    %c6 = arith.constant 6 : index
    %30 = memref.load %arg1[%c0_8, %c6] : memref<8x9xf32, #tpu.memory_space<smem>>
    %31 = vector.broadcast %30 : f32 to vector<8x1024xf32>
    %32 = arith.mulf %29, %31 : vector<8x1024xf32>
    %33 = arith.addf %28, %32 : vector<8x1024xf32>
    %c963_i32 = arith.constant 963 : i32
    %34 = tpu.dynamic_rotate %0 by %c963_i32 dim 1 : vector<8x1024xf32>, i32 -> vector<8x1024xf32>
    %c0_9 = arith.constant 0 : index
    %c7 = arith.constant 7 : index
    %35 = memref.load %arg1[%c0_9, %c7] : memref<8x9xf32, #tpu.memory_space<smem>>
    %36 = vector.broadcast %35 : f32 to vector<8x1024xf32>
    %37 = arith.mulf %34, %36 : vector<8x1024xf32>
    %38 = arith.addf %33, %37 : vector<8x1024xf32>
    %c962_i32 = arith.constant 962 : i32
    %39 = tpu.dynamic_rotate %0 by %c962_i32 dim 1 : vector<8x1024xf32>, i32 -> vector<8x1024xf32>
    %c0_10 = arith.constant 0 : index
    %c8 = arith.constant 8 : index
    %40 = memref.load %arg1[%c0_10, %c8] : memref<8x9xf32, #tpu.memory_space<smem>>
    %41 = vector.broadcast %40 : f32 to vector<8x1024xf32>
    %42 = arith.mulf %39, %41 : vector<8x1024xf32>
    %43 = arith.addf %38, %42 : vector<8x1024xf32>
    %c0_11 = arith.constant 0 : index
    %44 = memref.load %arg2[%c0_11] : memref<8xf32, #tpu.memory_space<smem>>
    %45 = vector.broadcast %44 : f32 to vector<8x1024xf32>
    %46 = arith.addf %43, %45 : vector<8x1024xf32>
    %cst = arith.constant 0.000000e+00 : f32
    %47 = vector.broadcast %cst : f32 to vector<8x1024xf32>
    %48 = arith.maximumf %46, %47 : vector<8x1024xf32>
    %49 = arith.truncf %48 : vector<8x1024xf32> to vector<8x1024xbf16>
    %c0_12 = arith.constant 0 : index
    %c0_13 = arith.constant 0 : index
    %50 = vector.load %arg7[%c0_12, %c0_13] : memref<8x8192xbf16, #tpu.memory_space<vmem>>, vector<8x1024xbf16>
    tpu.vector_store %arg7[%c0_12, %c0_13], %49 {strides = array<i32>} : memref<8x8192xbf16, #tpu.memory_space<vmem>>, vector<8x1024xbf16>,
    %c1_14 = arith.constant 1 : index
    %c0_15 = arith.constant 0 : index
    %51 = memref.load %arg1[%c1_14, %c0_15] : memref<8x9xf32, #tpu.memory_space<smem>>
    %52 = vector.broadcast %51 : f32 to vector<8x1024xf32>
    %53 = arith.mulf %0, %52 : vector<8x1024xf32>
    %c1023_i32_16 = arith.constant 1023 : i32
    %54 = tpu.dynamic_rotate %0 by %c1023_i32_16 dim 1 : vector<8x1024xf32>, i32 -> vector<8x1024xf32>
    %c1_17 = arith.constant 1 : index
    %c1_18 = arith.constant 1 : index
    %55 = memref.load %arg1[%c1_17, %c1_18] : memref<8x9xf32, #tpu.memory_space<smem>>
    %56 = vector.broadcast %55 : f32 to vector<8x1024xf32>
    %57 = arith.mulf %54, %56 : vector<8x1024xf32>
    %58 = arith.addf %53, %57 : vector<8x1024xf32>
    %c1022_i32_19 = arith.constant 1022 : i32
    %59 = tpu.dynamic_rotate %0 by %c1022_i32_19 dim 1 : vector<8x1024xf32>, i32 -> vector<8x1024xf32>
    %c1_20 = arith.constant 1 : index
    %c2_21 = arith.constant 2 : index
    %60 = memref.load %arg1[%c1_20, %c2_21] : memref<8x9xf32, #tpu.memory_space<smem>>
    %61 = vector.broadcast %60 : f32 to vector<8x1024xf32>
    %62 = arith.mulf %59, %61 : vector<8x1024xf32>
    %63 = arith.addf %58, %62 : vector<8x1024xf32>
    %c994_i32_22 = arith.constant 994 : i32
    %64 = tpu.dynamic_rotate %0 by %c994_i32_22 dim 1 : vector<8x1024xf32>, i32 -> vector<8x1024xf32>
    %c1_23 = arith.constant 1 : index
    %c3_24 = arith.constant 3 : index
    %65 = memref.load %arg1[%c1_23, %c3_24] : memref<8x9xf32, #tpu.memory_space<smem>>
    %66 = vector.broadcast %65 : f32 to vector<8x1024xf32>
    %67 = arith.mulf %64, %66 : vector<8x1024xf32>
    %68 = arith.addf %63, %67 : vector<8x1024xf32>
    %c993_i32_25 = arith.constant 993 : i32
    %69 = tpu.dynamic_rotate %0 by %c993_i32_25 dim 1 : vector<8x1024xf32>, i32 -> vector<8x1024xf32>
    %c1_26 = arith.constant 1 : index
    %c4_27 = arith.constant 4 : index
    %70 = memref.load %arg1[%c1_26, %c4_27] : memref<8x9xf32, #tpu.memory_space<smem>>
    %71 = vector.broadcast %70 : f32 to vector<8x1024xf32>
    %72 = arith.mulf %69, %71 : vector<8x1024xf32>
    %73 = arith.addf %68, %72 : vector<8x1024xf32>
    %c992_i32_28 = arith.constant 992 : i32
    %74 = tpu.dynamic_rotate %0 by %c992_i32_28 dim 1 : vector<8x1024xf32>, i32 -> vector<8x1024xf32>
    %c1_29 = arith.constant 1 : index
    %c5_30 = arith.constant 5 : index
    %75 = memref.load %arg1[%c1_29, %c5_30] : memref<8x9xf32, #tpu.memory_space<smem>>
    %76 = vector.broadcast %75 : f32 to vector<8x1024xf32>
    %77 = arith.mulf %74, %76 : vector<8x1024xf32>
    %78 = arith.addf %73, %77 : vector<8x1024xf32>
    %c964_i32_31 = arith.constant 964 : i32
    %79 = tpu.dynamic_rotate %0 by %c964_i32_31 dim 1 : vector<8x1024xf32>, i32 -> vector<8x1024xf32>
    %c1_32 = arith.constant 1 : index
    %c6_33 = arith.constant 6 : index
    %80 = memref.load %arg1[%c1_32, %c6_33] : memref<8x9xf32, #tpu.memory_space<smem>>
    %81 = vector.broadcast %80 : f32 to vector<8x1024xf32>
    %82 = arith.mulf %79, %81 : vector<8x1024xf32>
    %83 = arith.addf %78, %82 : vector<8x1024xf32>
    %c963_i32_34 = arith.constant 963 : i32
    %84 = tpu.dynamic_rotate %0 by %c963_i32_34 dim 1 : vector<8x1024xf32>, i32 -> vector<8x1024xf32>
    %c1_35 = arith.constant 1 : index
    %c7_36 = arith.constant 7 : index
    %85 = memref.load %arg1[%c1_35, %c7_36] : memref<8x9xf32, #tpu.memory_space<smem>>
    %86 = vector.broadcast %85 : f32 to vector<8x1024xf32>
    %87 = arith.mulf %84, %86 : vector<8x1024xf32>
    %88 = arith.addf %83, %87 : vector<8x1024xf32>
    %c962_i32_37 = arith.constant 962 : i32
    %89 = tpu.dynamic_rotate %0 by %c962_i32_37 dim 1 : vector<8x1024xf32>, i32 -> vector<8x1024xf32>
    %c1_38 = arith.constant 1 : index
    %c8_39 = arith.constant 8 : index
    %90 = memref.load %arg1[%c1_38, %c8_39] : memref<8x9xf32, #tpu.memory_space<smem>>
    %91 = vector.broadcast %90 : f32 to vector<8x1024xf32>
    %92 = arith.mulf %89, %91 : vector<8x1024xf32>
    %93 = arith.addf %88, %92 : vector<8x1024xf32>
    %c1_40 = arith.constant 1 : index
    %94 = memref.load %arg2[%c1_40] : memref<8xf32, #tpu.memory_space<smem>>
    %95 = vector.broadcast %94 : f32 to vector<8x1024xf32>
    %96 = arith.addf %93, %95 : vector<8x1024xf32>
    %cst_41 = arith.constant 0.000000e+00 : f32
    %97 = vector.broadcast %cst_41 : f32 to vector<8x1024xf32>
    %98 = arith.maximumf %96, %97 : vector<8x1024xf32>
    %99 = arith.truncf %98 : vector<8x1024xf32> to vector<8x1024xbf16>
    %c0_42 = arith.constant 0 : index
    %c1024 = arith.constant 1024 : index
    %100 = vector.load %arg7[%c0_42, %c1024] : memref<8x8192xbf16, #tpu.memory_space<vmem>>, vector<8x1024xbf16>
    tpu.vector_store %arg7[%c0_42, %c1024], %99 {strides = array<i32>} : memref<8x8192xbf16, #tpu.memory_space<vmem>>, vector<8x1024xbf16>,
    %c2_43 = arith.constant 2 : index
    %c0_44 = arith.constant 0 : index
    %101 = memref.load %arg1[%c2_43, %c0_44] : memref<8x9xf32, #tpu.memory_space<smem>>
    %102 = vector.broadcast %101 : f32 to vector<8x1024xf32>
    %103 = arith.mulf %0, %102 : vector<8x1024xf32>
    %c1023_i32_45 = arith.constant 1023 : i32
    %104 = tpu.dynamic_rotate %0 by %c1023_i32_45 dim 1 : vector<8x1024xf32>, i32 -> vector<8x1024xf32>
    %c2_46 = arith.constant 2 : index
    %c1_47 = arith.constant 1 : index
    %105 = memref.load %arg1[%c2_46, %c1_47] : memref<8x9xf32, #tpu.memory_space<smem>>
    %106 = vector.broadcast %105 : f32 to vector<8x1024xf32>
    %107 = arith.mulf %104, %106 : vector<8x1024xf32>
    %108 = arith.addf %103, %107 : vector<8x1024xf32>
    %c1022_i32_48 = arith.constant 1022 : i32
    %109 = tpu.dynamic_rotate %0 by %c1022_i32_48 dim 1 : vector<8x1024xf32>, i32 -> vector<8x1024xf32>
    %c2_49 = arith.constant 2 : index
    %c2_50 = arith.constant 2 : index
    %110 = memref.load %arg1[%c2_49, %c2_50] : memref<8x9xf32, #tpu.memory_space<smem>>
    %111 = vector.broadcast %110 : f32 to vector<8x1024xf32>
    %112 = arith.mulf %109, %111 : vector<8x1024xf32>
    %113 = arith.addf %108, %112 : vector<8x1024xf32>
    %c994_i32_51 = arith.constant 994 : i32
    %114 = tpu.dynamic_rotate %0 by %c994_i32_51 dim 1 : vector<8x1024xf32>, i32 -> vector<8x1024xf32>
    %c2_52 = arith.constant 2 : index
    %c3_53 = arith.constant 3 : index
    %115 = memref.load %arg1[%c2_52, %c3_53] : memref<8x9xf32, #tpu.memory_space<smem>>
    %116 = vector.broadcast %115 : f32 to vector<8x1024xf32>
    %117 = arith.mulf %114, %116 : vector<8x1024xf32>
    %118 = arith.addf %113, %117 : vector<8x1024xf32>
    %c993_i32_54 = arith.constant 993 : i32
    %119 = tpu.dynamic_rotate %0 by %c993_i32_54 dim 1 : vector<8x1024xf32>, i32 -> vector<8x1024xf32>
    %c2_55 = arith.constant 2 : index
    %c4_56 = arith.constant 4 : index
    %120 = memref.load %arg1[%c2_55, %c4_56] : memref<8x9xf32, #tpu.memory_space<smem>>
    %121 = vector.broadcast %120 : f32 to vector<8x1024xf32>
    %122 = arith.mulf %119, %121 : vector<8x1024xf32>
    %123 = arith.addf %118, %122 : vector<8x1024xf32>
    %c992_i32_57 = arith.constant 992 : i32
    %124 = tpu.dynamic_rotate %0 by %c992_i32_57 dim 1 : vector<8x1024xf32>, i32 -> vector<8x1024xf32>
    %c2_58 = arith.constant 2 : index
    %c5_59 = arith.constant 5 : index
    %125 = memref.load %arg1[%c2_58, %c5_59] : memref<8x9xf32, #tpu.memory_space<smem>>
    %126 = vector.broadcast %125 : f32 to vector<8x1024xf32>
    %127 = arith.mulf %124, %126 : vector<8x1024xf32>
    %128 = arith.addf %123, %127 : vector<8x1024xf32>
    %c964_i32_60 = arith.constant 964 : i32
    %129 = tpu.dynamic_rotate %0 by %c964_i32_60 dim 1 : vector<8x1024xf32>, i32 -> vector<8x1024xf32>
    %c2_61 = arith.constant 2 : index
    %c6_62 = arith.constant 6 : index
    %130 = memref.load %arg1[%c2_61, %c6_62] : memref<8x9xf32, #tpu.memory_space<smem>>
    %131 = vector.broadcast %130 : f32 to vector<8x1024xf32>
    %132 = arith.mulf %129, %131 : vector<8x1024xf32>
    %133 = arith.addf %128, %132 : vector<8x1024xf32>
    %c963_i32_63 = arith.constant 963 : i32
    %134 = tpu.dynamic_rotate %0 by %c963_i32_63 dim 1 : vector<8x1024xf32>, i32 -> vector<8x1024xf32>
    %c2_64 = arith.constant 2 : index
    %c7_65 = arith.constant 7 : index
    %135 = memref.load %arg1[%c2_64, %c7_65] : memref<8x9xf32, #tpu.memory_space<smem>>
    %136 = vector.broadcast %135 : f32 to vector<8x1024xf32>
    %137 = arith.mulf %134, %136 : vector<8x1024xf32>
    %138 = arith.addf %133, %137 : vector<8x1024xf32>
    %c962_i32_66 = arith.constant 962 : i32
    %139 = tpu.dynamic_rotate %0 by %c962_i32_66 dim 1 : vector<8x1024xf32>, i32 -> vector<8x1024xf32>
    %c2_67 = arith.constant 2 : index
    %c8_68 = arith.constant 8 : index
    %140 = memref.load %arg1[%c2_67, %c8_68] : memref<8x9xf32, #tpu.memory_space<smem>>
    %141 = vector.broadcast %140 : f32 to vector<8x1024xf32>
    %142 = arith.mulf %139, %141 : vector<8x1024xf32>
    %143 = arith.addf %138, %142 : vector<8x1024xf32>
    %c2_69 = arith.constant 2 : index
    %144 = memref.load %arg2[%c2_69] : memref<8xf32, #tpu.memory_space<smem>>
    %145 = vector.broadcast %144 : f32 to vector<8x1024xf32>
    %146 = arith.addf %143, %145 : vector<8x1024xf32>
    %cst_70 = arith.constant 0.000000e+00 : f32
    %147 = vector.broadcast %cst_70 : f32 to vector<8x1024xf32>
    %148 = arith.maximumf %146, %147 : vector<8x1024xf32>
    %149 = arith.truncf %148 : vector<8x1024xf32> to vector<8x1024xbf16>
    %c0_71 = arith.constant 0 : index
    %c2048 = arith.constant 2048 : index
    %150 = vector.load %arg7[%c0_71, %c2048] : memref<8x8192xbf16, #tpu.memory_space<vmem>>, vector<8x1024xbf16>
    tpu.vector_store %arg7[%c0_71, %c2048], %149 {strides = array<i32>} : memref<8x8192xbf16, #tpu.memory_space<vmem>>, vector<8x1024xbf16>,
    %c3_72 = arith.constant 3 : index
    %c0_73 = arith.constant 0 : index
    %151 = memref.load %arg1[%c3_72, %c0_73] : memref<8x9xf32, #tpu.memory_space<smem>>
    %152 = vector.broadcast %151 : f32 to vector<8x1024xf32>
    %153 = arith.mulf %0, %152 : vector<8x1024xf32>
    %c1023_i32_74 = arith.constant 1023 : i32
    %154 = tpu.dynamic_rotate %0 by %c1023_i32_74 dim 1 : vector<8x1024xf32>, i32 -> vector<8x1024xf32>
    %c3_75 = arith.constant 3 : index
    %c1_76 = arith.constant 1 : index
    %155 = memref.load %arg1[%c3_75, %c1_76] : memref<8x9xf32, #tpu.memory_space<smem>>
    %156 = vector.broadcast %155 : f32 to vector<8x1024xf32>
    %157 = arith.mulf %154, %156 : vector<8x1024xf32>
    %158 = arith.addf %153, %157 : vector<8x1024xf32>
    %c1022_i32_77 = arith.constant 1022 : i32
    %159 = tpu.dynamic_rotate %0 by %c1022_i32_77 dim 1 : vector<8x1024xf32>, i32 -> vector<8x1024xf32>
    %c3_78 = arith.constant 3 : index
    %c2_79 = arith.constant 2 : index
    %160 = memref.load %arg1[%c3_78, %c2_79] : memref<8x9xf32, #tpu.memory_space<smem>>
    %161 = vector.broadcast %160 : f32 to vector<8x1024xf32>
    %162 = arith.mulf %159, %161 : vector<8x1024xf32>
    %163 = arith.addf %158, %162 : vector<8x1024xf32>
    %c994_i32_80 = arith.constant 994 : i32
    %164 = tpu.dynamic_rotate %0 by %c994_i32_80 dim 1 : vector<8x1024xf32>, i32 -> vector<8x1024xf32>
    %c3_81 = arith.constant 3 : index
    %c3_82 = arith.constant 3 : index
    %165 = memref.load %arg1[%c3_81, %c3_82] : memref<8x9xf32, #tpu.memory_space<smem>>
    %166 = vector.broadcast %165 : f32 to vector<8x1024xf32>
    %167 = arith.mulf %164, %166 : vector<8x1024xf32>
    %168 = arith.addf %163, %167 : vector<8x1024xf32>
    %c993_i32_83 = arith.constant 993 : i32
    %169 = tpu.dynamic_rotate %0 by %c993_i32_83 dim 1 : vector<8x1024xf32>, i32 -> vector<8x1024xf32>
    %c3_84 = arith.constant 3 : index
    %c4_85 = arith.constant 4 : index
    %170 = memref.load %arg1[%c3_84, %c4_85] : memref<8x9xf32, #tpu.memory_space<smem>>
    %171 = vector.broadcast %170 : f32 to vector<8x1024xf32>
    %172 = arith.mulf %169, %171 : vector<8x1024xf32>
    %173 = arith.addf %168, %172 : vector<8x1024xf32>
    %c992_i32_86 = arith.constant 992 : i32
    %174 = tpu.dynamic_rotate %0 by %c992_i32_86 dim 1 : vector<8x1024xf32>, i32 -> vector<8x1024xf32>
    %c3_87 = arith.constant 3 : index
    %c5_88 = arith.constant 5 : index
    %175 = memref.load %arg1[%c3_87, %c5_88] : memref<8x9xf32, #tpu.memory_space<smem>>
    %176 = vector.broadcast %175 : f32 to vector<8x1024xf32>
    %177 = arith.mulf %174, %176 : vector<8x1024xf32>
    %178 = arith.addf %173, %177 : vector<8x1024xf32>
    %c964_i32_89 = arith.constant 964 : i32
    %179 = tpu.dynamic_rotate %0 by %c964_i32_89 dim 1 : vector<8x1024xf32>, i32 -> vector<8x1024xf32>
    %c3_90 = arith.constant 3 : index
    %c6_91 = arith.constant 6 : index
    %180 = memref.load %arg1[%c3_90, %c6_91] : memref<8x9xf32, #tpu.memory_space<smem>>
    %181 = vector.broadcast %180 : f32 to vector<8x1024xf32>
    %182 = arith.mulf %179, %181 : vector<8x1024xf32>
    %183 = arith.addf %178, %182 : vector<8x1024xf32>
    %c963_i32_92 = arith.constant 963 : i32
    %184 = tpu.dynamic_rotate %0 by %c963_i32_92 dim 1 : vector<8x1024xf32>, i32 -> vector<8x1024xf32>
    %c3_93 = arith.constant 3 : index
    %c7_94 = arith.constant 7 : index
    %185 = memref.load %arg1[%c3_93, %c7_94] : memref<8x9xf32, #tpu.memory_space<smem>>
    %186 = vector.broadcast %185 : f32 to vector<8x1024xf32>
    %187 = arith.mulf %184, %186 : vector<8x1024xf32>
    %188 = arith.addf %183, %187 : vector<8x1024xf32>
    %c962_i32_95 = arith.constant 962 : i32
    %189 = tpu.dynamic_rotate %0 by %c962_i32_95 dim 1 : vector<8x1024xf32>, i32 -> vector<8x1024xf32>
    %c3_96 = arith.constant 3 : index
    %c8_97 = arith.constant 8 : index
    %190 = memref.load %arg1[%c3_96, %c8_97] : memref<8x9xf32, #tpu.memory_space<smem>>
    %191 = vector.broadcast %190 : f32 to vector<8x1024xf32>
    %192 = arith.mulf %189, %191 : vector<8x1024xf32>
    %193 = arith.addf %188, %192 : vector<8x1024xf32>
    %c3_98 = arith.constant 3 : index
    %194 = memref.load %arg2[%c3_98] : memref<8xf32, #tpu.memory_space<smem>>
    %195 = vector.broadcast %194 : f32 to vector<8x1024xf32>
    %196 = arith.addf %193, %195 : vector<8x1024xf32>
    %cst_99 = arith.constant 0.000000e+00 : f32
    %197 = vector.broadcast %cst_99 : f32 to vector<8x1024xf32>
    %198 = arith.maximumf %196, %197 : vector<8x1024xf32>
    %199 = arith.truncf %198 : vector<8x1024xf32> to vector<8x1024xbf16>
    %c0_100 = arith.constant 0 : index
    %c3072 = arith.constant 3072 : index
    %200 = vector.load %arg7[%c0_100, %c3072] : memref<8x8192xbf16, #tpu.memory_space<vmem>>, vector<8x1024xbf16>
    tpu.vector_store %arg7[%c0_100, %c3072], %199 {strides = array<i32>} : memref<8x8192xbf16, #tpu.memory_space<vmem>>, vector<8x1024xbf16>,
    %c4_101 = arith.constant 4 : index
    %c0_102 = arith.constant 0 : index
    %201 = memref.load %arg1[%c4_101, %c0_102] : memref<8x9xf32, #tpu.memory_space<smem>>
    %202 = vector.broadcast %201 : f32 to vector<8x1024xf32>
    %203 = arith.mulf %0, %202 : vector<8x1024xf32>
    %c1023_i32_103 = arith.constant 1023 : i32
    %204 = tpu.dynamic_rotate %0 by %c1023_i32_103 dim 1 : vector<8x1024xf32>, i32 -> vector<8x1024xf32>
    %c4_104 = arith.constant 4 : index
    %c1_105 = arith.constant 1 : index
    %205 = memref.load %arg1[%c4_104, %c1_105] : memref<8x9xf32, #tpu.memory_space<smem>>
    %206 = vector.broadcast %205 : f32 to vector<8x1024xf32>
    %207 = arith.mulf %204, %206 : vector<8x1024xf32>
    %208 = arith.addf %203, %207 : vector<8x1024xf32>
    %c1022_i32_106 = arith.constant 1022 : i32
    %209 = tpu.dynamic_rotate %0 by %c1022_i32_106 dim 1 : vector<8x1024xf32>, i32 -> vector<8x1024xf32>
    %c4_107 = arith.constant 4 : index
    %c2_108 = arith.constant 2 : index
    %210 = memref.load %arg1[%c4_107, %c2_108] : memref<8x9xf32, #tpu.memory_space<smem>>
    %211 = vector.broadcast %210 : f32 to vector<8x1024xf32>
    %212 = arith.mulf %209, %211 : vector<8x1024xf32>
    %213 = arith.addf %208, %212 : vector<8x1024xf32>
    %c994_i32_109 = arith.constant 994 : i32
    %214 = tpu.dynamic_rotate %0 by %c994_i32_109 dim 1 : vector<8x1024xf32>, i32 -> vector<8x1024xf32>
    %c4_110 = arith.constant 4 : index
    %c3_111 = arith.constant 3 : index
    %215 = memref.load %arg1[%c4_110, %c3_111] : memref<8x9xf32, #tpu.memory_space<smem>>
    %216 = vector.broadcast %215 : f32 to vector<8x1024xf32>
    %217 = arith.mulf %214, %216 : vector<8x1024xf32>
    %218 = arith.addf %213, %217 : vector<8x1024xf32>
    %c993_i32_112 = arith.constant 993 : i32
    %219 = tpu.dynamic_rotate %0 by %c993_i32_112 dim 1 : vector<8x1024xf32>, i32 -> vector<8x1024xf32>
    %c4_113 = arith.constant 4 : index
    %c4_114 = arith.constant 4 : index
    %220 = memref.load %arg1[%c4_113, %c4_114] : memref<8x9xf32, #tpu.memory_space<smem>>
    %221 = vector.broadcast %220 : f32 to vector<8x1024xf32>
    %222 = arith.mulf %219, %221 : vector<8x1024xf32>
    %223 = arith.addf %218, %222 : vector<8x1024xf32>
    %c992_i32_115 = arith.constant 992 : i32
    %224 = tpu.dynamic_rotate %0 by %c992_i32_115 dim 1 : vector<8x1024xf32>, i32 -> vector<8x1024xf32>
    %c4_116 = arith.constant 4 : index
    %c5_117 = arith.constant 5 : index
    %225 = memref.load %arg1[%c4_116, %c5_117] : memref<8x9xf32, #tpu.memory_space<smem>>
    %226 = vector.broadcast %225 : f32 to vector<8x1024xf32>
    %227 = arith.mulf %224, %226 : vector<8x1024xf32>
    %228 = arith.addf %223, %227 : vector<8x1024xf32>
    %c964_i32_118 = arith.constant 964 : i32
    %229 = tpu.dynamic_rotate %0 by %c964_i32_118 dim 1 : vector<8x1024xf32>, i32 -> vector<8x1024xf32>
    %c4_119 = arith.constant 4 : index
    %c6_120 = arith.constant 6 : index
    %230 = memref.load %arg1[%c4_119, %c6_120] : memref<8x9xf32, #tpu.memory_space<smem>>
    %231 = vector.broadcast %230 : f32 to vector<8x1024xf32>
    %232 = arith.mulf %229, %231 : vector<8x1024xf32>
    %233 = arith.addf %228, %232 : vector<8x1024xf32>
    %c963_i32_121 = arith.constant 963 : i32
    %234 = tpu.dynamic_rotate %0 by %c963_i32_121 dim 1 : vector<8x1024xf32>, i32 -> vector<8x1024xf32>
    %c4_122 = arith.constant 4 : index
    %c7_123 = arith.constant 7 : index
    %235 = memref.load %arg1[%c4_122, %c7_123] : memref<8x9xf32, #tpu.memory_space<smem>>
    %236 = vector.broadcast %235 : f32 to vector<8x1024xf32>
    %237 = arith.mulf %234, %236 : vector<8x1024xf32>
    %238 = arith.addf %233, %237 : vector<8x1024xf32>
    %c962_i32_124 = arith.constant 962 : i32
    %239 = tpu.dynamic_rotate %0 by %c962_i32_124 dim 1 : vector<8x1024xf32>, i32 -> vector<8x1024xf32>
    %c4_125 = arith.constant 4 : index
    %c8_126 = arith.constant 8 : index
    %240 = memref.load %arg1[%c4_125, %c8_126] : memref<8x9xf32, #tpu.memory_space<smem>>
    %241 = vector.broadcast %240 : f32 to vector<8x1024xf32>
    %242 = arith.mulf %239, %241 : vector<8x1024xf32>
    %243 = arith.addf %238, %242 : vector<8x1024xf32>
    %c4_127 = arith.constant 4 : index
    %244 = memref.load %arg2[%c4_127] : memref<8xf32, #tpu.memory_space<smem>>
    %245 = vector.broadcast %244 : f32 to vector<8x1024xf32>
    %246 = arith.addf %243, %245 : vector<8x1024xf32>
    %cst_128 = arith.constant 0.000000e+00 : f32
    %247 = vector.broadcast %cst_128 : f32 to vector<8x1024xf32>
    %248 = arith.maximumf %246, %247 : vector<8x1024xf32>
    %249 = arith.truncf %248 : vector<8x1024xf32> to vector<8x1024xbf16>
    %c0_129 = arith.constant 0 : index
    %c4096 = arith.constant 4096 : index
    %250 = vector.load %arg7[%c0_129, %c4096] : memref<8x8192xbf16, #tpu.memory_space<vmem>>, vector<8x1024xbf16>
    tpu.vector_store %arg7[%c0_129, %c4096], %249 {strides = array<i32>} : memref<8x8192xbf16, #tpu.memory_space<vmem>>, vector<8x1024xbf16>,
    %c5_130 = arith.constant 5 : index
    %c0_131 = arith.constant 0 : index
    %251 = memref.load %arg1[%c5_130, %c0_131] : memref<8x9xf32, #tpu.memory_space<smem>>
    %252 = vector.broadcast %251 : f32 to vector<8x1024xf32>
    %253 = arith.mulf %0, %252 : vector<8x1024xf32>
    %c1023_i32_132 = arith.constant 1023 : i32
    %254 = tpu.dynamic_rotate %0 by %c1023_i32_132 dim 1 : vector<8x1024xf32>, i32 -> vector<8x1024xf32>
    %c5_133 = arith.constant 5 : index
    %c1_134 = arith.constant 1 : index
    %255 = memref.load %arg1[%c5_133, %c1_134] : memref<8x9xf32, #tpu.memory_space<smem>>
    %256 = vector.broadcast %255 : f32 to vector<8x1024xf32>
    %257 = arith.mulf %254, %256 : vector<8x1024xf32>
    %258 = arith.addf %253, %257 : vector<8x1024xf32>
    %c1022_i32_135 = arith.constant 1022 : i32
    %259 = tpu.dynamic_rotate %0 by %c1022_i32_135 dim 1 : vector<8x1024xf32>, i32 -> vector<8x1024xf32>
    %c5_136 = arith.constant 5 : index
    %c2_137 = arith.constant 2 : index
    %260 = memref.load %arg1[%c5_136, %c2_137] : memref<8x9xf32, #tpu.memory_space<smem>>
    %261 = vector.broadcast %260 : f32 to vector<8x1024xf32>
    %262 = arith.mulf %259, %261 : vector<8x1024xf32>
    %263 = arith.addf %258, %262 : vector<8x1024xf32>
    %c994_i32_138 = arith.constant 994 : i32
    %264 = tpu.dynamic_rotate %0 by %c994_i32_138 dim 1 : vector<8x1024xf32>, i32 -> vector<8x1024xf32>
    %c5_139 = arith.constant 5 : index
    %c3_140 = arith.constant 3 : index
    %265 = memref.load %arg1[%c5_139, %c3_140] : memref<8x9xf32, #tpu.memory_space<smem>>
    %266 = vector.broadcast %265 : f32 to vector<8x1024xf32>
    %267 = arith.mulf %264, %266 : vector<8x1024xf32>
    %268 = arith.addf %263, %267 : vector<8x1024xf32>
    %c993_i32_141 = arith.constant 993 : i32
    %269 = tpu.dynamic_rotate %0 by %c993_i32_141 dim 1 : vector<8x1024xf32>, i32 -> vector<8x1024xf32>
    %c5_142 = arith.constant 5 : index
    %c4_143 = arith.constant 4 : index
    %270 = memref.load %arg1[%c5_142, %c4_143] : memref<8x9xf32, #tpu.memory_space<smem>>
    %271 = vector.broadcast %270 : f32 to vector<8x1024xf32>
    %272 = arith.mulf %269, %271 : vector<8x1024xf32>
    %273 = arith.addf %268, %272 : vector<8x1024xf32>
    %c992_i32_144 = arith.constant 992 : i32
    %274 = tpu.dynamic_rotate %0 by %c992_i32_144 dim 1 : vector<8x1024xf32>, i32 -> vector<8x1024xf32>
    %c5_145 = arith.constant 5 : index
    %c5_146 = arith.constant 5 : index
    %275 = memref.load %arg1[%c5_145, %c5_146] : memref<8x9xf32, #tpu.memory_space<smem>>
    %276 = vector.broadcast %275 : f32 to vector<8x1024xf32>
    %277 = arith.mulf %274, %276 : vector<8x1024xf32>
    %278 = arith.addf %273, %277 : vector<8x1024xf32>
    %c964_i32_147 = arith.constant 964 : i32
    %279 = tpu.dynamic_rotate %0 by %c964_i32_147 dim 1 : vector<8x1024xf32>, i32 -> vector<8x1024xf32>
    %c5_148 = arith.constant 5 : index
    %c6_149 = arith.constant 6 : index
    %280 = memref.load %arg1[%c5_148, %c6_149] : memref<8x9xf32, #tpu.memory_space<smem>>
    %281 = vector.broadcast %280 : f32 to vector<8x1024xf32>
    %282 = arith.mulf %279, %281 : vector<8x1024xf32>
    %283 = arith.addf %278, %282 : vector<8x1024xf32>
    %c963_i32_150 = arith.constant 963 : i32
    %284 = tpu.dynamic_rotate %0 by %c963_i32_150 dim 1 : vector<8x1024xf32>, i32 -> vector<8x1024xf32>
    %c5_151 = arith.constant 5 : index
    %c7_152 = arith.constant 7 : index
    %285 = memref.load %arg1[%c5_151, %c7_152] : memref<8x9xf32, #tpu.memory_space<smem>>
    %286 = vector.broadcast %285 : f32 to vector<8x1024xf32>
    %287 = arith.mulf %284, %286 : vector<8x1024xf32>
    %288 = arith.addf %283, %287 : vector<8x1024xf32>
    %c962_i32_153 = arith.constant 962 : i32
    %289 = tpu.dynamic_rotate %0 by %c962_i32_153 dim 1 : vector<8x1024xf32>, i32 -> vector<8x1024xf32>
    %c5_154 = arith.constant 5 : index
    %c8_155 = arith.constant 8 : index
    %290 = memref.load %arg1[%c5_154, %c8_155] : memref<8x9xf32, #tpu.memory_space<smem>>
    %291 = vector.broadcast %290 : f32 to vector<8x1024xf32>
    %292 = arith.mulf %289, %291 : vector<8x1024xf32>
    %293 = arith.addf %288, %292 : vector<8x1024xf32>
    %c5_156 = arith.constant 5 : index
    %294 = memref.load %arg2[%c5_156] : memref<8xf32, #tpu.memory_space<smem>>
    %295 = vector.broadcast %294 : f32 to vector<8x1024xf32>
    %296 = arith.addf %293, %295 : vector<8x1024xf32>
    %cst_157 = arith.constant 0.000000e+00 : f32
    %297 = vector.broadcast %cst_157 : f32 to vector<8x1024xf32>
    %298 = arith.maximumf %296, %297 : vector<8x1024xf32>
    %299 = arith.truncf %298 : vector<8x1024xf32> to vector<8x1024xbf16>
    %c0_158 = arith.constant 0 : index
    %c5120 = arith.constant 5120 : index
    %300 = vector.load %arg7[%c0_158, %c5120] : memref<8x8192xbf16, #tpu.memory_space<vmem>>, vector<8x1024xbf16>
    tpu.vector_store %arg7[%c0_158, %c5120], %299 {strides = array<i32>} : memref<8x8192xbf16, #tpu.memory_space<vmem>>, vector<8x1024xbf16>,
    %c6_159 = arith.constant 6 : index
    %c0_160 = arith.constant 0 : index
    %301 = memref.load %arg1[%c6_159, %c0_160] : memref<8x9xf32, #tpu.memory_space<smem>>
    %302 = vector.broadcast %301 : f32 to vector<8x1024xf32>
    %303 = arith.mulf %0, %302 : vector<8x1024xf32>
    %c1023_i32_161 = arith.constant 1023 : i32
    %304 = tpu.dynamic_rotate %0 by %c1023_i32_161 dim 1 : vector<8x1024xf32>, i32 -> vector<8x1024xf32>
    %c6_162 = arith.constant 6 : index
    %c1_163 = arith.constant 1 : index
    %305 = memref.load %arg1[%c6_162, %c1_163] : memref<8x9xf32, #tpu.memory_space<smem>>
    %306 = vector.broadcast %305 : f32 to vector<8x1024xf32>
    %307 = arith.mulf %304, %306 : vector<8x1024xf32>
    %308 = arith.addf %303, %307 : vector<8x1024xf32>
    %c1022_i32_164 = arith.constant 1022 : i32
    %309 = tpu.dynamic_rotate %0 by %c1022_i32_164 dim 1 : vector<8x1024xf32>, i32 -> vector<8x1024xf32>
    %c6_165 = arith.constant 6 : index
    %c2_166 = arith.constant 2 : index
    %310 = memref.load %arg1[%c6_165, %c2_166] : memref<8x9xf32, #tpu.memory_space<smem>>
    %311 = vector.broadcast %310 : f32 to vector<8x1024xf32>
    %312 = arith.mulf %309, %311 : vector<8x1024xf32>
    %313 = arith.addf %308, %312 : vector<8x1024xf32>
    %c994_i32_167 = arith.constant 994 : i32
    %314 = tpu.dynamic_rotate %0 by %c994_i32_167 dim 1 : vector<8x1024xf32>, i32 -> vector<8x1024xf32>
    %c6_168 = arith.constant 6 : index
    %c3_169 = arith.constant 3 : index
    %315 = memref.load %arg1[%c6_168, %c3_169] : memref<8x9xf32, #tpu.memory_space<smem>>
    %316 = vector.broadcast %315 : f32 to vector<8x1024xf32>
    %317 = arith.mulf %314, %316 : vector<8x1024xf32>
    %318 = arith.addf %313, %317 : vector<8x1024xf32>
    %c993_i32_170 = arith.constant 993 : i32
    %319 = tpu.dynamic_rotate %0 by %c993_i32_170 dim 1 : vector<8x1024xf32>, i32 -> vector<8x1024xf32>
    %c6_171 = arith.constant 6 : index
    %c4_172 = arith.constant 4 : index
    %320 = memref.load %arg1[%c6_171, %c4_172] : memref<8x9xf32, #tpu.memory_space<smem>>
    %321 = vector.broadcast %320 : f32 to vector<8x1024xf32>
    %322 = arith.mulf %319, %321 : vector<8x1024xf32>
    %323 = arith.addf %318, %322 : vector<8x1024xf32>
    %c992_i32_173 = arith.constant 992 : i32
    %324 = tpu.dynamic_rotate %0 by %c992_i32_173 dim 1 : vector<8x1024xf32>, i32 -> vector<8x1024xf32>
    %c6_174 = arith.constant 6 : index
    %c5_175 = arith.constant 5 : index
    %325 = memref.load %arg1[%c6_174, %c5_175] : memref<8x9xf32, #tpu.memory_space<smem>>
    %326 = vector.broadcast %325 : f32 to vector<8x1024xf32>
    %327 = arith.mulf %324, %326 : vector<8x1024xf32>
    %328 = arith.addf %323, %327 : vector<8x1024xf32>
    %c964_i32_176 = arith.constant 964 : i32
    %329 = tpu.dynamic_rotate %0 by %c964_i32_176 dim 1 : vector<8x1024xf32>, i32 -> vector<8x1024xf32>
    %c6_177 = arith.constant 6 : index
    %c6_178 = arith.constant 6 : index
    %330 = memref.load %arg1[%c6_177, %c6_178] : memref<8x9xf32, #tpu.memory_space<smem>>
    %331 = vector.broadcast %330 : f32 to vector<8x1024xf32>
    %332 = arith.mulf %329, %331 : vector<8x1024xf32>
    %333 = arith.addf %328, %332 : vector<8x1024xf32>
    %c963_i32_179 = arith.constant 963 : i32
    %334 = tpu.dynamic_rotate %0 by %c963_i32_179 dim 1 : vector<8x1024xf32>, i32 -> vector<8x1024xf32>
    %c6_180 = arith.constant 6 : index
    %c7_181 = arith.constant 7 : index
    %335 = memref.load %arg1[%c6_180, %c7_181] : memref<8x9xf32, #tpu.memory_space<smem>>
    %336 = vector.broadcast %335 : f32 to vector<8x1024xf32>
    %337 = arith.mulf %334, %336 : vector<8x1024xf32>
    %338 = arith.addf %333, %337 : vector<8x1024xf32>
    %c962_i32_182 = arith.constant 962 : i32
    %339 = tpu.dynamic_rotate %0 by %c962_i32_182 dim 1 : vector<8x1024xf32>, i32 -> vector<8x1024xf32>
    %c6_183 = arith.constant 6 : index
    %c8_184 = arith.constant 8 : index
    %340 = memref.load %arg1[%c6_183, %c8_184] : memref<8x9xf32, #tpu.memory_space<smem>>
    %341 = vector.broadcast %340 : f32 to vector<8x1024xf32>
    %342 = arith.mulf %339, %341 : vector<8x1024xf32>
    %343 = arith.addf %338, %342 : vector<8x1024xf32>
    %c6_185 = arith.constant 6 : index
    %344 = memref.load %arg2[%c6_185] : memref<8xf32, #tpu.memory_space<smem>>
    %345 = vector.broadcast %344 : f32 to vector<8x1024xf32>
    %346 = arith.addf %343, %345 : vector<8x1024xf32>
    %cst_186 = arith.constant 0.000000e+00 : f32
    %347 = vector.broadcast %cst_186 : f32 to vector<8x1024xf32>
    %348 = arith.maximumf %346, %347 : vector<8x1024xf32>
    %349 = arith.truncf %348 : vector<8x1024xf32> to vector<8x1024xbf16>
    %c0_187 = arith.constant 0 : index
    %c6144 = arith.constant 6144 : index
    %350 = vector.load %arg7[%c0_187, %c6144] : memref<8x8192xbf16, #tpu.memory_space<vmem>>, vector<8x1024xbf16>
    tpu.vector_store %arg7[%c0_187, %c6144], %349 {strides = array<i32>} : memref<8x8192xbf16, #tpu.memory_space<vmem>>, vector<8x1024xbf16>,
    %c7_188 = arith.constant 7 : index
    %c0_189 = arith.constant 0 : index
    %351 = memref.load %arg1[%c7_188, %c0_189] : memref<8x9xf32, #tpu.memory_space<smem>>
    %352 = vector.broadcast %351 : f32 to vector<8x1024xf32>
    %353 = arith.mulf %0, %352 : vector<8x1024xf32>
    %c1023_i32_190 = arith.constant 1023 : i32
    %354 = tpu.dynamic_rotate %0 by %c1023_i32_190 dim 1 : vector<8x1024xf32>, i32 -> vector<8x1024xf32>
    %c7_191 = arith.constant 7 : index
    %c1_192 = arith.constant 1 : index
    %355 = memref.load %arg1[%c7_191, %c1_192] : memref<8x9xf32, #tpu.memory_space<smem>>
    %356 = vector.broadcast %355 : f32 to vector<8x1024xf32>
    %357 = arith.mulf %354, %356 : vector<8x1024xf32>
    %358 = arith.addf %353, %357 : vector<8x1024xf32>
    %c1022_i32_193 = arith.constant 1022 : i32
    %359 = tpu.dynamic_rotate %0 by %c1022_i32_193 dim 1 : vector<8x1024xf32>, i32 -> vector<8x1024xf32>
    %c7_194 = arith.constant 7 : index
    %c2_195 = arith.constant 2 : index
    %360 = memref.load %arg1[%c7_194, %c2_195] : memref<8x9xf32, #tpu.memory_space<smem>>
    %361 = vector.broadcast %360 : f32 to vector<8x1024xf32>
    %362 = arith.mulf %359, %361 : vector<8x1024xf32>
    %363 = arith.addf %358, %362 : vector<8x1024xf32>
    %c994_i32_196 = arith.constant 994 : i32
    %364 = tpu.dynamic_rotate %0 by %c994_i32_196 dim 1 : vector<8x1024xf32>, i32 -> vector<8x1024xf32>
    %c7_197 = arith.constant 7 : index
    %c3_198 = arith.constant 3 : index
    %365 = memref.load %arg1[%c7_197, %c3_198] : memref<8x9xf32, #tpu.memory_space<smem>>
    %366 = vector.broadcast %365 : f32 to vector<8x1024xf32>
    %367 = arith.mulf %364, %366 : vector<8x1024xf32>
    %368 = arith.addf %363, %367 : vector<8x1024xf32>
    %c993_i32_199 = arith.constant 993 : i32
    %369 = tpu.dynamic_rotate %0 by %c993_i32_199 dim 1 : vector<8x1024xf32>, i32 -> vector<8x1024xf32>
    %c7_200 = arith.constant 7 : index
    %c4_201 = arith.constant 4 : index
    %370 = memref.load %arg1[%c7_200, %c4_201] : memref<8x9xf32, #tpu.memory_space<smem>>
    %371 = vector.broadcast %370 : f32 to vector<8x1024xf32>
    %372 = arith.mulf %369, %371 : vector<8x1024xf32>
    %373 = arith.addf %368, %372 : vector<8x1024xf32>
    %c992_i32_202 = arith.constant 992 : i32
    %374 = tpu.dynamic_rotate %0 by %c992_i32_202 dim 1 : vector<8x1024xf32>, i32 -> vector<8x1024xf32>
    %c7_203 = arith.constant 7 : index
    %c5_204 = arith.constant 5 : index
    %375 = memref.load %arg1[%c7_203, %c5_204] : memref<8x9xf32, #tpu.memory_space<smem>>
    %376 = vector.broadcast %375 : f32 to vector<8x1024xf32>
    %377 = arith.mulf %374, %376 : vector<8x1024xf32>
    %378 = arith.addf %373, %377 : vector<8x1024xf32>
    %c964_i32_205 = arith.constant 964 : i32
    %379 = tpu.dynamic_rotate %0 by %c964_i32_205 dim 1 : vector<8x1024xf32>, i32 -> vector<8x1024xf32>
    %c7_206 = arith.constant 7 : index
    %c6_207 = arith.constant 6 : index
    %380 = memref.load %arg1[%c7_206, %c6_207] : memref<8x9xf32, #tpu.memory_space<smem>>
    %381 = vector.broadcast %380 : f32 to vector<8x1024xf32>
    %382 = arith.mulf %379, %381 : vector<8x1024xf32>
    %383 = arith.addf %378, %382 : vector<8x1024xf32>
    %c963_i32_208 = arith.constant 963 : i32
    %384 = tpu.dynamic_rotate %0 by %c963_i32_208 dim 1 : vector<8x1024xf32>, i32 -> vector<8x1024xf32>
    %c7_209 = arith.constant 7 : index
    %c7_210 = arith.constant 7 : index
    %385 = memref.load %arg1[%c7_209, %c7_210] : memref<8x9xf32, #tpu.memory_space<smem>>
    %386 = vector.broadcast %385 : f32 to vector<8x1024xf32>
    %387 = arith.mulf %384, %386 : vector<8x1024xf32>
    %388 = arith.addf %383, %387 : vector<8x1024xf32>
    %c962_i32_211 = arith.constant 962 : i32
    %389 = tpu.dynamic_rotate %0 by %c962_i32_211 dim 1 : vector<8x1024xf32>, i32 -> vector<8x1024xf32>
    %c7_212 = arith.constant 7 : index
    %c8_213 = arith.constant 8 : index
    %390 = memref.load %arg1[%c7_212, %c8_213] : memref<8x9xf32, #tpu.memory_space<smem>>
    %391 = vector.broadcast %390 : f32 to vector<8x1024xf32>
    %392 = arith.mulf %389, %391 : vector<8x1024xf32>
    %393 = arith.addf %388, %392 : vector<8x1024xf32>
    %c7_214 = arith.constant 7 : index
    %394 = memref.load %arg2[%c7_214] : memref<8xf32, #tpu.memory_space<smem>>
    %395 = vector.broadcast %394 : f32 to vector<8x1024xf32>
    %396 = arith.addf %393, %395 : vector<8x1024xf32>
    %cst_215 = arith.constant 0.000000e+00 : f32
    %397 = vector.broadcast %cst_215 : f32 to vector<8x1024xf32>
    %398 = arith.maximumf %396, %397 : vector<8x1024xf32>
    %399 = arith.truncf %398 : vector<8x1024xf32> to vector<8x1024xbf16>
    %c0_216 = arith.constant 0 : index
    %c7168 = arith.constant 7168 : index
    %400 = vector.load %arg7[%c0_216, %c7168] : memref<8x8192xbf16, #tpu.memory_space<vmem>>, vector<8x1024xbf16>
    tpu.vector_store %arg7[%c0_216, %c7168], %399 {strides = array<i32>} : memref<8x8192xbf16, #tpu.memory_space<vmem>>, vector<8x1024xbf16>,
    %c0_217 = arith.constant 0 : index
    %c0_218 = arith.constant 0 : index
    %401 = vector.load %arg7[%c0_217, %c0_218] : memref<8x8192xbf16, #tpu.memory_space<vmem>>, vector<8x8192xbf16>
    %c0_219 = arith.constant 0 : index
    %c0_220 = arith.constant 0 : index
    %402 = vector.load %arg4[%c0_219, %c0_220] : memref<8192x128xbf16, #tpu.memory_space<vmem>>, vector<8192x128xbf16>
    %cst_221 = arith.constant dense<0.000000e+00> : vector<8x128xf32>
    %403 = tpu.matmul %401, %402, %cst_221 {dimension_numbers = #tpu.dot_dimension_numbers<[1], [0], [0], [1], [0, 0, 1, 1], [], []>} : vector<8x8192xbf16>, vector<8192x128xbf16>, vector<8x128xf32> -> vector<8x128xf32>
    %c0_222 = arith.constant 0 : index
    %c0_223 = arith.constant 0 : index
    %404 = vector.load %arg5[%c0_222, %c0_223] : memref<1x128xf32, #tpu.memory_space<vmem>>, vector<1x128xf32>
    %405 = vector.broadcast %404 : vector<1x128xf32> to vector<8x128xf32>
    %406 = arith.addf %403, %405 : vector<8x128xf32>
    %c0_224 = arith.constant 0 : index
    %c0_225 = arith.constant 0 : index
    %407 = vector.load %arg6[%c0_224, %c0_225] : memref<8x128xf32, #tpu.memory_space<vmem>>, vector<8x128xf32>
    tpu.vector_store %arg6[%c0_224, %c0_225], %406 {strides = array<i32>} : memref<8x128xf32, #tpu.memory_space<vmem>>, vector<8x128xf32>,
    return
  }
  func.func @transform_0(%arg0: i32) -> (i32, i32) {
    %c0_i32 = arith.constant 0 : i32
    %c0_i32_0 = arith.constant 0 : i32
    %c0_i32_1 = arith.constant 0 : i32
    return %c0_i32, %c0_i32_0 : i32, i32
  }
  func.func @transform_1(%arg0: i32) -> i32 {
    %c0_i32 = arith.constant 0 : i32
    %c0_i32_0 = arith.constant 0 : i32
    return %c0_i32 : i32
  }
  func.func @transform_2(%arg0: i32) -> (i32, i32) {
    %c0_i32 = arith.constant 0 : i32
    %c0_i32_0 = arith.constant 0 : i32
    return %arg0, %c0_i32 : i32, i32
  }
  func.func @transform_3(%arg0: i32) -> (i32, i32) {
    %c0_i32 = arith.constant 0 : i32
    %c0_i32_0 = arith.constant 0 : i32
    %c0_i32_1 = arith.constant 0 : i32
    return %c0_i32, %c0_i32_0 : i32, i32
  }
  func.func @transform_4(%arg0: i32) -> (i32, i32) {
    %c0_i32 = arith.constant 0 : i32
    %c0_i32_0 = arith.constant 0 : i32
    %c0_i32_1 = arith.constant 0 : i32
    return %c0_i32, %c0_i32_0 : i32, i32
  }
  func.func @transform_5(%arg0: i32) -> (i32, i32) {
    %c0_i32 = arith.constant 0 : i32
    %c0_i32_0 = arith.constant 0 : i32
    return %arg0, %c0_i32 : i32, i32
  }
}

</mosaic_0001>

<llo_original>
// kernel: tpu_custom_call.1
$region0: #{tpu_custom_call.1}
  #allocation0 [shape = 'u32[]', space=smem, size = 0x4, offset = 0x4, fixed_abs, tag = 'smem constant byte address 0x4 - core index']
  #allocation1 [shape = 'u32[144,128]{1,0:T(1,128)}', space=vmem, size = 0x12000, scoped, tag = 'internal scratch']
  #allocation2 [shape = 'bf16[8,8192]{1,0:T(8,128)(2,1)}', space=vmem, size = 0x20000, scoped, tag = 'scratch operand']
  %s0 = inlined_call_operand.hbm [shape: f32[8,9], index: 0, kind: input, shape index: {}]
  %s1 = inlined_call_operand.hbm [shape: f32[8], index: 1, kind: input, shape index: {}]
  %s2 = inlined_call_operand.hbm [shape: f32[8,1024], index: 2, kind: input, shape index: {}]
  %s3 = inlined_call_operand.hbm [shape: bf16[8192,128], index: 3, kind: input, shape index: {}]
  %s4 = inlined_call_operand.hbm [shape: f32[1,128], index: 4, kind: input, shape index: {}]
  %s5 = inlined_call_operand.hbm [shape: f32[8,128], index: 5, kind: output, shape index: {}]
  %s6 = sld [smem:[#allocation0]]
  $region50: #{tpu_custom_call.1} parent=0
    _
  %s8 = ssub.s32 1, %s6
  %s9 = scalar_select 0, %s8, %s6
  $region1: #{tpu_custom_call.1} parent=0
    #allocation3 [shape = 'u8[4096]{0}', space=smem, size = 0x1000, scoped, tag = 'input window, operand 0, single buffered']
    #allocation4 [shape = 's32[1]{0}', space=sflag, size = 0x4, scoped, tag = 'scoped memory for tpu_custom_call.1']
    #allocation5 [shape = 's32[1]{0}', space=sflag, size = 0x4, scoped, tag = 'scoped memory for tpu_custom_call.1']
    #allocation6 [shape = 's32[1]{0}', space=sflag, size = 0x4, scoped, tag = 'scoped memory for tpu_custom_call.1']
    #allocation7 [shape = 'u8[512]{0}', space=smem, size = 0x200, scoped, tag = 'input window, operand 1, single buffered']
    #allocation8 [shape = 's32[1]{0}', space=sflag, size = 0x4, scoped, tag = 'scoped memory for tpu_custom_call.1']
    #allocation9 [shape = 'u8[32768]{0}', space=vmem, size = 0x8000, scoped, tag = 'input window, operand 2, single buffered']
    #allocation10 [shape = 'u8[2097152]{0}', space=vmem, size = 0x200000, scoped, tag = 'input window, operand 3, single buffered']
    #allocation11 [shape = 's32[1]{0}', space=sflag, size = 0x4, scoped, tag = 'scoped memory for tpu_custom_call.1']
    #allocation12 [shape = 'u8[512]{0}', space=vmem, size = 0x400, scoped, tag = 'input window, operand 4, single buffered']
    #allocation13 [shape = 'u8[4096]{0}', space=vmem, size = 0x1000, scoped, tag = 'output window, operand 0, single buffered']
    %10 = vsyncpa [#allocation6], 0
    %11 = vsyncpa [#allocation8], 0
    %12 = vsyncpa [#allocation4], 0
    %13 = vsyncpa [#allocation11], 0
    %14 = vsyncpa [#allocation5], 0
    // Predicated region
    $region2: #{tpu_custom_call.1} parent=1 // pred_check
      _
    $region3: #{tpu_custom_call.1} parent=1 // pred_check_branch
      %16 = sbr.rel (0) target = $region5
    $region4: #{tpu_custom_call.1} parent=1 // pred_region
      %s18 = ssub.s32 128, 128
      %19 = vsyncadd [#allocation6], %s18
      %22 = dma.hbm_to_smem %s0, 128, [#allocation3], [#allocation6]
    $region5: #{tpu_custom_call.1} parent=1 // pred_fallthru
      _
    // Predicated region
    $region6: #{tpu_custom_call.1} parent=1 // pred_check
      _
    $region7: #{tpu_custom_call.1} parent=1 // pred_check_branch
      %24 = sbr.rel (0) target = $region9
    $region8: #{tpu_custom_call.1} parent=1 // pred_region
      %s26 = ssub.s32 16, 16
      %27 = vsyncadd [#allocation8], %s26
      %30 = dma.hbm_to_smem %s1, 16, [#allocation7], [#allocation8]
    $region9: #{tpu_custom_call.1} parent=1 // pred_fallthru
      _
    // Predicated region
    $region10: #{tpu_custom_call.1} parent=1 // pred_check
      _
    $region11: #{tpu_custom_call.1} parent=1 // pred_check_branch
      %32 = sbr.rel (0) target = $region13
    $region12: #{tpu_custom_call.1} parent=1 // pred_region
      %s34 = ssub.s32 1024, 1024
      %35 = vsyncadd [#allocation4], %s34
      %s37 = sshll.u32 [#allocation9], 4
      %s38 = int_to_ptr.vmem [resolvable:$true] %s37
      %40 = dma.hbm_to_vmem [thread:$0]  %s2, 1024, %s38, [#allocation4]
    $region13: #{tpu_custom_call.1} parent=1 // pred_fallthru
      _
    // Predicated region
    $region14: #{tpu_custom_call.1} parent=1 // pred_check
      _
    $region15: #{tpu_custom_call.1} parent=1 // pred_check_branch
      %42 = sbr.rel (0) target = $region17
    $region16: #{tpu_custom_call.1} parent=1 // pred_region
      %s44 = ssub.s32 65536, 65536
      %45 = vsyncadd [#allocation11], %s44
      %s46 = sshll.u32 [#allocation10], 4
      %s47 = int_to_ptr.vmem [resolvable:$true] %s46
      %52 = dma.hbm_to_vmem [thread:$0]  %s3, 65536, %s47, [#allocation11], 64, 64, 4
    $region17: #{tpu_custom_call.1} parent=1 // pred_fallthru
      _
    // Predicated region
    $region18: #{tpu_custom_call.1} parent=1 // pred_check
      _
    $region19: #{tpu_custom_call.1} parent=1 // pred_check_branch
      %54 = sbr.rel (0) target = $region21
    $region20: #{tpu_custom_call.1} parent=1 // pred_region
      %s56 = ssub.s32 16, 16
      %57 = vsyncadd [#allocation11], %s56
      %s59 = sshll.u32 [#allocation12], 4
      %s60 = int_to_ptr.vmem [resolvable:$true] %s59
      %62 = dma.hbm_to_vmem [thread:$0]  %s4, 16, %s60, [#allocation11]
    $region21: #{tpu_custom_call.1} parent=1 // pred_fallthru
      _
    // Predicated region
    $region22: #{tpu_custom_call.1} parent=1 // pred_check
      _
    $region23: #{tpu_custom_call.1} parent=1 // pred_check_branch
      %64 = sbr.rel (0) target = $region25
    $region24: #{tpu_custom_call.1} parent=1 // pred_region
      %65 = dma.done [#allocation6], 128
    $region25: #{tpu_custom_call.1} parent=1 // pred_fallthru
      _
    // Predicated region
    $region26: #{tpu_custom_call.1} parent=1 // pred_check
      _
    $region27: #{tpu_custom_call.1} parent=1 // pred_check_branch
      %67 = sbr.rel (0) target = $region29
    $region28: #{tpu_custom_call.1} parent=1 // pred_region
      %68 = dma.done [#allocation8], 16
    $region29: #{tpu_custom_call.1} parent=1 // pred_fallthru
      _
    // Predicated region
    $region30: #{tpu_custom_call.1} parent=1 // pred_check
      _
    $region31: #{tpu_custom_call.1} parent=1 // pred_check_branch
      %70 = sbr.rel (0) target = $region33
    $region32: #{tpu_custom_call.1} parent=1 // pred_region
      %71 = dma.done [#allocation4], 1024
    $region33: #{tpu_custom_call.1} parent=1 // pred_fallthru
      _
    // Predicated region
    $region34: #{tpu_custom_call.1} parent=1 // pred_check
      _
    $region35: #{tpu_custom_call.1} parent=1 // pred_check_branch
      %73 = sbr.rel (0) target = $region37
    $region36: #{tpu_custom_call.1} parent=1 // pred_region
      %74 = dma.done [#allocation11], 65536
    $region37: #{tpu_custom_call.1} parent=1 // pred_fallthru
      _
    // Predicated region
    $region38: #{tpu_custom_call.1} parent=1 // pred_check
      _
    $region39: #{tpu_custom_call.1} parent=1 // pred_check_branch
      %76 = sbr.rel (0) target = $region41
    $region40: #{tpu_custom_call.1} parent=1 // pred_region
      %77 = dma.done [#allocation11], 16
    $region41: #{tpu_custom_call.1} parent=1 // pred_fallthru
      _
    %78 = sfence
    %v80 = vld [vmem:[#allocation9] sm:$0xff]
    %v81 = vld [vmem:[#allocation9 + $0x8] sm:$0xff]
    %v82 = vld [vmem:[#allocation9 + $0x10] sm:$0xff]
    %v83 = vld [vmem:[#allocation9 + $0x18] sm:$0xff]
    %v84 = vld [vmem:[#allocation9 + $0x20] sm:$0xff]
    %v85 = vld [vmem:[#allocation9 + $0x28] sm:$0xff]
    %v86 = vld [vmem:[#allocation9 + $0x30] sm:$0xff]
    %v87 = vld [vmem:[#allocation9 + $0x38] sm:$0xff]
    %s88 = sld [smem:[#allocation3]]
    %v89 = vstv %s88
    %v90 = vmul.f32 %v80, %v89
    %v91 = vmul.f32 %v81, %v89
    %v92 = vmul.f32 %v82, %v89
    %v93 = vmul.f32 %v83, %v89
    %v94 = vmul.f32 %v84, %v89
    %v95 = vmul.f32 %v85, %v89
    %v96 = vmul.f32 %v86, %v89
    %v97 = vmul.f32 %v87, %v89
    %98 = vrot.lane.b32.xlu0 %v80, 127
    %v99 = vpop.permute.xlu0 %98
    %100 = vrot.lane.b32.xlu0 %v81, 127
    %v101 = vpop.permute.xlu0 %100
    %102 = vrot.lane.b32.xlu0 %v82, 127
    %v103 = vpop.permute.xlu0 %102
    %104 = vrot.lane.b32.xlu0 %v83, 127
    %v105 = vpop.permute.xlu0 %104
    %106 = vrot.lane.b32.xlu0 %v84, 127
    %v107 = vpop.permute.xlu0 %106
    %108 = vrot.lane.b32.xlu0 %v85, 127
    %v109 = vpop.permute.xlu0 %108
    %110 = vrot.lane.b32.xlu0 %v86, 127
    %v111 = vpop.permute.xlu0 %110
    %112 = vrot.lane.b32.xlu0 %v87, 127
    %v113 = vpop.permute.xlu0 %112
    %v114 = vlaneseq
    %v115 = vand.u32 %v114, 127
    %vm116 = vcmp.lt.s32.totalorder %v115, 127
    %v117 = vsel %vm116, %v111, %v113
    %v118 = vsel %vm116, %v109, %v111
    %v119 = vsel %vm116, %v107, %v109
    %v120 = vsel %vm116, %v105, %v107
    %v121 = vsel %vm116, %v103, %v105
    %v122 = vsel %vm116, %v101, %v103
    %v123 = vsel %vm116, %v99, %v101
    %v124 = vsel %vm116, %v113, %v99
    %s125 = sld [smem:[#allocation3 + $0x1]]
    %v126 = vstv %s125
    %v127 = vmul.f32 %v123, %v126
    %v128 = vmul.f32 %v122, %v126
    %v129 = vmul.f32 %v121, %v126
    %v130 = vmul.f32 %v120, %v126
    %v131 = vmul.f32 %v119, %v126
    %v132 = vmul.f32 %v118, %v126
    %v133 = vmul.f32 %v117, %v126
    %v134 = vmul.f32 %v124, %v126
    %v135 = vadd.f32 %v90, %v127
    %v136 = vadd.f32 %v91, %v128
    %v137 = vadd.f32 %v92, %v129
    %v138 = vadd.f32 %v93, %v130
    %v139 = vadd.f32 %v94, %v131
    %v140 = vadd.f32 %v95, %v132
    %v141 = vadd.f32 %v96, %v133
    %v142 = vadd.f32 %v97, %v134
    %143 = vrot.lane.b32.xlu0 %v80, 126
    %v144 = vpop.permute.xlu0 %143
    %145 = vrot.lane.b32.xlu0 %v81, 126
    %v146 = vpop.permute.xlu0 %145
    %147 = vrot.lane.b32.xlu0 %v82, 126
    %v148 = vpop.permute.xlu0 %147
    %149 = vrot.lane.b32.xlu0 %v83, 126
    %v150 = vpop.permute.xlu0 %149
    %151 = vrot.lane.b32.xlu0 %v84, 126
    %v152 = vpop.permute.xlu0 %151
    %153 = vrot.lane.b32.xlu0 %v85, 126
    %v154 = vpop.permute.xlu0 %153
    %155 = vrot.lane.b32.xlu0 %v86, 126
    %v156 = vpop.permute.xlu0 %155
    %157 = vrot.lane.b32.xlu0 %v87, 126
    %v158 = vpop.permute.xlu0 %157
    %vm159 = vcmp.lt.s32.totalorder %v115, 126
    %v160 = vsel %vm159, %v156, %v158
    %v161 = vsel %vm159, %v154, %v156
    %v162 = vsel %vm159, %v152, %v154
    %v163 = vsel %vm159, %v150, %v152
    %v164 = vsel %vm159, %v148, %v150
    %v165 = vsel %vm159, %v146, %v148
    %v166 = vsel %vm159, %v144, %v146
    %v167 = vsel %vm159, %v158, %v144
    %s168 = sld [smem:[#allocation3 + $0x2]]
    %v169 = vstv %s168
    %v170 = vmul.f32 %v166, %v169
    %v171 = vmul.f32 %v165, %v169
    %v172 = vmul.f32 %v164, %v169
    %v173 = vmul.f32 %v163, %v169
    %v174 = vmul.f32 %v162, %v169
    %v175 = vmul.f32 %v161, %v169
    %v176 = vmul.f32 %v160, %v169
    %v177 = vmul.f32 %v167, %v169
    %v178 = vadd.f32 %v135, %v170
    %v179 = vadd.f32 %v136, %v171
    %v180 = vadd.f32 %v137, %v172
    %v181 = vadd.f32 %v138, %v173
    %v182 = vadd.f32 %v139, %v174
    %v183 = vadd.f32 %v140, %v175
    %v184 = vadd.f32 %v141, %v176
    %v185 = vadd.f32 %v142, %v177
    %186 = vrot.lane.b32.xlu0 %v80, 98
    %v187 = vpop.permute.xlu0 %186
    %188 = vrot.lane.b32.xlu0 %v81, 98
    %v189 = vpop.permute.xlu0 %188
    %190 = vrot.lane.b32.xlu0 %v82, 98
    %v191 = vpop.permute.xlu0 %190
    %192 = vrot.lane.b32.xlu0 %v83, 98
    %v193 = vpop.permute.xlu0 %192
    %194 = vrot.lane.b32.xlu0 %v84, 98
    %v195 = vpop.permute.xlu0 %194
    %196 = vrot.lane.b32.xlu0 %v85, 98
    %v197 = vpop.permute.xlu0 %196
    %198 = vrot.lane.b32.xlu0 %v86, 98
    %v199 = vpop.permute.xlu0 %198
    %200 = vrot.lane.b32.xlu0 %v87, 98
    %v201 = vpop.permute.xlu0 %200
    %vm202 = vcmp.lt.s32.totalorder %v115, 98
    %v203 = vsel %vm202, %v199, %v201
    %v204 = vsel %vm202, %v197, %v199
    %v205 = vsel %vm202, %v195, %v197
    %v206 = vsel %vm202, %v193, %v195
    %v207 = vsel %vm202, %v191, %v193
    %v208 = vsel %vm202, %v189, %v191
    %v209 = vsel %vm202, %v187, %v189
    %v210 = vsel %vm202, %v201, %v187
    %s211 = sld [smem:[#allocation3 + $0x3]]
    %v212 = vstv %s211
    %v213 = vmul.f32 %v209, %v212
    %v214 = vmul.f32 %v208, %v212
    %v215 = vmul.f32 %v207, %v212
    %v216 = vmul.f32 %v206, %v212
    %v217 = vmul.f32 %v205, %v212
    %v218 = vmul.f32 %v204, %v212
    %v219 = vmul.f32 %v203, %v212
    %v220 = vmul.f32 %v210, %v212
    %v221 = vadd.f32 %v178, %v213
    %v222 = vadd.f32 %v179, %v214
    %v223 = vadd.f32 %v180, %v215
    %v224 = vadd.f32 %v181, %v216
    %v225 = vadd.f32 %v182, %v217
    %v226 = vadd.f32 %v183, %v218
    %v227 = vadd.f32 %v184, %v219
    %v228 = vadd.f32 %v185, %v220
    %229 = vrot.lane.b32.xlu0 %v80, 97
    %v230 = vpop.permute.xlu0 %229
    %231 = vrot.lane.b32.xlu0 %v81, 97
    %v232 = vpop.permute.xlu0 %231
    %233 = vrot.lane.b32.xlu0 %v82, 97
    %v234 = vpop.permute.xlu0 %233
    %235 = vrot.lane.b32.xlu0 %v83, 97
    %v236 = vpop.permute.xlu0 %235
    %237 = vrot.lane.b32.xlu0 %v84, 97
    %v238 = vpop.permute.xlu0 %237
    %239 = vrot.lane.b32.xlu0 %v85, 97
    %v240 = vpop.permute.xlu0 %239
    %241 = vrot.lane.b32.xlu0 %v86, 97
    %v242 = vpop.permute.xlu0 %241
    %243 = vrot.lane.b32.xlu0 %v87, 97
    %v244 = vpop.permute.xlu0 %243
    %vm245 = vcmp.lt.s32.totalorder %v115, 97
    %v246 = vsel %vm245, %v242, %v244
    %v247 = vsel %vm245, %v240, %v242
    %v248 = vsel %vm245, %v238, %v240
    %v249 = vsel %vm245, %v236, %v238
    %v250 = vsel %vm245, %v234, %v236
    %v251 = vsel %vm245, %v232, %v234
    %v252 = vsel %vm245, %v230, %v232
    %v253 = vsel %vm245, %v244, %v230
    %s254 = sld [smem:[#allocation3 + $0x4]]
    %v255 = vstv %s254
    %v256 = vmul.f32 %v252, %v255
    %v257 = vmul.f32 %v251, %v255
    %v258 = vmul.f32 %v250, %v255
    %v259 = vmul.f32 %v249, %v255
    %v260 = vmul.f32 %v248, %v255
    %v261 = vmul.f32 %v247, %v255
    %v262 = vmul.f32 %v246, %v255
    %v263 = vmul.f32 %v253, %v255
    %v264 = vadd.f32 %v221, %v256
    %v265 = vadd.f32 %v222, %v257
    %v266 = vadd.f32 %v223, %v258
    %v267 = vadd.f32 %v224, %v259
    %v268 = vadd.f32 %v225, %v260
    %v269 = vadd.f32 %v226, %v261
    %v270 = vadd.f32 %v227, %v262
    %v271 = vadd.f32 %v228, %v263
    %272 = vrot.lane.b32.xlu0 %v80, 96
    %v273 = vpop.permute.xlu0 %272
    %274 = vrot.lane.b32.xlu0 %v81, 96
    %v275 = vpop.permute.xlu0 %274
    %276 = vrot.lane.b32.xlu0 %v82, 96
    %v277 = vpop.permute.xlu0 %276
    %278 = vrot.lane.b32.xlu0 %v83, 96
    %v279 = vpop.permute.xlu0 %278
    %280 = vrot.lane.b32.xlu0 %v84, 96
    %v281 = vpop.permute.xlu0 %280
    %282 = vrot.lane.b32.xlu0 %v85, 96
    %v283 = vpop.permute.xlu0 %282
    %284 = vrot.lane.b32.xlu0 %v86, 96
    %v285 = vpop.permute.xlu0 %284
    %286 = vrot.lane.b32.xlu0 %v87, 96
    %v287 = vpop.permute.xlu0 %286
    %vm288 = vcmp.lt.s32.totalorder %v115, 96
    %v289 = vsel %vm288, %v285, %v287
    %v290 = vsel %vm288, %v283, %v285
    %v291 = vsel %vm288, %v281, %v283
    %v292 = vsel %vm288, %v279, %v281
    %v293 = vsel %vm288, %v277, %v279
    %v294 = vsel %vm288, %v275, %v277
    %v295 = vsel %vm288, %v273, %v275
    %v296 = vsel %vm288, %v287, %v273
    %s297 = sld [smem:[#allocation3 + $0x5]]
    %v298 = vstv %s297
    %v299 = vmul.f32 %v295, %v298
    %v300 = vmul.f32 %v294, %v298
    %v301 = vmul.f32 %v293, %v298
    %v302 = vmul.f32 %v292, %v298
    %v303 = vmul.f32 %v291, %v298
    %v304 = vmul.f32 %v290, %v298
    %v305 = vmul.f32 %v289, %v298
    %v306 = vmul.f32 %v296, %v298
    %v307 = vadd.f32 %v264, %v299
    %v308 = vadd.f32 %v265, %v300
    %v309 = vadd.f32 %v266, %v301
    %v310 = vadd.f32 %v267, %v302
    %v311 = vadd.f32 %v268, %v303
    %v312 = vadd.f32 %v269, %v304
    %v313 = vadd.f32 %v270, %v305
    %v314 = vadd.f32 %v271, %v306
    %315 = vrot.lane.b32.xlu0 %v80, 68
    %v316 = vpop.permute.xlu0 %315
    %317 = vrot.lane.b32.xlu0 %v81, 68
    %v318 = vpop.permute.xlu0 %317
    %319 = vrot.lane.b32.xlu0 %v82, 68
    %v320 = vpop.permute.xlu0 %319
    %321 = vrot.lane.b32.xlu0 %v83, 68
    %v322 = vpop.permute.xlu0 %321
    %323 = vrot.lane.b32.xlu0 %v84, 68
    %v324 = vpop.permute.xlu0 %323
    %325 = vrot.lane.b32.xlu0 %v85, 68
    %v326 = vpop.permute.xlu0 %325
    %327 = vrot.lane.b32.xlu0 %v86, 68
    %v328 = vpop.permute.xlu0 %327
    %329 = vrot.lane.b32.xlu0 %v87, 68
    %v330 = vpop.permute.xlu0 %329
    %vm331 = vcmp.lt.s32.totalorder %v115, 68
    %v332 = vsel %vm331, %v328, %v330
    %v333 = vsel %vm331, %v326, %v328
    %v334 = vsel %vm331, %v324, %v326
    %v335 = vsel %vm331, %v322, %v324
    %v336 = vsel %vm331, %v320, %v322
    %v337 = vsel %vm331, %v318, %v320
    %v338 = vsel %vm331, %v316, %v318
    %v339 = vsel %vm331, %v330, %v316
    %s340 = sld [smem:[#allocation3 + $0x6]]
    %v341 = vstv %s340
    %v342 = vmul.f32 %v338, %v341
    %v343 = vmul.f32 %v337, %v341
    %v344 = vmul.f32 %v336, %v341
    %v345 = vmul.f32 %v335, %v341
    %v346 = vmul.f32 %v334, %v341
    %v347 = vmul.f32 %v333, %v341
    %v348 = vmul.f32 %v332, %v341
    %v349 = vmul.f32 %v339, %v341
    %v350 = vadd.f32 %v307, %v342
    %v351 = vadd.f32 %v308, %v343
    %v352 = vadd.f32 %v309, %v344
    %v353 = vadd.f32 %v310, %v345
    %v354 = vadd.f32 %v311, %v346
    %v355 = vadd.f32 %v312, %v347
    %v356 = vadd.f32 %v313, %v348
    %v357 = vadd.f32 %v314, %v349
    %358 = vrot.lane.b32.xlu0 %v80, 67
    %v359 = vpop.permute.xlu0 %358
    %360 = vrot.lane.b32.xlu0 %v81, 67
    %v361 = vpop.permute.xlu0 %360
    %362 = vrot.lane.b32.xlu0 %v82, 67
    %v363 = vpop.permute.xlu0 %362
    %364 = vrot.lane.b32.xlu0 %v83, 67
    %v365 = vpop.permute.xlu0 %364
    %366 = vrot.lane.b32.xlu0 %v84, 67
    %v367 = vpop.permute.xlu0 %366
    %368 = vrot.lane.b32.xlu0 %v85, 67
    %v369 = vpop.permute.xlu0 %368
    %370 = vrot.lane.b32.xlu0 %v86, 67
    %v371 = vpop.permute.xlu0 %370
    %372 = vrot.lane.b32.xlu0 %v87, 67
    %v373 = vpop.permute.xlu0 %372
    %vm374 = vcmp.lt.s32.totalorder %v115, 67
    %v375 = vsel %vm374, %v371, %v373
    %v376 = vsel %vm374, %v369, %v371
    %v377 = vsel %vm374, %v367, %v369
    %v378 = vsel %vm374, %v365, %v367
    %v379 = vsel %vm374, %v363, %v365
    %v380 = vsel %vm374, %v361, %v363
    %v381 = vsel %vm374, %v359, %v361
    %v382 = vsel %vm374, %v373, %v359
    %s383 = sld [smem:[#allocation3 + $0x7]]
    %v384 = vstv %s383
    %v385 = vmul.f32 %v381, %v384
    %v386 = vmul.f32 %v380, %v384
    %v387 = vmul.f32 %v379, %v384
    %v388 = vmul.f32 %v378, %v384
    %v389 = vmul.f32 %v377, %v384
    %v390 = vmul.f32 %v376, %v384
    %v391 = vmul.f32 %v375, %v384
    %v392 = vmul.f32 %v382, %v384
    %v393 = vadd.f32 %v350, %v385
    %v394 = vadd.f32 %v351, %v386
    %v395 = vadd.f32 %v352, %v387
    %v396 = vadd.f32 %v353, %v388
    %v397 = vadd.f32 %v354, %v389
    %v398 = vadd.f32 %v355, %v390
    %v399 = vadd.f32 %v356, %v391
    %v400 = vadd.f32 %v357, %v392
    %401 = vrot.lane.b32.xlu0 %v80, 66
    %v402 = vpop.permute.xlu0 %401
    %403 = vrot.lane.b32.xlu0 %v81, 66
    %v404 = vpop.permute.xlu0 %403
    %405 = vrot.lane.b32.xlu0 %v82, 66
    %v406 = vpop.permute.xlu0 %405
    %407 = vrot.lane.b32.xlu0 %v83, 66
    %v408 = vpop.permute.xlu0 %407
    %409 = vrot.lane.b32.xlu0 %v84, 66
    %v410 = vpop.permute.xlu0 %409
    %411 = vrot.lane.b32.xlu0 %v85, 66
    %v412 = vpop.permute.xlu0 %411
    %413 = vrot.lane.b32.xlu0 %v86, 66
    %v414 = vpop.permute.xlu0 %413
    %415 = vrot.lane.b32.xlu0 %v87, 66
    %v416 = vpop.permute.xlu0 %415
    %vm417 = vcmp.lt.s32.totalorder %v115, 66
    %v418 = vsel %vm417, %v414, %v416
    %v419 = vsel %vm417, %v412, %v414
    %v420 = vsel %vm417, %v410, %v412
    %v421 = vsel %vm417, %v408, %v410
    %v422 = vsel %vm417, %v406, %v408
    %v423 = vsel %vm417, %v404, %v406
    %v424 = vsel %vm417, %v402, %v404
    %v425 = vsel %vm417, %v416, %v402
    %s426 = sld [smem:[#allocation3 + $0x8]]
    %v427 = vstv %s426
    %v428 = vmul.f32 %v424, %v427
    %v429 = vmul.f32 %v423, %v427
    %v430 = vmul.f32 %v422, %v427
    %v431 = vmul.f32 %v421, %v427
    %v432 = vmul.f32 %v420, %v427
    %v433 = vmul.f32 %v419, %v427
    %v434 = vmul.f32 %v418, %v427
    %v435 = vmul.f32 %v425, %v427
    %v436 = vadd.f32 %v393, %v428
    %v437 = vadd.f32 %v394, %v429
    %v438 = vadd.f32 %v395, %v430
    %v439 = vadd.f32 %v396, %v431
    %v440 = vadd.f32 %v397, %v432
    %v441 = vadd.f32 %v398, %v433
    %v442 = vadd.f32 %v399, %v434
    %v443 = vadd.f32 %v400, %v435
    %s444 = sld [smem:[#allocation7]]
    %v445 = vstv %s444
    %v446 = vadd.f32 %v436, %v445
    %v447 = vadd.f32 %v437, %v445
    %v448 = vadd.f32 %v438, %v445
    %v449 = vadd.f32 %v439, %v445
    %v450 = vadd.f32 %v440, %v445
    %v451 = vadd.f32 %v441, %v445
    %v452 = vadd.f32 %v442, %v445
    %v453 = vadd.f32 %v443, %v445
    %v454 = vmax.f32 %v446, 0.0
    %v455 = vmax.f32 %v447, 0.0
    %v456 = vmax.f32 %v448, 0.0
    %v457 = vmax.f32 %v449, 0.0
    %v458 = vmax.f32 %v450, 0.0
    %v459 = vmax.f32 %v451, 0.0
    %v460 = vmax.f32 %v452, 0.0
    %v461 = vmax.f32 %v453, 0.0
    %v462 = vpack.c.bf16 %v454, %v454
    %v463 = vpack.c.bf16 %v455, %v455
    %v464 = vpack.c.bf16 %v456, %v456
    %v465 = vpack.c.bf16 %v457, %v457
    %v466 = vpack.c.bf16 %v458, %v458
    %v467 = vpack.c.bf16 %v459, %v459
    %v468 = vpack.c.bf16 %v460, %v460
    %v469 = vpack.c.bf16 %v461, %v461
    %v478 = vunpack.c.l.b16 %v462
    %v479 = vunpack.c.l.b16 %v463
    %v480 = vunpack.c.l.b16 %v464
    %v481 = vunpack.c.l.b16 %v465
    %v482 = vunpack.c.l.b16 %v466
    %v483 = vunpack.c.l.b16 %v467
    %v484 = vunpack.c.l.b16 %v468
    %v485 = vunpack.c.l.b16 %v469
    %v486 = vpack.c.b16 %v479, %v478
    %v487 = vpack.c.b16 %v481, %v480
    %v488 = vpack.c.b16 %v483, %v482
    %v489 = vpack.c.b16 %v485, %v484
    %494 = vst [vmem:[#allocation2] sm:$0xff] %v486
    %495 = vst [vmem:[#allocation2 + $0x8] sm:$0xff] %v487
    %496 = vst [vmem:[#allocation2 + $0x10] sm:$0xff] %v488
    %497 = vst [vmem:[#allocation2 + $0x18] sm:$0xff] %v489
    %s498 = sld [smem:[#allocation3 + $0x80]]
    %v499 = vstv %s498
    %v500 = vmul.f32 %v80, %v499
    %v501 = vmul.f32 %v81, %v499
    %v502 = vmul.f32 %v82, %v499
    %v503 = vmul.f32 %v83, %v499
    %v504 = vmul.f32 %v84, %v499
    %v505 = vmul.f32 %v85, %v499
    %v506 = vmul.f32 %v86, %v499
    %v507 = vmul.f32 %v87, %v499
    %s508 = sld [smem:[#allocation3 + $0x81]]
    %v509 = vstv %s508
    %v510 = vmul.f32 %v123, %v509
    %v511 = vmul.f32 %v122, %v509
    %v512 = vmul.f32 %v121, %v509
    %v513 = vmul.f32 %v120, %v509
    %v514 = vmul.f32 %v119, %v509
    %v515 = vmul.f32 %v118, %v509
    %v516 = vmul.f32 %v117, %v509
    %v517 = vmul.f32 %v124, %v509
    %v518 = vadd.f32 %v500, %v510
    %v519 = vadd.f32 %v501, %v511
    %v520 = vadd.f32 %v502, %v512
    %v521 = vadd.f32 %v503, %v513
    %v522 = vadd.f32 %v504, %v514
    %v523 = vadd.f32 %v505, %v515
    %v524 = vadd.f32 %v506, %v516
    %v525 = vadd.f32 %v507, %v517
    %s526 = sld [smem:[#allocation3 + $0x82]]
    %v527 = vstv %s526
    %v528 = vmul.f32 %v166, %v527
    %v529 = vmul.f32 %v165, %v527
    %v530 = vmul.f32 %v164, %v527
    %v531 = vmul.f32 %v163, %v527
    %v532 = vmul.f32 %v162, %v527
    %v533 = vmul.f32 %v161, %v527
    %v534 = vmul.f32 %v160, %v527
    %v535 = vmul.f32 %v167, %v527
    %v536 = vadd.f32 %v518, %v528
    %v537 = vadd.f32 %v519, %v529
    %v538 = vadd.f32 %v520, %v530
    %v539 = vadd.f32 %v521, %v531
    %v540 = vadd.f32 %v522, %v532
    %v541 = vadd.f32 %v523, %v533
    %v542 = vadd.f32 %v524, %v534
    %v543 = vadd.f32 %v525, %v535
    %s544 = sld [smem:[#allocation3 + $0x83]]
    %v545 = vstv %s544
    %v546 = vmul.f32 %v209, %v545
    %v547 = vmul.f32 %v208, %v545
    %v548 = vmul.f32 %v207, %v545
    %v549 = vmul.f32 %v206, %v545
    %v550 = vmul.f32 %v205, %v545
    %v551 = vmul.f32 %v204, %v545
    %v552 = vmul.f32 %v203, %v545
    %v553 = vmul.f32 %v210, %v545
    %v554 = vadd.f32 %v536, %v546
    %v555 = vadd.f32 %v537, %v547
    %v556 = vadd.f32 %v538, %v548
    %v557 = vadd.f32 %v539, %v549
    %v558 = vadd.f32 %v540, %v550
    %v559 = vadd.f32 %v541, %v551
    %v560 = vadd.f32 %v542, %v552
    %v561 = vadd.f32 %v543, %v553
    %s562 = sld [smem:[#allocation3 + $0x84]]
    %v563 = vstv %s562
    %v564 = vmul.f32 %v252, %v563
    %v565 = vmul.f32 %v251, %v563
    %v566 = vmul.f32 %v250, %v563
    %v567 = vmul.f32 %v249, %v563
    %v568 = vmul.f32 %v248, %v563
    %v569 = vmul.f32 %v247, %v563
    %v570 = vmul.f32 %v246, %v563
    %v571 = vmul.f32 %v253, %v563
    %v572 = vadd.f32 %v554, %v564
    %v573 = vadd.f32 %v555, %v565
    %v574 = vadd.f32 %v556, %v566
    %v575 = vadd.f32 %v557, %v567
    %v576 = vadd.f32 %v558, %v568
    %v577 = vadd.f32 %v559, %v569
    %v578 = vadd.f32 %v560, %v570
    %v579 = vadd.f32 %v561, %v571
    %s580 = sld [smem:[#allocation3 + $0x85]]
    %v581 = vstv %s580
    %v582 = vmul.f32 %v295, %v581
    %v583 = vmul.f32 %v294, %v581
    %v584 = vmul.f32 %v293, %v581
    %v585 = vmul.f32 %v292, %v581
    %v586 = vmul.f32 %v291, %v581
    %v587 = vmul.f32 %v290, %v581
    %v588 = vmul.f32 %v289, %v581
    %v589 = vmul.f32 %v296, %v581
    %v590 = vadd.f32 %v572, %v582
    %v591 = vadd.f32 %v573, %v583
    %v592 = vadd.f32 %v574, %v584
    %v593 = vadd.f32 %v575, %v585
    %v594 = vadd.f32 %v576, %v586
    %v595 = vadd.f32 %v577, %v587
    %v596 = vadd.f32 %v578, %v588
    %v597 = vadd.f32 %v579, %v589
    %s598 = sld [smem:[#allocation3 + $0x86]]
    %v599 = vstv %s598
    %v600 = vmul.f32 %v338, %v599
    %v601 = vmul.f32 %v337, %v599
    %v602 = vmul.f32 %v336, %v599
    %v603 = vmul.f32 %v335, %v599
    %v604 = vmul.f32 %v334, %v599
    %v605 = vmul.f32 %v333, %v599
    %v606 = vmul.f32 %v332, %v599
    %v607 = vmul.f32 %v339, %v599
    %v608 = vadd.f32 %v590, %v600
    %v609 = vadd.f32 %v591, %v601
    %v610 = vadd.f32 %v592, %v602
    %v611 = vadd.f32 %v593, %v603
    %v612 = vadd.f32 %v594, %v604
    %v613 = vadd.f32 %v595, %v605
    %v614 = vadd.f32 %v596, %v606
    %v615 = vadd.f32 %v597, %v607
    %s616 = sld [smem:[#allocation3 + $0x87]]
    %v617 = vstv %s616
    %v618 = vmul.f32 %v381, %v617
    %v619 = vmul.f32 %v380, %v617
    %v620 = vmul.f32 %v379, %v617
    %v621 = vmul.f32 %v378, %v617
    %v622 = vmul.f32 %v377, %v617
    %v623 = vmul.f32 %v376, %v617
    %v624 = vmul.f32 %v375, %v617
    %v625 = vmul.f32 %v382, %v617
    %v626 = vadd.f32 %v608, %v618
    %v627 = vadd.f32 %v609, %v619
    %v628 = vadd.f32 %v610, %v620
    %v629 = vadd.f32 %v611, %v621
    %v630 = vadd.f32 %v612, %v622
    %v631 = vadd.f32 %v613, %v623
    %v632 = vadd.f32 %v614, %v624
    %v633 = vadd.f32 %v615, %v625
    %s634 = sld [smem:[#allocation3 + $0x88]]
    %v635 = vstv %s634
    %v636 = vmul.f32 %v424, %v635
    %v637 = vmul.f32 %v423, %v635
    %v638 = vmul.f32 %v422, %v635
    %v639 = vmul.f32 %v421, %v635
    %v640 = vmul.f32 %v420, %v635
    %v641 = vmul.f32 %v419, %v635
    %v642 = vmul.f32 %v418, %v635
    %v643 = vmul.f32 %v425, %v635
    %v644 = vadd.f32 %v626, %v636
    %v645 = vadd.f32 %v627, %v637
    %v646 = vadd.f32 %v628, %v638
    %v647 = vadd.f32 %v629, %v639
    %v648 = vadd.f32 %v630, %v640
    %v649 = vadd.f32 %v631, %v641
    %v650 = vadd.f32 %v632, %v642
    %v651 = vadd.f32 %v633, %v643
    %s652 = sld [smem:[#allocation7 + $0x1]]
    %v653 = vstv %s652
    %v654 = vadd.f32 %v644, %v653
    %v655 = vadd.f32 %v645, %v653
    %v656 = vadd.f32 %v646, %v653
    %v657 = vadd.f32 %v647, %v653
    %v658 = vadd.f32 %v648, %v653
    %v659 = vadd.f32 %v649, %v653
    %v660 = vadd.f32 %v650, %v653
    %v661 = vadd.f32 %v651, %v653
    %v662 = vmax.f32 %v654, 0.0
    %v663 = vmax.f32 %v655, 0.0
    %v664 = vmax.f32 %v656, 0.0
    %v665 = vmax.f32 %v657, 0.0
    %v666 = vmax.f32 %v658, 0.0
    %v667 = vmax.f32 %v659, 0.0
    %v668 = vmax.f32 %v660, 0.0
    %v669 = vmax.f32 %v661, 0.0
    %v670 = vpack.c.bf16 %v662, %v662
    %v671 = vpack.c.bf16 %v663, %v663
    %v672 = vpack.c.bf16 %v664, %v664
    %v673 = vpack.c.bf16 %v665, %v665
    %v674 = vpack.c.bf16 %v666, %v666
    %v675 = vpack.c.bf16 %v667, %v667
    %v676 = vpack.c.bf16 %v668, %v668
    %v677 = vpack.c.bf16 %v669, %v669
    %v686 = vunpack.c.l.b16 %v670
    %v687 = vunpack.c.l.b16 %v671
    %v688 = vunpack.c.l.b16 %v672
    %v689 = vunpack.c.l.b16 %v673
    %v690 = vunpack.c.l.b16 %v674
    %v691 = vunpack.c.l.b16 %v675
    %v692 = vunpack.c.l.b16 %v676
    %v693 = vunpack.c.l.b16 %v677
    %v694 = vpack.c.b16 %v687, %v686
    %v695 = vpack.c.b16 %v689, %v688
    %v696 = vpack.c.b16 %v691, %v690
    %v697 = vpack.c.b16 %v693, %v692
    %702 = vst [vmem:[#allocation2 + $0x20] sm:$0xff] %v694
    %703 = vst [vmem:[#allocation2 + $0x28] sm:$0xff] %v695
    %704 = vst [vmem:[#allocation2 + $0x30] sm:$0xff] %v696
    %705 = vst [vmem:[#allocation2 + $0x38] sm:$0xff] %v697
    %s706 = sld [smem:[#allocation3 + $0x100]]
    %v707 = vstv %s706
    %v708 = vmul.f32 %v80, %v707
    %v709 = vmul.f32 %v81, %v707
    %v710 = vmul.f32 %v82, %v707
    %v711 = vmul.f32 %v83, %v707
    %v712 = vmul.f32 %v84, %v707
    %v713 = vmul.f32 %v85, %v707
    %v714 = vmul.f32 %v86, %v707
    %v715 = vmul.f32 %v87, %v707
    %s716 = sld [smem:[#allocation3 + $0x101]]
    %v717 = vstv %s716
    %v718 = vmul.f32 %v123, %v717
    %v719 = vmul.f32 %v122, %v717
    %v720 = vmul.f32 %v121, %v717
    %v721 = vmul.f32 %v120, %v717
    %v722 = vmul.f32 %v119, %v717
    %v723 = vmul.f32 %v118, %v717
    %v724 = vmul.f32 %v117, %v717
    %v725 = vmul.f32 %v124, %v717
    %v726 = vadd.f32 %v708, %v718
    %v727 = vadd.f32 %v709, %v719
    %v728 = vadd.f32 %v710, %v720
    %v729 = vadd.f32 %v711, %v721
    %v730 = vadd.f32 %v712, %v722
    %v731 = vadd.f32 %v713, %v723
    %v732 = vadd.f32 %v714, %v724
    %v733 = vadd.f32 %v715, %v725
    %s734 = sld [smem:[#allocation3 + $0x102]]
    %v735 = vstv %s734
    %v736 = vmul.f32 %v166, %v735
    %v737 = vmul.f32 %v165, %v735
    %v738 = vmul.f32 %v164, %v735
    %v739 = vmul.f32 %v163, %v735
    %v740 = vmul.f32 %v162, %v735
    %v741 = vmul.f32 %v161, %v735
    %v742 = vmul.f32 %v160, %v735
    %v743 = vmul.f32 %v167, %v735
    %v744 = vadd.f32 %v726, %v736
    %v745 = vadd.f32 %v727, %v737
    %v746 = vadd.f32 %v728, %v738
    %v747 = vadd.f32 %v729, %v739
    %v748 = vadd.f32 %v730, %v740
    %v749 = vadd.f32 %v731, %v741
    %v750 = vadd.f32 %v732, %v742
    %v751 = vadd.f32 %v733, %v743
    %s752 = sld [smem:[#allocation3 + $0x103]]
    %v753 = vstv %s752
    %v754 = vmul.f32 %v209, %v753
    %v755 = vmul.f32 %v208, %v753
    %v756 = vmul.f32 %v207, %v753
    %v757 = vmul.f32 %v206, %v753
    %v758 = vmul.f32 %v205, %v753
    %v759 = vmul.f32 %v204, %v753
    %v760 = vmul.f32 %v203, %v753
    %v761 = vmul.f32 %v210, %v753
    %v762 = vadd.f32 %v744, %v754
    %v763 = vadd.f32 %v745, %v755
    %v764 = vadd.f32 %v746, %v756
    %v765 = vadd.f32 %v747, %v757
    %v766 = vadd.f32 %v748, %v758
    %v767 = vadd.f32 %v749, %v759
    %v768 = vadd.f32 %v750, %v760
    %v769 = vadd.f32 %v751, %v761
    %s770 = sld [smem:[#allocation3 + $0x104]]
    %v771 = vstv %s770
    %v772 = vmul.f32 %v252, %v771
    %v773 = vmul.f32 %v251, %v771
    %v774 = vmul.f32 %v250, %v771
    %v775 = vmul.f32 %v249, %v771
    %v776 = vmul.f32 %v248, %v771
    %v777 = vmul.f32 %v247, %v771
    %v778 = vmul.f32 %v246, %v771
    %v779 = vmul.f32 %v253, %v771
    %v780 = vadd.f32 %v762, %v772
    %v781 = vadd.f32 %v763, %v773
    %v782 = vadd.f32 %v764, %v774
    %v783 = vadd.f32 %v765, %v775
    %v784 = vadd.f32 %v766, %v776
    %v785 = vadd.f32 %v767, %v777
    %v786 = vadd.f32 %v768, %v778
    %v787 = vadd.f32 %v769, %v779
    %s788 = sld [smem:[#allocation3 + $0x105]]
    %v789 = vstv %s788
    %v790 = vmul.f32 %v295, %v789
    %v791 = vmul.f32 %v294, %v789
    %v792 = vmul.f32 %v293, %v789
    %v793 = vmul.f32 %v292, %v789
    %v794 = vmul.f32 %v291, %v789
    %v795 = vmul.f32 %v290, %v789
    %v796 = vmul.f32 %v289, %v789
    %v797 = vmul.f32 %v296, %v789
    %v798 = vadd.f32 %v780, %v790
    %v799 = vadd.f32 %v781, %v791
    %v800 = vadd.f32 %v782, %v792
    %v801 = vadd.f32 %v783, %v793
    %v802 = vadd.f32 %v784, %v794
    %v803 = vadd.f32 %v785, %v795
    %v804 = vadd.f32 %v786, %v796
    %v805 = vadd.f32 %v787, %v797
    %s806 = sld [smem:[#allocation3 + $0x106]]
    %v807 = vstv %s806
    %v808 = vmul.f32 %v338, %v807
    %v809 = vmul.f32 %v337, %v807
    %v810 = vmul.f32 %v336, %v807
    %v811 = vmul.f32 %v335, %v807
    %v812 = vmul.f32 %v334, %v807
    %v813 = vmul.f32 %v333, %v807
    %v814 = vmul.f32 %v332, %v807
    %v815 = vmul.f32 %v339, %v807
    %v816 = vadd.f32 %v798, %v808
    %v817 = vadd.f32 %v799, %v809
    %v818 = vadd.f32 %v800, %v810
    %v819 = vadd.f32 %v801, %v811
    %v820 = vadd.f32 %v802, %v812
    %v821 = vadd.f32 %v803, %v813
    %v822 = vadd.f32 %v804, %v814
    %v823 = vadd.f32 %v805, %v815
    %s824 = sld [smem:[#allocation3 + $0x107]]
    %v825 = vstv %s824
    %v826 = vmul.f32 %v381, %v825
    %v827 = vmul.f32 %v380, %v825
    %v828 = vmul.f32 %v379, %v825
    %v829 = vmul.f32 %v378, %v825
    %v830 = vmul.f32 %v377, %v825
    %v831 = vmul.f32 %v376, %v825
    %v832 = vmul.f32 %v375, %v825
    %v833 = vmul.f32 %v382, %v825
    %v834 = vadd.f32 %v816, %v826
    %v835 = vadd.f32 %v817, %v827
    %v836 = vadd.f32 %v818, %v828
    %v837 = vadd.f32 %v819, %v829
    %v838 = vadd.f32 %v820, %v830
    %v839 = vadd.f32 %v821, %v831
    %v840 = vadd.f32 %v822, %v832
    %v841 = vadd.f32 %v823, %v833
    %s842 = sld [smem:[#allocation3 + $0x108]]
    %v843 = vstv %s842
    %v844 = vmul.f32 %v424, %v843
    %v845 = vmul.f32 %v423, %v843
    %v846 = vmul.f32 %v422, %v843
    %v847 = vmul.f32 %v421, %v843
    %v848 = vmul.f32 %v420, %v843
    %v849 = vmul.f32 %v419, %v843
    %v850 = vmul.f32 %v418, %v843
    %v851 = vmul.f32 %v425, %v843
    %v852 = vadd.f32 %v834, %v844
    %v853 = vadd.f32 %v835, %v845
    %v854 = vadd.f32 %v836, %v846
    %v855 = vadd.f32 %v837, %v847
    %v856 = vadd.f32 %v838, %v848
    %v857 = vadd.f32 %v839, %v849
    %v858 = vadd.f32 %v840, %v850
    %v859 = vadd.f32 %v841, %v851
    %s860 = sld [smem:[#allocation7 + $0x2]]
    %v861 = vstv %s860
    %v862 = vadd.f32 %v852, %v861
    %v863 = vadd.f32 %v853, %v861
    %v864 = vadd.f32 %v854, %v861
    %v865 = vadd.f32 %v855, %v861
    %v866 = vadd.f32 %v856, %v861
    %v867 = vadd.f32 %v857, %v861
    %v868 = vadd.f32 %v858, %v861
    %v869 = vadd.f32 %v859, %v861
    %v870 = vmax.f32 %v862, 0.0
    %v871 = vmax.f32 %v863, 0.0
    %v872 = vmax.f32 %v864, 0.0
    %v873 = vmax.f32 %v865, 0.0
    %v874 = vmax.f32 %v866, 0.0
    %v875 = vmax.f32 %v867, 0.0
    %v876 = vmax.f32 %v868, 0.0
    %v877 = vmax.f32 %v869, 0.0
    %v878 = vpack.c.bf16 %v870, %v870
    %v879 = vpack.c.bf16 %v871, %v871
    %v880 = vpack.c.bf16 %v872, %v872
    %v881 = vpack.c.bf16 %v873, %v873
    %v882 = vpack.c.bf16 %v874, %v874
    %v883 = vpack.c.bf16 %v875, %v875
    %v884 = vpack.c.bf16 %v876, %v876
    %v885 = vpack.c.bf16 %v877, %v877
    %v894 = vunpack.c.l.b16 %v878
    %v895 = vunpack.c.l.b16 %v879
    %v896 = vunpack.c.l.b16 %v880
    %v897 = vunpack.c.l.b16 %v881
    %v898 = vunpack.c.l.b16 %v882
    %v899 = vunpack.c.l.b16 %v883
    %v900 = vunpack.c.l.b16 %v884
    %v901 = vunpack.c.l.b16 %v885
    %v902 = vpack.c.b16 %v895, %v894
    %v903 = vpack.c.b16 %v897, %v896
    %v904 = vpack.c.b16 %v899, %v898
    %v905 = vpack.c.b16 %v901, %v900
    %910 = vst [vmem:[#allocation2 + $0x40] sm:$0xff] %v902
    %911 = vst [vmem:[#allocation2 + $0x48] sm:$0xff] %v903
    %912 = vst [vmem:[#allocation2 + $0x50] sm:$0xff] %v904
    %913 = vst [vmem:[#allocation2 + $0x58] sm:$0xff] %v905
    %s914 = sld [smem:[#allocation3 + $0x180]]
    %v915 = vstv %s914
    %v916 = vmul.f32 %v80, %v915
    %v917 = vmul.f32 %v81, %v915
    %v918 = vmul.f32 %v82, %v915
    %v919 = vmul.f32 %v83, %v915
    %v920 = vmul.f32 %v84, %v915
    %v921 = vmul.f32 %v85, %v915
    %v922 = vmul.f32 %v86, %v915
    %v923 = vmul.f32 %v87, %v915
    %s924 = sld [smem:[#allocation3 + $0x181]]
    %v925 = vstv %s924
    %v926 = vmul.f32 %v123, %v925
    %v927 = vmul.f32 %v122, %v925
    %v928 = vmul.f32 %v121, %v925
    %v929 = vmul.f32 %v120, %v925
    %v930 = vmul.f32 %v119, %v925
    %v931 = vmul.f32 %v118, %v925
    %v932 = vmul.f32 %v117, %v925
    %v933 = vmul.f32 %v124, %v925
    %v934 = vadd.f32 %v916, %v926
    %v935 = vadd.f32 %v917, %v927
    %v936 = vadd.f32 %v918, %v928
    %v937 = vadd.f32 %v919, %v929
    %v938 = vadd.f32 %v920, %v930
    %v939 = vadd.f32 %v921, %v931
    %v940 = vadd.f32 %v922, %v932
    %v941 = vadd.f32 %v923, %v933
    %s942 = sld [smem:[#allocation3 + $0x182]]
    %v943 = vstv %s942
    %v944 = vmul.f32 %v166, %v943
    %v945 = vmul.f32 %v165, %v943
    %v946 = vmul.f32 %v164, %v943
    %v947 = vmul.f32 %v163, %v943
    %v948 = vmul.f32 %v162, %v943
    %v949 = vmul.f32 %v161, %v943
    %v950 = vmul.f32 %v160, %v943
    %v951 = vmul.f32 %v167, %v943
    %v952 = vadd.f32 %v934, %v944
    %v953 = vadd.f32 %v935, %v945
    %v954 = vadd.f32 %v936, %v946
    %v955 = vadd.f32 %v937, %v947
    %v956 = vadd.f32 %v938, %v948
    %v957 = vadd.f32 %v939, %v949
    %v958 = vadd.f32 %v940, %v950
    %v959 = vadd.f32 %v941, %v951
    %s960 = sld [smem:[#allocation3 + $0x183]]
    %v961 = vstv %s960
    %v962 = vmul.f32 %v209, %v961
    %v963 = vmul.f32 %v208, %v961
    %v964 = vmul.f32 %v207, %v961
    %v965 = vmul.f32 %v206, %v961
    %v966 = vmul.f32 %v205, %v961
    %v967 = vmul.f32 %v204, %v961
    %v968 = vmul.f32 %v203, %v961
    %v969 = vmul.f32 %v210, %v961
    %v970 = vadd.f32 %v952, %v962
    %v971 = vadd.f32 %v953, %v963
    %v972 = vadd.f32 %v954, %v964
    %v973 = vadd.f32 %v955, %v965
    %v974 = vadd.f32 %v956, %v966
    %v975 = vadd.f32 %v957, %v967
    %v976 = vadd.f32 %v958, %v968
    %v977 = vadd.f32 %v959, %v969
    %s978 = sld [smem:[#allocation3 + $0x184]]
    %v979 = vstv %s978
    %v980 = vmul.f32 %v252, %v979
    %v981 = vmul.f32 %v251, %v979
    %v982 = vmul.f32 %v250, %v979
    %v983 = vmul.f32 %v249, %v979
    %v984 = vmul.f32 %v248, %v979
    %v985 = vmul.f32 %v247, %v979
    %v986 = vmul.f32 %v246, %v979
    %v987 = vmul.f32 %v253, %v979
    %v988 = vadd.f32 %v970, %v980
    %v989 = vadd.f32 %v971, %v981
    %v990 = vadd.f32 %v972, %v982
    %v991 = vadd.f32 %v973, %v983
    %v992 = vadd.f32 %v974, %v984
    %v993 = vadd.f32 %v975, %v985
    %v994 = vadd.f32 %v976, %v986
    %v995 = vadd.f32 %v977, %v987
    %s996 = sld [smem:[#allocation3 + $0x185]]
    %v997 = vstv %s996
    %v998 = vmul.f32 %v295, %v997
    %v999 = vmul.f32 %v294, %v997
    %v1000 = vmul.f32 %v293, %v997
    %v1001 = vmul.f32 %v292, %v997
    %v1002 = vmul.f32 %v291, %v997
    %v1003 = vmul.f32 %v290, %v997
    %v1004 = vmul.f32 %v289, %v997
    %v1005 = vmul.f32 %v296, %v997
    %v1006 = vadd.f32 %v988, %v998
    %v1007 = vadd.f32 %v989, %v999
    %v1008 = vadd.f32 %v990, %v1000
    %v1009 = vadd.f32 %v991, %v1001
    %v1010 = vadd.f32 %v992, %v1002
    %v1011 = vadd.f32 %v993, %v1003
    %v1012 = vadd.f32 %v994, %v1004
    %v1013 = vadd.f32 %v995, %v1005
    %s1014 = sld [smem:[#allocation3 + $0x186]]
    %v1015 = vstv %s1014
    %v1016 = vmul.f32 %v338, %v1015
    %v1017 = vmul.f32 %v337, %v1015
    %v1018 = vmul.f32 %v336, %v1015
    %v1019 = vmul.f32 %v335, %v1015
    %v1020 = vmul.f32 %v334, %v1015
    %v1021 = vmul.f32 %v333, %v1015
    %v1022 = vmul.f32 %v332, %v1015
    %v1023 = vmul.f32 %v339, %v1015
    %v1024 = vadd.f32 %v1006, %v1016
    %v1025 = vadd.f32 %v1007, %v1017
    %v1026 = vadd.f32 %v1008, %v1018
    %v1027 = vadd.f32 %v1009, %v1019
    %v1028 = vadd.f32 %v1010, %v1020
    %v1029 = vadd.f32 %v1011, %v1021
    %v1030 = vadd.f32 %v1012, %v1022
    %v1031 = vadd.f32 %v1013, %v1023
    %s1032 = sld [smem:[#allocation3 + $0x187]]
    %v1033 = vstv %s1032
    %v1034 = vmul.f32 %v381, %v1033
    %v1035 = vmul.f32 %v380, %v1033
    %v1036 = vmul.f32 %v379, %v1033
    %v1037 = vmul.f32 %v378, %v1033
    %v1038 = vmul.f32 %v377, %v1033
    %v1039 = vmul.f32 %v376, %v1033
    %v1040 = vmul.f32 %v375, %v1033
    %v1041 = vmul.f32 %v382, %v1033
    %v1042 = vadd.f32 %v1024, %v1034
    %v1043 = vadd.f32 %v1025, %v1035
    %v1044 = vadd.f32 %v1026, %v1036
    %v1045 = vadd.f32 %v1027, %v1037
    %v1046 = vadd.f32 %v1028, %v1038
    %v1047 = vadd.f32 %v1029, %v1039
    %v1048 = vadd.f32 %v1030, %v1040
    %v1049 = vadd.f32 %v1031, %v1041
    %s1050 = sld [smem:[#allocation3 + $0x188]]
    %v1051 = vstv %s1050
    %v1052 = vmul.f32 %v424, %v1051
    %v1053 = vmul.f32 %v423, %v1051
    %v1054 = vmul.f32 %v422, %v1051
    %v1055 = vmul.f32 %v421, %v1051
    %v1056 = vmul.f32 %v420, %v1051
    %v1057 = vmul.f32 %v419, %v1051
    %v1058 = vmul.f32 %v418, %v1051
    %v1059 = vmul.f32 %v425, %v1051
    %v1060 = vadd.f32 %v1042, %v1052
    %v1061 = vadd.f32 %v1043, %v1053
    %v1062 = vadd.f32 %v1044, %v1054
    %v1063 = vadd.f32 %v1045, %v1055
    %v1064 = vadd.f32 %v1046, %v1056
    %v1065 = vadd.f32 %v1047, %v1057
    %v1066 = vadd.f32 %v1048, %v1058
    %v1067 = vadd.f32 %v1049, %v1059
    %s1068 = sld [smem:[#allocation7 + $0x3]]
    %v1069 = vstv %s1068
    %v1070 = vadd.f32 %v1060, %v1069
    %v1071 = vadd.f32 %v1061, %v1069
    %v1072 = vadd.f32 %v1062, %v1069
    %v1073 = vadd.f32 %v1063, %v1069
    %v1074 = vadd.f32 %v1064, %v1069
    %v1075 = vadd.f32 %v1065, %v1069
    %v1076 = vadd.f32 %v1066, %v1069
    %v1077 = vadd.f32 %v1067, %v1069
    %v1078 = vmax.f32 %v1070, 0.0
    %v1079 = vmax.f32 %v1071, 0.0
    %v1080 = vmax.f32 %v1072, 0.0
    %v1081 = vmax.f32 %v1073, 0.0
    %v1082 = vmax.f32 %v1074, 0.0
    %v1083 = vmax.f32 %v1075, 0.0
    %v1084 = vmax.f32 %v1076, 0.0
    %v1085 = vmax.f32 %v1077, 0.0
    %v1086 = vpack.c.bf16 %v1078, %v1078
    %v1087 = vpack.c.bf16 %v1079, %v1079
    %v1088 = vpack.c.bf16 %v1080, %v1080
    %v1089 = vpack.c.bf16 %v1081, %v1081
    %v1090 = vpack.c.bf16 %v1082, %v1082
    %v1091 = vpack.c.bf16 %v1083, %v1083
    %v1092 = vpack.c.bf16 %v1084, %v1084
    %v1093 = vpack.c.bf16 %v1085, %v1085
    %v1102 = vunpack.c.l.b16 %v1086
    %v1103 = vunpack.c.l.b16 %v1087
    %v1104 = vunpack.c.l.b16 %v1088
    %v1105 = vunpack.c.l.b16 %v1089
    %v1106 = vunpack.c.l.b16 %v1090
    %v1107 = vunpack.c.l.b16 %v1091
    %v1108 = vunpack.c.l.b16 %v1092
    %v1109 = vunpack.c.l.b16 %v1093
    %v1110 = vpack.c.b16 %v1103, %v1102
    %v1111 = vpack.c.b16 %v1105, %v1104
    %v1112 = vpack.c.b16 %v1107, %v1106
    %v1113 = vpack.c.b16 %v1109, %v1108
    %1118 = vst [vmem:[#allocation2 + $0x60] sm:$0xff] %v1110
    %1119 = vst [vmem:[#allocation2 + $0x68] sm:$0xff] %v1111
    %1120 = vst [vmem:[#allocation2 + $0x70] sm:$0xff] %v1112
    %1121 = vst [vmem:[#allocation2 + $0x78] sm:$0xff] %v1113
    %s1122 = sld [smem:[#allocation3 + $0x200]]
    %v1123 = vstv %s1122
    %v1124 = vmul.f32 %v80, %v1123
    %v1125 = vmul.f32 %v81, %v1123
    %v1126 = vmul.f32 %v82, %v1123
    %v1127 = vmul.f32 %v83, %v1123
    %v1128 = vmul.f32 %v84, %v1123
    %v1129 = vmul.f32 %v85, %v1123
    %v1130 = vmul.f32 %v86, %v1123
    %v1131 = vmul.f32 %v87, %v1123
    %s1132 = sld [smem:[#allocation3 + $0x201]]
    %v1133 = vstv %s1132
    %v1134 = vmul.f32 %v123, %v1133
    %v1135 = vmul.f32 %v122, %v1133
    %v1136 = vmul.f32 %v121, %v1133
    %v1137 = vmul.f32 %v120, %v1133
    %v1138 = vmul.f32 %v119, %v1133
    %v1139 = vmul.f32 %v118, %v1133
    %v1140 = vmul.f32 %v117, %v1133
    %v1141 = vmul.f32 %v124, %v1133
    %v1142 = vadd.f32 %v1124, %v1134
    %v1143 = vadd.f32 %v1125, %v1135
    %v1144 = vadd.f32 %v1126, %v1136
    %v1145 = vadd.f32 %v1127, %v1137
    %v1146 = vadd.f32 %v1128, %v1138
    %v1147 = vadd.f32 %v1129, %v1139
    %v1148 = vadd.f32 %v1130, %v1140
    %v1149 = vadd.f32 %v1131, %v1141
    %s1150 = sld [smem:[#allocation3 + $0x202]]
    %v1151 = vstv %s1150
    %v1152 = vmul.f32 %v166, %v1151
    %v1153 = vmul.f32 %v165, %v1151
    %v1154 = vmul.f32 %v164, %v1151
    %v1155 = vmul.f32 %v163, %v1151
    %v1156 = vmul.f32 %v162, %v1151
    %v1157 = vmul.f32 %v161, %v1151
    %v1158 = vmul.f32 %v160, %v1151
    %v1159 = vmul.f32 %v167, %v1151
    %v1160 = vadd.f32 %v1142, %v1152
    %v1161 = vadd.f32 %v1143, %v1153
    %v1162 = vadd.f32 %v1144, %v1154
    %v1163 = vadd.f32 %v1145, %v1155
    %v1164 = vadd.f32 %v1146, %v1156
    %v1165 = vadd.f32 %v1147, %v1157
    %v1166 = vadd.f32 %v1148, %v1158
    %v1167 = vadd.f32 %v1149, %v1159
    %s1168 = sld [smem:[#allocation3 + $0x203]]
    %v1169 = vstv %s1168
    %v1170 = vmul.f32 %v209, %v1169
    %v1171 = vmul.f32 %v208, %v1169
    %v1172 = vmul.f32 %v207, %v1169
    %v1173 = vmul.f32 %v206, %v1169
    %v1174 = vmul.f32 %v205, %v1169
    %v1175 = vmul.f32 %v204, %v1169
    %v1176 = vmul.f32 %v203, %v1169
    %v1177 = vmul.f32 %v210, %v1169
    %v1178 = vadd.f32 %v1160, %v1170
    %v1179 = vadd.f32 %v1161, %v1171
    %v1180 = vadd.f32 %v1162, %v1172
    %v1181 = vadd.f32 %v1163, %v1173
    %v1182 = vadd.f32 %v1164, %v1174
    %v1183 = vadd.f32 %v1165, %v1175
    %v1184 = vadd.f32 %v1166, %v1176
    %v1185 = vadd.f32 %v1167, %v1177
    %s1186 = sld [smem:[#allocation3 + $0x204]]
    %v1187 = vstv %s1186
    %v1188 = vmul.f32 %v252, %v1187
    %v1189 = vmul.f32 %v251, %v1187
    %v1190 = vmul.f32 %v250, %v1187
    %v1191 = vmul.f32 %v249, %v1187
    %v1192 = vmul.f32 %v248, %v1187
    %v1193 = vmul.f32 %v247, %v1187
    %v1194 = vmul.f32 %v246, %v1187
    %v1195 = vmul.f32 %v253, %v1187
    %v1196 = vadd.f32 %v1178, %v1188
    %v1197 = vadd.f32 %v1179, %v1189
    %v1198 = vadd.f32 %v1180, %v1190
    %v1199 = vadd.f32 %v1181, %v1191
    %v1200 = vadd.f32 %v1182, %v1192
    %v1201 = vadd.f32 %v1183, %v1193
    %v1202 = vadd.f32 %v1184, %v1194
    %v1203 = vadd.f32 %v1185, %v1195
    %s1204 = sld [smem:[#allocation3 + $0x205]]
    %v1205 = vstv %s1204
    %v1206 = vmul.f32 %v295, %v1205
    %v1207 = vmul.f32 %v294, %v1205
    %v1208 = vmul.f32 %v293, %v1205
    %v1209 = vmul.f32 %v292, %v1205
    %v1210 = vmul.f32 %v291, %v1205
    %v1211 = vmul.f32 %v290, %v1205
    %v1212 = vmul.f32 %v289, %v1205
    %v1213 = vmul.f32 %v296, %v1205
    %v1214 = vadd.f32 %v1196, %v1206
    %v1215 = vadd.f32 %v1197, %v1207
    %v1216 = vadd.f32 %v1198, %v1208
    %v1217 = vadd.f32 %v1199, %v1209
    %v1218 = vadd.f32 %v1200, %v1210
    %v1219 = vadd.f32 %v1201, %v1211
    %v1220 = vadd.f32 %v1202, %v1212
    %v1221 = vadd.f32 %v1203, %v1213
    %s1222 = sld [smem:[#allocation3 + $0x206]]
    %v1223 = vstv %s1222
    %v1224 = vmul.f32 %v338, %v1223
    %v1225 = vmul.f32 %v337, %v1223
    %v1226 = vmul.f32 %v336, %v1223
    %v1227 = vmul.f32 %v335, %v1223
    %v1228 = vmul.f32 %v334, %v1223
    %v1229 = vmul.f32 %v333, %v1223
    %v1230 = vmul.f32 %v332, %v1223
    %v1231 = vmul.f32 %v339, %v1223
    %v1232 = vadd.f32 %v1214, %v1224
    %v1233 = vadd.f32 %v1215, %v1225
    %v1234 = vadd.f32 %v1216, %v1226
    %v1235 = vadd.f32 %v1217, %v1227
    %v1236 = vadd.f32 %v1218, %v1228
    %v1237 = vadd.f32 %v1219, %v1229
    %v1238 = vadd.f32 %v1220, %v1230
    %v1239 = vadd.f32 %v1221, %v1231
    %s1240 = sld [smem:[#allocation3 + $0x207]]
    %v1241 = vstv %s1240
    %v1242 = vmul.f32 %v381, %v1241
    %v1243 = vmul.f32 %v380, %v1241
    %v1244 = vmul.f32 %v379, %v1241
    %v1245 = vmul.f32 %v378, %v1241
    %v1246 = vmul.f32 %v377, %v1241
    %v1247 = vmul.f32 %v376, %v1241
    %v1248 = vmul.f32 %v375, %v1241
    %v1249 = vmul.f32 %v382, %v1241
    %v1250 = vadd.f32 %v1232, %v1242
    %v1251 = vadd.f32 %v1233, %v1243
    %v1252 = vadd.f32 %v1234, %v1244
    %v1253 = vadd.f32 %v1235, %v1245
    %v1254 = vadd.f32 %v1236, %v1246
    %v1255 = vadd.f32 %v1237, %v1247
    %v1256 = vadd.f32 %v1238, %v1248
    %v1257 = vadd.f32 %v1239, %v1249
    %s1258 = sld [smem:[#allocation3 + $0x208]]
    %v1259 = vstv %s1258
    %v1260 = vmul.f32 %v424, %v1259
    %v1261 = vmul.f32 %v423, %v1259
    %v1262 = vmul.f32 %v422, %v1259
    %v1263 = vmul.f32 %v421, %v1259
    %v1264 = vmul.f32 %v420, %v1259
    %v1265 = vmul.f32 %v419, %v1259
    %v1266 = vmul.f32 %v418, %v1259
    %v1267 = vmul.f32 %v425, %v1259
    %v1268 = vadd.f32 %v1250, %v1260
    %v1269 = vadd.f32 %v1251, %v1261
    %v1270 = vadd.f32 %v1252, %v1262
    %v1271 = vadd.f32 %v1253, %v1263
    %v1272 = vadd.f32 %v1254, %v1264
    %v1273 = vadd.f32 %v1255, %v1265
    %v1274 = vadd.f32 %v1256, %v1266
    %v1275 = vadd.f32 %v1257, %v1267
    %s1276 = sld [smem:[#allocation7 + $0x4]]
    %v1277 = vstv %s1276
    %v1278 = vadd.f32 %v1268, %v1277
    %v1279 = vadd.f32 %v1269, %v1277
    %v1280 = vadd.f32 %v1270, %v1277
    %v1281 = vadd.f32 %v1271, %v1277
    %v1282 = vadd.f32 %v1272, %v1277
    %v1283 = vadd.f32 %v1273, %v1277
    %v1284 = vadd.f32 %v1274, %v1277
    %v1285 = vadd.f32 %v1275, %v1277
    %v1286 = vmax.f32 %v1278, 0.0
    %v1287 = vmax.f32 %v1279, 0.0
    %v1288 = vmax.f32 %v1280, 0.0
    %v1289 = vmax.f32 %v1281, 0.0
    %v1290 = vmax.f32 %v1282, 0.0
    %v1291 = vmax.f32 %v1283, 0.0
    %v1292 = vmax.f32 %v1284, 0.0
    %v1293 = vmax.f32 %v1285, 0.0
    %v1294 = vpack.c.bf16 %v1286, %v1286
    %v1295 = vpack.c.bf16 %v1287, %v1287
    %v1296 = vpack.c.bf16 %v1288, %v1288
    %v1297 = vpack.c.bf16 %v1289, %v1289
    %v1298 = vpack.c.bf16 %v1290, %v1290
    %v1299 = vpack.c.bf16 %v1291, %v1291
    %v1300 = vpack.c.bf16 %v1292, %v1292
    %v1301 = vpack.c.bf16 %v1293, %v1293
    %v1310 = vunpack.c.l.b16 %v1294
    %v1311 = vunpack.c.l.b16 %v1295
    %v1312 = vunpack.c.l.b16 %v1296
    %v1313 = vunpack.c.l.b16 %v1297
    %v1314 = vunpack.c.l.b16 %v1298
    %v1315 = vunpack.c.l.b16 %v1299
    %v1316 = vunpack.c.l.b16 %v1300
    %v1317 = vunpack.c.l.b16 %v1301
    %v1318 = vpack.c.b16 %v1311, %v1310
    %v1319 = vpack.c.b16 %v1313, %v1312
    %v1320 = vpack.c.b16 %v1315, %v1314
    %v1321 = vpack.c.b16 %v1317, %v1316
    %1326 = vst [vmem:[#allocation2 + $0x80] sm:$0xff] %v1318
    %1327 = vst [vmem:[#allocation2 + $0x88] sm:$0xff] %v1319
    %1328 = vst [vmem:[#allocation2 + $0x90] sm:$0xff] %v1320
    %1329 = vst [vmem:[#allocation2 + $0x98] sm:$0xff] %v1321
    %s1330 = sld [smem:[#allocation3 + $0x280]]
    %v1331 = vstv %s1330
    %v1332 = vmul.f32 %v80, %v1331
    %v1333 = vmul.f32 %v81, %v1331
    %v1334 = vmul.f32 %v82, %v1331
    %v1335 = vmul.f32 %v83, %v1331
    %v1336 = vmul.f32 %v84, %v1331
    %v1337 = vmul.f32 %v85, %v1331
    %v1338 = vmul.f32 %v86, %v1331
    %v1339 = vmul.f32 %v87, %v1331
    %s1340 = sld [smem:[#allocation3 + $0x281]]
    %v1341 = vstv %s1340
    %v1342 = vmul.f32 %v123, %v1341
    %v1343 = vmul.f32 %v122, %v1341
    %v1344 = vmul.f32 %v121, %v1341
    %v1345 = vmul.f32 %v120, %v1341
    %v1346 = vmul.f32 %v119, %v1341
    %v1347 = vmul.f32 %v118, %v1341
    %v1348 = vmul.f32 %v117, %v1341
    %v1349 = vmul.f32 %v124, %v1341
    %v1350 = vadd.f32 %v1332, %v1342
    %v1351 = vadd.f32 %v1333, %v1343
    %v1352 = vadd.f32 %v1334, %v1344
    %v1353 = vadd.f32 %v1335, %v1345
    %v1354 = vadd.f32 %v1336, %v1346
    %v1355 = vadd.f32 %v1337, %v1347
    %v1356 = vadd.f32 %v1338, %v1348
    %v1357 = vadd.f32 %v1339, %v1349
    %s1358 = sld [smem:[#allocation3 + $0x282]]
    %v1359 = vstv %s1358
    %v1360 = vmul.f32 %v166, %v1359
    %v1361 = vmul.f32 %v165, %v1359
    %v1362 = vmul.f32 %v164, %v1359
    %v1363 = vmul.f32 %v163, %v1359
    %v1364 = vmul.f32 %v162, %v1359
    %v1365 = vmul.f32 %v161, %v1359
    %v1366 = vmul.f32 %v160, %v1359
    %v1367 = vmul.f32 %v167, %v1359
    %v1368 = vadd.f32 %v1350, %v1360
    %v1369 = vadd.f32 %v1351, %v1361
    %v1370 = vadd.f32 %v1352, %v1362
    %v1371 = vadd.f32 %v1353, %v1363
    %v1372 = vadd.f32 %v1354, %v1364
    %v1373 = vadd.f32 %v1355, %v1365
    %v1374 = vadd.f32 %v1356, %v1366
    %v1375 = vadd.f32 %v1357, %v1367
    %s1376 = sld [smem:[#allocation3 + $0x283]]
    %v1377 = vstv %s1376
    %v1378 = vmul.f32 %v209, %v1377
    %v1379 = vmul.f32 %v208, %v1377
    %v1380 = vmul.f32 %v207, %v1377
    %v1381 = vmul.f32 %v206, %v1377
    %v1382 = vmul.f32 %v205, %v1377
    %v1383 = vmul.f32 %v204, %v1377
    %v1384 = vmul.f32 %v203, %v1377
    %v1385 = vmul.f32 %v210, %v1377
    %v1386 = vadd.f32 %v1368, %v1378
    %v1387 = vadd.f32 %v1369, %v1379
    %v1388 = vadd.f32 %v1370, %v1380
    %v1389 = vadd.f32 %v1371, %v1381
    %v1390 = vadd.f32 %v1372, %v1382
    %v1391 = vadd.f32 %v1373, %v1383
    %v1392 = vadd.f32 %v1374, %v1384
    %v1393 = vadd.f32 %v1375, %v1385
    %s1394 = sld [smem:[#allocation3 + $0x284]]
    %v1395 = vstv %s1394
    %v1396 = vmul.f32 %v252, %v1395
    %v1397 = vmul.f32 %v251, %v1395
    %v1398 = vmul.f32 %v250, %v1395
    %v1399 = vmul.f32 %v249, %v1395
    %v1400 = vmul.f32 %v248, %v1395
    %v1401 = vmul.f32 %v247, %v1395
    %v1402 = vmul.f32 %v246, %v1395
    %v1403 = vmul.f32 %v253, %v1395
    %v1404 = vadd.f32 %v1386, %v1396
    %v1405 = vadd.f32 %v1387, %v1397
    %v1406 = vadd.f32 %v1388, %v1398
    %v1407 = vadd.f32 %v1389, %v1399
    %v1408 = vadd.f32 %v1390, %v1400
    %v1409 = vadd.f32 %v1391, %v1401
    %v1410 = vadd.f32 %v1392, %v1402
    %v1411 = vadd.f32 %v1393, %v1403
    %s1412 = sld [smem:[#allocation3 + $0x285]]
    %v1413 = vstv %s1412
    %v1414 = vmul.f32 %v295, %v1413
    %v1415 = vmul.f32 %v294, %v1413
    %v1416 = vmul.f32 %v293, %v1413
    %v1417 = vmul.f32 %v292, %v1413
    %v1418 = vmul.f32 %v291, %v1413
    %v1419 = vmul.f32 %v290, %v1413
    %v1420 = vmul.f32 %v289, %v1413
    %v1421 = vmul.f32 %v296, %v1413
    %v1422 = vadd.f32 %v1404, %v1414
    %v1423 = vadd.f32 %v1405, %v1415
    %v1424 = vadd.f32 %v1406, %v1416
    %v1425 = vadd.f32 %v1407, %v1417
    %v1426 = vadd.f32 %v1408, %v1418
    %v1427 = vadd.f32 %v1409, %v1419
    %v1428 = vadd.f32 %v1410, %v1420
    %v1429 = vadd.f32 %v1411, %v1421
    %s1430 = sld [smem:[#allocation3 + $0x286]]
    %v1431 = vstv %s1430
    %v1432 = vmul.f32 %v338, %v1431
    %v1433 = vmul.f32 %v337, %v1431
    %v1434 = vmul.f32 %v336, %v1431
    %v1435 = vmul.f32 %v335, %v1431
    %v1436 = vmul.f32 %v334, %v1431
    %v1437 = vmul.f32 %v333, %v1431
    %v1438 = vmul.f32 %v332, %v1431
    %v1439 = vmul.f32 %v339, %v1431
    %v1440 = vadd.f32 %v1422, %v1432
    %v1441 = vadd.f32 %v1423, %v1433
    %v1442 = vadd.f32 %v1424, %v1434
    %v1443 = vadd.f32 %v1425, %v1435
    %v1444 = vadd.f32 %v1426, %v1436
    %v1445 = vadd.f32 %v1427, %v1437
    %v1446 = vadd.f32 %v1428, %v1438
    %v1447 = vadd.f32 %v1429, %v1439
    %s1448 = sld [smem:[#allocation3 + $0x287]]
    %v1449 = vstv %s1448
    %v1450 = vmul.f32 %v381, %v1449
    %v1451 = vmul.f32 %v380, %v1449
    %v1452 = vmul.f32 %v379, %v1449
    %v1453 = vmul.f32 %v378, %v1449
    %v1454 = vmul.f32 %v377, %v1449
    %v1455 = vmul.f32 %v376, %v1449
    %v1456 = vmul.f32 %v375, %v1449
    %v1457 = vmul.f32 %v382, %v1449
    %v1458 = vadd.f32 %v1440, %v1450
    %v1459 = vadd.f32 %v1441, %v1451
    %v1460 = vadd.f32 %v1442, %v1452
    %v1461 = vadd.f32 %v1443, %v1453
    %v1462 = vadd.f32 %v1444, %v1454
    %v1463 = vadd.f32 %v1445, %v1455
    %v1464 = vadd.f32 %v1446, %v1456
    %v1465 = vadd.f32 %v1447, %v1457
    %s1466 = sld [smem:[#allocation3 + $0x288]]
    %v1467 = vstv %s1466
    %v1468 = vmul.f32 %v424, %v1467
    %v1469 = vmul.f32 %v423, %v1467
    %v1470 = vmul.f32 %v422, %v1467
    %v1471 = vmul.f32 %v421, %v1467
    %v1472 = vmul.f32 %v420, %v1467
    %v1473 = vmul.f32 %v419, %v1467
    %v1474 = vmul.f32 %v418, %v1467
    %v1475 = vmul.f32 %v425, %v1467
    %v1476 = vadd.f32 %v1458, %v1468
    %v1477 = vadd.f32 %v1459, %v1469
    %v1478 = vadd.f32 %v1460, %v1470
    %v1479 = vadd.f32 %v1461, %v1471
    %v1480 = vadd.f32 %v1462, %v1472
    %v1481 = vadd.f32 %v1463, %v1473
    %v1482 = vadd.f32 %v1464, %v1474
    %v1483 = vadd.f32 %v1465, %v1475
    %s1484 = sld [smem:[#allocation7 + $0x5]]
    %v1485 = vstv %s1484
    %v1486 = vadd.f32 %v1476, %v1485
    %v1487 = vadd.f32 %v1477, %v1485
    %v1488 = vadd.f32 %v1478, %v1485
    %v1489 = vadd.f32 %v1479, %v1485
    %v1490 = vadd.f32 %v1480, %v1485
    %v1491 = vadd.f32 %v1481, %v1485
    %v1492 = vadd.f32 %v1482, %v1485
    %v1493 = vadd.f32 %v1483, %v1485
    %v1494 = vmax.f32 %v1486, 0.0
    %v1495 = vmax.f32 %v1487, 0.0
    %v1496 = vmax.f32 %v1488, 0.0
    %v1497 = vmax.f32 %v1489, 0.0
    %v1498 = vmax.f32 %v1490, 0.0
    %v1499 = vmax.f32 %v1491, 0.0
    %v1500 = vmax.f32 %v1492, 0.0
    %v1501 = vmax.f32 %v1493, 0.0
    %v1502 = vpack.c.bf16 %v1494, %v1494
    %v1503 = vpack.c.bf16 %v1495, %v1495
    %v1504 = vpack.c.bf16 %v1496, %v1496
    %v1505 = vpack.c.bf16 %v1497, %v1497
    %v1506 = vpack.c.bf16 %v1498, %v1498
    %v1507 = vpack.c.bf16 %v1499, %v1499
    %v1508 = vpack.c.bf16 %v1500, %v1500
    %v1509 = vpack.c.bf16 %v1501, %v1501
    %v1518 = vunpack.c.l.b16 %v1502
    %v1519 = vunpack.c.l.b16 %v1503
    %v1520 = vunpack.c.l.b16 %v1504
    %v1521 = vunpack.c.l.b16 %v1505
    %v1522 = vunpack.c.l.b16 %v1506
    %v1523 = vunpack.c.l.b16 %v1507
    %v1524 = vunpack.c.l.b16 %v1508
    %v1525 = vunpack.c.l.b16 %v1509
    %v1526 = vpack.c.b16 %v1519, %v1518
    %v1527 = vpack.c.b16 %v1521, %v1520
    %v1528 = vpack.c.b16 %v1523, %v1522
    %v1529 = vpack.c.b16 %v1525, %v1524
    %1534 = vst [vmem:[#allocation2 + $0xa0] sm:$0xff] %v1526
    %1535 = vst [vmem:[#allocation2 + $0xa8] sm:$0xff] %v1527
    %1536 = vst [vmem:[#allocation2 + $0xb0] sm:$0xff] %v1528
    %1537 = vst [vmem:[#allocation2 + $0xb8] sm:$0xff] %v1529
    %s1538 = sld [smem:[#allocation3 + $0x300]]
    %v1539 = vstv %s1538
    %v1540 = vmul.f32 %v80, %v1539
    %v1541 = vmul.f32 %v81, %v1539
    %v1542 = vmul.f32 %v82, %v1539
    %v1543 = vmul.f32 %v83, %v1539
    %v1544 = vmul.f32 %v84, %v1539
    %v1545 = vmul.f32 %v85, %v1539
    %v1546 = vmul.f32 %v86, %v1539
    %v1547 = vmul.f32 %v87, %v1539
    %s1548 = sld [smem:[#allocation3 + $0x301]]
    %v1549 = vstv %s1548
    %v1550 = vmul.f32 %v123, %v1549
    %v1551 = vmul.f32 %v122, %v1549
    %v1552 = vmul.f32 %v121, %v1549
    %v1553 = vmul.f32 %v120, %v1549
    %v1554 = vmul.f32 %v119, %v1549
    %v1555 = vmul.f32 %v118, %v1549
    %v1556 = vmul.f32 %v117, %v1549
    %v1557 = vmul.f32 %v124, %v1549
    %v1558 = vadd.f32 %v1540, %v1550
    %v1559 = vadd.f32 %v1541, %v1551
    %v1560 = vadd.f32 %v1542, %v1552
    %v1561 = vadd.f32 %v1543, %v1553
    %v1562 = vadd.f32 %v1544, %v1554
    %v1563 = vadd.f32 %v1545, %v1555
    %v1564 = vadd.f32 %v1546, %v1556
    %v1565 = vadd.f32 %v1547, %v1557
    %s1566 = sld [smem:[#allocation3 + $0x302]]
    %v1567 = vstv %s1566
    %v1568 = vmul.f32 %v166, %v1567
    %v1569 = vmul.f32 %v165, %v1567
    %v1570 = vmul.f32 %v164, %v1567
    %v1571 = vmul.f32 %v163, %v1567
    %v1572 = vmul.f32 %v162, %v1567
    %v1573 = vmul.f32 %v161, %v1567
    %v1574 = vmul.f32 %v160, %v1567
    %v1575 = vmul.f32 %v167, %v1567
    %v1576 = vadd.f32 %v1558, %v1568
    %v1577 = vadd.f32 %v1559, %v1569
    %v1578 = vadd.f32 %v1560, %v1570
    %v1579 = vadd.f32 %v1561, %v1571
    %v1580 = vadd.f32 %v1562, %v1572
    %v1581 = vadd.f32 %v1563, %v1573
    %v1582 = vadd.f32 %v1564, %v1574
    %v1583 = vadd.f32 %v1565, %v1575
    %s1584 = sld [smem:[#allocation3 + $0x303]]
    %v1585 = vstv %s1584
    %v1586 = vmul.f32 %v209, %v1585
    %v1587 = vmul.f32 %v208, %v1585
    %v1588 = vmul.f32 %v207, %v1585
    %v1589 = vmul.f32 %v206, %v1585
    %v1590 = vmul.f32 %v205, %v1585
    %v1591 = vmul.f32 %v204, %v1585
    %v1592 = vmul.f32 %v203, %v1585
    %v1593 = vmul.f32 %v210, %v1585
    %v1594 = vadd.f32 %v1576, %v1586
    %v1595 = vadd.f32 %v1577, %v1587
    %v1596 = vadd.f32 %v1578, %v1588
    %v1597 = vadd.f32 %v1579, %v1589
    %v1598 = vadd.f32 %v1580, %v1590
    %v1599 = vadd.f32 %v1581, %v1591
    %v1600 = vadd.f32 %v1582, %v1592
    %v1601 = vadd.f32 %v1583, %v1593
    %s1602 = sld [smem:[#allocation3 + $0x304]]
    %v1603 = vstv %s1602
    %v1604 = vmul.f32 %v252, %v1603
    %v1605 = vmul.f32 %v251, %v1603
    %v1606 = vmul.f32 %v250, %v1603
    %v1607 = vmul.f32 %v249, %v1603
    %v1608 = vmul.f32 %v248, %v1603
    %v1609 = vmul.f32 %v247, %v1603
    %v1610 = vmul.f32 %v246, %v1603
    %v1611 = vmul.f32 %v253, %v1603
    %v1612 = vadd.f32 %v1594, %v1604
    %v1613 = vadd.f32 %v1595, %v1605
    %v1614 = vadd.f32 %v1596, %v1606
    %v1615 = vadd.f32 %v1597, %v1607
    %v1616 = vadd.f32 %v1598, %v1608
    %v1617 = vadd.f32 %v1599, %v1609
    %v1618 = vadd.f32 %v1600, %v1610
    %v1619 = vadd.f32 %v1601, %v1611
    %s1620 = sld [smem:[#allocation3 + $0x305]]
    %v1621 = vstv %s1620
    %v1622 = vmul.f32 %v295, %v1621
    %v1623 = vmul.f32 %v294, %v1621
    %v1624 = vmul.f32 %v293, %v1621
    %v1625 = vmul.f32 %v292, %v1621
    %v1626 = vmul.f32 %v291, %v1621
    %v1627 = vmul.f32 %v290, %v1621
    %v1628 = vmul.f32 %v289, %v1621
    %v1629 = vmul.f32 %v296, %v1621
    %v1630 = vadd.f32 %v1612, %v1622
    %v1631 = vadd.f32 %v1613, %v1623
    %v1632 = vadd.f32 %v1614, %v1624
    %v1633 = vadd.f32 %v1615, %v1625
    %v1634 = vadd.f32 %v1616, %v1626
    %v1635 = vadd.f32 %v1617, %v1627
    %v1636 = vadd.f32 %v1618, %v1628
    %v1637 = vadd.f32 %v1619, %v1629
    %s1638 = sld [smem:[#allocation3 + $0x306]]
    %v1639 = vstv %s1638
    %v1640 = vmul.f32 %v338, %v1639
    %v1641 = vmul.f32 %v337, %v1639
    %v1642 = vmul.f32 %v336, %v1639
    %v1643 = vmul.f32 %v335, %v1639
    %v1644 = vmul.f32 %v334, %v1639
    %v1645 = vmul.f32 %v333, %v1639
    %v1646 = vmul.f32 %v332, %v1639
    %v1647 = vmul.f32 %v339, %v1639
    %v1648 = vadd.f32 %v1630, %v1640
    %v1649 = vadd.f32 %v1631, %v1641
    %v1650 = vadd.f32 %v1632, %v1642
    %v1651 = vadd.f32 %v1633, %v1643
    %v1652 = vadd.f32 %v1634, %v1644
    %v1653 = vadd.f32 %v1635, %v1645
    %v1654 = vadd.f32 %v1636, %v1646
    %v1655 = vadd.f32 %v1637, %v1647
    %s1656 = sld [smem:[#allocation3 + $0x307]]
    %v1657 = vstv %s1656
    %v1658 = vmul.f32 %v381, %v1657
    %v1659 = vmul.f32 %v380, %v1657
    %v1660 = vmul.f32 %v379, %v1657
    %v1661 = vmul.f32 %v378, %v1657
    %v1662 = vmul.f32 %v377, %v1657
    %v1663 = vmul.f32 %v376, %v1657
    %v1664 = vmul.f32 %v375, %v1657
    %v1665 = vmul.f32 %v382, %v1657
    %v1666 = vadd.f32 %v1648, %v1658
    %v1667 = vadd.f32 %v1649, %v1659
    %v1668 = vadd.f32 %v1650, %v1660
    %v1669 = vadd.f32 %v1651, %v1661
    %v1670 = vadd.f32 %v1652, %v1662
    %v1671 = vadd.f32 %v1653, %v1663
    %v1672 = vadd.f32 %v1654, %v1664
    %v1673 = vadd.f32 %v1655, %v1665
    %s1674 = sld [smem:[#allocation3 + $0x308]]
    %v1675 = vstv %s1674
    %v1676 = vmul.f32 %v424, %v1675
    %v1677 = vmul.f32 %v423, %v1675
    %v1678 = vmul.f32 %v422, %v1675
    %v1679 = vmul.f32 %v421, %v1675
    %v1680 = vmul.f32 %v420, %v1675
    %v1681 = vmul.f32 %v419, %v1675
    %v1682 = vmul.f32 %v418, %v1675
    %v1683 = vmul.f32 %v425, %v1675
    %v1684 = vadd.f32 %v1666, %v1676
    %v1685 = vadd.f32 %v1667, %v1677
    %v1686 = vadd.f32 %v1668, %v1678
    %v1687 = vadd.f32 %v1669, %v1679
    %v1688 = vadd.f32 %v1670, %v1680
    %v1689 = vadd.f32 %v1671, %v1681
    %v1690 = vadd.f32 %v1672, %v1682
    %v1691 = vadd.f32 %v1673, %v1683
    %s1692 = sld [smem:[#allocation7 + $0x6]]
    %v1693 = vstv %s1692
    %v1694 = vadd.f32 %v1684, %v1693
    %v1695 = vadd.f32 %v1685, %v1693
    %v1696 = vadd.f32 %v1686, %v1693
    %v1697 = vadd.f32 %v1687, %v1693
    %v1698 = vadd.f32 %v1688, %v1693
    %v1699 = vadd.f32 %v1689, %v1693
    %v1700 = vadd.f32 %v1690, %v1693
    %v1701 = vadd.f32 %v1691, %v1693
    %v1702 = vmax.f32 %v1694, 0.0
    %v1703 = vmax.f32 %v1695, 0.0
    %v1704 = vmax.f32 %v1696, 0.0
    %v1705 = vmax.f32 %v1697, 0.0
    %v1706 = vmax.f32 %v1698, 0.0
    %v1707 = vmax.f32 %v1699, 0.0
    %v1708 = vmax.f32 %v1700, 0.0
    %v1709 = vmax.f32 %v1701, 0.0
    %v1710 = vpack.c.bf16 %v1702, %v1702
    %v1711 = vpack.c.bf16 %v1703, %v1703
    %v1712 = vpack.c.bf16 %v1704, %v1704
    %v1713 = vpack.c.bf16 %v1705, %v1705
    %v1714 = vpack.c.bf16 %v1706, %v1706
    %v1715 = vpack.c.bf16 %v1707, %v1707
    %v1716 = vpack.c.bf16 %v1708, %v1708
    %v1717 = vpack.c.bf16 %v1709, %v1709
    %v1726 = vunpack.c.l.b16 %v1710
    %v1727 = vunpack.c.l.b16 %v1711
    %v1728 = vunpack.c.l.b16 %v1712
    %v1729 = vunpack.c.l.b16 %v1713
    %v1730 = vunpack.c.l.b16 %v1714
    %v1731 = vunpack.c.l.b16 %v1715
    %v1732 = vunpack.c.l.b16 %v1716
    %v1733 = vunpack.c.l.b16 %v1717
    %v1734 = vpack.c.b16 %v1727, %v1726
    %v1735 = vpack.c.b16 %v1729, %v1728
    %v1736 = vpack.c.b16 %v1731, %v1730
    %v1737 = vpack.c.b16 %v1733, %v1732
    %1742 = vst [vmem:[#allocation2 + $0xc0] sm:$0xff] %v1734
    %1743 = vst [vmem:[#allocation2 + $0xc8] sm:$0xff] %v1735
    %1744 = vst [vmem:[#allocation2 + $0xd0] sm:$0xff] %v1736
    %1745 = vst [vmem:[#allocation2 + $0xd8] sm:$0xff] %v1737
    %s1746 = sld [smem:[#allocation3 + $0x380]]
    %v1747 = vstv %s1746
    %v1748 = vmul.f32 %v80, %v1747
    %v1749 = vmul.f32 %v81, %v1747
    %v1750 = vmul.f32 %v82, %v1747
    %v1751 = vmul.f32 %v83, %v1747
    %v1752 = vmul.f32 %v84, %v1747
    %v1753 = vmul.f32 %v85, %v1747
    %v1754 = vmul.f32 %v86, %v1747
    %v1755 = vmul.f32 %v87, %v1747
    %s1756 = sld [smem:[#allocation3 + $0x381]]
    %v1757 = vstv %s1756
    %v1758 = vmul.f32 %v123, %v1757
    %v1759 = vmul.f32 %v122, %v1757
    %v1760 = vmul.f32 %v121, %v1757
    %v1761 = vmul.f32 %v120, %v1757
    %v1762 = vmul.f32 %v119, %v1757
    %v1763 = vmul.f32 %v118, %v1757
    %v1764 = vmul.f32 %v117, %v1757
    %v1765 = vmul.f32 %v124, %v1757
    %v1766 = vadd.f32 %v1748, %v1758
    %v1767 = vadd.f32 %v1749, %v1759
    %v1768 = vadd.f32 %v1750, %v1760
    %v1769 = vadd.f32 %v1751, %v1761
    %v1770 = vadd.f32 %v1752, %v1762
    %v1771 = vadd.f32 %v1753, %v1763
    %v1772 = vadd.f32 %v1754, %v1764
    %v1773 = vadd.f32 %v1755, %v1765
    %s1774 = sld [smem:[#allocation3 + $0x382]]
    %v1775 = vstv %s1774
    %v1776 = vmul.f32 %v166, %v1775
    %v1777 = vmul.f32 %v165, %v1775
    %v1778 = vmul.f32 %v164, %v1775
    %v1779 = vmul.f32 %v163, %v1775
    %v1780 = vmul.f32 %v162, %v1775
    %v1781 = vmul.f32 %v161, %v1775
    %v1782 = vmul.f32 %v160, %v1775
    %v1783 = vmul.f32 %v167, %v1775
    %v1784 = vadd.f32 %v1766, %v1776
    %v1785 = vadd.f32 %v1767, %v1777
    %v1786 = vadd.f32 %v1768, %v1778
    %v1787 = vadd.f32 %v1769, %v1779
    %v1788 = vadd.f32 %v1770, %v1780
    %v1789 = vadd.f32 %v1771, %v1781
    %v1790 = vadd.f32 %v1772, %v1782
    %v1791 = vadd.f32 %v1773, %v1783
    %s1792 = sld [smem:[#allocation3 + $0x383]]
    %v1793 = vstv %s1792
    %v1794 = vmul.f32 %v209, %v1793
    %v1795 = vmul.f32 %v208, %v1793
    %v1796 = vmul.f32 %v207, %v1793
    %v1797 = vmul.f32 %v206, %v1793
    %v1798 = vmul.f32 %v205, %v1793
    %v1799 = vmul.f32 %v204, %v1793
    %v1800 = vmul.f32 %v203, %v1793
    %v1801 = vmul.f32 %v210, %v1793
    %v1802 = vadd.f32 %v1784, %v1794
    %v1803 = vadd.f32 %v1785, %v1795
    %v1804 = vadd.f32 %v1786, %v1796
    %v1805 = vadd.f32 %v1787, %v1797
    %v1806 = vadd.f32 %v1788, %v1798
    %v1807 = vadd.f32 %v1789, %v1799
    %v1808 = vadd.f32 %v1790, %v1800
    %v1809 = vadd.f32 %v1791, %v1801
    %s1810 = sld [smem:[#allocation3 + $0x384]]
    %v1811 = vstv %s1810
    %v1812 = vmul.f32 %v252, %v1811
    %v1813 = vmul.f32 %v251, %v1811
    %v1814 = vmul.f32 %v250, %v1811
    %v1815 = vmul.f32 %v249, %v1811
    %v1816 = vmul.f32 %v248, %v1811
    %v1817 = vmul.f32 %v247, %v1811
    %v1818 = vmul.f32 %v246, %v1811
    %v1819 = vmul.f32 %v253, %v1811
    %v1820 = vadd.f32 %v1802, %v1812
    %v1821 = vadd.f32 %v1803, %v1813
    %v1822 = vadd.f32 %v1804, %v1814
    %v1823 = vadd.f32 %v1805, %v1815
    %v1824 = vadd.f32 %v1806, %v1816
    %v1825 = vadd.f32 %v1807, %v1817
    %v1826 = vadd.f32 %v1808, %v1818
    %v1827 = vadd.f32 %v1809, %v1819
    %s1828 = sld [smem:[#allocation3 + $0x385]]
    %v1829 = vstv %s1828
    %v1830 = vmul.f32 %v295, %v1829
    %v1831 = vmul.f32 %v294, %v1829
    %v1832 = vmul.f32 %v293, %v1829
    %v1833 = vmul.f32 %v292, %v1829
    %v1834 = vmul.f32 %v291, %v1829
    %v1835 = vmul.f32 %v290, %v1829
    %v1836 = vmul.f32 %v289, %v1829
    %v1837 = vmul.f32 %v296, %v1829
    %v1838 = vadd.f32 %v1820, %v1830
    %v1839 = vadd.f32 %v1821, %v1831
    %v1840 = vadd.f32 %v1822, %v1832
    %v1841 = vadd.f32 %v1823, %v1833
    %v1842 = vadd.f32 %v1824, %v1834
    %v1843 = vadd.f32 %v1825, %v1835
    %v1844 = vadd.f32 %v1826, %v1836
    %v1845 = vadd.f32 %v1827, %v1837
    %s1846 = sld [smem:[#allocation3 + $0x386]]
    %v1847 = vstv %s1846
    %v1848 = vmul.f32 %v338, %v1847
    %v1849 = vmul.f32 %v337, %v1847
    %v1850 = vmul.f32 %v336, %v1847
    %v1851 = vmul.f32 %v335, %v1847
    %v1852 = vmul.f32 %v334, %v1847
    %v1853 = vmul.f32 %v333, %v1847
    %v1854 = vmul.f32 %v332, %v1847
    %v1855 = vmul.f32 %v339, %v1847
    %v1856 = vadd.f32 %v1838, %v1848
    %v1857 = vadd.f32 %v1839, %v1849
    %v1858 = vadd.f32 %v1840, %v1850
    %v1859 = vadd.f32 %v1841, %v1851
    %v1860 = vadd.f32 %v1842, %v1852
    %v1861 = vadd.f32 %v1843, %v1853
    %v1862 = vadd.f32 %v1844, %v1854
    %v1863 = vadd.f32 %v1845, %v1855
    %s1864 = sld [smem:[#allocation3 + $0x387]]
    %v1865 = vstv %s1864
    %v1866 = vmul.f32 %v381, %v1865
    %v1867 = vmul.f32 %v380, %v1865
    %v1868 = vmul.f32 %v379, %v1865
    %v1869 = vmul.f32 %v378, %v1865
    %v1870 = vmul.f32 %v377, %v1865
    %v1871 = vmul.f32 %v376, %v1865
    %v1872 = vmul.f32 %v375, %v1865
    %v1873 = vmul.f32 %v382, %v1865
    %v1874 = vadd.f32 %v1856, %v1866
    %v1875 = vadd.f32 %v1857, %v1867
    %v1876 = vadd.f32 %v1858, %v1868
    %v1877 = vadd.f32 %v1859, %v1869
    %v1878 = vadd.f32 %v1860, %v1870
    %v1879 = vadd.f32 %v1861, %v1871
    %v1880 = vadd.f32 %v1862, %v1872
    %v1881 = vadd.f32 %v1863, %v1873
    %s1882 = sld [smem:[#allocation3 + $0x388]]
    %v1883 = vstv %s1882
    %v1884 = vmul.f32 %v424, %v1883
    %v1885 = vmul.f32 %v423, %v1883
    %v1886 = vmul.f32 %v422, %v1883
    %v1887 = vmul.f32 %v421, %v1883
    %v1888 = vmul.f32 %v420, %v1883
    %v1889 = vmul.f32 %v419, %v1883
    %v1890 = vmul.f32 %v418, %v1883
    %v1891 = vmul.f32 %v425, %v1883
    %v1892 = vadd.f32 %v1874, %v1884
    %v1893 = vadd.f32 %v1875, %v1885
    %v1894 = vadd.f32 %v1876, %v1886
    %v1895 = vadd.f32 %v1877, %v1887
    %v1896 = vadd.f32 %v1878, %v1888
    %v1897 = vadd.f32 %v1879, %v1889
    %v1898 = vadd.f32 %v1880, %v1890
    %v1899 = vadd.f32 %v1881, %v1891
    %s1900 = sld [smem:[#allocation7 + $0x7]]
    %v1901 = vstv %s1900
    %v1902 = vadd.f32 %v1892, %v1901
    %v1903 = vadd.f32 %v1893, %v1901
    %v1904 = vadd.f32 %v1894, %v1901
    %v1905 = vadd.f32 %v1895, %v1901
    %v1906 = vadd.f32 %v1896, %v1901
    %v1907 = vadd.f32 %v1897, %v1901
    %v1908 = vadd.f32 %v1898, %v1901
    %v1909 = vadd.f32 %v1899, %v1901
    %v1910 = vmax.f32 %v1902, 0.0
    %v1911 = vmax.f32 %v1903, 0.0
    %v1912 = vmax.f32 %v1904, 0.0
    %v1913 = vmax.f32 %v1905, 0.0
    %v1914 = vmax.f32 %v1906, 0.0
    %v1915 = vmax.f32 %v1907, 0.0
    %v1916 = vmax.f32 %v1908, 0.0
    %v1917 = vmax.f32 %v1909, 0.0
    %v1918 = vpack.c.bf16 %v1910, %v1910
    %v1919 = vpack.c.bf16 %v1911, %v1911
    %v1920 = vpack.c.bf16 %v1912, %v1912
    %v1921 = vpack.c.bf16 %v1913, %v1913
    %v1922 = vpack.c.bf16 %v1914, %v1914
    %v1923 = vpack.c.bf16 %v1915, %v1915
    %v1924 = vpack.c.bf16 %v1916, %v1916
    %v1925 = vpack.c.bf16 %v1917, %v1917
    %v1934 = vunpack.c.l.b16 %v1918
    %v1935 = vunpack.c.l.b16 %v1919
    %v1936 = vunpack.c.l.b16 %v1920
    %v1937 = vunpack.c.l.b16 %v1921
    %v1938 = vunpack.c.l.b16 %v1922
    %v1939 = vunpack.c.l.b16 %v1923
    %v1940 = vunpack.c.l.b16 %v1924
    %v1941 = vunpack.c.l.b16 %v1925
    %v1942 = vpack.c.b16 %v1935, %v1934
    %v1943 = vpack.c.b16 %v1937, %v1936
    %v1944 = vpack.c.b16 %v1939, %v1938
    %v1945 = vpack.c.b16 %v1941, %v1940
    %1950 = vst [vmem:[#allocation2 + $0xe0] sm:$0xff] %v1942
    %1951 = vst [vmem:[#allocation2 + $0xe8] sm:$0xff] %v1943
    %1952 = vst [vmem:[#allocation2 + $0xf0] sm:$0xff] %v1944
    %1953 = vst [vmem:[#allocation2 + $0xf8] sm:$0xff] %v1945
    %v1954 = vld [vmem:[#allocation2] sm:$0xff]
    %v1955 = vld [vmem:[#allocation2 + $0x8] sm:$0xff]
    %v1956 = vld [vmem:[#allocation2 + $0x10] sm:$0xff]
    %v1957 = vld [vmem:[#allocation2 + $0x18] sm:$0xff]
    %v1958 = vld [vmem:[#allocation2 + $0x20] sm:$0xff]
    %v1959 = vld [vmem:[#allocation2 + $0x28] sm:$0xff]
    %v1960 = vld [vmem:[#allocation2 + $0x30] sm:$0xff]
    %v1961 = vld [vmem:[#allocation2 + $0x38] sm:$0xff]
    %v1962 = vld [vmem:[#allocation2 + $0x40] sm:$0xff]
    %v1963 = vld [vmem:[#allocation2 + $0x48] sm:$0xff]
    %v1964 = vld [vmem:[#allocation2 + $0x50] sm:$0xff]
    %v1965 = vld [vmem:[#allocation2 + $0x58] sm:$0xff]
    %v1966 = vld [vmem:[#allocation2 + $0x60] sm:$0xff]
    %v1967 = vld [vmem:[#allocation2 + $0x68] sm:$0xff]
    %v1968 = vld [vmem:[#allocation2 + $0x70] sm:$0xff]
    %v1969 = vld [vmem:[#allocation2 + $0x78] sm:$0xff]
    %v1970 = vld [vmem:[#allocation2 + $0x80] sm:$0xff]
    %v1971 = vld [vmem:[#allocation2 + $0x88] sm:$0xff]
    %v1972 = vld [vmem:[#allocation2 + $0x90] sm:$0xff]
    %v1973 = vld [vmem:[#allocation2 + $0x98] sm:$0xff]
    %v1974 = vld [vmem:[#allocation2 + $0xa0] sm:$0xff]
    %v1975 = vld [vmem:[#allocation2 + $0xa8] sm:$0xff]
    %v1976 = vld [vmem:[#allocation2 + $0xb0] sm:$0xff]
    %v1977 = vld [vmem:[#allocation2 + $0xb8] sm:$0xff]
    %v1978 = vld [vmem:[#allocation2 + $0xc0] sm:$0xff]
    %v1979 = vld [vmem:[#allocation2 + $0xc8] sm:$0xff]
    %v1980 = vld [vmem:[#allocation2 + $0xd0] sm:$0xff]
    %v1981 = vld [vmem:[#allocation2 + $0xd8] sm:$0xff]
    %v1982 = vld [vmem:[#allocation2 + $0xe0] sm:$0xff]
    %v1983 = vld [vmem:[#allocation2 + $0xe8] sm:$0xff]
    %v1984 = vld [vmem:[#allocation2 + $0xf0] sm:$0xff]
    %v1985 = vld [vmem:[#allocation2 + $0xf8] sm:$0xff]
    %v1986 = vld [vmem:[#allocation10] sm:$0xf]
    %v1987 = vld [vmem:[#allocation10 + $0x4] sm:$0xf]
    %v1988 = vld [vmem:[#allocation10 + $0x8] sm:$0xf]
    %v1989 = vld [vmem:[#allocation10 + $0xc] sm:$0xf]
    %v1990 = vld [vmem:[#allocation10 + $0x10] sm:$0xf]
    %v1991 = vld [vmem:[#allocation10 + $0x14] sm:$0xf]
    %v1992 = vld [vmem:[#allocation10 + $0x18] sm:$0xf]
    %v1993 = vld [vmem:[#allocation10 + $0x1c] sm:$0xf]
    %v1994 = vld [vmem:[#allocation10 + $0x20] sm:$0xf]
    %v1995 = vld [vmem:[#allocation10 + $0x24] sm:$0xf]
    %v1996 = vld [vmem:[#allocation10 + $0x28] sm:$0xf]
    %v1997 = vld [vmem:[#allocation10 + $0x2c] sm:$0xf]
    %v1998 = vld [vmem:[#allocation10 + $0x30] sm:$0xf]
    %v1999 = vld [vmem:[#allocation10 + $0x34] sm:$0xf]
    %v2000 = vld [vmem:[#allocation10 + $0x38] sm:$0xf]
    %v2001 = vld [vmem:[#allocation10 + $0x3c] sm:$0xf]
    %v2002 = vld [vmem:[#allocation10 + $0x40] sm:$0xf]
    %v2003 = vld [vmem:[#allocation10 + $0x44] sm:$0xf]
    %v2004 = vld [vmem:[#allocation10 + $0x48] sm:$0xf]
    %v2005 = vld [vmem:[#allocation10 + $0x4c] sm:$0xf]
    %v2006 = vld [vmem:[#allocation10 + $0x50] sm:$0xf]
    %v2007 = vld [vmem:[#allocation10 + $0x54] sm:$0xf]
    %v2008 = vld [vmem:[#allocation10 + $0x58] sm:$0xf]
    %v2009 = vld [vmem:[#allocation10 + $0x5c] sm:$0xf]
    %v2010 = vld [vmem:[#allocation10 + $0x60] sm:$0xf]
    %v2011 = vld [vmem:[#allocation10 + $0x64] sm:$0xf]
    %v2012 = vld [vmem:[#allocation10 + $0x68] sm:$0xf]
    %v2013 = vld [vmem:[#allocation10 + $0x6c] sm:$0xf]
    %v2014 = vld [vmem:[#allocation10 + $0x70] sm:$0xf]
    %v2015 = vld [vmem:[#allocation10 + $0x74] sm:$0xf]
    %v2016 = vld [vmem:[#allocation10 + $0x78] sm:$0xf]
    %v2017 = vld [vmem:[#allocation10 + $0x7c] sm:$0xf]
    %v2018 = vld [vmem:[#allocation10 + $0x80] sm:$0xf]
    %v2019 = vld [vmem:[#allocation10 + $0x84] sm:$0xf]
    %v2020 = vld [vmem:[#allocation10 + $0x88] sm:$0xf]
    %v2021 = vld [vmem:[#allocation10 + $0x8c] sm:$0xf]
    %v2022 = vld [vmem:[#allocation10 + $0x90] sm:$0xf]
    %v2023 = vld [vmem:[#allocation10 + $0x94] sm:$0xf]
    %v2024 = vld [vmem:[#allocation10 + $0x98] sm:$0xf]
    %v2025 = vld [vmem:[#allocation10 + $0x9c] sm:$0xf]
    %v2026 = vld [vmem:[#allocation10 + $0xa0] sm:$0xf]
    %v2027 = vld [vmem:[#allocation10 + $0xa4] sm:$0xf]
    %v2028 = vld [vmem:[#allocation10 + $0xa8] sm:$0xf]
    %v2029 = vld [vmem:[#allocation10 + $0xac] sm:$0xf]
    %v2030 = vld [vmem:[#allocation10 + $0xb0] sm:$0xf]
    %v2031 = vld [vmem:[#allocation10 + $0xb4] sm:$0xf]
    %v2032 = vld [vmem:[#allocation10 + $0xb8] sm:$0xf]
    %v2033 = vld [vmem:[#allocation10 + $0xbc] sm:$0xf]
    %v2034 = vld [vmem:[#allocation10 + $0xc0] sm:$0xf]
    %v2035 = vld [vmem:[#allocation10 + $0xc4] sm:$0xf]
    %v2036 = vld [vmem:[#allocation10 + $0xc8] sm:$0xf]
    %v2037 = vld [vmem:[#allocation10 + $0xcc] sm:$0xf]
    %v2038 = vld [vmem:[#allocation10 + $0xd0] sm:$0xf]
    %v2039 = vld [vmem:[#allocation10 + $0xd4] sm:$0xf]
    %v2040 = vld [vmem:[#allocation10 + $0xd8] sm:$0xf]
    %v2041 = vld [vmem:[#allocation10 + $0xdc] sm:$0xf]
    %v2042 = vld [vmem:[#allocation10 + $0xe0] sm:$0xf]
    %v2043 = vld [vmem:[#allocation10 + $0xe4] sm:$0xf]
    %v2044 = vld [vmem:[#allocation10 + $0xe8] sm:$0xf]
    %v2045 = vld [vmem:[#allocation10 + $0xec] sm:$0xf]
    %v2046 = vld [vmem:[#allocation10 + $0xf0] sm:$0xf]
    %v2047 = vld [vmem:[#allocation10 + $0xf4] sm:$0xf]
    %v2048 = vld [vmem:[#allocation10 + $0xf8] sm:$0xf]
    %v2049 = vld [vmem:[#allocation10 + $0xfc] sm:$0xf]
    %v2050 = vld [vmem:[#allocation10 + $0x100] sm:$0xf]
    %v2051 = vld [vmem:[#allocation10 + $0x104] sm:$0xf]
    %v2052 = vld [vmem:[#allocation10 + $0x108] sm:$0xf]
    %v2053 = vld [vmem:[#allocation10 + $0x10c] sm:$0xf]
    %v2054 = vld [vmem:[#allocation10 + $0x110] sm:$0xf]
    %v2055 = vld [vmem:[#allocation10 + $0x114] sm:$0xf]
    %v2056 = vld [vmem:[#allocation10 + $0x118] sm:$0xf]
    %v2057 = vld [vmem:[#allocation10 + $0x11c] sm:$0xf]
    %v2058 = vld [vmem:[#allocation10 + $0x120] sm:$0xf]
    %v2059 = vld [vmem:[#allocation10 + $0x124] sm:$0xf]
    %v2060 = vld [vmem:[#allocation10 + $0x128] sm:$0xf]
    %v2061 = vld [vmem:[#allocation10 + $0x12c] sm:$0xf]
    %v2062 = vld [vmem:[#allocation10 + $0x130] sm:$0xf]
    %v2063 = vld [vmem:[#allocation10 + $0x134] sm:$0xf]
    %v2064 = vld [vmem:[#allocation10 + $0x138] sm:$0xf]
    %v2065 = vld [vmem:[#allocation10 + $0x13c] sm:$0xf]
    %v2066 = vld [vmem:[#allocation10 + $0x140] sm:$0xf]
    %v2067 = vld [vmem:[#allocation10 + $0x144] sm:$0xf]
    %v2068 = vld [vmem:[#allocation10 + $0x148] sm:$0xf]
    %v2069 = vld [vmem:[#allocation10 + $0x14c] sm:$0xf]
    %v2070 = vld [vmem:[#allocation10 + $0x150] sm:$0xf]
    %v2071 = vld [vmem:[#allocation10 + $0x154] sm:$0xf]
    %v2072 = vld [vmem:[#allocation10 + $0x158] sm:$0xf]
    %v2073 = vld [vmem:[#allocation10 + $0x15c] sm:$0xf]
    %v2074 = vld [vmem:[#allocation10 + $0x160] sm:$0xf]
    %v2075 = vld [vmem:[#allocation10 + $0x164] sm:$0xf]
    %v2076 = vld [vmem:[#allocation10 + $0x168] sm:$0xf]
    %v2077 = vld [vmem:[#allocation10 + $0x16c] sm:$0xf]
    %v2078 = vld [vmem:[#allocation10 + $0x170] sm:$0xf]
    %v2079 = vld [vmem:[#allocation10 + $0x174] sm:$0xf]
    %v2080 = vld [vmem:[#allocation10 + $0x178] sm:$0xf]
    %v2081 = vld [vmem:[#allocation10 + $0x17c] sm:$0xf]
    %v2082 = vld [vmem:[#allocation10 + $0x180] sm:$0xf]
    %v2083 = vld [vmem:[#allocation10 + $0x184] sm:$0xf]
    %v2084 = vld [vmem:[#allocation10 + $0x188] sm:$0xf]
    %v2085 = vld [vmem:[#allocation10 + $0x18c] sm:$0xf]
    %v2086 = vld [vmem:[#allocation10 + $0x190] sm:$0xf]
    %v2087 = vld [vmem:[#allocation10 + $0x194] sm:$0xf]
    %v2088 = vld [vmem:[#allocation10 + $0x198] sm:$0xf]
    %v2089 = vld [vmem:[#allocation10 + $0x19c] sm:$0xf]
    %v2090 = vld [vmem:[#allocation10 + $0x1a0] sm:$0xf]
    %v2091 = vld [vmem:[#allocation10 + $0x1a4] sm:$0xf]
    %v2092 = vld [vmem:[#allocation10 + $0x1a8] sm:$0xf]
    %v2093 = vld [vmem:[#allocation10 + $0x1ac] sm:$0xf]
    %v2094 = vld [vmem:[#allocation10 + $0x1b0] sm:$0xf]
    %v2095 = vld [vmem:[#allocation10 + $0x1b4] sm:$0xf]
    %v2096 = vld [vmem:[#allocation10 + $0x1b8] sm:$0xf]
    %v2097 = vld [vmem:[#allocation10 + $0x1bc] sm:$0xf]
    %v2098 = vld [vmem:[#allocation10 + $0x1c0] sm:$0xf]
    %v2099 = vld [vmem:[#allocation10 + $0x1c4] sm:$0xf]
    %v2100 = vld [vmem:[#allocation10 + $0x1c8] sm:$0xf]
    %v2101 = vld [vmem:[#allocation10 + $0x1cc] sm:$0xf]
    %v2102 = vld [vmem:[#allocation10 + $0x1d0] sm:$0xf]
    %v2103 = vld [vmem:[#allocation10 + $0x1d4] sm:$0xf]
    %v2104 = vld [vmem:[#allocation10 + $0x1d8] sm:$0xf]
    %v2105 = vld [vmem:[#allocation10 + $0x1dc] sm:$0xf]
    %v2106 = vld [vmem:[#allocation10 + $0x1e0] sm:$0xf]
    %v2107 = vld [vmem:[#allocation10 + $0x1e4] sm:$0xf]
    %v2108 = vld [vmem:[#allocation10 + $0x1e8] sm:$0xf]
    %v2109 = vld [vmem:[#allocation10 + $0x1ec] sm:$0xf]
    %v2110 = vld [vmem:[#allocation10 + $0x1f0] sm:$0xf]
    %v2111 = vld [vmem:[#allocation10 + $0x1f4] sm:$0xf]
    %v2112 = vld [vmem:[#allocation10 + $0x1f8] sm:$0xf]
    %v2113 = vld [vmem:[#allocation10 + $0x1fc] sm:$0xf]
    %v2114 = vld [vmem:[#allocation10 + $0x200] sm:$0xf]
    %v2115 = vld [vmem:[#allocation10 + $0x204] sm:$0xf]
    %v2116 = vld [vmem:[#allocation10 + $0x208] sm:$0xf]
    %v2117 = vld [vmem:[#allocation10 + $0x20c] sm:$0xf]
    %v2118 = vld [vmem:[#allocation10 + $0x210] sm:$0xf]
    %v2119 = vld [vmem:[#allocation10 + $0x214] sm:$0xf]
    %v2120 = vld [vmem:[#allocation10 + $0x218] sm:$0xf]
    %v2121 = vld [vmem:[#allocation10 + $0x21c] sm:$0xf]
    %v2122 = vld [vmem:[#allocation10 + $0x220] sm:$0xf]
    %v2123 = vld [vmem:[#allocation10 + $0x224] sm:$0xf]
    %v2124 = vld [vmem:[#allocation10 + $0x228] sm:$0xf]
    %v2125 = vld [vmem:[#allocation10 + $0x22c] sm:$0xf]
    %v2126 = vld [vmem:[#allocation10 + $0x230] sm:$0xf]
    %v2127 = vld [vmem:[#allocation10 + $0x234] sm:$0xf]
    %v2128 = vld [vmem:[#allocation10 + $0x238] sm:$0xf]
    %v2129 = vld [vmem:[#allocation10 + $0x23c] sm:$0xf]
    %v2130 = vld [vmem:[#allocation10 + $0x240] sm:$0xf]
    %v2131 = vld [vmem:[#allocation10 + $0x244] sm:$0xf]
    %v2132 = vld [vmem:[#allocation10 + $0x248] sm:$0xf]
    %v2133 = vld [vmem:[#allocation10 + $0x24c] sm:$0xf]
    %v2134 = vld [vmem:[#allocation10 + $0x250] sm:$0xf]
    %v2135 = vld [vmem:[#allocation10 + $0x254] sm:$0xf]
    %v2136 = vld [vmem:[#allocation10 + $0x258] sm:$0xf]
    %v2137 = vld [vmem:[#allocation10 + $0x25c] sm:$0xf]
    %v2138 = vld [vmem:[#allocation10 + $0x260] sm:$0xf]
    %v2139 = vld [vmem:[#allocation10 + $0x264] sm:$0xf]
    %v2140 = vld [vmem:[#allocation10 + $0x268] sm:$0xf]
    %v2141 = vld [vmem:[#allocation10 + $0x26c] sm:$0xf]
    %v2142 = vld [vmem:[#allocation10 + $0x270] sm:$0xf]
    %v2143 = vld [vmem:[#allocation10 + $0x274] sm:$0xf]
    %v2144 = vld [vmem:[#allocation10 + $0x278] sm:$0xf]
    %v2145 = vld [vmem:[#allocation10 + $0x27c] sm:$0xf]
    %v2146 = vld [vmem:[#allocation10 + $0x280] sm:$0xf]
    %v2147 = vld [vmem:[#allocation10 + $0x284] sm:$0xf]
    %v2148 = vld [vmem:[#allocation10 + $0x288] sm:$0xf]
    %v2149 = vld [vmem:[#allocation10 + $0x28c] sm:$0xf]
    %v2150 = vld [vmem:[#allocation10 + $0x290] sm:$0xf]
    %v2151 = vld [vmem:[#allocation10 + $0x294] sm:$0xf]
    %v2152 = vld [vmem:[#allocation10 + $0x298] sm:$0xf]
    %v2153 = vld [vmem:[#allocation10 + $0x29c] sm:$0xf]
    %v2154 = vld [vmem:[#allocation10 + $0x2a0] sm:$0xf]
    %v2155 = vld [vmem:[#allocation10 + $0x2a4] sm:$0xf]
    %v2156 = vld [vmem:[#allocation10 + $0x2a8] sm:$0xf]
    %v2157 = vld [vmem:[#allocation10 + $0x2ac] sm:$0xf]
    %v2158 = vld [vmem:[#allocation10 + $0x2b0] sm:$0xf]
    %v2159 = vld [vmem:[#allocation10 + $0x2b4] sm:$0xf]
    %v2160 = vld [vmem:[#allocation10 + $0x2b8] sm:$0xf]
    %v2161 = vld [vmem:[#allocation10 + $0x2bc] sm:$0xf]
    %v2162 = vld [vmem:[#allocation10 + $0x2c0] sm:$0xf]
    %v2163 = vld [vmem:[#allocation10 + $0x2c4] sm:$0xf]
    %v2164 = vld [vmem:[#allocation10 + $0x2c8] sm:$0xf]
    %v2165 = vld [vmem:[#allocation10 + $0x2cc] sm:$0xf]
    %v2166 = vld [vmem:[#allocation10 + $0x2d0] sm:$0xf]
    %v2167 = vld [vmem:[#allocation10 + $0x2d4] sm:$0xf]
    %v2168 = vld [vmem:[#allocation10 + $0x2d8] sm:$0xf]
    %v2169 = vld [vmem:[#allocation10 + $0x2dc] sm:$0xf]
    %v2170 = vld [vmem:[#allocation10 + $0x2e0] sm:$0xf]
    %v2171 = vld [vmem:[#allocation10 + $0x2e4] sm:$0xf]
    %v2172 = vld [vmem:[#allocation10 + $0x2e8] sm:$0xf]
    %v2173 = vld [vmem:[#allocation10 + $0x2ec] sm:$0xf]
    %v2174 = vld [vmem:[#allocation10 + $0x2f0] sm:$0xf]
    %v2175 = vld [vmem:[#allocation10 + $0x2f4] sm:$0xf]
    %v2176 = vld [vmem:[#allocation10 + $0x2f8] sm:$0xf]
    %v2177 = vld [vmem:[#allocation10 + $0x2fc] sm:$0xf]
    %v2178 = vld [vmem:[#allocation10 + $0x300] sm:$0xf]
    %v2179 = vld [vmem:[#allocation10 + $0x304] sm:$0xf]
    %v2180 = vld [vmem:[#allocation10 + $0x308] sm:$0xf]
    %v2181 = vld [vmem:[#allocation10 + $0x30c] sm:$0xf]
    %v2182 = vld [vmem:[#allocation10 + $0x310] sm:$0xf]
    %v2183 = vld [vmem:[#allocation10 + $0x314] sm:$0xf]
    %v2184 = vld [vmem:[#allocation10 + $0x318] sm:$0xf]
    %v2185 = vld [vmem:[#allocation10 + $0x31c] sm:$0xf]
    %v2186 = vld [vmem:[#allocation10 + $0x320] sm:$0xf]
    %v2187 = vld [vmem:[#allocation10 + $0x324] sm:$0xf]
    %v2188 = vld [vmem:[#allocation10 + $0x328] sm:$0xf]
    %v2189 = vld [vmem:[#allocation10 + $0x32c] sm:$0xf]
    %v2190 = vld [vmem:[#allocation10 + $0x330] sm:$0xf]
    %v2191 = vld [vmem:[#allocation10 + $0x334] sm:$0xf]
    %v2192 = vld [vmem:[#allocation10 + $0x338] sm:$0xf]
    %v2193 = vld [vmem:[#allocation10 + $0x33c] sm:$0xf]
    %v2194 = vld [vmem:[#allocation10 + $0x340] sm:$0xf]
    %v2195 = vld [vmem:[#allocation10 + $0x344] sm:$0xf]
    %v2196 = vld [vmem:[#allocation10 + $0x348] sm:$0xf]
    %v2197 = vld [vmem:[#allocation10 + $0x34c] sm:$0xf]
    %v2198 = vld [vmem:[#allocation10 + $0x350] sm:$0xf]
    %v2199 = vld [vmem:[#allocation10 + $0x354] sm:$0xf]
    %v2200 = vld [vmem:[#allocation10 + $0x358] sm:$0xf]
    %v2201 = vld [vmem:[#allocation10 + $0x35c] sm:$0xf]
    %v2202 = vld [vmem:[#allocation10 + $0x360] sm:$0xf]
    %v2203 = vld [vmem:[#allocation10 + $0x364] sm:$0xf]
    %v2204 = vld [vmem:[#allocation10 + $0x368] sm:$0xf]
    %v2205 = vld [vmem:[#allocation10 + $0x36c] sm:$0xf]
    %v2206 = vld [vmem:[#allocation10 + $0x370] sm:$0xf]
    %v2207 = vld [vmem:[#allocation10 + $0x374] sm:$0xf]
    %v2208 = vld [vmem:[#allocation10 + $0x378] sm:$0xf]
    %v2209 = vld [vmem:[#allocation10 + $0x37c] sm:$0xf]
    %v2210 = vld [vmem:[#allocation10 + $0x380] sm:$0xf]
    %v2211 = vld [vmem:[#allocation10 + $0x384] sm:$0xf]
    %v2212 = vld [vmem:[#allocation10 + $0x388] sm:$0xf]
    %v2213 = vld [vmem:[#allocation10 + $0x38c] sm:$0xf]
    %v2214 = vld [vmem:[#allocation10 + $0x390] sm:$0xf]
    %v2215 = vld [vmem:[#allocation10 + $0x394] sm:$0xf]
    %v2216 = vld [vmem:[#allocation10 + $0x398] sm:$0xf]
    %v2217 = vld [vmem:[#allocation10 + $0x39c] sm:$0xf]
    %v2218 = vld [vmem:[#allocation10 + $0x3a0] sm:$0xf]
    %v2219 = vld [vmem:[#allocation10 + $0x3a4] sm:$0xf]
    %v2220 = vld [vmem:[#allocation10 + $0x3a8] sm:$0xf]
    %v2221 = vld [vmem:[#allocation10 + $0x3ac] sm:$0xf]
    %v2222 = vld [vmem:[#allocation10 + $0x3b0] sm:$0xf]
    %v2223 = vld [vmem:[#allocation10 + $0x3b4] sm:$0xf]
    %v2224 = vld [vmem:[#allocation10 + $0x3b8] sm:$0xf]
    %v2225 = vld [vmem:[#allocation10 + $0x3bc] sm:$0xf]
    %v2226 = vld [vmem:[#allocation10 + $0x3c0] sm:$0xf]
    %v2227 = vld [vmem:[#allocation10 + $0x3c4] sm:$0xf]
    %v2228 = vld [vmem:[#allocation10 + $0x3c8] sm:$0xf]
    %v2229 = vld [vmem:[#allocation10 + $0x3cc] sm:$0xf]
    %v2230 = vld [vmem:[#allocation10 + $0x3d0] sm:$0xf]
    %v2231 = vld [vmem:[#allocation10 + $0x3d4] sm:$0xf]
    %v2232 = vld [vmem:[#allocation10 + $0x3d8] sm:$0xf]
    %v2233 = vld [vmem:[#allocation10 + $0x3dc] sm:$0xf]
    %v2234 = vld [vmem:[#allocation10 + $0x3e0] sm:$0xf]
    %v2235 = vld [vmem:[#allocation10 + $0x3e4] sm:$0xf]
    %v2236 = vld [vmem:[#allocation10 + $0x3e8] sm:$0xf]
    %v2237 = vld [vmem:[#allocation10 + $0x3ec] sm:$0xf]
    %v2238 = vld [vmem:[#allocation10 + $0x3f0] sm:$0xf]
    %v2239 = vld [vmem:[#allocation10 + $0x3f4] sm:$0xf]
    %v2240 = vld [vmem:[#allocation10 + $0x3f8] sm:$0xf]
    %v2241 = vld [vmem:[#allocation10 + $0x3fc] sm:$0xf]
    %v2242 = vld [vmem:[#allocation10 + $0x400] sm:$0xf]
    %v2243 = vld [vmem:[#allocation10 + $0x404] sm:$0xf]
    %v2244 = vld [vmem:[#allocation10 + $0x408] sm:$0xf]
    %v2245 = vld [vmem:[#allocation10 + $0x40c] sm:$0xf]
    %v2246 = vld [vmem:[#allocation10 + $0x410] sm:$0xf]
    %v2247 = vld [vmem:[#allocation10 + $0x414] sm:$0xf]
    %v2248 = vld [vmem:[#allocation10 + $0x418] sm:$0xf]
    %v2249 = vld [vmem:[#allocation10 + $0x41c] sm:$0xf]
    %v2250 = vld [vmem:[#allocation10 + $0x420] sm:$0xf]
    %v2251 = vld [vmem:[#allocation10 + $0x424] sm:$0xf]
    %v2252 = vld [vmem:[#allocation10 + $0x428] sm:$0xf]
    %v2253 = vld [vmem:[#allocation10 + $0x42c] sm:$0xf]
    %v2254 = vld [vmem:[#allocation10 + $0x430] sm:$0xf]
    %v2255 = vld [vmem:[#allocation10 + $0x434] sm:$0xf]
    %v2256 = vld [vmem:[#allocation10 + $0x438] sm:$0xf]
    %v2257 = vld [vmem:[#allocation10 + $0x43c] sm:$0xf]
    %v2258 = vld [vmem:[#allocation10 + $0x440] sm:$0xf]
    %v2259 = vld [vmem:[#allocation10 + $0x444] sm:$0xf]
    %v2260 = vld [vmem:[#allocation10 + $0x448] sm:$0xf]
    %v2261 = vld [vmem:[#allocation10 + $0x44c] sm:$0xf]
    %v2262 = vld [vmem:[#allocation10 + $0x450] sm:$0xf]
    %v2263 = vld [vmem:[#allocation10 + $0x454] sm:$0xf]
    %v2264 = vld [vmem:[#allocation10 + $0x458] sm:$0xf]
    %v2265 = vld [vmem:[#allocation10 + $0x45c] sm:$0xf]
    %v2266 = vld [vmem:[#allocation10 + $0x460] sm:$0xf]
    %v2267 = vld [vmem:[#allocation10 + $0x464] sm:$0xf]
    %v2268 = vld [vmem:[#allocation10 + $0x468] sm:$0xf]
    %v2269 = vld [vmem:[#allocation10 + $0x46c] sm:$0xf]
    %v2270 = vld [vmem:[#allocation10 + $0x470] sm:$0xf]
    %v2271 = vld [vmem:[#allocation10 + $0x474] sm:$0xf]
    %v2272 = vld [vmem:[#allocation10 + $0x478] sm:$0xf]
    %v2273 = vld [vmem:[#allocation10 + $0x47c] sm:$0xf]
    %v2274 = vld [vmem:[#allocation10 + $0x480] sm:$0xf]
    %v2275 = vld [vmem:[#allocation10 + $0x484] sm:$0xf]
    %v2276 = vld [vmem:[#allocation10 + $0x488] sm:$0xf]
    %v2277 = vld [vmem:[#allocation10 + $0x48c] sm:$0xf]
    %v2278 = vld [vmem:[#allocation10 + $0x490] sm:$0xf]
    %v2279 = vld [vmem:[#allocation10 + $0x494] sm:$0xf]
    %v2280 = vld [vmem:[#allocation10 + $0x498] sm:$0xf]
    %v2281 = vld [vmem:[#allocation10 + $0x49c] sm:$0xf]
    %v2282 = vld [vmem:[#allocation10 + $0x4a0] sm:$0xf]
    %v2283 = vld [vmem:[#allocation10 + $0x4a4] sm:$0xf]
    %v2284 = vld [vmem:[#allocation10 + $0x4a8] sm:$0xf]
    %v2285 = vld [vmem:[#allocation10 + $0x4ac] sm:$0xf]
    %v2286 = vld [vmem:[#allocation10 + $0x4b0] sm:$0xf]
    %v2287 = vld [vmem:[#allocation10 + $0x4b4] sm:$0xf]
    %v2288 = vld [vmem:[#allocation10 + $0x4b8] sm:$0xf]
    %v2289 = vld [vmem:[#allocation10 + $0x4bc] sm:$0xf]
    %v2290 = vld [vmem:[#allocation10 + $0x4c0] sm:$0xf]
    %v2291 = vld [vmem:[#allocation10 + $0x4c4] sm:$0xf]
    %v2292 = vld [vmem:[#allocation10 + $0x4c8] sm:$0xf]
    %v2293 = vld [vmem:[#allocation10 + $0x4cc] sm:$0xf]
    %v2294 = vld [vmem:[#allocation10 + $0x4d0] sm:$0xf]
    %v2295 = vld [vmem:[#allocation10 + $0x4d4] sm:$0xf]
    %v2296 = vld [vmem:[#allocation10 + $0x4d8] sm:$0xf]
    %v2297 = vld [vmem:[#allocation10 + $0x4dc] sm:$0xf]
    %v2298 = vld [vmem:[#allocation10 + $0x4e0] sm:$0xf]
    %v2299 = vld [vmem:[#allocation10 + $0x4e4] sm:$0xf]
    %v2300 = vld [vmem:[#allocation10 + $0x4e8] sm:$0xf]
    %v2301 = vld [vmem:[#allocation10 + $0x4ec] sm:$0xf]
    %v2302 = vld [vmem:[#allocation10 + $0x4f0] sm:$0xf]
    %v2303 = vld [vmem:[#allocation10 + $0x4f4] sm:$0xf]
    %v2304 = vld [vmem:[#allocation10 + $0x4f8] sm:$0xf]
    %v2305 = vld [vmem:[#allocation10 + $0x4fc] sm:$0xf]
    %v2306 = vld [vmem:[#allocation10 + $0x500] sm:$0xf]
    %v2307 = vld [vmem:[#allocation10 + $0x504] sm:$0xf]
    %v2308 = vld [vmem:[#allocation10 + $0x508] sm:$0xf]
    %v2309 = vld [vmem:[#allocation10 + $0x50c] sm:$0xf]
    %v2310 = vld [vmem:[#allocation10 + $0x510] sm:$0xf]
    %v2311 = vld [vmem:[#allocation10 + $0x514] sm:$0xf]
    %v2312 = vld [vmem:[#allocation10 + $0x518] sm:$0xf]
    %v2313 = vld [vmem:[#allocation10 + $0x51c] sm:$0xf]
    %v2314 = vld [vmem:[#allocation10 + $0x520] sm:$0xf]
    %v2315 = vld [vmem:[#allocation10 + $0x524] sm:$0xf]
    %v2316 = vld [vmem:[#allocation10 + $0x528] sm:$0xf]
    %v2317 = vld [vmem:[#allocation10 + $0x52c] sm:$0xf]
    %v2318 = vld [vmem:[#allocation10 + $0x530] sm:$0xf]
    %v2319 = vld [vmem:[#allocation10 + $0x534] sm:$0xf]
    %v2320 = vld [vmem:[#allocation10 + $0x538] sm:$0xf]
    %v2321 = vld [vmem:[#allocation10 + $0x53c] sm:$0xf]
    %v2322 = vld [vmem:[#allocation10 + $0x540] sm:$0xf]
    %v2323 = vld [vmem:[#allocation10 + $0x544] sm:$0xf]
    %v2324 = vld [vmem:[#allocation10 + $0x548] sm:$0xf]
    %v2325 = vld [vmem:[#allocation10 + $0x54c] sm:$0xf]
    %v2326 = vld [vmem:[#allocation10 + $0x550] sm:$0xf]
    %v2327 = vld [vmem:[#allocation10 + $0x554] sm:$0xf]
    %v2328 = vld [vmem:[#allocation10 + $0x558] sm:$0xf]
    %v2329 = vld [vmem:[#allocation10 + $0x55c] sm:$0xf]
    %v2330 = vld [vmem:[#allocation10 + $0x560] sm:$0xf]
    %v2331 = vld [vmem:[#allocation10 + $0x564] sm:$0xf]
    %v2332 = vld [vmem:[#allocation10 + $0x568] sm:$0xf]
    %v2333 = vld [vmem:[#allocation10 + $0x56c] sm:$0xf]
    %v2334 = vld [vmem:[#allocation10 + $0x570] sm:$0xf]
    %v2335 = vld [vmem:[#allocation10 + $0x574] sm:$0xf]
    %v2336 = vld [vmem:[#allocation10 + $0x578] sm:$0xf]
    %v2337 = vld [vmem:[#allocation10 + $0x57c] sm:$0xf]
    %v2338 = vld [vmem:[#allocation10 + $0x580] sm:$0xf]
    %v2339 = vld [vmem:[#allocation10 + $0x584] sm:$0xf]
    %v2340 = vld [vmem:[#allocation10 + $0x588] sm:$0xf]
    %v2341 = vld [vmem:[#allocation10 + $0x58c] sm:$0xf]
    %v2342 = vld [vmem:[#allocation10 + $0x590] sm:$0xf]
    %v2343 = vld [vmem:[#allocation10 + $0x594] sm:$0xf]
    %v2344 = vld [vmem:[#allocation10 + $0x598] sm:$0xf]
    %v2345 = vld [vmem:[#allocation10 + $0x59c] sm:$0xf]
    %v2346 = vld [vmem:[#allocation10 + $0x5a0] sm:$0xf]
    %v2347 = vld [vmem:[#allocation10 + $0x5a4] sm:$0xf]
    %v2348 = vld [vmem:[#allocation10 + $0x5a8] sm:$0xf]
    %v2349 = vld [vmem:[#allocation10 + $0x5ac] sm:$0xf]
    %v2350 = vld [vmem:[#allocation10 + $0x5b0] sm:$0xf]
    %v2351 = vld [vmem:[#allocation10 + $0x5b4] sm:$0xf]
    %v2352 = vld [vmem:[#allocation10 + $0x5b8] sm:$0xf]
    %v2353 = vld [vmem:[#allocation10 + $0x5bc] sm:$0xf]
    %v2354 = vld [vmem:[#allocation10 + $0x5c0] sm:$0xf]
    %v2355 = vld [vmem:[#allocation10 + $0x5c4] sm:$0xf]
    %v2356 = vld [vmem:[#allocation10 + $0x5c8] sm:$0xf]
    %v2357 = vld [vmem:[#allocation10 + $0x5cc] sm:$0xf]
    %v2358 = vld [vmem:[#allocation10 + $0x5d0] sm:$0xf]
    %v2359 = vld [vmem:[#allocation10 + $0x5d4] sm:$0xf]
    %v2360 = vld [vmem:[#allocation10 + $0x5d8] sm:$0xf]
    %v2361 = vld [vmem:[#allocation10 + $0x5dc] sm:$0xf]
    %v2362 = vld [vmem:[#allocation10 + $0x5e0] sm:$0xf]
    %v2363 = vld [vmem:[#allocation10 + $0x5e4] sm:$0xf]
    %v2364 = vld [vmem:[#allocation10 + $0x5e8] sm:$0xf]
    %v2365 = vld [vmem:[#allocation10 + $0x5ec] sm:$0xf]
    %v2366 = vld [vmem:[#allocation10 + $0x5f0] sm:$0xf]
    %v2367 = vld [vmem:[#allocation10 + $0x5f4] sm:$0xf]
    %v2368 = vld [vmem:[#allocation10 + $0x5f8] sm:$0xf]
    %v2369 = vld [vmem:[#allocation10 + $0x5fc] sm:$0xf]
    %v2370 = vld [vmem:[#allocation10 + $0x600] sm:$0xf]
    %v2371 = vld [vmem:[#allocation10 + $0x604] sm:$0xf]
    %v2372 = vld [vmem:[#allocation10 + $0x608] sm:$0xf]
    %v2373 = vld [vmem:[#allocation10 + $0x60c] sm:$0xf]
    %v2374 = vld [vmem:[#allocation10 + $0x610] sm:$0xf]
    %v2375 = vld [vmem:[#allocation10 + $0x614] sm:$0xf]
    %v2376 = vld [vmem:[#allocation10 + $0x618] sm:$0xf]
    %v2377 = vld [vmem:[#allocation10 + $0x61c] sm:$0xf]
    %v2378 = vld [vmem:[#allocation10 + $0x620] sm:$0xf]
    %v2379 = vld [vmem:[#allocation10 + $0x624] sm:$0xf]
    %v2380 = vld [vmem:[#allocation10 + $0x628] sm:$0xf]
    %v2381 = vld [vmem:[#allocation10 + $0x62c] sm:$0xf]
    %v2382 = vld [vmem:[#allocation10 + $0x630] sm:$0xf]
    %v2383 = vld [vmem:[#allocation10 + $0x634] sm:$0xf]
    %v2384 = vld [vmem:[#allocation10 + $0x638] sm:$0xf]
    %v2385 = vld [vmem:[#allocation10 + $0x63c] sm:$0xf]
    %v2386 = vld [vmem:[#allocation10 + $0x640] sm:$0xf]
    %v2387 = vld [vmem:[#allocation10 + $0x644] sm:$0xf]
    %v2388 = vld [vmem:[#allocation10 + $0x648] sm:$0xf]
    %v2389 = vld [vmem:[#allocation10 + $0x64c] sm:$0xf]
    %v2390 = vld [vmem:[#allocation10 + $0x650] sm:$0xf]
    %v2391 = vld [vmem:[#allocation10 + $0x654] sm:$0xf]
    %v2392 = vld [vmem:[#allocation10 + $0x658] sm:$0xf]
    %v2393 = vld [vmem:[#allocation10 + $0x65c] sm:$0xf]
    %v2394 = vld [vmem:[#allocation10 + $0x660] sm:$0xf]
    %v2395 = vld [vmem:[#allocation10 + $0x664] sm:$0xf]
    %v2396 = vld [vmem:[#allocation10 + $0x668] sm:$0xf]
    %v2397 = vld [vmem:[#allocation10 + $0x66c] sm:$0xf]
    %v2398 = vld [vmem:[#allocation10 + $0x670] sm:$0xf]
    %v2399 = vld [vmem:[#allocation10 + $0x674] sm:$0xf]
    %v2400 = vld [vmem:[#allocation10 + $0x678] sm:$0xf]
    %v2401 = vld [vmem:[#allocation10 + $0x67c] sm:$0xf]
    %v2402 = vld [vmem:[#allocation10 + $0x680] sm:$0xf]
    %v2403 = vld [vmem:[#allocation10 + $0x684] sm:$0xf]
    %v2404 = vld [vmem:[#allocation10 + $0x688] sm:$0xf]
    %v2405 = vld [vmem:[#allocation10 + $0x68c] sm:$0xf]
    %v2406 = vld [vmem:[#allocation10 + $0x690] sm:$0xf]
    %v2407 = vld [vmem:[#allocation10 + $0x694] sm:$0xf]
    %v2408 = vld [vmem:[#allocation10 + $0x698] sm:$0xf]
    %v2409 = vld [vmem:[#allocation10 + $0x69c] sm:$0xf]
    %v2410 = vld [vmem:[#allocation10 + $0x6a0] sm:$0xf]
    %v2411 = vld [vmem:[#allocation10 + $0x6a4] sm:$0xf]
    %v2412 = vld [vmem:[#allocation10 + $0x6a8] sm:$0xf]
    %v2413 = vld [vmem:[#allocation10 + $0x6ac] sm:$0xf]
    %v2414 = vld [vmem:[#allocation10 + $0x6b0] sm:$0xf]
    %v2415 = vld [vmem:[#allocation10 + $0x6b4] sm:$0xf]
    %v2416 = vld [vmem:[#allocation10 + $0x6b8] sm:$0xf]
    %v2417 = vld [vmem:[#allocation10 + $0x6bc] sm:$0xf]
    %v2418 = vld [vmem:[#allocation10 + $0x6c0] sm:$0xf]
    %v2419 = vld [vmem:[#allocation10 + $0x6c4] sm:$0xf]
    %v2420 = vld [vmem:[#allocation10 + $0x6c8] sm:$0xf]
    %v2421 = vld [vmem:[#allocation10 + $0x6cc] sm:$0xf]
    %v2422 = vld [vmem:[#allocation10 + $0x6d0] sm:$0xf]
    %v2423 = vld [vmem:[#allocation10 + $0x6d4] sm:$0xf]
    %v2424 = vld [vmem:[#allocation10 + $0x6d8] sm:$0xf]
    %v2425 = vld [vmem:[#allocation10 + $0x6dc] sm:$0xf]
    %v2426 = vld [vmem:[#allocation10 + $0x6e0] sm:$0xf]
    %v2427 = vld [vmem:[#allocation10 + $0x6e4] sm:$0xf]
    %v2428 = vld [vmem:[#allocation10 + $0x6e8] sm:$0xf]
    %v2429 = vld [vmem:[#allocation10 + $0x6ec] sm:$0xf]
    %v2430 = vld [vmem:[#allocation10 + $0x6f0] sm:$0xf]
    %v2431 = vld [vmem:[#allocation10 + $0x6f4] sm:$0xf]
    %v2432 = vld [vmem:[#allocation10 + $0x6f8] sm:$0xf]
    %v2433 = vld [vmem:[#allocation10 + $0x6fc] sm:$0xf]
    %v2434 = vld [vmem:[#allocation10 + $0x700] sm:$0xf]
    %v2435 = vld [vmem:[#allocation10 + $0x704] sm:$0xf]
    %v2436 = vld [vmem:[#allocation10 + $0x708] sm:$0xf]
    %v2437 = vld [vmem:[#allocation10 + $0x70c] sm:$0xf]
    %v2438 = vld [vmem:[#allocation10 + $0x710] sm:$0xf]
    %v2439 = vld [vmem:[#allocation10 + $0x714] sm:$0xf]
    %v2440 = vld [vmem:[#allocation10 + $0x718] sm:$0xf]
    %v2441 = vld [vmem:[#allocation10 + $0x71c] sm:$0xf]
    %v2442 = vld [vmem:[#allocation10 + $0x720] sm:$0xf]
    %v2443 = vld [vmem:[#allocation10 + $0x724] sm:$0xf]
    %v2444 = vld [vmem:[#allocation10 + $0x728] sm:$0xf]
    %v2445 = vld [vmem:[#allocation10 + $0x72c] sm:$0xf]
    %v2446 = vld [vmem:[#allocation10 + $0x730] sm:$0xf]
    %v2447 = vld [vmem:[#allocation10 + $0x734] sm:$0xf]
    %v2448 = vld [vmem:[#allocation10 + $0x738] sm:$0xf]
    %v2449 = vld [vmem:[#allocation10 + $0x73c] sm:$0xf]
    %v2450 = vld [vmem:[#allocation10 + $0x740] sm:$0xf]
    %v2451 = vld [vmem:[#allocation10 + $0x744] sm:$0xf]
    %v2452 = vld [vmem:[#allocation10 + $0x748] sm:$0xf]
    %v2453 = vld [vmem:[#allocation10 + $0x74c] sm:$0xf]
    %v2454 = vld [vmem:[#allocation10 + $0x750] sm:$0xf]
    %v2455 = vld [vmem:[#allocation10 + $0x754] sm:$0xf]
    %v2456 = vld [vmem:[#allocation10 + $0x758] sm:$0xf]
    %v2457 = vld [vmem:[#allocation10 + $0x75c] sm:$0xf]
    %v2458 = vld [vmem:[#allocation10 + $0x760] sm:$0xf]
    %v2459 = vld [vmem:[#allocation10 + $0x764] sm:$0xf]
    %v2460 = vld [vmem:[#allocation10 + $0x768] sm:$0xf]
    %v2461 = vld [vmem:[#allocation10 + $0x76c] sm:$0xf]
    %v2462 = vld [vmem:[#allocation10 + $0x770] sm:$0xf]
    %v2463 = vld [vmem:[#allocation10 + $0x774] sm:$0xf]
    %v2464 = vld [vmem:[#allocation10 + $0x778] sm:$0xf]
    %v2465 = vld [vmem:[#allocation10 + $0x77c] sm:$0xf]
    %v2466 = vld [vmem:[#allocation10 + $0x780] sm:$0xf]
    %v2467 = vld [vmem:[#allocation10 + $0x784] sm:$0xf]
    %v2468 = vld [vmem:[#allocation10 + $0x788] sm:$0xf]
    %v2469 = vld [vmem:[#allocation10 + $0x78c] sm:$0xf]
    %v2470 = vld [vmem:[#allocation10 + $0x790] sm:$0xf]
    %v2471 = vld [vmem:[#allocation10 + $0x794] sm:$0xf]
    %v2472 = vld [vmem:[#allocation10 + $0x798] sm:$0xf]
    %v2473 = vld [vmem:[#allocation10 + $0x79c] sm:$0xf]
    %v2474 = vld [vmem:[#allocation10 + $0x7a0] sm:$0xf]
    %v2475 = vld [vmem:[#allocation10 + $0x7a4] sm:$0xf]
    %v2476 = vld [vmem:[#allocation10 + $0x7a8] sm:$0xf]
    %v2477 = vld [vmem:[#allocation10 + $0x7ac] sm:$0xf]
    %v2478 = vld [vmem:[#allocation10 + $0x7b0] sm:$0xf]
    %v2479 = vld [vmem:[#allocation10 + $0x7b4] sm:$0xf]
    %v2480 = vld [vmem:[#allocation10 + $0x7b8] sm:$0xf]
    %v2481 = vld [vmem:[#allocation10 + $0x7bc] sm:$0xf]
    %v2482 = vld [vmem:[#allocation10 + $0x7c0] sm:$0xf]
    %v2483 = vld [vmem:[#allocation10 + $0x7c4] sm:$0xf]
    %v2484 = vld [vmem:[#allocation10 + $0x7c8] sm:$0xf]
    %v2485 = vld [vmem:[#allocation10 + $0x7cc] sm:$0xf]
    %v2486 = vld [vmem:[#allocation10 + $0x7d0] sm:$0xf]
    %v2487 = vld [vmem:[#allocation10 + $0x7d4] sm:$0xf]
    %v2488 = vld [vmem:[#allocation10 + $0x7d8] sm:$0xf]
    %v2489 = vld [vmem:[#allocation10 + $0x7dc] sm:$0xf]
    %v2490 = vld [vmem:[#allocation10 + $0x7e0] sm:$0xf]
    %v2491 = vld [vmem:[#allocation10 + $0x7e4] sm:$0xf]
    %v2492 = vld [vmem:[#allocation10 + $0x7e8] sm:$0xf]
    %v2493 = vld [vmem:[#allocation10 + $0x7ec] sm:$0xf]
    %v2494 = vld [vmem:[#allocation10 + $0x7f0] sm:$0xf]
    %v2495 = vld [vmem:[#allocation10 + $0x7f4] sm:$0xf]
    %v2496 = vld [vmem:[#allocation10 + $0x7f8] sm:$0xf]
    %v2497 = vld [vmem:[#allocation10 + $0x7fc] sm:$0xf]
    %v2498 = vld [vmem:[#allocation10 + $0x800] sm:$0xf]
    %v2499 = vld [vmem:[#allocation10 + $0x804] sm:$0xf]
    %v2500 = vld [vmem:[#allocation10 + $0x808] sm:$0xf]
    %v2501 = vld [vmem:[#allocation10 + $0x80c] sm:$0xf]
    %v2502 = vld [vmem:[#allocation10 + $0x810] sm:$0xf]
    %v2503 = vld [vmem:[#allocation10 + $0x814] sm:$0xf]
    %v2504 = vld [vmem:[#allocation10 + $0x818] sm:$0xf]
    %v2505 = vld [vmem:[#allocation10 + $0x81c] sm:$0xf]
    %v2506 = vld [vmem:[#allocation10 + $0x820] sm:$0xf]
    %v2507 = vld [vmem:[#allocation10 + $0x824] sm:$0xf]
    %v2508 = vld [vmem:[#allocation10 + $0x828] sm:$0xf]
    %v2509 = vld [vmem:[#allocation10 + $0x82c] sm:$0xf]
    %v2510 = vld [vmem:[#allocation10 + $0x830] sm:$0xf]
    %v2511 = vld [vmem:[#allocation10 + $0x834] sm:$0xf]
    %v2512 = vld [vmem:[#allocation10 + $0x838] sm:$0xf]
    %v2513 = vld [vmem:[#allocation10 + $0x83c] sm:$0xf]
    %v2514 = vld [vmem:[#allocation10 + $0x840] sm:$0xf]
    %v2515 = vld [vmem:[#allocation10 + $0x844] sm:$0xf]
    %v2516 = vld [vmem:[#allocation10 + $0x848] sm:$0xf]
    %v2517 = vld [vmem:[#allocation10 + $0x84c] sm:$0xf]
    %v2518 = vld [vmem:[#allocation10 + $0x850] sm:$0xf]
    %v2519 = vld [vmem:[#allocation10 + $0x854] sm:$0xf]
    %v2520 = vld [vmem:[#allocation10 + $0x858] sm:$0xf]
    %v2521 = vld [vmem:[#allocation10 + $0x85c] sm:$0xf]
    %v2522 = vld [vmem:[#allocation10 + $0x860] sm:$0xf]
    %v2523 = vld [vmem:[#allocation10 + $0x864] sm:$0xf]
    %v2524 = vld [vmem:[#allocation10 + $0x868] sm:$0xf]
    %v2525 = vld [vmem:[#allocation10 + $0x86c] sm:$0xf]
    %v2526 = vld [vmem:[#allocation10 + $0x870] sm:$0xf]
    %v2527 = vld [vmem:[#allocation10 + $0x874] sm:$0xf]
    %v2528 = vld [vmem:[#allocation10 + $0x878] sm:$0xf]
    %v2529 = vld [vmem:[#allocation10 + $0x87c] sm:$0xf]
    %v2530 = vld [vmem:[#allocation10 + $0x880] sm:$0xf]
    %v2531 = vld [vmem:[#allocation10 + $0x884] sm:$0xf]
    %v2532 = vld [vmem:[#allocation10 + $0x888] sm:$0xf]
    %v2533 = vld [vmem:[#allocation10 + $0x88c] sm:$0xf]
    %v2534 = vld [vmem:[#allocation10 + $0x890] sm:$0xf]
    %v2535 = vld [vmem:[#allocation10 + $0x894] sm:$0xf]
    %v2536 = vld [vmem:[#allocation10 + $0x898] sm:$0xf]
    %v2537 = vld [vmem:[#allocation10 + $0x89c] sm:$0xf]
    %v2538 = vld [vmem:[#allocation10 + $0x8a0] sm:$0xf]
    %v2539 = vld [vmem:[#allocation10 + $0x8a4] sm:$0xf]
    %v2540 = vld [vmem:[#allocation10 + $0x8a8] sm:$0xf]
    %v2541 = vld [vmem:[#allocation10 + $0x8ac] sm:$0xf]
    %v2542 = vld [vmem:[#allocation10 + $0x8b0] sm:$0xf]
    %v2543 = vld [vmem:[#allocation10 + $0x8b4] sm:$0xf]
    %v2544 = vld [vmem:[#allocation10 + $0x8b8] sm:$0xf]
    %v2545 = vld [vmem:[#allocation10 + $0x8bc] sm:$0xf]
    %v2546 = vld [vmem:[#allocation10 + $0x8c0] sm:$0xf]
    %v2547 = vld [vmem:[#allocation10 + $0x8c4] sm:$0xf]
    %v2548 = vld [vmem:[#allocation10 + $0x8c8] sm:$0xf]
    %v2549 = vld [vmem:[#allocation10 + $0x8cc] sm:$0xf]
    %v2550 = vld [vmem:[#allocation10 + $0x8d0] sm:$0xf]
    %v2551 = vld [vmem:[#allocation10 + $0x8d4] sm:$0xf]
    %v2552 = vld [vmem:[#allocation10 + $0x8d8] sm:$0xf]
    %v2553 = vld [vmem:[#allocation10 + $0x8dc] sm:$0xf]
    %v2554 = vld [vmem:[#allocation10 + $0x8e0] sm:$0xf]
    %v2555 = vld [vmem:[#allocation10 + $0x8e4] sm:$0xf]
    %v2556 = vld [vmem:[#allocation10 + $0x8e8] sm:$0xf]
    %v2557 = vld [vmem:[#allocation10 + $0x8ec] sm:$0xf]
    %v2558 = vld [vmem:[#allocation10 + $0x8f0] sm:$0xf]
    %v2559 = vld [vmem:[#allocation10 + $0x8f4] sm:$0xf]
    %v2560 = vld [vmem:[#allocation10 + $0x8f8] sm:$0xf]
    %v2561 = vld [vmem:[#allocation10 + $0x8fc] sm:$0xf]
    %v2562 = vld [vmem:[#allocation10 + $0x900] sm:$0xf]
    %v2563 = vld [vmem:[#allocation10 + $0x904] sm:$0xf]
    %v2564 = vld [vmem:[#allocation10 + $0x908] sm:$0xf]
    %v2565 = vld [vmem:[#allocation10 + $0x90c] sm:$0xf]
    %v2566 = vld [vmem:[#allocation10 + $0x910] sm:$0xf]
    %v2567 = vld [vmem:[#allocation10 + $0x914] sm:$0xf]
    %v2568 = vld [vmem:[#allocation10 + $0x918] sm:$0xf]
    %v2569 = vld [vmem:[#allocation10 + $0x91c] sm:$0xf]
    %v2570 = vld [vmem:[#allocation10 + $0x920] sm:$0xf]
    %v2571 = vld [vmem:[#allocation10 + $0x924] sm:$0xf]
    %v2572 = vld [vmem:[#allocation10 + $0x928] sm:$0xf]
    %v2573 = vld [vmem:[#allocation10 + $0x92c] sm:$0xf]
    %v2574 = vld [vmem:[#allocation10 + $0x930] sm:$0xf]
    %v2575 = vld [vmem:[#allocation10 + $0x934] sm:$0xf]
    %v2576 = vld [vmem:[#allocation10 + $0x938] sm:$0xf]
    %v2577 = vld [vmem:[#allocation10 + $0x93c] sm:$0xf]
    %v2578 = vld [vmem:[#allocation10 + $0x940] sm:$0xf]
    %v2579 = vld [vmem:[#allocation10 + $0x944] sm:$0xf]
    %v2580 = vld [vmem:[#allocation10 + $0x948] sm:$0xf]
    %v2581 = vld [vmem:[#allocation10 + $0x94c] sm:$0xf]
    %v2582 = vld [vmem:[#allocation10 + $0x950] sm:$0xf]
    %v2583 = vld [vmem:[#allocation10 + $0x954] sm:$0xf]
    %v2584 = vld [vmem:[#allocation10 + $0x958] sm:$0xf]
    %v2585 = vld [vmem:[#allocation10 + $0x95c] sm:$0xf]
    %v2586 = vld [vmem:[#allocation10 + $0x960] sm:$0xf]
    %v2587 = vld [vmem:[#allocation10 + $0x964] sm:$0xf]
    %v2588 = vld [vmem:[#allocation10 + $0x968] sm:$0xf]
    %v2589 = vld [vmem:[#allocation10 + $0x96c] sm:$0xf]
    %v2590 = vld [vmem:[#allocation10 + $0x970] sm:$0xf]
    %v2591 = vld [vmem:[#allocation10 + $0x974] sm:$0xf]
    %v2592 = vld [vmem:[#allocation10 + $0x978] sm:$0xf]
    %v2593 = vld [vmem:[#allocation10 + $0x97c] sm:$0xf]
    %v2594 = vld [vmem:[#allocation10 + $0x980] sm:$0xf]
    %v2595 = vld [vmem:[#allocation10 + $0x984] sm:$0xf]
    %v2596 = vld [vmem:[#allocation10 + $0x988] sm:$0xf]
    %v2597 = vld [vmem:[#allocation10 + $0x98c] sm:$0xf]
    %v2598 = vld [vmem:[#allocation10 + $0x990] sm:$0xf]
    %v2599 = vld [vmem:[#allocation10 + $0x994] sm:$0xf]
    %v2600 = vld [vmem:[#allocation10 + $0x998] sm:$0xf]
    %v2601 = vld [vmem:[#allocation10 + $0x99c] sm:$0xf]
    %v2602 = vld [vmem:[#allocation10 + $0x9a0] sm:$0xf]
    %v2603 = vld [vmem:[#allocation10 + $0x9a4] sm:$0xf]
    %v2604 = vld [vmem:[#allocation10 + $0x9a8] sm:$0xf]
    %v2605 = vld [vmem:[#allocation10 + $0x9ac] sm:$0xf]
    %v2606 = vld [vmem:[#allocation10 + $0x9b0] sm:$0xf]
    %v2607 = vld [vmem:[#allocation10 + $0x9b4] sm:$0xf]
    %v2608 = vld [vmem:[#allocation10 + $0x9b8] sm:$0xf]
    %v2609 = vld [vmem:[#allocation10 + $0x9bc] sm:$0xf]
    %v2610 = vld [vmem:[#allocation10 + $0x9c0] sm:$0xf]
    %v2611 = vld [vmem:[#allocation10 + $0x9c4] sm:$0xf]
    %v2612 = vld [vmem:[#allocation10 + $0x9c8] sm:$0xf]
    %v2613 = vld [vmem:[#allocation10 + $0x9cc] sm:$0xf]
    %v2614 = vld [vmem:[#allocation10 + $0x9d0] sm:$0xf]
    %v2615 = vld [vmem:[#allocation10 + $0x9d4] sm:$0xf]
    %v2616 = vld [vmem:[#allocation10 + $0x9d8] sm:$0xf]
    %v2617 = vld [vmem:[#allocation10 + $0x9dc] sm:$0xf]
    %v2618 = vld [vmem:[#allocation10 + $0x9e0] sm:$0xf]
    %v2619 = vld [vmem:[#allocation10 + $0x9e4] sm:$0xf]
    %v2620 = vld [vmem:[#allocation10 + $0x9e8] sm:$0xf]
    %v2621 = vld [vmem:[#allocation10 + $0x9ec] sm:$0xf]
    %v2622 = vld [vmem:[#allocation10 + $0x9f0] sm:$0xf]
    %v2623 = vld [vmem:[#allocation10 + $0x9f4] sm:$0xf]
    %v2624 = vld [vmem:[#allocation10 + $0x9f8] sm:$0xf]
    %v2625 = vld [vmem:[#allocation10 + $0x9fc] sm:$0xf]
    %v2626 = vld [vmem:[#allocation10 + $0xa00] sm:$0xf]
    %v2627 = vld [vmem:[#allocation10 + $0xa04] sm:$0xf]
    %v2628 = vld [vmem:[#allocation10 + $0xa08] sm:$0xf]
    %v2629 = vld [vmem:[#allocation10 + $0xa0c] sm:$0xf]
    %v2630 = vld [vmem:[#allocation10 + $0xa10] sm:$0xf]
    %v2631 = vld [vmem:[#allocation10 + $0xa14] sm:$0xf]
    %v2632 = vld [vmem:[#allocation10 + $0xa18] sm:$0xf]
    %v2633 = vld [vmem:[#allocation10 + $0xa1c] sm:$0xf]
    %v2634 = vld [vmem:[#allocation10 + $0xa20] sm:$0xf]
    %v2635 = vld [vmem:[#allocation10 + $0xa24] sm:$0xf]
    %v2636 = vld [vmem:[#allocation10 + $0xa28] sm:$0xf]
    %v2637 = vld [vmem:[#allocation10 + $0xa2c] sm:$0xf]
    %v2638 = vld [vmem:[#allocation10 + $0xa30] sm:$0xf]
    %v2639 = vld [vmem:[#allocation10 + $0xa34] sm:$0xf]
    %v2640 = vld [vmem:[#allocation10 + $0xa38] sm:$0xf]
    %v2641 = vld [vmem:[#allocation10 + $0xa3c] sm:$0xf]
    %v2642 = vld [vmem:[#allocation10 + $0xa40] sm:$0xf]
    %v2643 = vld [vmem:[#allocation10 + $0xa44] sm:$0xf]
    %v2644 = vld [vmem:[#allocation10 + $0xa48] sm:$0xf]
    %v2645 = vld [vmem:[#allocation10 + $0xa4c] sm:$0xf]
    %v2646 = vld [vmem:[#allocation10 + $0xa50] sm:$0xf]
    %v2647 = vld [vmem:[#allocation10 + $0xa54] sm:$0xf]
    %v2648 = vld [vmem:[#allocation10 + $0xa58] sm:$0xf]
    %v2649 = vld [vmem:[#allocation10 + $0xa5c] sm:$0xf]
    %v2650 = vld [vmem:[#allocation10 + $0xa60] sm:$0xf]
    %v2651 = vld [vmem:[#allocation10 + $0xa64] sm:$0xf]
    %v2652 = vld [vmem:[#allocation10 + $0xa68] sm:$0xf]
    %v2653 = vld [vmem:[#allocation10 + $0xa6c] sm:$0xf]
    %v2654 = vld [vmem:[#allocation10 + $0xa70] sm:$0xf]
    %v2655 = vld [vmem:[#allocation10 + $0xa74] sm:$0xf]
    %v2656 = vld [vmem:[#allocation10 + $0xa78] sm:$0xf]
    %v2657 = vld [vmem:[#allocation10 + $0xa7c] sm:$0xf]
    %v2658 = vld [vmem:[#allocation10 + $0xa80] sm:$0xf]
    %v2659 = vld [vmem:[#allocation10 + $0xa84] sm:$0xf]
    %v2660 = vld [vmem:[#allocation10 + $0xa88] sm:$0xf]
    %v2661 = vld [vmem:[#allocation10 + $0xa8c] sm:$0xf]
    %v2662 = vld [vmem:[#allocation10 + $0xa90] sm:$0xf]
    %v2663 = vld [vmem:[#allocation10 + $0xa94] sm:$0xf]
    %v2664 = vld [vmem:[#allocation10 + $0xa98] sm:$0xf]
    %v2665 = vld [vmem:[#allocation10 + $0xa9c] sm:$0xf]
    %v2666 = vld [vmem:[#allocation10 + $0xaa0] sm:$0xf]
    %v2667 = vld [vmem:[#allocation10 + $0xaa4] sm:$0xf]
    %v2668 = vld [vmem:[#allocation10 + $0xaa8] sm:$0xf]
    %v2669 = vld [vmem:[#allocation10 + $0xaac] sm:$0xf]
    %v2670 = vld [vmem:[#allocation10 + $0xab0] sm:$0xf]
    %v2671 = vld [vmem:[#allocation10 + $0xab4] sm:$0xf]
    %v2672 = vld [vmem:[#allocation10 + $0xab8] sm:$0xf]
    %v2673 = vld [vmem:[#allocation10 + $0xabc] sm:$0xf]
    %v2674 = vld [vmem:[#allocation10 + $0xac0] sm:$0xf]
    %v2675 = vld [vmem:[#allocation10 + $0xac4] sm:$0xf]
    %v2676 = vld [vmem:[#allocation10 + $0xac8] sm:$0xf]
    %v2677 = vld [vmem:[#allocation10 + $0xacc] sm:$0xf]
    %v2678 = vld [vmem:[#allocation10 + $0xad0] sm:$0xf]
    %v2679 = vld [vmem:[#allocation10 + $0xad4] sm:$0xf]
    %v2680 = vld [vmem:[#allocation10 + $0xad8] sm:$0xf]
    %v2681 = vld [vmem:[#allocation10 + $0xadc] sm:$0xf]
    %v2682 = vld [vmem:[#allocation10 + $0xae0] sm:$0xf]
    %v2683 = vld [vmem:[#allocation10 + $0xae4] sm:$0xf]
    %v2684 = vld [vmem:[#allocation10 + $0xae8] sm:$0xf]
    %v2685 = vld [vmem:[#allocation10 + $0xaec] sm:$0xf]
    %v2686 = vld [vmem:[#allocation10 + $0xaf0] sm:$0xf]
    %v2687 = vld [vmem:[#allocation10 + $0xaf4] sm:$0xf]
    %v2688 = vld [vmem:[#allocation10 + $0xaf8] sm:$0xf]
    %v2689 = vld [vmem:[#allocation10 + $0xafc] sm:$0xf]
    %v2690 = vld [vmem:[#allocation10 + $0xb00] sm:$0xf]
    %v2691 = vld [vmem:[#allocation10 + $0xb04] sm:$0xf]
    %v2692 = vld [vmem:[#allocation10 + $0xb08] sm:$0xf]
    %v2693 = vld [vmem:[#allocation10 + $0xb0c] sm:$0xf]
    %v2694 = vld [vmem:[#allocation10 + $0xb10] sm:$0xf]
    %v2695 = vld [vmem:[#allocation10 + $0xb14] sm:$0xf]
    %v2696 = vld [vmem:[#allocation10 + $0xb18] sm:$0xf]
    %v2697 = vld [vmem:[#allocation10 + $0xb1c] sm:$0xf]
    %v2698 = vld [vmem:[#allocation10 + $0xb20] sm:$0xf]
    %v2699 = vld [vmem:[#allocation10 + $0xb24] sm:$0xf]
    %v2700 = vld [vmem:[#allocation10 + $0xb28] sm:$0xf]
    %v2701 = vld [vmem:[#allocation10 + $0xb2c] sm:$0xf]
    %v2702 = vld [vmem:[#allocation10 + $0xb30] sm:$0xf]
    %v2703 = vld [vmem:[#allocation10 + $0xb34] sm:$0xf]
    %v2704 = vld [vmem:[#allocation10 + $0xb38] sm:$0xf]
    %v2705 = vld [vmem:[#allocation10 + $0xb3c] sm:$0xf]
    %v2706 = vld [vmem:[#allocation10 + $0xb40] sm:$0xf]
    %v2707 = vld [vmem:[#allocation10 + $0xb44] sm:$0xf]
    %v2708 = vld [vmem:[#allocation10 + $0xb48] sm:$0xf]
    %v2709 = vld [vmem:[#allocation10 + $0xb4c] sm:$0xf]
    %v2710 = vld [vmem:[#allocation10 + $0xb50] sm:$0xf]
    %v2711 = vld [vmem:[#allocation10 + $0xb54] sm:$0xf]
    %v2712 = vld [vmem:[#allocation10 + $0xb58] sm:$0xf]
    %v2713 = vld [vmem:[#allocation10 + $0xb5c] sm:$0xf]
    %v2714 = vld [vmem:[#allocation10 + $0xb60] sm:$0xf]
    %v2715 = vld [vmem:[#allocation10 + $0xb64] sm:$0xf]
    %v2716 = vld [vmem:[#allocation10 + $0xb68] sm:$0xf]
    %v2717 = vld [vmem:[#allocation10 + $0xb6c] sm:$0xf]
    %v2718 = vld [vmem:[#allocation10 + $0xb70] sm:$0xf]
    %v2719 = vld [vmem:[#allocation10 + $0xb74] sm:$0xf]
    %v2720 = vld [vmem:[#allocation10 + $0xb78] sm:$0xf]
    %v2721 = vld [vmem:[#allocation10 + $0xb7c] sm:$0xf]
    %v2722 = vld [vmem:[#allocation10 + $0xb80] sm:$0xf]
    %v2723 = vld [vmem:[#allocation10 + $0xb84] sm:$0xf]
    %v2724 = vld [vmem:[#allocation10 + $0xb88] sm:$0xf]
    %v2725 = vld [vmem:[#allocation10 + $0xb8c] sm:$0xf]
    %v2726 = vld [vmem:[#allocation10 + $0xb90] sm:$0xf]
    %v2727 = vld [vmem:[#allocation10 + $0xb94] sm:$0xf]
    %v2728 = vld [vmem:[#allocation10 + $0xb98] sm:$0xf]
    %v2729 = vld [vmem:[#allocation10 + $0xb9c] sm:$0xf]
    %v2730 = vld [vmem:[#allocation10 + $0xba0] sm:$0xf]
    %v2731 = vld [vmem:[#allocation10 + $0xba4] sm:$0xf]
    %v2732 = vld [vmem:[#allocation10 + $0xba8] sm:$0xf]
    %v2733 = vld [vmem:[#allocation10 + $0xbac] sm:$0xf]
    %v2734 = vld [vmem:[#allocation10 + $0xbb0] sm:$0xf]
    %v2735 = vld [vmem:[#allocation10 + $0xbb4] sm:$0xf]
    %v2736 = vld [vmem:[#allocation10 + $0xbb8] sm:$0xf]
    %v2737 = vld [vmem:[#allocation10 + $0xbbc] sm:$0xf]
    %v2738 = vld [vmem:[#allocation10 + $0xbc0] sm:$0xf]
    %v2739 = vld [vmem:[#allocation10 + $0xbc4] sm:$0xf]
    %v2740 = vld [vmem:[#allocation10 + $0xbc8] sm:$0xf]
    %v2741 = vld [vmem:[#allocation10 + $0xbcc] sm:$0xf]
    %v2742 = vld [vmem:[#allocation10 + $0xbd0] sm:$0xf]
    %v2743 = vld [vmem:[#allocation10 + $0xbd4] sm:$0xf]
    %v2744 = vld [vmem:[#allocation10 + $0xbd8] sm:$0xf]
    %v2745 = vld [vmem:[#allocation10 + $0xbdc] sm:$0xf]
    %v2746 = vld [vmem:[#allocation10 + $0xbe0] sm:$0xf]
    %v2747 = vld [vmem:[#allocation10 + $0xbe4] sm:$0xf]
    %v2748 = vld [vmem:[#allocation10 + $0xbe8] sm:$0xf]
    %v2749 = vld [vmem:[#allocation10 + $0xbec] sm:$0xf]
    %v2750 = vld [vmem:[#allocation10 + $0xbf0] sm:$0xf]
    %v2751 = vld [vmem:[#allocation10 + $0xbf4] sm:$0xf]
    %v2752 = vld [vmem:[#allocation10 + $0xbf8] sm:$0xf]
    %v2753 = vld [vmem:[#allocation10 + $0xbfc] sm:$0xf]
    %v2754 = vld [vmem:[#allocation10 + $0xc00] sm:$0xf]
    %v2755 = vld [vmem:[#allocation10 + $0xc04] sm:$0xf]
    %v2756 = vld [vmem:[#allocation10 + $0xc08] sm:$0xf]
    %v2757 = vld [vmem:[#allocation10 + $0xc0c] sm:$0xf]
    %v2758 = vld [vmem:[#allocation10 + $0xc10] sm:$0xf]
    %v2759 = vld [vmem:[#allocation10 + $0xc14] sm:$0xf]
    %v2760 = vld [vmem:[#allocation10 + $0xc18] sm:$0xf]
    %v2761 = vld [vmem:[#allocation10 + $0xc1c] sm:$0xf]
    %v2762 = vld [vmem:[#allocation10 + $0xc20] sm:$0xf]
    %v2763 = vld [vmem:[#allocation10 + $0xc24] sm:$0xf]
    %v2764 = vld [vmem:[#allocation10 + $0xc28] sm:$0xf]
    %v2765 = vld [vmem:[#allocation10 + $0xc2c] sm:$0xf]
    %v2766 = vld [vmem:[#allocation10 + $0xc30] sm:$0xf]
    %v2767 = vld [vmem:[#allocation10 + $0xc34] sm:$0xf]
    %v2768 = vld [vmem:[#allocation10 + $0xc38] sm:$0xf]
    %v2769 = vld [vmem:[#allocation10 + $0xc3c] sm:$0xf]
    %v2770 = vld [vmem:[#allocation10 + $0xc40] sm:$0xf]
    %v2771 = vld [vmem:[#allocation10 + $0xc44] sm:$0xf]
    %v2772 = vld [vmem:[#allocation10 + $0xc48] sm:$0xf]
    %v2773 = vld [vmem:[#allocation10 + $0xc4c] sm:$0xf]
    %v2774 = vld [vmem:[#allocation10 + $0xc50] sm:$0xf]
    %v2775 = vld [vmem:[#allocation10 + $0xc54] sm:$0xf]
    %v2776 = vld [vmem:[#allocation10 + $0xc58] sm:$0xf]
    %v2777 = vld [vmem:[#allocation10 + $0xc5c] sm:$0xf]
    %v2778 = vld [vmem:[#allocation10 + $0xc60] sm:$0xf]
    %v2779 = vld [vmem:[#allocation10 + $0xc64] sm:$0xf]
    %v2780 = vld [vmem:[#allocation10 + $0xc68] sm:$0xf]
    %v2781 = vld [vmem:[#allocation10 + $0xc6c] sm:$0xf]
    %v2782 = vld [vmem:[#allocation10 + $0xc70] sm:$0xf]
    %v2783 = vld [vmem:[#allocation10 + $0xc74] sm:$0xf]
    %v2784 = vld [vmem:[#allocation10 + $0xc78] sm:$0xf]
    %v2785 = vld [vmem:[#allocation10 + $0xc7c] sm:$0xf]
    %v2786 = vld [vmem:[#allocation10 + $0xc80] sm:$0xf]
    %v2787 = vld [vmem:[#allocation10 + $0xc84] sm:$0xf]
    %v2788 = vld [vmem:[#allocation10 + $0xc88] sm:$0xf]
    %v2789 = vld [vmem:[#allocation10 + $0xc8c] sm:$0xf]
    %v2790 = vld [vmem:[#allocation10 + $0xc90] sm:$0xf]
    %v2791 = vld [vmem:[#allocation10 + $0xc94] sm:$0xf]
    %v2792 = vld [vmem:[#allocation10 + $0xc98] sm:$0xf]
    %v2793 = vld [vmem:[#allocation10 + $0xc9c] sm:$0xf]
    %v2794 = vld [vmem:[#allocation10 + $0xca0] sm:$0xf]
    %v2795 = vld [vmem:[#allocation10 + $0xca4] sm:$0xf]
    %v2796 = vld [vmem:[#allocation10 + $0xca8] sm:$0xf]
    %v2797 = vld [vmem:[#allocation10 + $0xcac] sm:$0xf]
    %v2798 = vld [vmem:[#allocation10 + $0xcb0] sm:$0xf]
    %v2799 = vld [vmem:[#allocation10 + $0xcb4] sm:$0xf]
    %v2800 = vld [vmem:[#allocation10 + $0xcb8] sm:$0xf]
    %v2801 = vld [vmem:[#allocation10 + $0xcbc] sm:$0xf]
    %v2802 = vld [vmem:[#allocation10 + $0xcc0] sm:$0xf]
    %v2803 = vld [vmem:[#allocation10 + $0xcc4] sm:$0xf]
    %v2804 = vld [vmem:[#allocation10 + $0xcc8] sm:$0xf]
    %v2805 = vld [vmem:[#allocation10 + $0xccc] sm:$0xf]
    %v2806 = vld [vmem:[#allocation10 + $0xcd0] sm:$0xf]
    %v2807 = vld [vmem:[#allocation10 + $0xcd4] sm:$0xf]
    %v2808 = vld [vmem:[#allocation10 + $0xcd8] sm:$0xf]
    %v2809 = vld [vmem:[#allocation10 + $0xcdc] sm:$0xf]
    %v2810 = vld [vmem:[#allocation10 + $0xce0] sm:$0xf]
    %v2811 = vld [vmem:[#allocation10 + $0xce4] sm:$0xf]
    %v2812 = vld [vmem:[#allocation10 + $0xce8] sm:$0xf]
    %v2813 = vld [vmem:[#allocation10 + $0xcec] sm:$0xf]
    %v2814 = vld [vmem:[#allocation10 + $0xcf0] sm:$0xf]
    %v2815 = vld [vmem:[#allocation10 + $0xcf4] sm:$0xf]
    %v2816 = vld [vmem:[#allocation10 + $0xcf8] sm:$0xf]
    %v2817 = vld [vmem:[#allocation10 + $0xcfc] sm:$0xf]
    %v2818 = vld [vmem:[#allocation10 + $0xd00] sm:$0xf]
    %v2819 = vld [vmem:[#allocation10 + $0xd04] sm:$0xf]
    %v2820 = vld [vmem:[#allocation10 + $0xd08] sm:$0xf]
    %v2821 = vld [vmem:[#allocation10 + $0xd0c] sm:$0xf]
    %v2822 = vld [vmem:[#allocation10 + $0xd10] sm:$0xf]
    %v2823 = vld [vmem:[#allocation10 + $0xd14] sm:$0xf]
    %v2824 = vld [vmem:[#allocation10 + $0xd18] sm:$0xf]
    %v2825 = vld [vmem:[#allocation10 + $0xd1c] sm:$0xf]
    %v2826 = vld [vmem:[#allocation10 + $0xd20] sm:$0xf]
    %v2827 = vld [vmem:[#allocation10 + $0xd24] sm:$0xf]
    %v2828 = vld [vmem:[#allocation10 + $0xd28] sm:$0xf]
    %v2829 = vld [vmem:[#allocation10 + $0xd2c] sm:$0xf]
    %v2830 = vld [vmem:[#allocation10 + $0xd30] sm:$0xf]
    %v2831 = vld [vmem:[#allocation10 + $0xd34] sm:$0xf]
    %v2832 = vld [vmem:[#allocation10 + $0xd38] sm:$0xf]
    %v2833 = vld [vmem:[#allocation10 + $0xd3c] sm:$0xf]
    %v2834 = vld [vmem:[#allocation10 + $0xd40] sm:$0xf]
    %v2835 = vld [vmem:[#allocation10 + $0xd44] sm:$0xf]
    %v2836 = vld [vmem:[#allocation10 + $0xd48] sm:$0xf]
    %v2837 = vld [vmem:[#allocation10 + $0xd4c] sm:$0xf]
    %v2838 = vld [vmem:[#allocation10 + $0xd50] sm:$0xf]
    %v2839 = vld [vmem:[#allocation10 + $0xd54] sm:$0xf]
    %v2840 = vld [vmem:[#allocation10 + $0xd58] sm:$0xf]
    %v2841 = vld [vmem:[#allocation10 + $0xd5c] sm:$0xf]
    %v2842 = vld [vmem:[#allocation10 + $0xd60] sm:$0xf]
    %v2843 = vld [vmem:[#allocation10 + $0xd64] sm:$0xf]
    %v2844 = vld [vmem:[#allocation10 + $0xd68] sm:$0xf]
    %v2845 = vld [vmem:[#allocation10 + $0xd6c] sm:$0xf]
    %v2846 = vld [vmem:[#allocation10 + $0xd70] sm:$0xf]
    %v2847 = vld [vmem:[#allocation10 + $0xd74] sm:$0xf]
    %v2848 = vld [vmem:[#allocation10 + $0xd78] sm:$0xf]
    %v2849 = vld [vmem:[#allocation10 + $0xd7c] sm:$0xf]
    %v2850 = vld [vmem:[#allocation10 + $0xd80] sm:$0xf]
    %v2851 = vld [vmem:[#allocation10 + $0xd84] sm:$0xf]
    %v2852 = vld [vmem:[#allocation10 + $0xd88] sm:$0xf]
    %v2853 = vld [vmem:[#allocation10 + $0xd8c] sm:$0xf]
    %v2854 = vld [vmem:[#allocation10 + $0xd90] sm:$0xf]
    %v2855 = vld [vmem:[#allocation10 + $0xd94] sm:$0xf]
    %v2856 = vld [vmem:[#allocation10 + $0xd98] sm:$0xf]
    %v2857 = vld [vmem:[#allocation10 + $0xd9c] sm:$0xf]
    %v2858 = vld [vmem:[#allocation10 + $0xda0] sm:$0xf]
    %v2859 = vld [vmem:[#allocation10 + $0xda4] sm:$0xf]
    %v2860 = vld [vmem:[#allocation10 + $0xda8] sm:$0xf]
    %v2861 = vld [vmem:[#allocation10 + $0xdac] sm:$0xf]
    %v2862 = vld [vmem:[#allocation10 + $0xdb0] sm:$0xf]
    %v2863 = vld [vmem:[#allocation10 + $0xdb4] sm:$0xf]
    %v2864 = vld [vmem:[#allocation10 + $0xdb8] sm:$0xf]
    %v2865 = vld [vmem:[#allocation10 + $0xdbc] sm:$0xf]
    %v2866 = vld [vmem:[#allocation10 + $0xdc0] sm:$0xf]
    %v2867 = vld [vmem:[#allocation10 + $0xdc4] sm:$0xf]
    %v2868 = vld [vmem:[#allocation10 + $0xdc8] sm:$0xf]
    %v2869 = vld [vmem:[#allocation10 + $0xdcc] sm:$0xf]
    %v2870 = vld [vmem:[#allocation10 + $0xdd0] sm:$0xf]
    %v2871 = vld [vmem:[#allocation10 + $0xdd4] sm:$0xf]
    %v2872 = vld [vmem:[#allocation10 + $0xdd8] sm:$0xf]
    %v2873 = vld [vmem:[#allocation10 + $0xddc] sm:$0xf]
    %v2874 = vld [vmem:[#allocation10 + $0xde0] sm:$0xf]
    %v2875 = vld [vmem:[#allocation10 + $0xde4] sm:$0xf]
    %v2876 = vld [vmem:[#allocation10 + $0xde8] sm:$0xf]
    %v2877 = vld [vmem:[#allocation10 + $0xdec] sm:$0xf]
    %v2878 = vld [vmem:[#allocation10 + $0xdf0] sm:$0xf]
    %v2879 = vld [vmem:[#allocation10 + $0xdf4] sm:$0xf]
    %v2880 = vld [vmem:[#allocation10 + $0xdf8] sm:$0xf]
    %v2881 = vld [vmem:[#allocation10 + $0xdfc] sm:$0xf]
    %v2882 = vld [vmem:[#allocation10 + $0xe00] sm:$0xf]
    %v2883 = vld [vmem:[#allocation10 + $0xe04] sm:$0xf]
    %v2884 = vld [vmem:[#allocation10 + $0xe08] sm:$0xf]
    %v2885 = vld [vmem:[#allocation10 + $0xe0c] sm:$0xf]
    %v2886 = vld [vmem:[#allocation10 + $0xe10] sm:$0xf]
    %v2887 = vld [vmem:[#allocation10 + $0xe14] sm:$0xf]
    %v2888 = vld [vmem:[#allocation10 + $0xe18] sm:$0xf]
    %v2889 = vld [vmem:[#allocation10 + $0xe1c] sm:$0xf]
    %v2890 = vld [vmem:[#allocation10 + $0xe20] sm:$0xf]
    %v2891 = vld [vmem:[#allocation10 + $0xe24] sm:$0xf]
    %v2892 = vld [vmem:[#allocation10 + $0xe28] sm:$0xf]
    %v2893 = vld [vmem:[#allocation10 + $0xe2c] sm:$0xf]
    %v2894 = vld [vmem:[#allocation10 + $0xe30] sm:$0xf]
    %v2895 = vld [vmem:[#allocation10 + $0xe34] sm:$0xf]
    %v2896 = vld [vmem:[#allocation10 + $0xe38] sm:$0xf]
    %v2897 = vld [vmem:[#allocation10 + $0xe3c] sm:$0xf]
    %v2898 = vld [vmem:[#allocation10 + $0xe40] sm:$0xf]
    %v2899 = vld [vmem:[#allocation10 + $0xe44] sm:$0xf]
    %v2900 = vld [vmem:[#allocation10 + $0xe48] sm:$0xf]
    %v2901 = vld [vmem:[#allocation10 + $0xe4c] sm:$0xf]
    %v2902 = vld [vmem:[#allocation10 + $0xe50] sm:$0xf]
    %v2903 = vld [vmem:[#allocation10 + $0xe54] sm:$0xf]
    %v2904 = vld [vmem:[#allocation10 + $0xe58] sm:$0xf]
    %v2905 = vld [vmem:[#allocation10 + $0xe5c] sm:$0xf]
    %v2906 = vld [vmem:[#allocation10 + $0xe60] sm:$0xf]
    %v2907 = vld [vmem:[#allocation10 + $0xe64] sm:$0xf]
    %v2908 = vld [vmem:[#allocation10 + $0xe68] sm:$0xf]
    %v2909 = vld [vmem:[#allocation10 + $0xe6c] sm:$0xf]
    %v2910 = vld [vmem:[#allocation10 + $0xe70] sm:$0xf]
    %v2911 = vld [vmem:[#allocation10 + $0xe74] sm:$0xf]
    %v2912 = vld [vmem:[#allocation10 + $0xe78] sm:$0xf]
    %v2913 = vld [vmem:[#allocation10 + $0xe7c] sm:$0xf]
    %v2914 = vld [vmem:[#allocation10 + $0xe80] sm:$0xf]
    %v2915 = vld [vmem:[#allocation10 + $0xe84] sm:$0xf]
    %v2916 = vld [vmem:[#allocation10 + $0xe88] sm:$0xf]
    %v2917 = vld [vmem:[#allocation10 + $0xe8c] sm:$0xf]
    %v2918 = vld [vmem:[#allocation10 + $0xe90] sm:$0xf]
    %v2919 = vld [vmem:[#allocation10 + $0xe94] sm:$0xf]
    %v2920 = vld [vmem:[#allocation10 + $0xe98] sm:$0xf]
    %v2921 = vld [vmem:[#allocation10 + $0xe9c] sm:$0xf]
    %v2922 = vld [vmem:[#allocation10 + $0xea0] sm:$0xf]
    %v2923 = vld [vmem:[#allocation10 + $0xea4] sm:$0xf]
    %v2924 = vld [vmem:[#allocation10 + $0xea8] sm:$0xf]
    %v2925 = vld [vmem:[#allocation10 + $0xeac] sm:$0xf]
    %v2926 = vld [vmem:[#allocation10 + $0xeb0] sm:$0xf]
    %v2927 = vld [vmem:[#allocation10 + $0xeb4] sm:$0xf]
    %v2928 = vld [vmem:[#allocation10 + $0xeb8] sm:$0xf]
    %v2929 = vld [vmem:[#allocation10 + $0xebc] sm:$0xf]
    %v2930 = vld [vmem:[#allocation10 + $0xec0] sm:$0xf]
    %v2931 = vld [vmem:[#allocation10 + $0xec4] sm:$0xf]
    %v2932 = vld [vmem:[#allocation10 + $0xec8] sm:$0xf]
    %v2933 = vld [vmem:[#allocation10 + $0xecc] sm:$0xf]
    %v2934 = vld [vmem:[#allocation10 + $0xed0] sm:$0xf]
    %v2935 = vld [vmem:[#allocation10 + $0xed4] sm:$0xf]
    %v2936 = vld [vmem:[#allocation10 + $0xed8] sm:$0xf]
    %v2937 = vld [vmem:[#allocation10 + $0xedc] sm:$0xf]
    %v2938 = vld [vmem:[#allocation10 + $0xee0] sm:$0xf]
    %v2939 = vld [vmem:[#allocation10 + $0xee4] sm:$0xf]
    %v2940 = vld [vmem:[#allocation10 + $0xee8] sm:$0xf]
    %v2941 = vld [vmem:[#allocation10 + $0xeec] sm:$0xf]
    %v2942 = vld [vmem:[#allocation10 + $0xef0] sm:$0xf]
    %v2943 = vld [vmem:[#allocation10 + $0xef4] sm:$0xf]
    %v2944 = vld [vmem:[#allocation10 + $0xef8] sm:$0xf]
    %v2945 = vld [vmem:[#allocation10 + $0xefc] sm:$0xf]
    %v2946 = vld [vmem:[#allocation10 + $0xf00] sm:$0xf]
    %v2947 = vld [vmem:[#allocation10 + $0xf04] sm:$0xf]
    %v2948 = vld [vmem:[#allocation10 + $0xf08] sm:$0xf]
    %v2949 = vld [vmem:[#allocation10 + $0xf0c] sm:$0xf]
    %v2950 = vld [vmem:[#allocation10 + $0xf10] sm:$0xf]
    %v2951 = vld [vmem:[#allocation10 + $0xf14] sm:$0xf]
    %v2952 = vld [vmem:[#allocation10 + $0xf18] sm:$0xf]
    %v2953 = vld [vmem:[#allocation10 + $0xf1c] sm:$0xf]
    %v2954 = vld [vmem:[#allocation10 + $0xf20] sm:$0xf]
    %v2955 = vld [vmem:[#allocation10 + $0xf24] sm:$0xf]
    %v2956 = vld [vmem:[#allocation10 + $0xf28] sm:$0xf]
    %v2957 = vld [vmem:[#allocation10 + $0xf2c] sm:$0xf]
    %v2958 = vld [vmem:[#allocation10 + $0xf30] sm:$0xf]
    %v2959 = vld [vmem:[#allocation10 + $0xf34] sm:$0xf]
    %v2960 = vld [vmem:[#allocation10 + $0xf38] sm:$0xf]
    %v2961 = vld [vmem:[#allocation10 + $0xf3c] sm:$0xf]
    %v2962 = vld [vmem:[#allocation10 + $0xf40] sm:$0xf]
    %v2963 = vld [vmem:[#allocation10 + $0xf44] sm:$0xf]
    %v2964 = vld [vmem:[#allocation10 + $0xf48] sm:$0xf]
    %v2965 = vld [vmem:[#allocation10 + $0xf4c] sm:$0xf]
    %v2966 = vld [vmem:[#allocation10 + $0xf50] sm:$0xf]
    %v2967 = vld [vmem:[#allocation10 + $0xf54] sm:$0xf]
    %v2968 = vld [vmem:[#allocation10 + $0xf58] sm:$0xf]
    %v2969 = vld [vmem:[#allocation10 + $0xf5c] sm:$0xf]
    %v2970 = vld [vmem:[#allocation10 + $0xf60] sm:$0xf]
    %v2971 = vld [vmem:[#allocation10 + $0xf64] sm:$0xf]
    %v2972 = vld [vmem:[#allocation10 + $0xf68] sm:$0xf]
    %v2973 = vld [vmem:[#allocation10 + $0xf6c] sm:$0xf]
    %v2974 = vld [vmem:[#allocation10 + $0xf70] sm:$0xf]
    %v2975 = vld [vmem:[#allocation10 + $0xf74] sm:$0xf]
    %v2976 = vld [vmem:[#allocation10 + $0xf78] sm:$0xf]
    %v2977 = vld [vmem:[#allocation10 + $0xf7c] sm:$0xf]
    %v2978 = vld [vmem:[#allocation10 + $0xf80] sm:$0xf]
    %v2979 = vld [vmem:[#allocation10 + $0xf84] sm:$0xf]
    %v2980 = vld [vmem:[#allocation10 + $0xf88] sm:$0xf]
    %v2981 = vld [vmem:[#allocation10 + $0xf8c] sm:$0xf]
    %v2982 = vld [vmem:[#allocation10 + $0xf90] sm:$0xf]
    %v2983 = vld [vmem:[#allocation10 + $0xf94] sm:$0xf]
    %v2984 = vld [vmem:[#allocation10 + $0xf98] sm:$0xf]
    %v2985 = vld [vmem:[#allocation10 + $0xf9c] sm:$0xf]
    %v2986 = vld [vmem:[#allocation10 + $0xfa0] sm:$0xf]
    %v2987 = vld [vmem:[#allocation10 + $0xfa4] sm:$0xf]
    %v2988 = vld [vmem:[#allocation10 + $0xfa8] sm:$0xf]
    %v2989 = vld [vmem:[#allocation10 + $0xfac] sm:$0xf]
    %v2990 = vld [vmem:[#allocation10 + $0xfb0] sm:$0xf]
    %v2991 = vld [vmem:[#allocation10 + $0xfb4] sm:$0xf]
    %v2992 = vld [vmem:[#allocation10 + $0xfb8] sm:$0xf]
    %v2993 = vld [vmem:[#allocation10 + $0xfbc] sm:$0xf]
    %v2994 = vld [vmem:[#allocation10 + $0xfc0] sm:$0xf]
    %v2995 = vld [vmem:[#allocation10 + $0xfc4] sm:$0xf]
    %v2996 = vld [vmem:[#allocation10 + $0xfc8] sm:$0xf]
    %v2997 = vld [vmem:[#allocation10 + $0xfcc] sm:$0xf]
    %v2998 = vld [vmem:[#allocation10 + $0xfd0] sm:$0xf]
    %v2999 = vld [vmem:[#allocation10 + $0xfd4] sm:$0xf]
    %v3000 = vld [vmem:[#allocation10 + $0xfd8] sm:$0xf]
    %v3001 = vld [vmem:[#allocation10 + $0xfdc] sm:$0xf]
    %v3002 = vld [vmem:[#allocation10 + $0xfe0] sm:$0xf]
    %v3003 = vld [vmem:[#allocation10 + $0xfe4] sm:$0xf]
    %v3004 = vld [vmem:[#allocation10 + $0xfe8] sm:$0xf]
    %v3005 = vld [vmem:[#allocation10 + $0xfec] sm:$0xf]
    %v3006 = vld [vmem:[#allocation10 + $0xff0] sm:$0xf]
    %v3007 = vld [vmem:[#allocation10 + $0xff4] sm:$0xf]
    %v3008 = vld [vmem:[#allocation10 + $0xff8] sm:$0xf]
    %v3009 = vld [vmem:[#allocation10 + $0xffc] sm:$0xf]
    %v3010 = vld [vmem:[#allocation12] sm:$0x1]
    %v3012 = vlaneseq
    %v3013 = vshrl.u32 %v3012, 7
    %v3014 = vsub.s32 0, %v3013
    %v3015 = vrot.slane %v3010, %v3014
    %v3049 = vunpack.c.l.b16 %v1954
    %v3050 = vunpack.c.h.b16 %v1954
    %v3051 = vunpack.c.l.b16 %v1955
    %v3052 = vunpack.c.h.b16 %v1955
    %v3053 = vunpack.c.l.b16 %v1956
    %v3054 = vunpack.c.h.b16 %v1956
    %v3055 = vunpack.c.l.b16 %v1957
    %v3056 = vunpack.c.h.b16 %v1957
    %v3057 = vunpack.c.l.b16 %v1958
    %v3058 = vunpack.c.h.b16 %v1958
    %v3059 = vunpack.c.l.b16 %v1959
    %v3060 = vunpack.c.h.b16 %v1959
    %v3061 = vunpack.c.l.b16 %v1960
    %v3062 = vunpack.c.h.b16 %v1960
    %v3063 = vunpack.c.l.b16 %v1961
    %v3064 = vunpack.c.h.b16 %v1961
    %v3065 = vunpack.c.l.b16 %v1962
    %v3066 = vunpack.c.h.b16 %v1962
    %v3067 = vunpack.c.l.b16 %v1963
    %v3068 = vunpack.c.h.b16 %v1963
    %v3069 = vunpack.c.l.b16 %v1964
    %v3070 = vunpack.c.h.b16 %v1964
    %v3071 = vunpack.c.l.b16 %v1965
    %v3072 = vunpack.c.h.b16 %v1965
    %v3073 = vunpack.c.l.b16 %v1966
    %v3074 = vunpack.c.h.b16 %v1966
    %v3075 = vunpack.c.l.b16 %v1967
    %v3076 = vunpack.c.h.b16 %v1967
    %v3077 = vunpack.c.l.b16 %v1968
    %v3078 = vunpack.c.h.b16 %v1968
    %v3079 = vunpack.c.l.b16 %v1969
    %v3080 = vunpack.c.h.b16 %v1969
    %v3081 = vunpack.c.l.b16 %v1970
    %v3082 = vunpack.c.h.b16 %v1970
    %v3083 = vunpack.c.l.b16 %v1971
    %v3084 = vunpack.c.h.b16 %v1971
    %v3085 = vunpack.c.l.b16 %v1972
    %v3086 = vunpack.c.h.b16 %v1972
    %v3087 = vunpack.c.l.b16 %v1973
    %v3088 = vunpack.c.h.b16 %v1973
    %v3089 = vunpack.c.l.b16 %v1974
    %v3090 = vunpack.c.h.b16 %v1974
    %v3091 = vunpack.c.l.b16 %v1975
    %v3092 = vunpack.c.h.b16 %v1975
    %v3093 = vunpack.c.l.b16 %v1976
    %v3094 = vunpack.c.h.b16 %v1976
    %v3095 = vunpack.c.l.b16 %v1977
    %v3096 = vunpack.c.h.b16 %v1977
    %v3097 = vunpack.c.l.b16 %v1978
    %v3098 = vunpack.c.h.b16 %v1978
    %v3099 = vunpack.c.l.b16 %v1979
    %v3100 = vunpack.c.h.b16 %v1979
    %v3101 = vunpack.c.l.b16 %v1980
    %v3102 = vunpack.c.h.b16 %v1980
    %v3103 = vunpack.c.l.b16 %v1981
    %v3104 = vunpack.c.h.b16 %v1981
    %v3105 = vunpack.c.l.b16 %v1982
    %v3106 = vunpack.c.h.b16 %v1982
    %v3107 = vunpack.c.l.b16 %v1983
    %v3108 = vunpack.c.h.b16 %v1983
    %v3109 = vunpack.c.l.b16 %v1984
    %v3110 = vunpack.c.h.b16 %v1984
    %v3111 = vunpack.c.l.b16 %v1985
    %v3112 = vunpack.c.h.b16 %v1985
    %v3113 = vpack.c.b16 %v3049, %v3049
    %v3114 = vpack.c.b16 %v3050, %v3050
    %v3115 = vpack.c.b16 %v3051, %v3051
    %v3116 = vpack.c.b16 %v3052, %v3052
    %v3117 = vpack.c.b16 %v3053, %v3053
    %v3118 = vpack.c.b16 %v3054, %v3054
    %v3119 = vpack.c.b16 %v3055, %v3055
    %v3120 = vpack.c.b16 %v3056, %v3056
    %v3121 = vpack.c.b16 %v3057, %v3057
    %v3122 = vpack.c.b16 %v3058, %v3058
    %v3123 = vpack.c.b16 %v3059, %v3059
    %v3124 = vpack.c.b16 %v3060, %v3060
    %v3125 = vpack.c.b16 %v3061, %v3061
    %v3126 = vpack.c.b16 %v3062, %v3062
    %v3127 = vpack.c.b16 %v3063, %v3063
    %v3128 = vpack.c.b16 %v3064, %v3064
    %v3129 = vpack.c.b16 %v3065, %v3065
    %v3130 = vpack.c.b16 %v3066, %v3066
    %v3131 = vpack.c.b16 %v3067, %v3067
    %v3132 = vpack.c.b16 %v3068, %v3068
    %v3133 = vpack.c.b16 %v3069, %v3069
    %v3134 = vpack.c.b16 %v3070, %v3070
    %v3135 = vpack.c.b16 %v3071, %v3071
    %v3136 = vpack.c.b16 %v3072, %v3072
    %v3137 = vpack.c.b16 %v3073, %v3073
    %v3138 = vpack.c.b16 %v3074, %v3074
    %v3139 = vpack.c.b16 %v3075, %v3075
    %v3140 = vpack.c.b16 %v3076, %v3076
    %v3141 = vpack.c.b16 %v3077, %v3077
    %v3142 = vpack.c.b16 %v3078, %v3078
    %v3143 = vpack.c.b16 %v3079, %v3079
    %v3144 = vpack.c.b16 %v3080, %v3080
    %v3145 = vpack.c.b16 %v3081, %v3081
    %v3146 = vpack.c.b16 %v3082, %v3082
    %v3147 = vpack.c.b16 %v3083, %v3083
    %v3148 = vpack.c.b16 %v3084, %v3084
    %v3149 = vpack.c.b16 %v3085, %v3085
    %v3150 = vpack.c.b16 %v3086, %v3086
    %v3151 = vpack.c.b16 %v3087, %v3087
    %v3152 = vpack.c.b16 %v3088, %v3088
    %v3153 = vpack.c.b16 %v3089, %v3089
    %v3154 = vpack.c.b16 %v3090, %v3090
    %v3155 = vpack.c.b16 %v3091, %v3091
    %v3156 = vpack.c.b16 %v3092, %v3092
    %v3157 = vpack.c.b16 %v3093, %v3093
    %v3158 = vpack.c.b16 %v3094, %v3094
    %v3159 = vpack.c.b16 %v3095, %v3095
    %v3160 = vpack.c.b16 %v3096, %v3096
    %v3161 = vpack.c.b16 %v3097, %v3097
    %v3162 = vpack.c.b16 %v3098, %v3098
    %v3163 = vpack.c.b16 %v3099, %v3099
    %v3164 = vpack.c.b16 %v3100, %v3100
    %v3165 = vpack.c.b16 %v3101, %v3101
    %v3166 = vpack.c.b16 %v3102, %v3102
    %v3167 = vpack.c.b16 %v3103, %v3103
    %v3168 = vpack.c.b16 %v3104, %v3104
    %v3169 = vpack.c.b16 %v3105, %v3105
    %v3170 = vpack.c.b16 %v3106, %v3106
    %v3171 = vpack.c.b16 %v3107, %v3107
    %v3172 = vpack.c.b16 %v3108, %v3108
    %v3173 = vpack.c.b16 %v3109, %v3109
    %v3174 = vpack.c.b16 %v3110, %v3110
    %v3175 = vpack.c.b16 %v3111, %v3111
    %v3176 = vpack.c.b16 %v3112, %v3112
    %v4265 = vunpack.c.l.b16 %v1986
    %v4266 = vunpack.c.l.b16 %v1987
    %v4267 = vunpack.c.l.b16 %v1988
    %v4268 = vunpack.c.l.b16 %v1989
    %v4269 = vunpack.c.l.b16 %v1990
    %v4270 = vunpack.c.l.b16 %v1991
    %v4271 = vunpack.c.l.b16 %v1992
    %v4272 = vunpack.c.l.b16 %v1993
    %v4273 = vunpack.c.l.b16 %v1994
    %v4274 = vunpack.c.l.b16 %v1995
    %v4275 = vunpack.c.l.b16 %v1996
    %v4276 = vunpack.c.l.b16 %v1997
    %v4277 = vunpack.c.l.b16 %v1998
    %v4278 = vunpack.c.l.b16 %v1999
    %v4279 = vunpack.c.l.b16 %v2000
    %v4280 = vunpack.c.l.b16 %v2001
    %v4281 = vunpack.c.l.b16 %v2002
    %v4282 = vunpack.c.l.b16 %v2003
    %v4283 = vunpack.c.l.b16 %v2004
    %v4284 = vunpack.c.l.b16 %v2005
    %v4285 = vunpack.c.l.b16 %v2006
    %v4286 = vunpack.c.l.b16 %v2007
    %v4287 = vunpack.c.l.b16 %v2008
    %v4288 = vunpack.c.l.b16 %v2009
    %v4289 = vunpack.c.l.b16 %v2010
    %v4290 = vunpack.c.l.b16 %v2011
    %v4291 = vunpack.c.l.b16 %v2012
    %v4292 = vunpack.c.l.b16 %v2013
    %v4293 = vunpack.c.l.b16 %v2014
    %v4294 = vunpack.c.l.b16 %v2015
    %v4295 = vunpack.c.l.b16 %v2016
    %v4296 = vunpack.c.l.b16 %v2017
    %v4297 = vunpack.c.l.b16 %v2018
    %v4298 = vunpack.c.l.b16 %v2019
    %v4299 = vunpack.c.l.b16 %v2020
    %v4300 = vunpack.c.l.b16 %v2021
    %v4301 = vunpack.c.l.b16 %v2022
    %v4302 = vunpack.c.l.b16 %v2023
    %v4303 = vunpack.c.l.b16 %v2024
    %v4304 = vunpack.c.l.b16 %v2025
    %v4305 = vunpack.c.l.b16 %v2026
    %v4306 = vunpack.c.l.b16 %v2027
    %v4307 = vunpack.c.l.b16 %v2028
    %v4308 = vunpack.c.l.b16 %v2029
    %v4309 = vunpack.c.l.b16 %v2030
    %v4310 = vunpack.c.l.b16 %v2031
    %v4311 = vunpack.c.l.b16 %v2032
    %v4312 = vunpack.c.l.b16 %v2033
    %v4313 = vunpack.c.l.b16 %v2034
    %v4314 = vunpack.c.l.b16 %v2035
    %v4315 = vunpack.c.l.b16 %v2036
    %v4316 = vunpack.c.l.b16 %v2037
    %v4317 = vunpack.c.l.b16 %v2038
    %v4318 = vunpack.c.l.b16 %v2039
    %v4319 = vunpack.c.l.b16 %v2040
    %v4320 = vunpack.c.l.b16 %v2041
    %v4321 = vunpack.c.l.b16 %v2042
    %v4322 = vunpack.c.l.b16 %v2043
    %v4323 = vunpack.c.l.b16 %v2044
    %v4324 = vunpack.c.l.b16 %v2045
    %v4325 = vunpack.c.l.b16 %v2046
    %v4326 = vunpack.c.l.b16 %v2047
    %v4327 = vunpack.c.l.b16 %v2048
    %v4328 = vunpack.c.l.b16 %v2049
    %v4329 = vunpack.c.l.b16 %v2050
    %v4330 = vunpack.c.l.b16 %v2051
    %v4331 = vunpack.c.l.b16 %v2052
    %v4332 = vunpack.c.l.b16 %v2053
    %v4333 = vunpack.c.l.b16 %v2054
    %v4334 = vunpack.c.l.b16 %v2055
    %v4335 = vunpack.c.l.b16 %v2056
    %v4336 = vunpack.c.l.b16 %v2057
    %v4337 = vunpack.c.l.b16 %v2058
    %v4338 = vunpack.c.l.b16 %v2059
    %v4339 = vunpack.c.l.b16 %v2060
    %v4340 = vunpack.c.l.b16 %v2061
    %v4341 = vunpack.c.l.b16 %v2062
    %v4342 = vunpack.c.l.b16 %v2063
    %v4343 = vunpack.c.l.b16 %v2064
    %v4344 = vunpack.c.l.b16 %v2065
    %v4345 = vunpack.c.l.b16 %v2066
    %v4346 = vunpack.c.l.b16 %v2067
    %v4347 = vunpack.c.l.b16 %v2068
    %v4348 = vunpack.c.l.b16 %v2069
    %v4349 = vunpack.c.l.b16 %v2070
    %v4350 = vunpack.c.l.b16 %v2071
    %v4351 = vunpack.c.l.b16 %v2072
    %v4352 = vunpack.c.l.b16 %v2073
    %v4353 = vunpack.c.l.b16 %v2074
    %v4354 = vunpack.c.l.b16 %v2075
    %v4355 = vunpack.c.l.b16 %v2076
    %v4356 = vunpack.c.l.b16 %v2077
    %v4357 = vunpack.c.l.b16 %v2078
    %v4358 = vunpack.c.l.b16 %v2079
    %v4359 = vunpack.c.l.b16 %v2080
    %v4360 = vunpack.c.l.b16 %v2081
    %v4361 = vunpack.c.l.b16 %v2082
    %v4362 = vunpack.c.l.b16 %v2083
    %v4363 = vunpack.c.l.b16 %v2084
    %v4364 = vunpack.c.l.b16 %v2085
    %v4365 = vunpack.c.l.b16 %v2086
    %v4366 = vunpack.c.l.b16 %v2087
    %v4367 = vunpack.c.l.b16 %v2088
    %v4368 = vunpack.c.l.b16 %v2089
    %v4369 = vunpack.c.l.b16 %v2090
    %v4370 = vunpack.c.l.b16 %v2091
    %v4371 = vunpack.c.l.b16 %v2092
    %v4372 = vunpack.c.l.b16 %v2093
    %v4373 = vunpack.c.l.b16 %v2094
    %v4374 = vunpack.c.l.b16 %v2095
    %v4375 = vunpack.c.l.b16 %v2096
    %v4376 = vunpack.c.l.b16 %v2097
    %v4377 = vunpack.c.l.b16 %v2098
    %v4378 = vunpack.c.l.b16 %v2099
    %v4379 = vunpack.c.l.b16 %v2100
    %v4380 = vunpack.c.l.b16 %v2101
    %v4381 = vunpack.c.l.b16 %v2102
    %v4382 = vunpack.c.l.b16 %v2103
    %v4383 = vunpack.c.l.b16 %v2104
    %v4384 = vunpack.c.l.b16 %v2105
    %v4385 = vunpack.c.l.b16 %v2106
    %v4386 = vunpack.c.l.b16 %v2107
    %v4387 = vunpack.c.l.b16 %v2108
    %v4388 = vunpack.c.l.b16 %v2109
    %v4389 = vunpack.c.l.b16 %v2110
    %v4390 = vunpack.c.l.b16 %v2111
    %v4391 = vunpack.c.l.b16 %v2112
    %v4392 = vunpack.c.l.b16 %v2113
    %v4393 = vunpack.c.l.b16 %v2114
    %v4394 = vunpack.c.l.b16 %v2115
    %v4395 = vunpack.c.l.b16 %v2116
    %v4396 = vunpack.c.l.b16 %v2117
    %v4397 = vunpack.c.l.b16 %v2118
    %v4398 = vunpack.c.l.b16 %v2119
    %v4399 = vunpack.c.l.b16 %v2120
    %v4400 = vunpack.c.l.b16 %v2121
    %v4401 = vunpack.c.l.b16 %v2122
    %v4402 = vunpack.c.l.b16 %v2123
    %v4403 = vunpack.c.l.b16 %v2124
    %v4404 = vunpack.c.l.b16 %v2125
    %v4405 = vunpack.c.l.b16 %v2126
    %v4406 = vunpack.c.l.b16 %v2127
    %v4407 = vunpack.c.l.b16 %v2128
    %v4408 = vunpack.c.l.b16 %v2129
    %v4409 = vunpack.c.l.b16 %v2130
    %v4410 = vunpack.c.l.b16 %v2131
    %v4411 = vunpack.c.l.b16 %v2132
    %v4412 = vunpack.c.l.b16 %v2133
    %v4413 = vunpack.c.l.b16 %v2134
    %v4414 = vunpack.c.l.b16 %v2135
    %v4415 = vunpack.c.l.b16 %v2136
    %v4416 = vunpack.c.l.b16 %v2137
    %v4417 = vunpack.c.l.b16 %v2138
    %v4418 = vunpack.c.l.b16 %v2139
    %v4419 = vunpack.c.l.b16 %v2140
    %v4420 = vunpack.c.l.b16 %v2141
    %v4421 = vunpack.c.l.b16 %v2142
    %v4422 = vunpack.c.l.b16 %v2143
    %v4423 = vunpack.c.l.b16 %v2144
    %v4424 = vunpack.c.l.b16 %v2145
    %v4425 = vunpack.c.l.b16 %v2146
    %v4426 = vunpack.c.l.b16 %v2147
    %v4427 = vunpack.c.l.b16 %v2148
    %v4428 = vunpack.c.l.b16 %v2149
    %v4429 = vunpack.c.l.b16 %v2150
    %v4430 = vunpack.c.l.b16 %v2151
    %v4431 = vunpack.c.l.b16 %v2152
    %v4432 = vunpack.c.l.b16 %v2153
    %v4433 = vunpack.c.l.b16 %v2154
    %v4434 = vunpack.c.l.b16 %v2155
    %v4435 = vunpack.c.l.b16 %v2156
    %v4436 = vunpack.c.l.b16 %v2157
    %v4437 = vunpack.c.l.b16 %v2158
    %v4438 = vunpack.c.l.b16 %v2159
    %v4439 = vunpack.c.l.b16 %v2160
    %v4440 = vunpack.c.l.b16 %v2161
    %v4441 = vunpack.c.l.b16 %v2162
    %v4442 = vunpack.c.l.b16 %v2163
    %v4443 = vunpack.c.l.b16 %v2164
    %v4444 = vunpack.c.l.b16 %v2165
    %v4445 = vunpack.c.l.b16 %v2166
    %v4446 = vunpack.c.l.b16 %v2167
    %v4447 = vunpack.c.l.b16 %v2168
    %v4448 = vunpack.c.l.b16 %v2169
    %v4449 = vunpack.c.l.b16 %v2170
    %v4450 = vunpack.c.l.b16 %v2171
    %v4451 = vunpack.c.l.b16 %v2172
    %v4452 = vunpack.c.l.b16 %v2173
    %v4453 = vunpack.c.l.b16 %v2174
    %v4454 = vunpack.c.l.b16 %v2175
    %v4455 = vunpack.c.l.b16 %v2176
    %v4456 = vunpack.c.l.b16 %v2177
    %v4457 = vunpack.c.l.b16 %v2178
    %v4458 = vunpack.c.l.b16 %v2179
    %v4459 = vunpack.c.l.b16 %v2180
    %v4460 = vunpack.c.l.b16 %v2181
    %v4461 = vunpack.c.l.b16 %v2182
    %v4462 = vunpack.c.l.b16 %v2183
    %v4463 = vunpack.c.l.b16 %v2184
    %v4464 = vunpack.c.l.b16 %v2185
    %v4465 = vunpack.c.l.b16 %v2186
    %v4466 = vunpack.c.l.b16 %v2187
    %v4467 = vunpack.c.l.b16 %v2188
    %v4468 = vunpack.c.l.b16 %v2189
    %v4469 = vunpack.c.l.b16 %v2190
    %v4470 = vunpack.c.l.b16 %v2191
    %v4471 = vunpack.c.l.b16 %v2192
    %v4472 = vunpack.c.l.b16 %v2193
    %v4473 = vunpack.c.l.b16 %v2194
    %v4474 = vunpack.c.l.b16 %v2195
    %v4475 = vunpack.c.l.b16 %v2196
    %v4476 = vunpack.c.l.b16 %v2197
    %v4477 = vunpack.c.l.b16 %v2198
    %v4478 = vunpack.c.l.b16 %v2199
    %v4479 = vunpack.c.l.b16 %v2200
    %v4480 = vunpack.c.l.b16 %v2201
    %v4481 = vunpack.c.l.b16 %v2202
    %v4482 = vunpack.c.l.b16 %v2203
    %v4483 = vunpack.c.l.b16 %v2204
    %v4484 = vunpack.c.l.b16 %v2205
    %v4485 = vunpack.c.l.b16 %v2206
    %v4486 = vunpack.c.l.b16 %v2207
    %v4487 = vunpack.c.l.b16 %v2208
    %v4488 = vunpack.c.l.b16 %v2209
    %v4489 = vunpack.c.l.b16 %v2210
    %v4490 = vunpack.c.l.b16 %v2211
    %v4491 = vunpack.c.l.b16 %v2212
    %v4492 = vunpack.c.l.b16 %v2213
    %v4493 = vunpack.c.l.b16 %v2214
    %v4494 = vunpack.c.l.b16 %v2215
    %v4495 = vunpack.c.l.b16 %v2216
    %v4496 = vunpack.c.l.b16 %v2217
    %v4497 = vunpack.c.l.b16 %v2218
    %v4498 = vunpack.c.l.b16 %v2219
    %v4499 = vunpack.c.l.b16 %v2220
    %v4500 = vunpack.c.l.b16 %v2221
    %v4501 = vunpack.c.l.b16 %v2222
    %v4502 = vunpack.c.l.b16 %v2223
    %v4503 = vunpack.c.l.b16 %v2224
    %v4504 = vunpack.c.l.b16 %v2225
    %v4505 = vunpack.c.l.b16 %v2226
    %v4506 = vunpack.c.l.b16 %v2227
    %v4507 = vunpack.c.l.b16 %v2228
    %v4508 = vunpack.c.l.b16 %v2229
    %v4509 = vunpack.c.l.b16 %v2230
    %v4510 = vunpack.c.l.b16 %v2231
    %v4511 = vunpack.c.l.b16 %v2232
    %v4512 = vunpack.c.l.b16 %v2233
    %v4513 = vunpack.c.l.b16 %v2234
    %v4514 = vunpack.c.l.b16 %v2235
    %v4515 = vunpack.c.l.b16 %v2236
    %v4516 = vunpack.c.l.b16 %v2237
    %v4517 = vunpack.c.l.b16 %v2238
    %v4518 = vunpack.c.l.b16 %v2239
    %v4519 = vunpack.c.l.b16 %v2240
    %v4520 = vunpack.c.l.b16 %v2241
    %v4521 = vunpack.c.l.b16 %v2242
    %v4522 = vunpack.c.l.b16 %v2243
    %v4523 = vunpack.c.l.b16 %v2244
    %v4524 = vunpack.c.l.b16 %v2245
    %v4525 = vunpack.c.l.b16 %v2246
    %v4526 = vunpack.c.l.b16 %v2247
    %v4527 = vunpack.c.l.b16 %v2248
    %v4528 = vunpack.c.l.b16 %v2249
    %v4529 = vunpack.c.l.b16 %v2250
    %v4530 = vunpack.c.l.b16 %v2251
    %v4531 = vunpack.c.l.b16 %v2252
    %v4532 = vunpack.c.l.b16 %v2253
    %v4533 = vunpack.c.l.b16 %v2254
    %v4534 = vunpack.c.l.b16 %v2255
    %v4535 = vunpack.c.l.b16 %v2256
    %v4536 = vunpack.c.l.b16 %v2257
    %v4537 = vunpack.c.l.b16 %v2258
    %v4538 = vunpack.c.l.b16 %v2259
    %v4539 = vunpack.c.l.b16 %v2260
    %v4540 = vunpack.c.l.b16 %v2261
    %v4541 = vunpack.c.l.b16 %v2262
    %v4542 = vunpack.c.l.b16 %v2263
    %v4543 = vunpack.c.l.b16 %v2264
    %v4544 = vunpack.c.l.b16 %v2265
    %v4545 = vunpack.c.l.b16 %v2266
    %v4546 = vunpack.c.l.b16 %v2267
    %v4547 = vunpack.c.l.b16 %v2268
    %v4548 = vunpack.c.l.b16 %v2269
    %v4549 = vunpack.c.l.b16 %v2270
    %v4550 = vunpack.c.l.b16 %v2271
    %v4551 = vunpack.c.l.b16 %v2272
    %v4552 = vunpack.c.l.b16 %v2273
    %v4553 = vunpack.c.l.b16 %v2274
    %v4554 = vunpack.c.l.b16 %v2275
    %v4555 = vunpack.c.l.b16 %v2276
    %v4556 = vunpack.c.l.b16 %v2277
    %v4557 = vunpack.c.l.b16 %v2278
    %v4558 = vunpack.c.l.b16 %v2279
    %v4559 = vunpack.c.l.b16 %v2280
    %v4560 = vunpack.c.l.b16 %v2281
    %v4561 = vunpack.c.l.b16 %v2282
    %v4562 = vunpack.c.l.b16 %v2283
    %v4563 = vunpack.c.l.b16 %v2284
    %v4564 = vunpack.c.l.b16 %v2285
    %v4565 = vunpack.c.l.b16 %v2286
    %v4566 = vunpack.c.l.b16 %v2287
    %v4567 = vunpack.c.l.b16 %v2288
    %v4568 = vunpack.c.l.b16 %v2289
    %v4569 = vunpack.c.l.b16 %v2290
    %v4570 = vunpack.c.l.b16 %v2291
    %v4571 = vunpack.c.l.b16 %v2292
    %v4572 = vunpack.c.l.b16 %v2293
    %v4573 = vunpack.c.l.b16 %v2294
    %v4574 = vunpack.c.l.b16 %v2295
    %v4575 = vunpack.c.l.b16 %v2296
    %v4576 = vunpack.c.l.b16 %v2297
    %v4577 = vunpack.c.l.b16 %v2298
    %v4578 = vunpack.c.l.b16 %v2299
    %v4579 = vunpack.c.l.b16 %v2300
    %v4580 = vunpack.c.l.b16 %v2301
    %v4581 = vunpack.c.l.b16 %v2302
    %v4582 = vunpack.c.l.b16 %v2303
    %v4583 = vunpack.c.l.b16 %v2304
    %v4584 = vunpack.c.l.b16 %v2305
    %v4585 = vunpack.c.l.b16 %v2306
    %v4586 = vunpack.c.l.b16 %v2307
    %v4587 = vunpack.c.l.b16 %v2308
    %v4588 = vunpack.c.l.b16 %v2309
    %v4589 = vunpack.c.l.b16 %v2310
    %v4590 = vunpack.c.l.b16 %v2311
    %v4591 = vunpack.c.l.b16 %v2312
    %v4592 = vunpack.c.l.b16 %v2313
    %v4593 = vunpack.c.l.b16 %v2314
    %v4594 = vunpack.c.l.b16 %v2315
    %v4595 = vunpack.c.l.b16 %v2316
    %v4596 = vunpack.c.l.b16 %v2317
    %v4597 = vunpack.c.l.b16 %v2318
    %v4598 = vunpack.c.l.b16 %v2319
    %v4599 = vunpack.c.l.b16 %v2320
    %v4600 = vunpack.c.l.b16 %v2321
    %v4601 = vunpack.c.l.b16 %v2322
    %v4602 = vunpack.c.l.b16 %v2323
    %v4603 = vunpack.c.l.b16 %v2324
    %v4604 = vunpack.c.l.b16 %v2325
    %v4605 = vunpack.c.l.b16 %v2326
    %v4606 = vunpack.c.l.b16 %v2327
    %v4607 = vunpack.c.l.b16 %v2328
    %v4608 = vunpack.c.l.b16 %v2329
    %v4609 = vunpack.c.l.b16 %v2330
    %v4610 = vunpack.c.l.b16 %v2331
    %v4611 = vunpack.c.l.b16 %v2332
    %v4612 = vunpack.c.l.b16 %v2333
    %v4613 = vunpack.c.l.b16 %v2334
    %v4614 = vunpack.c.l.b16 %v2335
    %v4615 = vunpack.c.l.b16 %v2336
    %v4616 = vunpack.c.l.b16 %v2337
    %v4617 = vunpack.c.l.b16 %v2338
    %v4618 = vunpack.c.l.b16 %v2339
    %v4619 = vunpack.c.l.b16 %v2340
    %v4620 = vunpack.c.l.b16 %v2341
    %v4621 = vunpack.c.l.b16 %v2342
    %v4622 = vunpack.c.l.b16 %v2343
    %v4623 = vunpack.c.l.b16 %v2344
    %v4624 = vunpack.c.l.b16 %v2345
    %v4625 = vunpack.c.l.b16 %v2346
    %v4626 = vunpack.c.l.b16 %v2347
    %v4627 = vunpack.c.l.b16 %v2348
    %v4628 = vunpack.c.l.b16 %v2349
    %v4629 = vunpack.c.l.b16 %v2350
    %v4630 = vunpack.c.l.b16 %v2351
    %v4631 = vunpack.c.l.b16 %v2352
    %v4632 = vunpack.c.l.b16 %v2353
    %v4633 = vunpack.c.l.b16 %v2354
    %v4634 = vunpack.c.l.b16 %v2355
    %v4635 = vunpack.c.l.b16 %v2356
    %v4636 = vunpack.c.l.b16 %v2357
    %v4637 = vunpack.c.l.b16 %v2358
    %v4638 = vunpack.c.l.b16 %v2359
    %v4639 = vunpack.c.l.b16 %v2360
    %v4640 = vunpack.c.l.b16 %v2361
    %v4641 = vunpack.c.l.b16 %v2362
    %v4642 = vunpack.c.l.b16 %v2363
    %v4643 = vunpack.c.l.b16 %v2364
    %v4644 = vunpack.c.l.b16 %v2365
    %v4645 = vunpack.c.l.b16 %v2366
    %v4646 = vunpack.c.l.b16 %v2367
    %v4647 = vunpack.c.l.b16 %v2368
    %v4648 = vunpack.c.l.b16 %v2369
    %v4649 = vunpack.c.l.b16 %v2370
    %v4650 = vunpack.c.l.b16 %v2371
    %v4651 = vunpack.c.l.b16 %v2372
    %v4652 = vunpack.c.l.b16 %v2373
    %v4653 = vunpack.c.l.b16 %v2374
    %v4654 = vunpack.c.l.b16 %v2375
    %v4655 = vunpack.c.l.b16 %v2376
    %v4656 = vunpack.c.l.b16 %v2377
    %v4657 = vunpack.c.l.b16 %v2378
    %v4658 = vunpack.c.l.b16 %v2379
    %v4659 = vunpack.c.l.b16 %v2380
    %v4660 = vunpack.c.l.b16 %v2381
    %v4661 = vunpack.c.l.b16 %v2382
    %v4662 = vunpack.c.l.b16 %v2383
    %v4663 = vunpack.c.l.b16 %v2384
    %v4664 = vunpack.c.l.b16 %v2385
    %v4665 = vunpack.c.l.b16 %v2386
    %v4666 = vunpack.c.l.b16 %v2387
    %v4667 = vunpack.c.l.b16 %v2388
    %v4668 = vunpack.c.l.b16 %v2389
    %v4669 = vunpack.c.l.b16 %v2390
    %v4670 = vunpack.c.l.b16 %v2391
    %v4671 = vunpack.c.l.b16 %v2392
    %v4672 = vunpack.c.l.b16 %v2393
    %v4673 = vunpack.c.l.b16 %v2394
    %v4674 = vunpack.c.l.b16 %v2395
    %v4675 = vunpack.c.l.b16 %v2396
    %v4676 = vunpack.c.l.b16 %v2397
    %v4677 = vunpack.c.l.b16 %v2398
    %v4678 = vunpack.c.l.b16 %v2399
    %v4679 = vunpack.c.l.b16 %v2400
    %v4680 = vunpack.c.l.b16 %v2401
    %v4681 = vunpack.c.l.b16 %v2402
    %v4682 = vunpack.c.l.b16 %v2403
    %v4683 = vunpack.c.l.b16 %v2404
    %v4684 = vunpack.c.l.b16 %v2405
    %v4685 = vunpack.c.l.b16 %v2406
    %v4686 = vunpack.c.l.b16 %v2407
    %v4687 = vunpack.c.l.b16 %v2408
    %v4688 = vunpack.c.l.b16 %v2409
    %v4689 = vunpack.c.l.b16 %v2410
    %v4690 = vunpack.c.l.b16 %v2411
    %v4691 = vunpack.c.l.b16 %v2412
    %v4692 = vunpack.c.l.b16 %v2413
    %v4693 = vunpack.c.l.b16 %v2414
    %v4694 = vunpack.c.l.b16 %v2415
    %v4695 = vunpack.c.l.b16 %v2416
    %v4696 = vunpack.c.l.b16 %v2417
    %v4697 = vunpack.c.l.b16 %v2418
    %v4698 = vunpack.c.l.b16 %v2419
    %v4699 = vunpack.c.l.b16 %v2420
    %v4700 = vunpack.c.l.b16 %v2421
    %v4701 = vunpack.c.l.b16 %v2422
    %v4702 = vunpack.c.l.b16 %v2423
    %v4703 = vunpack.c.l.b16 %v2424
    %v4704 = vunpack.c.l.b16 %v2425
    %v4705 = vunpack.c.l.b16 %v2426
    %v4706 = vunpack.c.l.b16 %v2427
    %v4707 = vunpack.c.l.b16 %v2428
    %v4708 = vunpack.c.l.b16 %v2429
    %v4709 = vunpack.c.l.b16 %v2430
    %v4710 = vunpack.c.l.b16 %v2431
    %v4711 = vunpack.c.l.b16 %v2432
    %v4712 = vunpack.c.l.b16 %v2433
    %v4713 = vunpack.c.l.b16 %v2434
    %v4714 = vunpack.c.l.b16 %v2435
    %v4715 = vunpack.c.l.b16 %v2436
    %v4716 = vunpack.c.l.b16 %v2437
    %v4717 = vunpack.c.l.b16 %v2438
    %v4718 = vunpack.c.l.b16 %v2439
    %v4719 = vunpack.c.l.b16 %v2440
    %v4720 = vunpack.c.l.b16 %v2441
    %v4721 = vunpack.c.l.b16 %v2442
    %v4722 = vunpack.c.l.b16 %v2443
    %v4723 = vunpack.c.l.b16 %v2444
    %v4724 = vunpack.c.l.b16 %v2445
    %v4725 = vunpack.c.l.b16 %v2446
    %v4726 = vunpack.c.l.b16 %v2447
    %v4727 = vunpack.c.l.b16 %v2448
    %v4728 = vunpack.c.l.b16 %v2449
    %v4729 = vunpack.c.l.b16 %v2450
    %v4730 = vunpack.c.l.b16 %v2451
    %v4731 = vunpack.c.l.b16 %v2452
    %v4732 = vunpack.c.l.b16 %v2453
    %v4733 = vunpack.c.l.b16 %v2454
    %v4734 = vunpack.c.l.b16 %v2455
    %v4735 = vunpack.c.l.b16 %v2456
    %v4736 = vunpack.c.l.b16 %v2457
    %v4737 = vunpack.c.l.b16 %v2458
    %v4738 = vunpack.c.l.b16 %v2459
    %v4739 = vunpack.c.l.b16 %v2460
    %v4740 = vunpack.c.l.b16 %v2461
    %v4741 = vunpack.c.l.b16 %v2462
    %v4742 = vunpack.c.l.b16 %v2463
    %v4743 = vunpack.c.l.b16 %v2464
    %v4744 = vunpack.c.l.b16 %v2465
    %v4745 = vunpack.c.l.b16 %v2466
    %v4746 = vunpack.c.l.b16 %v2467
    %v4747 = vunpack.c.l.b16 %v2468
    %v4748 = vunpack.c.l.b16 %v2469
    %v4749 = vunpack.c.l.b16 %v2470
    %v4750 = vunpack.c.l.b16 %v2471
    %v4751 = vunpack.c.l.b16 %v2472
    %v4752 = vunpack.c.l.b16 %v2473
    %v4753 = vunpack.c.l.b16 %v2474
    %v4754 = vunpack.c.l.b16 %v2475
    %v4755 = vunpack.c.l.b16 %v2476
    %v4756 = vunpack.c.l.b16 %v2477
    %v4757 = vunpack.c.l.b16 %v2478
    %v4758 = vunpack.c.l.b16 %v2479
    %v4759 = vunpack.c.l.b16 %v2480
    %v4760 = vunpack.c.l.b16 %v2481
    %v4761 = vunpack.c.l.b16 %v2482
    %v4762 = vunpack.c.l.b16 %v2483
    %v4763 = vunpack.c.l.b16 %v2484
    %v4764 = vunpack.c.l.b16 %v2485
    %v4765 = vunpack.c.l.b16 %v2486
    %v4766 = vunpack.c.l.b16 %v2487
    %v4767 = vunpack.c.l.b16 %v2488
    %v4768 = vunpack.c.l.b16 %v2489
    %v4769 = vunpack.c.l.b16 %v2490
    %v4770 = vunpack.c.l.b16 %v2491
    %v4771 = vunpack.c.l.b16 %v2492
    %v4772 = vunpack.c.l.b16 %v2493
    %v4773 = vunpack.c.l.b16 %v2494
    %v4774 = vunpack.c.l.b16 %v2495
    %v4775 = vunpack.c.l.b16 %v2496
    %v4776 = vunpack.c.l.b16 %v2497
    %v4777 = vunpack.c.l.b16 %v2498
    %v4778 = vunpack.c.l.b16 %v2499
    %v4779 = vunpack.c.l.b16 %v2500
    %v4780 = vunpack.c.l.b16 %v2501
    %v4781 = vunpack.c.l.b16 %v2502
    %v4782 = vunpack.c.l.b16 %v2503
    %v4783 = vunpack.c.l.b16 %v2504
    %v4784 = vunpack.c.l.b16 %v2505
    %v4785 = vunpack.c.l.b16 %v2506
    %v4786 = vunpack.c.l.b16 %v2507
    %v4787 = vunpack.c.l.b16 %v2508
    %v4788 = vunpack.c.l.b16 %v2509
    %v4789 = vunpack.c.l.b16 %v2510
    %v4790 = vunpack.c.l.b16 %v2511
    %v4791 = vunpack.c.l.b16 %v2512
    %v4792 = vunpack.c.l.b16 %v2513
    %v4793 = vunpack.c.l.b16 %v2514
    %v4794 = vunpack.c.l.b16 %v2515
    %v4795 = vunpack.c.l.b16 %v2516
    %v4796 = vunpack.c.l.b16 %v2517
    %v4797 = vunpack.c.l.b16 %v2518
    %v4798 = vunpack.c.l.b16 %v2519
    %v4799 = vunpack.c.l.b16 %v2520
    %v4800 = vunpack.c.l.b16 %v2521
    %v4801 = vunpack.c.l.b16 %v2522
    %v4802 = vunpack.c.l.b16 %v2523
    %v4803 = vunpack.c.l.b16 %v2524
    %v4804 = vunpack.c.l.b16 %v2525
    %v4805 = vunpack.c.l.b16 %v2526
    %v4806 = vunpack.c.l.b16 %v2527
    %v4807 = vunpack.c.l.b16 %v2528
    %v4808 = vunpack.c.l.b16 %v2529
    %v4809 = vunpack.c.l.b16 %v2530
    %v4810 = vunpack.c.l.b16 %v2531
    %v4811 = vunpack.c.l.b16 %v2532
    %v4812 = vunpack.c.l.b16 %v2533
    %v4813 = vunpack.c.l.b16 %v2534
    %v4814 = vunpack.c.l.b16 %v2535
    %v4815 = vunpack.c.l.b16 %v2536
    %v4816 = vunpack.c.l.b16 %v2537
    %v4817 = vunpack.c.l.b16 %v2538
    %v4818 = vunpack.c.l.b16 %v2539
    %v4819 = vunpack.c.l.b16 %v2540
    %v4820 = vunpack.c.l.b16 %v2541
    %v4821 = vunpack.c.l.b16 %v2542
    %v4822 = vunpack.c.l.b16 %v2543
    %v4823 = vunpack.c.l.b16 %v2544
    %v4824 = vunpack.c.l.b16 %v2545
    %v4825 = vunpack.c.l.b16 %v2546
    %v4826 = vunpack.c.l.b16 %v2547
    %v4827 = vunpack.c.l.b16 %v2548
    %v4828 = vunpack.c.l.b16 %v2549
    %v4829 = vunpack.c.l.b16 %v2550
    %v4830 = vunpack.c.l.b16 %v2551
    %v4831 = vunpack.c.l.b16 %v2552
    %v4832 = vunpack.c.l.b16 %v2553
    %v4833 = vunpack.c.l.b16 %v2554
    %v4834 = vunpack.c.l.b16 %v2555
    %v4835 = vunpack.c.l.b16 %v2556
    %v4836 = vunpack.c.l.b16 %v2557
    %v4837 = vunpack.c.l.b16 %v2558
    %v4838 = vunpack.c.l.b16 %v2559
    %v4839 = vunpack.c.l.b16 %v2560
    %v4840 = vunpack.c.l.b16 %v2561
    %v4841 = vunpack.c.l.b16 %v2562
    %v4842 = vunpack.c.l.b16 %v2563
    %v4843 = vunpack.c.l.b16 %v2564
    %v4844 = vunpack.c.l.b16 %v2565
    %v4845 = vunpack.c.l.b16 %v2566
    %v4846 = vunpack.c.l.b16 %v2567
    %v4847 = vunpack.c.l.b16 %v2568
    %v4848 = vunpack.c.l.b16 %v2569
    %v4849 = vunpack.c.l.b16 %v2570
    %v4850 = vunpack.c.l.b16 %v2571
    %v4851 = vunpack.c.l.b16 %v2572
    %v4852 = vunpack.c.l.b16 %v2573
    %v4853 = vunpack.c.l.b16 %v2574
    %v4854 = vunpack.c.l.b16 %v2575
    %v4855 = vunpack.c.l.b16 %v2576
    %v4856 = vunpack.c.l.b16 %v2577
    %v4857 = vunpack.c.l.b16 %v2578
    %v4858 = vunpack.c.l.b16 %v2579
    %v4859 = vunpack.c.l.b16 %v2580
    %v4860 = vunpack.c.l.b16 %v2581
    %v4861 = vunpack.c.l.b16 %v2582
    %v4862 = vunpack.c.l.b16 %v2583
    %v4863 = vunpack.c.l.b16 %v2584
    %v4864 = vunpack.c.l.b16 %v2585
    %v4865 = vunpack.c.l.b16 %v2586
    %v4866 = vunpack.c.l.b16 %v2587
    %v4867 = vunpack.c.l.b16 %v2588
    %v4868 = vunpack.c.l.b16 %v2589
    %v4869 = vunpack.c.l.b16 %v2590
    %v4870 = vunpack.c.l.b16 %v2591
    %v4871 = vunpack.c.l.b16 %v2592
    %v4872 = vunpack.c.l.b16 %v2593
    %v4873 = vunpack.c.l.b16 %v2594
    %v4874 = vunpack.c.l.b16 %v2595
    %v4875 = vunpack.c.l.b16 %v2596
    %v4876 = vunpack.c.l.b16 %v2597
    %v4877 = vunpack.c.l.b16 %v2598
    %v4878 = vunpack.c.l.b16 %v2599
    %v4879 = vunpack.c.l.b16 %v2600
    %v4880 = vunpack.c.l.b16 %v2601
    %v4881 = vunpack.c.l.b16 %v2602
    %v4882 = vunpack.c.l.b16 %v2603
    %v4883 = vunpack.c.l.b16 %v2604
    %v4884 = vunpack.c.l.b16 %v2605
    %v4885 = vunpack.c.l.b16 %v2606
    %v4886 = vunpack.c.l.b16 %v2607
    %v4887 = vunpack.c.l.b16 %v2608
    %v4888 = vunpack.c.l.b16 %v2609
    %v4889 = vunpack.c.l.b16 %v2610
    %v4890 = vunpack.c.l.b16 %v2611
    %v4891 = vunpack.c.l.b16 %v2612
    %v4892 = vunpack.c.l.b16 %v2613
    %v4893 = vunpack.c.l.b16 %v2614
    %v4894 = vunpack.c.l.b16 %v2615
    %v4895 = vunpack.c.l.b16 %v2616
    %v4896 = vunpack.c.l.b16 %v2617
    %v4897 = vunpack.c.l.b16 %v2618
    %v4898 = vunpack.c.l.b16 %v2619
    %v4899 = vunpack.c.l.b16 %v2620
    %v4900 = vunpack.c.l.b16 %v2621
    %v4901 = vunpack.c.l.b16 %v2622
    %v4902 = vunpack.c.l.b16 %v2623
    %v4903 = vunpack.c.l.b16 %v2624
    %v4904 = vunpack.c.l.b16 %v2625
    %v4905 = vunpack.c.l.b16 %v2626
    %v4906 = vunpack.c.l.b16 %v2627
    %v4907 = vunpack.c.l.b16 %v2628
    %v4908 = vunpack.c.l.b16 %v2629
    %v4909 = vunpack.c.l.b16 %v2630
    %v4910 = vunpack.c.l.b16 %v2631
    %v4911 = vunpack.c.l.b16 %v2632
    %v4912 = vunpack.c.l.b16 %v2633
    %v4913 = vunpack.c.l.b16 %v2634
    %v4914 = vunpack.c.l.b16 %v2635
    %v4915 = vunpack.c.l.b16 %v2636
    %v4916 = vunpack.c.l.b16 %v2637
    %v4917 = vunpack.c.l.b16 %v2638
    %v4918 = vunpack.c.l.b16 %v2639
    %v4919 = vunpack.c.l.b16 %v2640
    %v4920 = vunpack.c.l.b16 %v2641
    %v4921 = vunpack.c.l.b16 %v2642
    %v4922 = vunpack.c.l.b16 %v2643
    %v4923 = vunpack.c.l.b16 %v2644
    %v4924 = vunpack.c.l.b16 %v2645
    %v4925 = vunpack.c.l.b16 %v2646
    %v4926 = vunpack.c.l.b16 %v2647
    %v4927 = vunpack.c.l.b16 %v2648
    %v4928 = vunpack.c.l.b16 %v2649
    %v4929 = vunpack.c.l.b16 %v2650
    %v4930 = vunpack.c.l.b16 %v2651
    %v4931 = vunpack.c.l.b16 %v2652
    %v4932 = vunpack.c.l.b16 %v2653
    %v4933 = vunpack.c.l.b16 %v2654
    %v4934 = vunpack.c.l.b16 %v2655
    %v4935 = vunpack.c.l.b16 %v2656
    %v4936 = vunpack.c.l.b16 %v2657
    %v4937 = vunpack.c.l.b16 %v2658
    %v4938 = vunpack.c.l.b16 %v2659
    %v4939 = vunpack.c.l.b16 %v2660
    %v4940 = vunpack.c.l.b16 %v2661
    %v4941 = vunpack.c.l.b16 %v2662
    %v4942 = vunpack.c.l.b16 %v2663
    %v4943 = vunpack.c.l.b16 %v2664
    %v4944 = vunpack.c.l.b16 %v2665
    %v4945 = vunpack.c.l.b16 %v2666
    %v4946 = vunpack.c.l.b16 %v2667
    %v4947 = vunpack.c.l.b16 %v2668
    %v4948 = vunpack.c.l.b16 %v2669
    %v4949 = vunpack.c.l.b16 %v2670
    %v4950 = vunpack.c.l.b16 %v2671
    %v4951 = vunpack.c.l.b16 %v2672
    %v4952 = vunpack.c.l.b16 %v2673
    %v4953 = vunpack.c.l.b16 %v2674
    %v4954 = vunpack.c.l.b16 %v2675
    %v4955 = vunpack.c.l.b16 %v2676
    %v4956 = vunpack.c.l.b16 %v2677
    %v4957 = vunpack.c.l.b16 %v2678
    %v4958 = vunpack.c.l.b16 %v2679
    %v4959 = vunpack.c.l.b16 %v2680
    %v4960 = vunpack.c.l.b16 %v2681
    %v4961 = vunpack.c.l.b16 %v2682
    %v4962 = vunpack.c.l.b16 %v2683
    %v4963 = vunpack.c.l.b16 %v2684
    %v4964 = vunpack.c.l.b16 %v2685
    %v4965 = vunpack.c.l.b16 %v2686
    %v4966 = vunpack.c.l.b16 %v2687
    %v4967 = vunpack.c.l.b16 %v2688
    %v4968 = vunpack.c.l.b16 %v2689
    %v4969 = vunpack.c.l.b16 %v2690
    %v4970 = vunpack.c.l.b16 %v2691
    %v4971 = vunpack.c.l.b16 %v2692
    %v4972 = vunpack.c.l.b16 %v2693
    %v4973 = vunpack.c.l.b16 %v2694
    %v4974 = vunpack.c.l.b16 %v2695
    %v4975 = vunpack.c.l.b16 %v2696
    %v4976 = vunpack.c.l.b16 %v2697
    %v4977 = vunpack.c.l.b16 %v2698
    %v4978 = vunpack.c.l.b16 %v2699
    %v4979 = vunpack.c.l.b16 %v2700
    %v4980 = vunpack.c.l.b16 %v2701
    %v4981 = vunpack.c.l.b16 %v2702
    %v4982 = vunpack.c.l.b16 %v2703
    %v4983 = vunpack.c.l.b16 %v2704
    %v4984 = vunpack.c.l.b16 %v2705
    %v4985 = vunpack.c.l.b16 %v2706
    %v4986 = vunpack.c.l.b16 %v2707
    %v4987 = vunpack.c.l.b16 %v2708
    %v4988 = vunpack.c.l.b16 %v2709
    %v4989 = vunpack.c.l.b16 %v2710
    %v4990 = vunpack.c.l.b16 %v2711
    %v4991 = vunpack.c.l.b16 %v2712
    %v4992 = vunpack.c.l.b16 %v2713
    %v4993 = vunpack.c.l.b16 %v2714
    %v4994 = vunpack.c.l.b16 %v2715
    %v4995 = vunpack.c.l.b16 %v2716
    %v4996 = vunpack.c.l.b16 %v2717
    %v4997 = vunpack.c.l.b16 %v2718
    %v4998 = vunpack.c.l.b16 %v2719
    %v4999 = vunpack.c.l.b16 %v2720
    %v5000 = vunpack.c.l.b16 %v2721
    %v5001 = vunpack.c.l.b16 %v2722
    %v5002 = vunpack.c.l.b16 %v2723
    %v5003 = vunpack.c.l.b16 %v2724
    %v5004 = vunpack.c.l.b16 %v2725
    %v5005 = vunpack.c.l.b16 %v2726
    %v5006 = vunpack.c.l.b16 %v2727
    %v5007 = vunpack.c.l.b16 %v2728
    %v5008 = vunpack.c.l.b16 %v2729
    %v5009 = vunpack.c.l.b16 %v2730
    %v5010 = vunpack.c.l.b16 %v2731
    %v5011 = vunpack.c.l.b16 %v2732
    %v5012 = vunpack.c.l.b16 %v2733
    %v5013 = vunpack.c.l.b16 %v2734
    %v5014 = vunpack.c.l.b16 %v2735
    %v5015 = vunpack.c.l.b16 %v2736
    %v5016 = vunpack.c.l.b16 %v2737
    %v5017 = vunpack.c.l.b16 %v2738
    %v5018 = vunpack.c.l.b16 %v2739
    %v5019 = vunpack.c.l.b16 %v2740
    %v5020 = vunpack.c.l.b16 %v2741
    %v5021 = vunpack.c.l.b16 %v2742
    %v5022 = vunpack.c.l.b16 %v2743
    %v5023 = vunpack.c.l.b16 %v2744
    %v5024 = vunpack.c.l.b16 %v2745
    %v5025 = vunpack.c.l.b16 %v2746
    %v5026 = vunpack.c.l.b16 %v2747
    %v5027 = vunpack.c.l.b16 %v2748
    %v5028 = vunpack.c.l.b16 %v2749
    %v5029 = vunpack.c.l.b16 %v2750
    %v5030 = vunpack.c.l.b16 %v2751
    %v5031 = vunpack.c.l.b16 %v2752
    %v5032 = vunpack.c.l.b16 %v2753
    %v5033 = vunpack.c.l.b16 %v2754
    %v5034 = vunpack.c.l.b16 %v2755
    %v5035 = vunpack.c.l.b16 %v2756
    %v5036 = vunpack.c.l.b16 %v2757
    %v5037 = vunpack.c.l.b16 %v2758
    %v5038 = vunpack.c.l.b16 %v2759
    %v5039 = vunpack.c.l.b16 %v2760
    %v5040 = vunpack.c.l.b16 %v2761
    %v5041 = vunpack.c.l.b16 %v2762
    %v5042 = vunpack.c.l.b16 %v2763
    %v5043 = vunpack.c.l.b16 %v2764
    %v5044 = vunpack.c.l.b16 %v2765
    %v5045 = vunpack.c.l.b16 %v2766
    %v5046 = vunpack.c.l.b16 %v2767
    %v5047 = vunpack.c.l.b16 %v2768
    %v5048 = vunpack.c.l.b16 %v2769
    %v5049 = vunpack.c.l.b16 %v2770
    %v5050 = vunpack.c.l.b16 %v2771
    %v5051 = vunpack.c.l.b16 %v2772
    %v5052 = vunpack.c.l.b16 %v2773
    %v5053 = vunpack.c.l.b16 %v2774
    %v5054 = vunpack.c.l.b16 %v2775
    %v5055 = vunpack.c.l.b16 %v2776
    %v5056 = vunpack.c.l.b16 %v2777
    %v5057 = vunpack.c.l.b16 %v2778
    %v5058 = vunpack.c.l.b16 %v2779
    %v5059 = vunpack.c.l.b16 %v2780
    %v5060 = vunpack.c.l.b16 %v2781
    %v5061 = vunpack.c.l.b16 %v2782
    %v5062 = vunpack.c.l.b16 %v2783
    %v5063 = vunpack.c.l.b16 %v2784
    %v5064 = vunpack.c.l.b16 %v2785
    %v5065 = vunpack.c.l.b16 %v2786
    %v5066 = vunpack.c.l.b16 %v2787
    %v5067 = vunpack.c.l.b16 %v2788
    %v5068 = vunpack.c.l.b16 %v2789
    %v5069 = vunpack.c.l.b16 %v2790
    %v5070 = vunpack.c.l.b16 %v2791
    %v5071 = vunpack.c.l.b16 %v2792
    %v5072 = vunpack.c.l.b16 %v2793
    %v5073 = vunpack.c.l.b16 %v2794
    %v5074 = vunpack.c.l.b16 %v2795
    %v5075 = vunpack.c.l.b16 %v2796
    %v5076 = vunpack.c.l.b16 %v2797
    %v5077 = vunpack.c.l.b16 %v2798
    %v5078 = vunpack.c.l.b16 %v2799
    %v5079 = vunpack.c.l.b16 %v2800
    %v5080 = vunpack.c.l.b16 %v2801
    %v5081 = vunpack.c.l.b16 %v2802
    %v5082 = vunpack.c.l.b16 %v2803
    %v5083 = vunpack.c.l.b16 %v2804
    %v5084 = vunpack.c.l.b16 %v2805
    %v5085 = vunpack.c.l.b16 %v2806
    %v5086 = vunpack.c.l.b16 %v2807
    %v5087 = vunpack.c.l.b16 %v2808
    %v5088 = vunpack.c.l.b16 %v2809
    %v5089 = vunpack.c.l.b16 %v2810
    %v5090 = vunpack.c.l.b16 %v2811
    %v5091 = vunpack.c.l.b16 %v2812
    %v5092 = vunpack.c.l.b16 %v2813
    %v5093 = vunpack.c.l.b16 %v2814
    %v5094 = vunpack.c.l.b16 %v2815
    %v5095 = vunpack.c.l.b16 %v2816
    %v5096 = vunpack.c.l.b16 %v2817
    %v5097 = vunpack.c.l.b16 %v2818
    %v5098 = vunpack.c.l.b16 %v2819
    %v5099 = vunpack.c.l.b16 %v2820
    %v5100 = vunpack.c.l.b16 %v2821
    %v5101 = vunpack.c.l.b16 %v2822
    %v5102 = vunpack.c.l.b16 %v2823
    %v5103 = vunpack.c.l.b16 %v2824
    %v5104 = vunpack.c.l.b16 %v2825
    %v5105 = vunpack.c.l.b16 %v2826
    %v5106 = vunpack.c.l.b16 %v2827
    %v5107 = vunpack.c.l.b16 %v2828
    %v5108 = vunpack.c.l.b16 %v2829
    %v5109 = vunpack.c.l.b16 %v2830
    %v5110 = vunpack.c.l.b16 %v2831
    %v5111 = vunpack.c.l.b16 %v2832
    %v5112 = vunpack.c.l.b16 %v2833
    %v5113 = vunpack.c.l.b16 %v2834
    %v5114 = vunpack.c.l.b16 %v2835
    %v5115 = vunpack.c.l.b16 %v2836
    %v5116 = vunpack.c.l.b16 %v2837
    %v5117 = vunpack.c.l.b16 %v2838
    %v5118 = vunpack.c.l.b16 %v2839
    %v5119 = vunpack.c.l.b16 %v2840
    %v5120 = vunpack.c.l.b16 %v2841
    %v5121 = vunpack.c.l.b16 %v2842
    %v5122 = vunpack.c.l.b16 %v2843
    %v5123 = vunpack.c.l.b16 %v2844
    %v5124 = vunpack.c.l.b16 %v2845
    %v5125 = vunpack.c.l.b16 %v2846
    %v5126 = vunpack.c.l.b16 %v2847
    %v5127 = vunpack.c.l.b16 %v2848
    %v5128 = vunpack.c.l.b16 %v2849
    %v5129 = vunpack.c.l.b16 %v2850
    %v5130 = vunpack.c.l.b16 %v2851
    %v5131 = vunpack.c.l.b16 %v2852
    %v5132 = vunpack.c.l.b16 %v2853
    %v5133 = vunpack.c.l.b16 %v2854
    %v5134 = vunpack.c.l.b16 %v2855
    %v5135 = vunpack.c.l.b16 %v2856
    %v5136 = vunpack.c.l.b16 %v2857
    %v5137 = vunpack.c.l.b16 %v2858
    %v5138 = vunpack.c.l.b16 %v2859
    %v5139 = vunpack.c.l.b16 %v2860
    %v5140 = vunpack.c.l.b16 %v2861
    %v5141 = vunpack.c.l.b16 %v2862
    %v5142 = vunpack.c.l.b16 %v2863
    %v5143 = vunpack.c.l.b16 %v2864
    %v5144 = vunpack.c.l.b16 %v2865
    %v5145 = vunpack.c.l.b16 %v2866
    %v5146 = vunpack.c.l.b16 %v2867
    %v5147 = vunpack.c.l.b16 %v2868
    %v5148 = vunpack.c.l.b16 %v2869
    %v5149 = vunpack.c.l.b16 %v2870
    %v5150 = vunpack.c.l.b16 %v2871
    %v5151 = vunpack.c.l.b16 %v2872
    %v5152 = vunpack.c.l.b16 %v2873
    %v5153 = vunpack.c.l.b16 %v2874
    %v5154 = vunpack.c.l.b16 %v2875
    %v5155 = vunpack.c.l.b16 %v2876
    %v5156 = vunpack.c.l.b16 %v2877
    %v5157 = vunpack.c.l.b16 %v2878
    %v5158 = vunpack.c.l.b16 %v2879
    %v5159 = vunpack.c.l.b16 %v2880
    %v5160 = vunpack.c.l.b16 %v2881
    %v5161 = vunpack.c.l.b16 %v2882
    %v5162 = vunpack.c.l.b16 %v2883
    %v5163 = vunpack.c.l.b16 %v2884
    %v5164 = vunpack.c.l.b16 %v2885
    %v5165 = vunpack.c.l.b16 %v2886
    %v5166 = vunpack.c.l.b16 %v2887
    %v5167 = vunpack.c.l.b16 %v2888
    %v5168 = vunpack.c.l.b16 %v2889
    %v5169 = vunpack.c.l.b16 %v2890
    %v5170 = vunpack.c.l.b16 %v2891
    %v5171 = vunpack.c.l.b16 %v2892
    %v5172 = vunpack.c.l.b16 %v2893
    %v5173 = vunpack.c.l.b16 %v2894
    %v5174 = vunpack.c.l.b16 %v2895
    %v5175 = vunpack.c.l.b16 %v2896
    %v5176 = vunpack.c.l.b16 %v2897
    %v5177 = vunpack.c.l.b16 %v2898
    %v5178 = vunpack.c.l.b16 %v2899
    %v5179 = vunpack.c.l.b16 %v2900
    %v5180 = vunpack.c.l.b16 %v2901
    %v5181 = vunpack.c.l.b16 %v2902
    %v5182 = vunpack.c.l.b16 %v2903
    %v5183 = vunpack.c.l.b16 %v2904
    %v5184 = vunpack.c.l.b16 %v2905
    %v5185 = vunpack.c.l.b16 %v2906
    %v5186 = vunpack.c.l.b16 %v2907
    %v5187 = vunpack.c.l.b16 %v2908
    %v5188 = vunpack.c.l.b16 %v2909
    %v5189 = vunpack.c.l.b16 %v2910
    %v5190 = vunpack.c.l.b16 %v2911
    %v5191 = vunpack.c.l.b16 %v2912
    %v5192 = vunpack.c.l.b16 %v2913
    %v5193 = vunpack.c.l.b16 %v2914
    %v5194 = vunpack.c.l.b16 %v2915
    %v5195 = vunpack.c.l.b16 %v2916
    %v5196 = vunpack.c.l.b16 %v2917
    %v5197 = vunpack.c.l.b16 %v2918
    %v5198 = vunpack.c.l.b16 %v2919
    %v5199 = vunpack.c.l.b16 %v2920
    %v5200 = vunpack.c.l.b16 %v2921
    %v5201 = vunpack.c.l.b16 %v2922
    %v5202 = vunpack.c.l.b16 %v2923
    %v5203 = vunpack.c.l.b16 %v2924
    %v5204 = vunpack.c.l.b16 %v2925
    %v5205 = vunpack.c.l.b16 %v2926
    %v5206 = vunpack.c.l.b16 %v2927
    %v5207 = vunpack.c.l.b16 %v2928
    %v5208 = vunpack.c.l.b16 %v2929
    %v5209 = vunpack.c.l.b16 %v2930
    %v5210 = vunpack.c.l.b16 %v2931
    %v5211 = vunpack.c.l.b16 %v2932
    %v5212 = vunpack.c.l.b16 %v2933
    %v5213 = vunpack.c.l.b16 %v2934
    %v5214 = vunpack.c.l.b16 %v2935
    %v5215 = vunpack.c.l.b16 %v2936
    %v5216 = vunpack.c.l.b16 %v2937
    %v5217 = vunpack.c.l.b16 %v2938
    %v5218 = vunpack.c.l.b16 %v2939
    %v5219 = vunpack.c.l.b16 %v2940
    %v5220 = vunpack.c.l.b16 %v2941
    %v5221 = vunpack.c.l.b16 %v2942
    %v5222 = vunpack.c.l.b16 %v2943
    %v5223 = vunpack.c.l.b16 %v2944
    %v5224 = vunpack.c.l.b16 %v2945
    %v5225 = vunpack.c.l.b16 %v2946
    %v5226 = vunpack.c.l.b16 %v2947
    %v5227 = vunpack.c.l.b16 %v2948
    %v5228 = vunpack.c.l.b16 %v2949
    %v5229 = vunpack.c.l.b16 %v2950
    %v5230 = vunpack.c.l.b16 %v2951
    %v5231 = vunpack.c.l.b16 %v2952
    %v5232 = vunpack.c.l.b16 %v2953
    %v5233 = vunpack.c.l.b16 %v2954
    %v5234 = vunpack.c.l.b16 %v2955
    %v5235 = vunpack.c.l.b16 %v2956
    %v5236 = vunpack.c.l.b16 %v2957
    %v5237 = vunpack.c.l.b16 %v2958
    %v5238 = vunpack.c.l.b16 %v2959
    %v5239 = vunpack.c.l.b16 %v2960
    %v5240 = vunpack.c.l.b16 %v2961
    %v5241 = vunpack.c.l.b16 %v2962
    %v5242 = vunpack.c.l.b16 %v2963
    %v5243 = vunpack.c.l.b16 %v2964
    %v5244 = vunpack.c.l.b16 %v2965
    %v5245 = vunpack.c.l.b16 %v2966
    %v5246 = vunpack.c.l.b16 %v2967
    %v5247 = vunpack.c.l.b16 %v2968
    %v5248 = vunpack.c.l.b16 %v2969
    %v5249 = vunpack.c.l.b16 %v2970
    %v5250 = vunpack.c.l.b16 %v2971
    %v5251 = vunpack.c.l.b16 %v2972
    %v5252 = vunpack.c.l.b16 %v2973
    %v5253 = vunpack.c.l.b16 %v2974
    %v5254 = vunpack.c.l.b16 %v2975
    %v5255 = vunpack.c.l.b16 %v2976
    %v5256 = vunpack.c.l.b16 %v2977
    %v5257 = vunpack.c.l.b16 %v2978
    %v5258 = vunpack.c.l.b16 %v2979
    %v5259 = vunpack.c.l.b16 %v2980
    %v5260 = vunpack.c.l.b16 %v2981
    %v5261 = vunpack.c.l.b16 %v2982
    %v5262 = vunpack.c.l.b16 %v2983
    %v5263 = vunpack.c.l.b16 %v2984
    %v5264 = vunpack.c.l.b16 %v2985
    %v5265 = vunpack.c.l.b16 %v2986
    %v5266 = vunpack.c.l.b16 %v2987
    %v5267 = vunpack.c.l.b16 %v2988
    %v5268 = vunpack.c.l.b16 %v2989
    %v5269 = vunpack.c.l.b16 %v2990
    %v5270 = vunpack.c.l.b16 %v2991
    %v5271 = vunpack.c.l.b16 %v2992
    %v5272 = vunpack.c.l.b16 %v2993
    %v5273 = vunpack.c.l.b16 %v2994
    %v5274 = vunpack.c.l.b16 %v2995
    %v5275 = vunpack.c.l.b16 %v2996
    %v5276 = vunpack.c.l.b16 %v2997
    %v5277 = vunpack.c.l.b16 %v2998
    %v5278 = vunpack.c.l.b16 %v2999
    %v5279 = vunpack.c.l.b16 %v3000
    %v5280 = vunpack.c.l.b16 %v3001
    %v5281 = vunpack.c.l.b16 %v3002
    %v5282 = vunpack.c.l.b16 %v3003
    %v5283 = vunpack.c.l.b16 %v3004
    %v5284 = vunpack.c.l.b16 %v3005
    %v5285 = vunpack.c.l.b16 %v3006
    %v5286 = vunpack.c.l.b16 %v3007
    %v5287 = vunpack.c.l.b16 %v3008
    %v5288 = vunpack.c.l.b16 %v3009
    %v5289 = vpack.c.b16 %v4266, %v4265
    %v5290 = vpack.c.b16 %v4268, %v4267
    %v5291 = vpack.c.b16 %v4270, %v4269
    %v5292 = vpack.c.b16 %v4272, %v4271
    %v5293 = vpack.c.b16 %v4274, %v4273
    %v5294 = vpack.c.b16 %v4276, %v4275
    %v5295 = vpack.c.b16 %v4278, %v4277
    %v5296 = vpack.c.b16 %v4280, %v4279
    %v5297 = vpack.c.b16 %v4282, %v4281
    %v5298 = vpack.c.b16 %v4284, %v4283
    %v5299 = vpack.c.b16 %v4286, %v4285
    %v5300 = vpack.c.b16 %v4288, %v4287
    %v5301 = vpack.c.b16 %v4290, %v4289
    %v5302 = vpack.c.b16 %v4292, %v4291
    %v5303 = vpack.c.b16 %v4294, %v4293
    %v5304 = vpack.c.b16 %v4296, %v4295
    %v5305 = vpack.c.b16 %v4298, %v4297
    %v5306 = vpack.c.b16 %v4300, %v4299
    %v5307 = vpack.c.b16 %v4302, %v4301
    %v5308 = vpack.c.b16 %v4304, %v4303
    %v5309 = vpack.c.b16 %v4306, %v4305
    %v5310 = vpack.c.b16 %v4308, %v4307
    %v5311 = vpack.c.b16 %v4310, %v4309
    %v5312 = vpack.c.b16 %v4312, %v4311
    %v5313 = vpack.c.b16 %v4314, %v4313
    %v5314 = vpack.c.b16 %v4316, %v4315
    %v5315 = vpack.c.b16 %v4318, %v4317
    %v5316 = vpack.c.b16 %v4320, %v4319
    %v5317 = vpack.c.b16 %v4322, %v4321
    %v5318 = vpack.c.b16 %v4324, %v4323
    %v5319 = vpack.c.b16 %v4326, %v4325
    %v5320 = vpack.c.b16 %v4328, %v4327
    %v5321 = vpack.c.b16 %v4330, %v4329
    %v5322 = vpack.c.b16 %v4332, %v4331
    %v5323 = vpack.c.b16 %v4334, %v4333
    %v5324 = vpack.c.b16 %v4336, %v4335
    %v5325 = vpack.c.b16 %v4338, %v4337
    %v5326 = vpack.c.b16 %v4340, %v4339
    %v5327 = vpack.c.b16 %v4342, %v4341
    %v5328 = vpack.c.b16 %v4344, %v4343
    %v5329 = vpack.c.b16 %v4346, %v4345
    %v5330 = vpack.c.b16 %v4348, %v4347
    %v5331 = vpack.c.b16 %v4350, %v4349
    %v5332 = vpack.c.b16 %v4352, %v4351
    %v5333 = vpack.c.b16 %v4354, %v4353
    %v5334 = vpack.c.b16 %v4356, %v4355
    %v5335 = vpack.c.b16 %v4358, %v4357
    %v5336 = vpack.c.b16 %v4360, %v4359
    %v5337 = vpack.c.b16 %v4362, %v4361
    %v5338 = vpack.c.b16 %v4364, %v4363
    %v5339 = vpack.c.b16 %v4366, %v4365
    %v5340 = vpack.c.b16 %v4368, %v4367
    %v5341 = vpack.c.b16 %v4370, %v4369
    %v5342 = vpack.c.b16 %v4372, %v4371
    %v5343 = vpack.c.b16 %v4374, %v4373
    %v5344 = vpack.c.b16 %v4376, %v4375
    %v5345 = vpack.c.b16 %v4378, %v4377
    %v5346 = vpack.c.b16 %v4380, %v4379
    %v5347 = vpack.c.b16 %v4382, %v4381
    %v5348 = vpack.c.b16 %v4384, %v4383
    %v5349 = vpack.c.b16 %v4386, %v4385
    %v5350 = vpack.c.b16 %v4388, %v4387
    %v5351 = vpack.c.b16 %v4390, %v4389
    %v5352 = vpack.c.b16 %v4392, %v4391
    %v5353 = vpack.c.b16 %v4394, %v4393
    %v5354 = vpack.c.b16 %v4396, %v4395
    %v5355 = vpack.c.b16 %v4398, %v4397
    %v5356 = vpack.c.b16 %v4400, %v4399
    %v5357 = vpack.c.b16 %v4402, %v4401
    %v5358 = vpack.c.b16 %v4404, %v4403
    %v5359 = vpack.c.b16 %v4406, %v4405
    %v5360 = vpack.c.b16 %v4408, %v4407
    %v5361 = vpack.c.b16 %v4410, %v4409
    %v5362 = vpack.c.b16 %v4412, %v4411
    %v5363 = vpack.c.b16 %v4414, %v4413
    %v5364 = vpack.c.b16 %v4416, %v4415
    %v5365 = vpack.c.b16 %v4418, %v4417
    %v5366 = vpack.c.b16 %v4420, %v4419
    %v5367 = vpack.c.b16 %v4422, %v4421
    %v5368 = vpack.c.b16 %v4424, %v4423
    %v5369 = vpack.c.b16 %v4426, %v4425
    %v5370 = vpack.c.b16 %v4428, %v4427
    %v5371 = vpack.c.b16 %v4430, %v4429
    %v5372 = vpack.c.b16 %v4432, %v4431
    %v5373 = vpack.c.b16 %v4434, %v4433
    %v5374 = vpack.c.b16 %v4436, %v4435
    %v5375 = vpack.c.b16 %v4438, %v4437
    %v5376 = vpack.c.b16 %v4440, %v4439
    %v5377 = vpack.c.b16 %v4442, %v4441
    %v5378 = vpack.c.b16 %v4444, %v4443
    %v5379 = vpack.c.b16 %v4446, %v4445
    %v5380 = vpack.c.b16 %v4448, %v4447
    %v5381 = vpack.c.b16 %v4450, %v4449
    %v5382 = vpack.c.b16 %v4452, %v4451
    %v5383 = vpack.c.b16 %v4454, %v4453
    %v5384 = vpack.c.b16 %v4456, %v4455
    %v5385 = vpack.c.b16 %v4458, %v4457
    %v5386 = vpack.c.b16 %v4460, %v4459
    %v5387 = vpack.c.b16 %v4462, %v4461
    %v5388 = vpack.c.b16 %v4464, %v4463
    %v5389 = vpack.c.b16 %v4466, %v4465
    %v5390 = vpack.c.b16 %v4468, %v4467
    %v5391 = vpack.c.b16 %v4470, %v4469
    %v5392 = vpack.c.b16 %v4472, %v4471
    %v5393 = vpack.c.b16 %v4474, %v4473
    %v5394 = vpack.c.b16 %v4476, %v4475
    %v5395 = vpack.c.b16 %v4478, %v4477
    %v5396 = vpack.c.b16 %v4480, %v4479
    %v5397 = vpack.c.b16 %v4482, %v4481
    %v5398 = vpack.c.b16 %v4484, %v4483
    %v5399 = vpack.c.b16 %v4486, %v4485
    %v5400 = vpack.c.b16 %v4488, %v4487
    %v5401 = vpack.c.b16 %v4490, %v4489
    %v5402 = vpack.c.b16 %v4492, %v4491
    %v5403 = vpack.c.b16 %v4494, %v4493
    %v5404 = vpack.c.b16 %v4496, %v4495
    %v5405 = vpack.c.b16 %v4498, %v4497
    %v5406 = vpack.c.b16 %v4500, %v4499
    %v5407 = vpack.c.b16 %v4502, %v4501
    %v5408 = vpack.c.b16 %v4504, %v4503
    %v5409 = vpack.c.b16 %v4506, %v4505
    %v5410 = vpack.c.b16 %v4508, %v4507
    %v5411 = vpack.c.b16 %v4510, %v4509
    %v5412 = vpack.c.b16 %v4512, %v4511
    %v5413 = vpack.c.b16 %v4514, %v4513
    %v5414 = vpack.c.b16 %v4516, %v4515
    %v5415 = vpack.c.b16 %v4518, %v4517
    %v5416 = vpack.c.b16 %v4520, %v4519
    %v5417 = vpack.c.b16 %v4522, %v4521
    %v5418 = vpack.c.b16 %v4524, %v4523
    %v5419 = vpack.c.b16 %v4526, %v4525
    %v5420 = vpack.c.b16 %v4528, %v4527
    %v5421 = vpack.c.b16 %v4530, %v4529
    %v5422 = vpack.c.b16 %v4532, %v4531
    %v5423 = vpack.c.b16 %v4534, %v4533
    %v5424 = vpack.c.b16 %v4536, %v4535
    %v5425 = vpack.c.b16 %v4538, %v4537
    %v5426 = vpack.c.b16 %v4540, %v4539
    %v5427 = vpack.c.b16 %v4542, %v4541
    %v5428 = vpack.c.b16 %v4544, %v4543
    %v5429 = vpack.c.b16 %v4546, %v4545
    %v5430 = vpack.c.b16 %v4548, %v4547
    %v5431 = vpack.c.b16 %v4550, %v4549
    %v5432 = vpack.c.b16 %v4552, %v4551
    %v5433 = vpack.c.b16 %v4554, %v4553
    %v5434 = vpack.c.b16 %v4556, %v4555
    %v5435 = vpack.c.b16 %v4558, %v4557
    %v5436 = vpack.c.b16 %v4560, %v4559
    %v5437 = vpack.c.b16 %v4562, %v4561
    %v5438 = vpack.c.b16 %v4564, %v4563
    %v5439 = vpack.c.b16 %v4566, %v4565
    %v5440 = vpack.c.b16 %v4568, %v4567
    %v5441 = vpack.c.b16 %v4570, %v4569
    %v5442 = vpack.c.b16 %v4572, %v4571
    %v5443 = vpack.c.b16 %v4574, %v4573
    %v5444 = vpack.c.b16 %v4576, %v4575
    %v5445 = vpack.c.b16 %v4578, %v4577
    %v5446 = vpack.c.b16 %v4580, %v4579
    %v5447 = vpack.c.b16 %v4582, %v4581
    %v5448 = vpack.c.b16 %v4584, %v4583
    %v5449 = vpack.c.b16 %v4586, %v4585
    %v5450 = vpack.c.b16 %v4588, %v4587
    %v5451 = vpack.c.b16 %v4590, %v4589
    %v5452 = vpack.c.b16 %v4592, %v4591
    %v5453 = vpack.c.b16 %v4594, %v4593
    %v5454 = vpack.c.b16 %v4596, %v4595
    %v5455 = vpack.c.b16 %v4598, %v4597
    %v5456 = vpack.c.b16 %v4600, %v4599
    %v5457 = vpack.c.b16 %v4602, %v4601
    %v5458 = vpack.c.b16 %v4604, %v4603
    %v5459 = vpack.c.b16 %v4606, %v4605
    %v5460 = vpack.c.b16 %v4608, %v4607
    %v5461 = vpack.c.b16 %v4610, %v4609
    %v5462 = vpack.c.b16 %v4612, %v4611
    %v5463 = vpack.c.b16 %v4614, %v4613
    %v5464 = vpack.c.b16 %v4616, %v4615
    %v5465 = vpack.c.b16 %v4618, %v4617
    %v5466 = vpack.c.b16 %v4620, %v4619
    %v5467 = vpack.c.b16 %v4622, %v4621
    %v5468 = vpack.c.b16 %v4624, %v4623
    %v5469 = vpack.c.b16 %v4626, %v4625
    %v5470 = vpack.c.b16 %v4628, %v4627
    %v5471 = vpack.c.b16 %v4630, %v4629
    %v5472 = vpack.c.b16 %v4632, %v4631
    %v5473 = vpack.c.b16 %v4634, %v4633
    %v5474 = vpack.c.b16 %v4636, %v4635
    %v5475 = vpack.c.b16 %v4638, %v4637
    %v5476 = vpack.c.b16 %v4640, %v4639
    %v5477 = vpack.c.b16 %v4642, %v4641
    %v5478 = vpack.c.b16 %v4644, %v4643
    %v5479 = vpack.c.b16 %v4646, %v4645
    %v5480 = vpack.c.b16 %v4648, %v4647
    %v5481 = vpack.c.b16 %v4650, %v4649
    %v5482 = vpack.c.b16 %v4652, %v4651
    %v5483 = vpack.c.b16 %v4654, %v4653
    %v5484 = vpack.c.b16 %v4656, %v4655
    %v5485 = vpack.c.b16 %v4658, %v4657
    %v5486 = vpack.c.b16 %v4660, %v4659
    %v5487 = vpack.c.b16 %v4662, %v4661
    %v5488 = vpack.c.b16 %v4664, %v4663
    %v5489 = vpack.c.b16 %v4666, %v4665
    %v5490 = vpack.c.b16 %v4668, %v4667
    %v5491 = vpack.c.b16 %v4670, %v4669
    %v5492 = vpack.c.b16 %v4672, %v4671
    %v5493 = vpack.c.b16 %v4674, %v4673
    %v5494 = vpack.c.b16 %v4676, %v4675
    %v5495 = vpack.c.b16 %v4678, %v4677
    %v5496 = vpack.c.b16 %v4680, %v4679
    %v5497 = vpack.c.b16 %v4682, %v4681
    %v5498 = vpack.c.b16 %v4684, %v4683
    %v5499 = vpack.c.b16 %v4686, %v4685
    %v5500 = vpack.c.b16 %v4688, %v4687
    %v5501 = vpack.c.b16 %v4690, %v4689
    %v5502 = vpack.c.b16 %v4692, %v4691
    %v5503 = vpack.c.b16 %v4694, %v4693
    %v5504 = vpack.c.b16 %v4696, %v4695
    %v5505 = vpack.c.b16 %v4698, %v4697
    %v5506 = vpack.c.b16 %v4700, %v4699
    %v5507 = vpack.c.b16 %v4702, %v4701
    %v5508 = vpack.c.b16 %v4704, %v4703
    %v5509 = vpack.c.b16 %v4706, %v4705
    %v5510 = vpack.c.b16 %v4708, %v4707
    %v5511 = vpack.c.b16 %v4710, %v4709
    %v5512 = vpack.c.b16 %v4712, %v4711
    %v5513 = vpack.c.b16 %v4714, %v4713
    %v5514 = vpack.c.b16 %v4716, %v4715
    %v5515 = vpack.c.b16 %v4718, %v4717
    %v5516 = vpack.c.b16 %v4720, %v4719
    %v5517 = vpack.c.b16 %v4722, %v4721
    %v5518 = vpack.c.b16 %v4724, %v4723
    %v5519 = vpack.c.b16 %v4726, %v4725
    %v5520 = vpack.c.b16 %v4728, %v4727
    %v5521 = vpack.c.b16 %v4730, %v4729
    %v5522 = vpack.c.b16 %v4732, %v4731
    %v5523 = vpack.c.b16 %v4734, %v4733
    %v5524 = vpack.c.b16 %v4736, %v4735
    %v5525 = vpack.c.b16 %v4738, %v4737
    %v5526 = vpack.c.b16 %v4740, %v4739
    %v5527 = vpack.c.b16 %v4742, %v4741
    %v5528 = vpack.c.b16 %v4744, %v4743
    %v5529 = vpack.c.b16 %v4746, %v4745
    %v5530 = vpack.c.b16 %v4748, %v4747
    %v5531 = vpack.c.b16 %v4750, %v4749
    %v5532 = vpack.c.b16 %v4752, %v4751
    %v5533 = vpack.c.b16 %v4754, %v4753
    %v5534 = vpack.c.b16 %v4756, %v4755
    %v5535 = vpack.c.b16 %v4758, %v4757
    %v5536 = vpack.c.b16 %v4760, %v4759
    %v5537 = vpack.c.b16 %v4762, %v4761
    %v5538 = vpack.c.b16 %v4764, %v4763
    %v5539 = vpack.c.b16 %v4766, %v4765
    %v5540 = vpack.c.b16 %v4768, %v4767
    %v5541 = vpack.c.b16 %v4770, %v4769
    %v5542 = vpack.c.b16 %v4772, %v4771
    %v5543 = vpack.c.b16 %v4774, %v4773
    %v5544 = vpack.c.b16 %v4776, %v4775
    %v5545 = vpack.c.b16 %v4778, %v4777
    %v5546 = vpack.c.b16 %v4780, %v4779
    %v5547 = vpack.c.b16 %v4782, %v4781
    %v5548 = vpack.c.b16 %v4784, %v4783
    %v5549 = vpack.c.b16 %v4786, %v4785
    %v5550 = vpack.c.b16 %v4788, %v4787
    %v5551 = vpack.c.b16 %v4790, %v4789
    %v5552 = vpack.c.b16 %v4792, %v4791
    %v5553 = vpack.c.b16 %v4794, %v4793
    %v5554 = vpack.c.b16 %v4796, %v4795
    %v5555 = vpack.c.b16 %v4798, %v4797
    %v5556 = vpack.c.b16 %v4800, %v4799
    %v5557 = vpack.c.b16 %v4802, %v4801
    %v5558 = vpack.c.b16 %v4804, %v4803
    %v5559 = vpack.c.b16 %v4806, %v4805
    %v5560 = vpack.c.b16 %v4808, %v4807
    %v5561 = vpack.c.b16 %v4810, %v4809
    %v5562 = vpack.c.b16 %v4812, %v4811
    %v5563 = vpack.c.b16 %v4814, %v4813
    %v5564 = vpack.c.b16 %v4816, %v4815
    %v5565 = vpack.c.b16 %v4818, %v4817
    %v5566 = vpack.c.b16 %v4820, %v4819
    %v5567 = vpack.c.b16 %v4822, %v4821
    %v5568 = vpack.c.b16 %v4824, %v4823
    %v5569 = vpack.c.b16 %v4826, %v4825
    %v5570 = vpack.c.b16 %v4828, %v4827
    %v5571 = vpack.c.b16 %v4830, %v4829
    %v5572 = vpack.c.b16 %v4832, %v4831
    %v5573 = vpack.c.b16 %v4834, %v4833
    %v5574 = vpack.c.b16 %v4836, %v4835
    %v5575 = vpack.c.b16 %v4838, %v4837
    %v5576 = vpack.c.b16 %v4840, %v4839
    %v5577 = vpack.c.b16 %v4842, %v4841
    %v5578 = vpack.c.b16 %v4844, %v4843
    %v5579 = vpack.c.b16 %v4846, %v4845
    %v5580 = vpack.c.b16 %v4848, %v4847
    %v5581 = vpack.c.b16 %v4850, %v4849
    %v5582 = vpack.c.b16 %v4852, %v4851
    %v5583 = vpack.c.b16 %v4854, %v4853
    %v5584 = vpack.c.b16 %v4856, %v4855
    %v5585 = vpack.c.b16 %v4858, %v4857
    %v5586 = vpack.c.b16 %v4860, %v4859
    %v5587 = vpack.c.b16 %v4862, %v4861
    %v5588 = vpack.c.b16 %v4864, %v4863
    %v5589 = vpack.c.b16 %v4866, %v4865
    %v5590 = vpack.c.b16 %v4868, %v4867
    %v5591 = vpack.c.b16 %v4870, %v4869
    %v5592 = vpack.c.b16 %v4872, %v4871
    %v5593 = vpack.c.b16 %v4874, %v4873
    %v5594 = vpack.c.b16 %v4876, %v4875
    %v5595 = vpack.c.b16 %v4878, %v4877
    %v5596 = vpack.c.b16 %v4880, %v4879
    %v5597 = vpack.c.b16 %v4882, %v4881
    %v5598 = vpack.c.b16 %v4884, %v4883
    %v5599 = vpack.c.b16 %v4886, %v4885
    %v5600 = vpack.c.b16 %v4888, %v4887
    %v5601 = vpack.c.b16 %v4890, %v4889
    %v5602 = vpack.c.b16 %v4892, %v4891
    %v5603 = vpack.c.b16 %v4894, %v4893
    %v5604 = vpack.c.b16 %v4896, %v4895
    %v5605 = vpack.c.b16 %v4898, %v4897
    %v5606 = vpack.c.b16 %v4900, %v4899
    %v5607 = vpack.c.b16 %v4902, %v4901
    %v5608 = vpack.c.b16 %v4904, %v4903
    %v5609 = vpack.c.b16 %v4906, %v4905
    %v5610 = vpack.c.b16 %v4908, %v4907
    %v5611 = vpack.c.b16 %v4910, %v4909
    %v5612 = vpack.c.b16 %v4912, %v4911
    %v5613 = vpack.c.b16 %v4914, %v4913
    %v5614 = vpack.c.b16 %v4916, %v4915
    %v5615 = vpack.c.b16 %v4918, %v4917
    %v5616 = vpack.c.b16 %v4920, %v4919
    %v5617 = vpack.c.b16 %v4922, %v4921
    %v5618 = vpack.c.b16 %v4924, %v4923
    %v5619 = vpack.c.b16 %v4926, %v4925
    %v5620 = vpack.c.b16 %v4928, %v4927
    %v5621 = vpack.c.b16 %v4930, %v4929
    %v5622 = vpack.c.b16 %v4932, %v4931
    %v5623 = vpack.c.b16 %v4934, %v4933
    %v5624 = vpack.c.b16 %v4936, %v4935
    %v5625 = vpack.c.b16 %v4938, %v4937
    %v5626 = vpack.c.b16 %v4940, %v4939
    %v5627 = vpack.c.b16 %v4942, %v4941
    %v5628 = vpack.c.b16 %v4944, %v4943
    %v5629 = vpack.c.b16 %v4946, %v4945
    %v5630 = vpack.c.b16 %v4948, %v4947
    %v5631 = vpack.c.b16 %v4950, %v4949
    %v5632 = vpack.c.b16 %v4952, %v4951
    %v5633 = vpack.c.b16 %v4954, %v4953
    %v5634 = vpack.c.b16 %v4956, %v4955
    %v5635 = vpack.c.b16 %v4958, %v4957
    %v5636 = vpack.c.b16 %v4960, %v4959
    %v5637 = vpack.c.b16 %v4962, %v4961
    %v5638 = vpack.c.b16 %v4964, %v4963
    %v5639 = vpack.c.b16 %v4966, %v4965
    %v5640 = vpack.c.b16 %v4968, %v4967
    %v5641 = vpack.c.b16 %v4970, %v4969
    %v5642 = vpack.c.b16 %v4972, %v4971
    %v5643 = vpack.c.b16 %v4974, %v4973
    %v5644 = vpack.c.b16 %v4976, %v4975
    %v5645 = vpack.c.b16 %v4978, %v4977
    %v5646 = vpack.c.b16 %v4980, %v4979
    %v5647 = vpack.c.b16 %v4982, %v4981
    %v5648 = vpack.c.b16 %v4984, %v4983
    %v5649 = vpack.c.b16 %v4986, %v4985
    %v5650 = vpack.c.b16 %v4988, %v4987
    %v5651 = vpack.c.b16 %v4990, %v4989
    %v5652 = vpack.c.b16 %v4992, %v4991
    %v5653 = vpack.c.b16 %v4994, %v4993
    %v5654 = vpack.c.b16 %v4996, %v4995
    %v5655 = vpack.c.b16 %v4998, %v4997
    %v5656 = vpack.c.b16 %v5000, %v4999
    %v5657 = vpack.c.b16 %v5002, %v5001
    %v5658 = vpack.c.b16 %v5004, %v5003
    %v5659 = vpack.c.b16 %v5006, %v5005
    %v5660 = vpack.c.b16 %v5008, %v5007
    %v5661 = vpack.c.b16 %v5010, %v5009
    %v5662 = vpack.c.b16 %v5012, %v5011
    %v5663 = vpack.c.b16 %v5014, %v5013
    %v5664 = vpack.c.b16 %v5016, %v5015
    %v5665 = vpack.c.b16 %v5018, %v5017
    %v5666 = vpack.c.b16 %v5020, %v5019
    %v5667 = vpack.c.b16 %v5022, %v5021
    %v5668 = vpack.c.b16 %v5024, %v5023
    %v5669 = vpack.c.b16 %v5026, %v5025
    %v5670 = vpack.c.b16 %v5028, %v5027
    %v5671 = vpack.c.b16 %v5030, %v5029
    %v5672 = vpack.c.b16 %v5032, %v5031
    %v5673 = vpack.c.b16 %v5034, %v5033
    %v5674 = vpack.c.b16 %v5036, %v5035
    %v5675 = vpack.c.b16 %v5038, %v5037
    %v5676 = vpack.c.b16 %v5040, %v5039
    %v5677 = vpack.c.b16 %v5042, %v5041
    %v5678 = vpack.c.b16 %v5044, %v5043
    %v5679 = vpack.c.b16 %v5046, %v5045
    %v5680 = vpack.c.b16 %v5048, %v5047
    %v5681 = vpack.c.b16 %v5050, %v5049
    %v5682 = vpack.c.b16 %v5052, %v5051
    %v5683 = vpack.c.b16 %v5054, %v5053
    %v5684 = vpack.c.b16 %v5056, %v5055
    %v5685 = vpack.c.b16 %v5058, %v5057
    %v5686 = vpack.c.b16 %v5060, %v5059
    %v5687 = vpack.c.b16 %v5062, %v5061
    %v5688 = vpack.c.b16 %v5064, %v5063
    %v5689 = vpack.c.b16 %v5066, %v5065
    %v5690 = vpack.c.b16 %v5068, %v5067
    %v5691 = vpack.c.b16 %v5070, %v5069
    %v5692 = vpack.c.b16 %v5072, %v5071
    %v5693 = vpack.c.b16 %v5074, %v5073
    %v5694 = vpack.c.b16 %v5076, %v5075
    %v5695 = vpack.c.b16 %v5078, %v5077
    %v5696 = vpack.c.b16 %v5080, %v5079
    %v5697 = vpack.c.b16 %v5082, %v5081
    %v5698 = vpack.c.b16 %v5084, %v5083
    %v5699 = vpack.c.b16 %v5086, %v5085
    %v5700 = vpack.c.b16 %v5088, %v5087
    %v5701 = vpack.c.b16 %v5090, %v5089
    %v5702 = vpack.c.b16 %v5092, %v5091
    %v5703 = vpack.c.b16 %v5094, %v5093
    %v5704 = vpack.c.b16 %v5096, %v5095
    %v5705 = vpack.c.b16 %v5098, %v5097
    %v5706 = vpack.c.b16 %v5100, %v5099
    %v5707 = vpack.c.b16 %v5102, %v5101
    %v5708 = vpack.c.b16 %v5104, %v5103
    %v5709 = vpack.c.b16 %v5106, %v5105
    %v5710 = vpack.c.b16 %v5108, %v5107
    %v5711 = vpack.c.b16 %v5110, %v5109
    %v5712 = vpack.c.b16 %v5112, %v5111
    %v5713 = vpack.c.b16 %v5114, %v5113
    %v5714 = vpack.c.b16 %v5116, %v5115
    %v5715 = vpack.c.b16 %v5118, %v5117
    %v5716 = vpack.c.b16 %v5120, %v5119
    %v5717 = vpack.c.b16 %v5122, %v5121
    %v5718 = vpack.c.b16 %v5124, %v5123
    %v5719 = vpack.c.b16 %v5126, %v5125
    %v5720 = vpack.c.b16 %v5128, %v5127
    %v5721 = vpack.c.b16 %v5130, %v5129
    %v5722 = vpack.c.b16 %v5132, %v5131
    %v5723 = vpack.c.b16 %v5134, %v5133
    %v5724 = vpack.c.b16 %v5136, %v5135
    %v5725 = vpack.c.b16 %v5138, %v5137
    %v5726 = vpack.c.b16 %v5140, %v5139
    %v5727 = vpack.c.b16 %v5142, %v5141
    %v5728 = vpack.c.b16 %v5144, %v5143
    %v5729 = vpack.c.b16 %v5146, %v5145
    %v5730 = vpack.c.b16 %v5148, %v5147
    %v5731 = vpack.c.b16 %v5150, %v5149
    %v5732 = vpack.c.b16 %v5152, %v5151
    %v5733 = vpack.c.b16 %v5154, %v5153
    %v5734 = vpack.c.b16 %v5156, %v5155
    %v5735 = vpack.c.b16 %v5158, %v5157
    %v5736 = vpack.c.b16 %v5160, %v5159
    %v5737 = vpack.c.b16 %v5162, %v5161
    %v5738 = vpack.c.b16 %v5164, %v5163
    %v5739 = vpack.c.b16 %v5166, %v5165
    %v5740 = vpack.c.b16 %v5168, %v5167
    %v5741 = vpack.c.b16 %v5170, %v5169
    %v5742 = vpack.c.b16 %v5172, %v5171
    %v5743 = vpack.c.b16 %v5174, %v5173
    %v5744 = vpack.c.b16 %v5176, %v5175
    %v5745 = vpack.c.b16 %v5178, %v5177
    %v5746 = vpack.c.b16 %v5180, %v5179
    %v5747 = vpack.c.b16 %v5182, %v5181
    %v5748 = vpack.c.b16 %v5184, %v5183
    %v5749 = vpack.c.b16 %v5186, %v5185
    %v5750 = vpack.c.b16 %v5188, %v5187
    %v5751 = vpack.c.b16 %v5190, %v5189
    %v5752 = vpack.c.b16 %v5192, %v5191
    %v5753 = vpack.c.b16 %v5194, %v5193
    %v5754 = vpack.c.b16 %v5196, %v5195
    %v5755 = vpack.c.b16 %v5198, %v5197
    %v5756 = vpack.c.b16 %v5200, %v5199
    %v5757 = vpack.c.b16 %v5202, %v5201
    %v5758 = vpack.c.b16 %v5204, %v5203
    %v5759 = vpack.c.b16 %v5206, %v5205
    %v5760 = vpack.c.b16 %v5208, %v5207
    %v5761 = vpack.c.b16 %v5210, %v5209
    %v5762 = vpack.c.b16 %v5212, %v5211
    %v5763 = vpack.c.b16 %v5214, %v5213
    %v5764 = vpack.c.b16 %v5216, %v5215
    %v5765 = vpack.c.b16 %v5218, %v5217
    %v5766 = vpack.c.b16 %v5220, %v5219
    %v5767 = vpack.c.b16 %v5222, %v5221
    %v5768 = vpack.c.b16 %v5224, %v5223
    %v5769 = vpack.c.b16 %v5226, %v5225
    %v5770 = vpack.c.b16 %v5228, %v5227
    %v5771 = vpack.c.b16 %v5230, %v5229
    %v5772 = vpack.c.b16 %v5232, %v5231
    %v5773 = vpack.c.b16 %v5234, %v5233
    %v5774 = vpack.c.b16 %v5236, %v5235
    %v5775 = vpack.c.b16 %v5238, %v5237
    %v5776 = vpack.c.b16 %v5240, %v5239
    %v5777 = vpack.c.b16 %v5242, %v5241
    %v5778 = vpack.c.b16 %v5244, %v5243
    %v5779 = vpack.c.b16 %v5246, %v5245
    %v5780 = vpack.c.b16 %v5248, %v5247
    %v5781 = vpack.c.b16 %v5250, %v5249
    %v5782 = vpack.c.b16 %v5252, %v5251
    %v5783 = vpack.c.b16 %v5254, %v5253
    %v5784 = vpack.c.b16 %v5256, %v5255
    %v5785 = vpack.c.b16 %v5258, %v5257
    %v5786 = vpack.c.b16 %v5260, %v5259
    %v5787 = vpack.c.b16 %v5262, %v5261
    %v5788 = vpack.c.b16 %v5264, %v5263
    %v5789 = vpack.c.b16 %v5266, %v5265
    %v5790 = vpack.c.b16 %v5268, %v5267
    %v5791 = vpack.c.b16 %v5270, %v5269
    %v5792 = vpack.c.b16 %v5272, %v5271
    %v5793 = vpack.c.b16 %v5274, %v5273
    %v5794 = vpack.c.b16 %v5276, %v5275
    %v5795 = vpack.c.b16 %v5278, %v5277
    %v5796 = vpack.c.b16 %v5280, %v5279
    %v5797 = vpack.c.b16 %v5282, %v5281
    %v5798 = vpack.c.b16 %v5284, %v5283
    %v5799 = vpack.c.b16 %v5286, %v5285
    %v5800 = vpack.c.b16 %v5288, %v5287
    %6313 = vmatprep.subr.bf16.mxu0 0
    %6314 = vmatpush1.bf16.msra.mxu0 %v5289
    %6315 = vmatprep.subr.bf16.mxu0 0
    %6316 = vmatpush1.bf16.msra.mxu0 %v5290
    %6317 = vmatprep.subr.bf16.mxu0 0
    %6318 = vmatpush1.bf16.msra.mxu0 %v5291
    %6319 = vmatprep.subr.bf16.mxu0 0
    %6320 = vmatpush1.bf16.msra.mxu0 %v5292
    %6321 = vmatprep.subr.bf16.mxu0 0
    %6322 = vmatpush1.bf16.msra.mxu0 %v5293
    %6323 = vmatprep.subr.bf16.mxu0 0
    %6324 = vmatpush1.bf16.msra.mxu0 %v5294
    %6325 = vmatprep.subr.bf16.mxu0 0
    %6326 = vmatpush1.bf16.msra.mxu0 %v5295
    %6327 = vmatprep.subr.bf16.mxu0 0
    %6328 = vmatpush1.bf16.msra.mxu0 %v5296
    %6329 = vmatprep.subr.bf16.mxu0 0
    %6330 = vmatpush1.bf16.msra.mxu0 %v5297
    %6331 = vmatprep.subr.bf16.mxu0 0
    %6332 = vmatpush1.bf16.msra.mxu0 %v5298
    %6333 = vmatprep.subr.bf16.mxu0 0
    %6334 = vmatpush1.bf16.msra.mxu0 %v5299
    %6335 = vmatprep.subr.bf16.mxu0 0
    %6336 = vmatpush1.bf16.msra.mxu0 %v5300
    %6337 = vmatprep.subr.bf16.mxu0 0
    %6338 = vmatpush1.bf16.msra.mxu0 %v5301
    %6339 = vmatprep.subr.bf16.mxu0 0
    %6340 = vmatpush1.bf16.msra.mxu0 %v5302
    %6341 = vmatprep.subr.bf16.mxu0 0
    %6342 = vmatpush1.bf16.msra.mxu0 %v5303
    %6343 = vmatprep.subr.bf16.mxu0 0
    %6344 = vmatpush1.bf16.msra.mxu0 %v5304
    %6345 = vmatprep.mubr.bf16.mxu0 %v3114
    %6346 = vmatmul.mubr.bf16.gmra.mrb[0].mxu0 %v3113
    %v6347 = vpop.f32.mrb[0].mxu0
    %v6348 = vadd.f32 %v3015, %v6347
    %v6349 = vpop.f32.mrb[0].mxu0
    %v6350 = vpop.f32.mrb[0].mxu0
    %v6351 = vpop.f32.mrb[0].mxu0
    %6352 = vdwg.mxu0
    %6353 = vmatprep.subr.bf16.mxu0 0
    %6354 = vmatpush1.bf16.msra.mxu0 %v5305
    %6355 = vmatprep.subr.bf16.mxu0 0
    %6356 = vmatpush1.bf16.msra.mxu0 %v5306
    %6357 = vmatprep.subr.bf16.mxu0 0
    %6358 = vmatpush1.bf16.msra.mxu0 %v5307
    %6359 = vmatprep.subr.bf16.mxu0 0
    %6360 = vmatpush1.bf16.msra.mxu0 %v5308
    %6361 = vmatprep.subr.bf16.mxu0 0
    %6362 = vmatpush1.bf16.msra.mxu0 %v5309
    %6363 = vmatprep.subr.bf16.mxu0 0
    %6364 = vmatpush1.bf16.msra.mxu0 %v5310
    %6365 = vmatprep.subr.bf16.mxu0 0
    %6366 = vmatpush1.bf16.msra.mxu0 %v5311
    %6367 = vmatprep.subr.bf16.mxu0 0
    %6368 = vmatpush1.bf16.msra.mxu0 %v5312
    %6369 = vmatprep.subr.bf16.mxu0 0
    %6370 = vmatpush1.bf16.msra.mxu0 %v5313
    %6371 = vmatprep.subr.bf16.mxu0 0
    %6372 = vmatpush1.bf16.msra.mxu0 %v5314
    %6373 = vmatprep.subr.bf16.mxu0 0
    %6374 = vmatpush1.bf16.msra.mxu0 %v5315
    %6375 = vmatprep.subr.bf16.mxu0 0
    %6376 = vmatpush1.bf16.msra.mxu0 %v5316
    %6377 = vmatprep.subr.bf16.mxu0 0
    %6378 = vmatpush1.bf16.msra.mxu0 %v5317
    %6379 = vmatprep.subr.bf16.mxu0 0
    %6380 = vmatpush1.bf16.msra.mxu0 %v5318
    %6381 = vmatprep.subr.bf16.mxu0 0
    %6382 = vmatpush1.bf16.msra.mxu0 %v5319
    %6383 = vmatprep.subr.bf16.mxu0 0
    %6384 = vmatpush1.bf16.msra.mxu0 %v5320
    %6385 = vmatprep.mubr.bf16.mxu0 %v3116
    %6386 = vmatmul.mubr.bf16.gmra.mrb[0].mxu0 %v3115
    %v6387 = vpop.f32.mrb[0].mxu0
    %v6388 = vadd.f32 %v6348, %v6387
    %v6389 = vpop.f32.mrb[0].mxu0
    %v6390 = vpop.f32.mrb[0].mxu0
    %v6391 = vpop.f32.mrb[0].mxu0
    %6392 = vdwg.mxu0
    %6393 = vmatprep.subr.bf16.mxu0 0
    %6394 = vmatpush1.bf16.msra.mxu0 %v5321
    %6395 = vmatprep.subr.bf16.mxu0 0
    %6396 = vmatpush1.bf16.msra.mxu0 %v5322
    %6397 = vmatprep.subr.bf16.mxu0 0
    %6398 = vmatpush1.bf16.msra.mxu0 %v5323
    %6399 = vmatprep.subr.bf16.mxu0 0
    %6400 = vmatpush1.bf16.msra.mxu0 %v5324
    %6401 = vmatprep.subr.bf16.mxu0 0
    %6402 = vmatpush1.bf16.msra.mxu0 %v5325
    %6403 = vmatprep.subr.bf16.mxu0 0
    %6404 = vmatpush1.bf16.msra.mxu0 %v5326
    %6405 = vmatprep.subr.bf16.mxu0 0
    %6406 = vmatpush1.bf16.msra.mxu0 %v5327
    %6407 = vmatprep.subr.bf16.mxu0 0
    %6408 = vmatpush1.bf16.msra.mxu0 %v5328
    %6409 = vmatprep.subr.bf16.mxu0 0
    %6410 = vmatpush1.bf16.msra.mxu0 %v5329
    %6411 = vmatprep.subr.bf16.mxu0 0
    %6412 = vmatpush1.bf16.msra.mxu0 %v5330
    %6413 = vmatprep.subr.bf16.mxu0 0
    %6414 = vmatpush1.bf16.msra.mxu0 %v5331
    %6415 = vmatprep.subr.bf16.mxu0 0
    %6416 = vmatpush1.bf16.msra.mxu0 %v5332
    %6417 = vmatprep.subr.bf16.mxu0 0
    %6418 = vmatpush1.bf16.msra.mxu0 %v5333
    %6419 = vmatprep.subr.bf16.mxu0 0
    %6420 = vmatpush1.bf16.msra.mxu0 %v5334
    %6421 = vmatprep.subr.bf16.mxu0 0
    %6422 = vmatpush1.bf16.msra.mxu0 %v5335
    %6423 = vmatprep.subr.bf16.mxu0 0
    %6424 = vmatpush1.bf16.msra.mxu0 %v5336
    %6425 = vmatprep.mubr.bf16.mxu0 %v3118
    %6426 = vmatmul.mubr.bf16.gmra.mrb[0].mxu0 %v3117
    %v6427 = vpop.f32.mrb[0].mxu0
    %v6428 = vadd.f32 %v6388, %v6427
    %v6429 = vpop.f32.mrb[0].mxu0
    %v6430 = vpop.f32.mrb[0].mxu0
    %v6431 = vpop.f32.mrb[0].mxu0
    %6432 = vdwg.mxu0
    %6433 = vmatprep.subr.bf16.mxu0 0
    %6434 = vmatpush1.bf16.msra.mxu0 %v5337
    %6435 = vmatprep.subr.bf16.mxu0 0
    %6436 = vmatpush1.bf16.msra.mxu0 %v5338
    %6437 = vmatprep.subr.bf16.mxu0 0
    %6438 = vmatpush1.bf16.msra.mxu0 %v5339
    %6439 = vmatprep.subr.bf16.mxu0 0
    %6440 = vmatpush1.bf16.msra.mxu0 %v5340
    %6441 = vmatprep.subr.bf16.mxu0 0
    %6442 = vmatpush1.bf16.msra.mxu0 %v5341
    %6443 = vmatprep.subr.bf16.mxu0 0
    %6444 = vmatpush1.bf16.msra.mxu0 %v5342
    %6445 = vmatprep.subr.bf16.mxu0 0
    %6446 = vmatpush1.bf16.msra.mxu0 %v5343
    %6447 = vmatprep.subr.bf16.mxu0 0
    %6448 = vmatpush1.bf16.msra.mxu0 %v5344
    %6449 = vmatprep.subr.bf16.mxu0 0
    %6450 = vmatpush1.bf16.msra.mxu0 %v5345
    %6451 = vmatprep.subr.bf16.mxu0 0
    %6452 = vmatpush1.bf16.msra.mxu0 %v5346
    %6453 = vmatprep.subr.bf16.mxu0 0
    %6454 = vmatpush1.bf16.msra.mxu0 %v5347
    %6455 = vmatprep.subr.bf16.mxu0 0
    %6456 = vmatpush1.bf16.msra.mxu0 %v5348
    %6457 = vmatprep.subr.bf16.mxu0 0
    %6458 = vmatpush1.bf16.msra.mxu0 %v5349
    %6459 = vmatprep.subr.bf16.mxu0 0
    %6460 = vmatpush1.bf16.msra.mxu0 %v5350
    %6461 = vmatprep.subr.bf16.mxu0 0
    %6462 = vmatpush1.bf16.msra.mxu0 %v5351
    %6463 = vmatprep.subr.bf16.mxu0 0
    %6464 = vmatpush1.bf16.msra.mxu0 %v5352
    %6465 = vmatprep.mubr.bf16.mxu0 %v3120
    %6466 = vmatmul.mubr.bf16.gmra.mrb[0].mxu0 %v3119
    %v6467 = vpop.f32.mrb[0].mxu0
    %v6468 = vadd.f32 %v6428, %v6467
    %v6469 = vpop.f32.mrb[0].mxu0
    %v6470 = vpop.f32.mrb[0].mxu0
    %v6471 = vpop.f32.mrb[0].mxu0
    %6472 = vdwg.mxu0
    %6473 = vmatprep.subr.bf16.mxu0 0
    %6474 = vmatpush1.bf16.msra.mxu0 %v5353
    %6475 = vmatprep.subr.bf16.mxu0 0
    %6476 = vmatpush1.bf16.msra.mxu0 %v5354
    %6477 = vmatprep.subr.bf16.mxu0 0
    %6478 = vmatpush1.bf16.msra.mxu0 %v5355
    %6479 = vmatprep.subr.bf16.mxu0 0
    %6480 = vmatpush1.bf16.msra.mxu0 %v5356
    %6481 = vmatprep.subr.bf16.mxu0 0
    %6482 = vmatpush1.bf16.msra.mxu0 %v5357
    %6483 = vmatprep.subr.bf16.mxu0 0
    %6484 = vmatpush1.bf16.msra.mxu0 %v5358
    %6485 = vmatprep.subr.bf16.mxu0 0
    %6486 = vmatpush1.bf16.msra.mxu0 %v5359
    %6487 = vmatprep.subr.bf16.mxu0 0
    %6488 = vmatpush1.bf16.msra.mxu0 %v5360
    %6489 = vmatprep.subr.bf16.mxu0 0
    %6490 = vmatpush1.bf16.msra.mxu0 %v5361
    %6491 = vmatprep.subr.bf16.mxu0 0
    %6492 = vmatpush1.bf16.msra.mxu0 %v5362
    %6493 = vmatprep.subr.bf16.mxu0 0
    %6494 = vmatpush1.bf16.msra.mxu0 %v5363
    %6495 = vmatprep.subr.bf16.mxu0 0
    %6496 = vmatpush1.bf16.msra.mxu0 %v5364
    %6497 = vmatprep.subr.bf16.mxu0 0
    %6498 = vmatpush1.bf16.msra.mxu0 %v5365
    %6499 = vmatprep.subr.bf16.mxu0 0
    %6500 = vmatpush1.bf16.msra.mxu0 %v5366
    %6501 = vmatprep.subr.bf16.mxu0 0
    %6502 = vmatpush1.bf16.msra.mxu0 %v5367
    %6503 = vmatprep.subr.bf16.mxu0 0
    %6504 = vmatpush1.bf16.msra.mxu0 %v5368
    %6505 = vmatprep.mubr.bf16.mxu0 %v3122
    %6506 = vmatmul.mubr.bf16.gmra.mrb[0].mxu0 %v3121
    %v6507 = vpop.f32.mrb[0].mxu0
    %v6508 = vadd.f32 %v6468, %v6507
    %v6509 = vpop.f32.mrb[0].mxu0
    %v6510 = vpop.f32.mrb[0].mxu0
    %v6511 = vpop.f32.mrb[0].mxu0
    %6512 = vdwg.mxu0
    %6513 = vmatprep.subr.bf16.mxu0 0
    %6514 = vmatpush1.bf16.msra.mxu0 %v5369
    %6515 = vmatprep.subr.bf16.mxu0 0
    %6516 = vmatpush1.bf16.msra.mxu0 %v5370
    %6517 = vmatprep.subr.bf16.mxu0 0
    %6518 = vmatpush1.bf16.msra.mxu0 %v5371
    %6519 = vmatprep.subr.bf16.mxu0 0
    %6520 = vmatpush1.bf16.msra.mxu0 %v5372
    %6521 = vmatprep.subr.bf16.mxu0 0
    %6522 = vmatpush1.bf16.msra.mxu0 %v5373
    %6523 = vmatprep.subr.bf16.mxu0 0
    %6524 = vmatpush1.bf16.msra.mxu0 %v5374
    %6525 = vmatprep.subr.bf16.mxu0 0
    %6526 = vmatpush1.bf16.msra.mxu0 %v5375
    %6527 = vmatprep.subr.bf16.mxu0 0
    %6528 = vmatpush1.bf16.msra.mxu0 %v5376
    %6529 = vmatprep.subr.bf16.mxu0 0
    %6530 = vmatpush1.bf16.msra.mxu0 %v5377
    %6531 = vmatprep.subr.bf16.mxu0 0
    %6532 = vmatpush1.bf16.msra.mxu0 %v5378
    %6533 = vmatprep.subr.bf16.mxu0 0
    %6534 = vmatpush1.bf16.msra.mxu0 %v5379
    %6535 = vmatprep.subr.bf16.mxu0 0
    %6536 = vmatpush1.bf16.msra.mxu0 %v5380
    %6537 = vmatprep.subr.bf16.mxu0 0
    %6538 = vmatpush1.bf16.msra.mxu0 %v5381
    %6539 = vmatprep.subr.bf16.mxu0 0
    %6540 = vmatpush1.bf16.msra.mxu0 %v5382
    %6541 = vmatprep.subr.bf16.mxu0 0
    %6542 = vmatpush1.bf16.msra.mxu0 %v5383
    %6543 = vmatprep.subr.bf16.mxu0 0
    %6544 = vmatpush1.bf16.msra.mxu0 %v5384
    %6545 = vmatprep.mubr.bf16.mxu0 %v3124
    %6546 = vmatmul.mubr.bf16.gmra.mrb[0].mxu0 %v3123
    %v6547 = vpop.f32.mrb[0].mxu0
    %v6548 = vadd.f32 %v6508, %v6547
    %v6549 = vpop.f32.mrb[0].mxu0
    %v6550 = vpop.f32.mrb[0].mxu0
    %v6551 = vpop.f32.mrb[0].mxu0
    %6552 = vdwg.mxu0
    %6553 = vmatprep.subr.bf16.mxu0 0
    %6554 = vmatpush1.bf16.msra.mxu0 %v5385
    %6555 = vmatprep.subr.bf16.mxu0 0
    %6556 = vmatpush1.bf16.msra.mxu0 %v5386
    %6557 = vmatprep.subr.bf16.mxu0 0
    %6558 = vmatpush1.bf16.msra.mxu0 %v5387
    %6559 = vmatprep.subr.bf16.mxu0 0
    %6560 = vmatpush1.bf16.msra.mxu0 %v5388
    %6561 = vmatprep.subr.bf16.mxu0 0
    %6562 = vmatpush1.bf16.msra.mxu0 %v5389
    %6563 = vmatprep.subr.bf16.mxu0 0
    %6564 = vmatpush1.bf16.msra.mxu0 %v5390
    %6565 = vmatprep.subr.bf16.mxu0 0
    %6566 = vmatpush1.bf16.msra.mxu0 %v5391
    %6567 = vmatprep.subr.bf16.mxu0 0
    %6568 = vmatpush1.bf16.msra.mxu0 %v5392
    %6569 = vmatprep.subr.bf16.mxu0 0
    %6570 = vmatpush1.bf16.msra.mxu0 %v5393
    %6571 = vmatprep.subr.bf16.mxu0 0
    %6572 = vmatpush1.bf16.msra.mxu0 %v5394
    %6573 = vmatprep.subr.bf16.mxu0 0
    %6574 = vmatpush1.bf16.msra.mxu0 %v5395
    %6575 = vmatprep.subr.bf16.mxu0 0
    %6576 = vmatpush1.bf16.msra.mxu0 %v5396
    %6577 = vmatprep.subr.bf16.mxu0 0
    %6578 = vmatpush1.bf16.msra.mxu0 %v5397
    %6579 = vmatprep.subr.bf16.mxu0 0
    %6580 = vmatpush1.bf16.msra.mxu0 %v5398
    %6581 = vmatprep.subr.bf16.mxu0 0
    %6582 = vmatpush1.bf16.msra.mxu0 %v5399
    %6583 = vmatprep.subr.bf16.mxu0 0
    %6584 = vmatpush1.bf16.msra.mxu0 %v5400
    %6585 = vmatprep.mubr.bf16.mxu0 %v3126
    %6586 = vmatmul.mubr.bf16.gmra.mrb[0].mxu0 %v3125
    %v6587 = vpop.f32.mrb[0].mxu0
    %v6588 = vadd.f32 %v6548, %v6587
    %v6589 = vpop.f32.mrb[0].mxu0
    %v6590 = vpop.f32.mrb[0].mxu0
    %v6591 = vpop.f32.mrb[0].mxu0
    %6592 = vdwg.mxu0
    %6593 = vmatprep.subr.bf16.mxu0 0
    %6594 = vmatpush1.bf16.msra.mxu0 %v5401
    %6595 = vmatprep.subr.bf16.mxu0 0
    %6596 = vmatpush1.bf16.msra.mxu0 %v5402
    %6597 = vmatprep.subr.bf16.mxu0 0
    %6598 = vmatpush1.bf16.msra.mxu0 %v5403
    %6599 = vmatprep.subr.bf16.mxu0 0
    %6600 = vmatpush1.bf16.msra.mxu0 %v5404
    %6601 = vmatprep.subr.bf16.mxu0 0
    %6602 = vmatpush1.bf16.msra.mxu0 %v5405
    %6603 = vmatprep.subr.bf16.mxu0 0
    %6604 = vmatpush1.bf16.msra.mxu0 %v5406
    %6605 = vmatprep.subr.bf16.mxu0 0
    %6606 = vmatpush1.bf16.msra.mxu0 %v5407
    %6607 = vmatprep.subr.bf16.mxu0 0
    %6608 = vmatpush1.bf16.msra.mxu0 %v5408
    %6609 = vmatprep.subr.bf16.mxu0 0
    %6610 = vmatpush1.bf16.msra.mxu0 %v5409
    %6611 = vmatprep.subr.bf16.mxu0 0
    %6612 = vmatpush1.bf16.msra.mxu0 %v5410
    %6613 = vmatprep.subr.bf16.mxu0 0
    %6614 = vmatpush1.bf16.msra.mxu0 %v5411
    %6615 = vmatprep.subr.bf16.mxu0 0
    %6616 = vmatpush1.bf16.msra.mxu0 %v5412
    %6617 = vmatprep.subr.bf16.mxu0 0
    %6618 = vmatpush1.bf16.msra.mxu0 %v5413
    %6619 = vmatprep.subr.bf16.mxu0 0
    %6620 = vmatpush1.bf16.msra.mxu0 %v5414
    %6621 = vmatprep.subr.bf16.mxu0 0
    %6622 = vmatpush1.bf16.msra.mxu0 %v5415
    %6623 = vmatprep.subr.bf16.mxu0 0
    %6624 = vmatpush1.bf16.msra.mxu0 %v5416
    %6625 = vmatprep.mubr.bf16.mxu0 %v3128
    %6626 = vmatmul.mubr.bf16.gmra.mrb[0].mxu0 %v3127
    %v6627 = vpop.f32.mrb[0].mxu0
    %v6628 = vadd.f32 %v6588, %v6627
    %v6629 = vpop.f32.mrb[0].mxu0
    %v6630 = vpop.f32.mrb[0].mxu0
    %v6631 = vpop.f32.mrb[0].mxu0
    %6632 = vdwg.mxu0
    %6633 = vmatprep.subr.bf16.mxu0 0
    %6634 = vmatpush1.bf16.msra.mxu0 %v5417
    %6635 = vmatprep.subr.bf16.mxu0 0
    %6636 = vmatpush1.bf16.msra.mxu0 %v5418
    %6637 = vmatprep.subr.bf16.mxu0 0
    %6638 = vmatpush1.bf16.msra.mxu0 %v5419
    %6639 = vmatprep.subr.bf16.mxu0 0
    %6640 = vmatpush1.bf16.msra.mxu0 %v5420
    %6641 = vmatprep.subr.bf16.mxu0 0
    %6642 = vmatpush1.bf16.msra.mxu0 %v5421
    %6643 = vmatprep.subr.bf16.mxu0 0
    %6644 = vmatpush1.bf16.msra.mxu0 %v5422
    %6645 = vmatprep.subr.bf16.mxu0 0
    %6646 = vmatpush1.bf16.msra.mxu0 %v5423
    %6647 = vmatprep.subr.bf16.mxu0 0
    %6648 = vmatpush1.bf16.msra.mxu0 %v5424
    %6649 = vmatprep.subr.bf16.mxu0 0
    %6650 = vmatpush1.bf16.msra.mxu0 %v5425
    %6651 = vmatprep.subr.bf16.mxu0 0
    %6652 = vmatpush1.bf16.msra.mxu0 %v5426
    %6653 = vmatprep.subr.bf16.mxu0 0
    %6654 = vmatpush1.bf16.msra.mxu0 %v5427
    %6655 = vmatprep.subr.bf16.mxu0 0
    %6656 = vmatpush1.bf16.msra.mxu0 %v5428
    %6657 = vmatprep.subr.bf16.mxu0 0
    %6658 = vmatpush1.bf16.msra.mxu0 %v5429
    %6659 = vmatprep.subr.bf16.mxu0 0
    %6660 = vmatpush1.bf16.msra.mxu0 %v5430
    %6661 = vmatprep.subr.bf16.mxu0 0
    %6662 = vmatpush1.bf16.msra.mxu0 %v5431
    %6663 = vmatprep.subr.bf16.mxu0 0
    %6664 = vmatpush1.bf16.msra.mxu0 %v5432
    %6665 = vmatprep.mubr.bf16.mxu0 %v3130
    %6666 = vmatmul.mubr.bf16.gmra.mrb[0].mxu0 %v3129
    %v6667 = vpop.f32.mrb[0].mxu0
    %v6668 = vadd.f32 %v6628, %v6667
    %v6669 = vpop.f32.mrb[0].mxu0
    %v6670 = vpop.f32.mrb[0].mxu0
    %v6671 = vpop.f32.mrb[0].mxu0
    %6672 = vdwg.mxu0
    %6673 = vmatprep.subr.bf16.mxu0 0
    %6674 = vmatpush1.bf16.msra.mxu0 %v5433
    %6675 = vmatprep.subr.bf16.mxu0 0
    %6676 = vmatpush1.bf16.msra.mxu0 %v5434
    %6677 = vmatprep.subr.bf16.mxu0 0
    %6678 = vmatpush1.bf16.msra.mxu0 %v5435
    %6679 = vmatprep.subr.bf16.mxu0 0
    %6680 = vmatpush1.bf16.msra.mxu0 %v5436
    %6681 = vmatprep.subr.bf16.mxu0 0
    %6682 = vmatpush1.bf16.msra.mxu0 %v5437
    %6683 = vmatprep.subr.bf16.mxu0 0
    %6684 = vmatpush1.bf16.msra.mxu0 %v5438
    %6685 = vmatprep.subr.bf16.mxu0 0
    %6686 = vmatpush1.bf16.msra.mxu0 %v5439
    %6687 = vmatprep.subr.bf16.mxu0 0
    %6688 = vmatpush1.bf16.msra.mxu0 %v5440
    %6689 = vmatprep.subr.bf16.mxu0 0
    %6690 = vmatpush1.bf16.msra.mxu0 %v5441
    %6691 = vmatprep.subr.bf16.mxu0 0
    %6692 = vmatpush1.bf16.msra.mxu0 %v5442
    %6693 = vmatprep.subr.bf16.mxu0 0
    %6694 = vmatpush1.bf16.msra.mxu0 %v5443
    %6695 = vmatprep.subr.bf16.mxu0 0
    %6696 = vmatpush1.bf16.msra.mxu0 %v5444
    %6697 = vmatprep.subr.bf16.mxu0 0
    %6698 = vmatpush1.bf16.msra.mxu0 %v5445
    %6699 = vmatprep.subr.bf16.mxu0 0
    %6700 = vmatpush1.bf16.msra.mxu0 %v5446
    %6701 = vmatprep.subr.bf16.mxu0 0
    %6702 = vmatpush1.bf16.msra.mxu0 %v5447
    %6703 = vmatprep.subr.bf16.mxu0 0
    %6704 = vmatpush1.bf16.msra.mxu0 %v5448
    %6705 = vmatprep.mubr.bf16.mxu0 %v3132
    %6706 = vmatmul.mubr.bf16.gmra.mrb[0].mxu0 %v3131
    %v6707 = vpop.f32.mrb[0].mxu0
    %v6708 = vadd.f32 %v6668, %v6707
    %v6709 = vpop.f32.mrb[0].mxu0
    %v6710 = vpop.f32.mrb[0].mxu0
    %v6711 = vpop.f32.mrb[0].mxu0
    %6712 = vdwg.mxu0
    %6713 = vmatprep.subr.bf16.mxu0 0
    %6714 = vmatpush1.bf16.msra.mxu0 %v5449
    %6715 = vmatprep.subr.bf16.mxu0 0
    %6716 = vmatpush1.bf16.msra.mxu0 %v5450
    %6717 = vmatprep.subr.bf16.mxu0 0
    %6718 = vmatpush1.bf16.msra.mxu0 %v5451
    %6719 = vmatprep.subr.bf16.mxu0 0
    %6720 = vmatpush1.bf16.msra.mxu0 %v5452
    %6721 = vmatprep.subr.bf16.mxu0 0
    %6722 = vmatpush1.bf16.msra.mxu0 %v5453
    %6723 = vmatprep.subr.bf16.mxu0 0
    %6724 = vmatpush1.bf16.msra.mxu0 %v5454
    %6725 = vmatprep.subr.bf16.mxu0 0
    %6726 = vmatpush1.bf16.msra.mxu0 %v5455
    %6727 = vmatprep.subr.bf16.mxu0 0
    %6728 = vmatpush1.bf16.msra.mxu0 %v5456
    %6729 = vmatprep.subr.bf16.mxu0 0
    %6730 = vmatpush1.bf16.msra.mxu0 %v5457
    %6731 = vmatprep.subr.bf16.mxu0 0
    %6732 = vmatpush1.bf16.msra.mxu0 %v5458
    %6733 = vmatprep.subr.bf16.mxu0 0
    %6734 = vmatpush1.bf16.msra.mxu0 %v5459
    %6735 = vmatprep.subr.bf16.mxu0 0
    %6736 = vmatpush1.bf16.msra.mxu0 %v5460
    %6737 = vmatprep.subr.bf16.mxu0 0
    %6738 = vmatpush1.bf16.msra.mxu0 %v5461
    %6739 = vmatprep.subr.bf16.mxu0 0
    %6740 = vmatpush1.bf16.msra.mxu0 %v5462
    %6741 = vmatprep.subr.bf16.mxu0 0
    %6742 = vmatpush1.bf16.msra.mxu0 %v5463
    %6743 = vmatprep.subr.bf16.mxu0 0
    %6744 = vmatpush1.bf16.msra.mxu0 %v5464
    %6745 = vmatprep.mubr.bf16.mxu0 %v3134
    %6746 = vmatmul.mubr.bf16.gmra.mrb[0].mxu0 %v3133
    %v6747 = vpop.f32.mrb[0].mxu0
    %v6748 = vadd.f32 %v6708, %v6747
    %v6749 = vpop.f32.mrb[0].mxu0
    %v6750 = vpop.f32.mrb[0].mxu0
    %v6751 = vpop.f32.mrb[0].mxu0
    %6752 = vdwg.mxu0
    %6753 = vmatprep.subr.bf16.mxu0 0
    %6754 = vmatpush1.bf16.msra.mxu0 %v5465
    %6755 = vmatprep.subr.bf16.mxu0 0
    %6756 = vmatpush1.bf16.msra.mxu0 %v5466
    %6757 = vmatprep.subr.bf16.mxu0 0
    %6758 = vmatpush1.bf16.msra.mxu0 %v5467
    %6759 = vmatprep.subr.bf16.mxu0 0
    %6760 = vmatpush1.bf16.msra.mxu0 %v5468
    %6761 = vmatprep.subr.bf16.mxu0 0
    %6762 = vmatpush1.bf16.msra.mxu0 %v5469
    %6763 = vmatprep.subr.bf16.mxu0 0
    %6764 = vmatpush1.bf16.msra.mxu0 %v5470
    %6765 = vmatprep.subr.bf16.mxu0 0
    %6766 = vmatpush1.bf16.msra.mxu0 %v5471
    %6767 = vmatprep.subr.bf16.mxu0 0
    %6768 = vmatpush1.bf16.msra.mxu0 %v5472
    %6769 = vmatprep.subr.bf16.mxu0 0
    %6770 = vmatpush1.bf16.msra.mxu0 %v5473
    %6771 = vmatprep.subr.bf16.mxu0 0
    %6772 = vmatpush1.bf16.msra.mxu0 %v5474
    %6773 = vmatprep.subr.bf16.mxu0 0
    %6774 = vmatpush1.bf16.msra.mxu0 %v5475
    %6775 = vmatprep.subr.bf16.mxu0 0
    %6776 = vmatpush1.bf16.msra.mxu0 %v5476
    %6777 = vmatprep.subr.bf16.mxu0 0
    %6778 = vmatpush1.bf16.msra.mxu0 %v5477
    %6779 = vmatprep.subr.bf16.mxu0 0
    %6780 = vmatpush1.bf16.msra.mxu0 %v5478
    %6781 = vmatprep.subr.bf16.mxu0 0
    %6782 = vmatpush1.bf16.msra.mxu0 %v5479
    %6783 = vmatprep.subr.bf16.mxu0 0
    %6784 = vmatpush1.bf16.msra.mxu0 %v5480
    %6785 = vmatprep.mubr.bf16.mxu0 %v3136
    %6786 = vmatmul.mubr.bf16.gmra.mrb[0].mxu0 %v3135
    %v6787 = vpop.f32.mrb[0].mxu0
    %v6788 = vadd.f32 %v6748, %v6787
    %v6789 = vpop.f32.mrb[0].mxu0
    %v6790 = vpop.f32.mrb[0].mxu0
    %v6791 = vpop.f32.mrb[0].mxu0
    %6792 = vdwg.mxu0
    %6793 = vmatprep.subr.bf16.mxu0 0
    %6794 = vmatpush1.bf16.msra.mxu0 %v5481
    %6795 = vmatprep.subr.bf16.mxu0 0
    %6796 = vmatpush1.bf16.msra.mxu0 %v5482
    %6797 = vmatprep.subr.bf16.mxu0 0
    %6798 = vmatpush1.bf16.msra.mxu0 %v5483
    %6799 = vmatprep.subr.bf16.mxu0 0
    %6800 = vmatpush1.bf16.msra.mxu0 %v5484
    %6801 = vmatprep.subr.bf16.mxu0 0
    %6802 = vmatpush1.bf16.msra.mxu0 %v5485
    %6803 = vmatprep.subr.bf16.mxu0 0
    %6804 = vmatpush1.bf16.msra.mxu0 %v5486
    %6805 = vmatprep.subr.bf16.mxu0 0
    %6806 = vmatpush1.bf16.msra.mxu0 %v5487
    %6807 = vmatprep.subr.bf16.mxu0 0
    %6808 = vmatpush1.bf16.msra.mxu0 %v5488
    %6809 = vmatprep.subr.bf16.mxu0 0
    %6810 = vmatpush1.bf16.msra.mxu0 %v5489
    %6811 = vmatprep.subr.bf16.mxu0 0
    %6812 = vmatpush1.bf16.msra.mxu0 %v5490
    %6813 = vmatprep.subr.bf16.mxu0 0
    %6814 = vmatpush1.bf16.msra.mxu0 %v5491
    %6815 = vmatprep.subr.bf16.mxu0 0
    %6816 = vmatpush1.bf16.msra.mxu0 %v5492
    %6817 = vmatprep.subr.bf16.mxu0 0
    %6818 = vmatpush1.bf16.msra.mxu0 %v5493
    %6819 = vmatprep.subr.bf16.mxu0 0
    %6820 = vmatpush1.bf16.msra.mxu0 %v5494
    %6821 = vmatprep.subr.bf16.mxu0 0
    %6822 = vmatpush1.bf16.msra.mxu0 %v5495
    %6823 = vmatprep.subr.bf16.mxu0 0
    %6824 = vmatpush1.bf16.msra.mxu0 %v5496
    %6825 = vmatprep.mubr.bf16.mxu0 %v3138
    %6826 = vmatmul.mubr.bf16.gmra.mrb[0].mxu0 %v3137
    %v6827 = vpop.f32.mrb[0].mxu0
    %v6828 = vadd.f32 %v6788, %v6827
    %v6829 = vpop.f32.mrb[0].mxu0
    %v6830 = vpop.f32.mrb[0].mxu0
    %v6831 = vpop.f32.mrb[0].mxu0
    %6832 = vdwg.mxu0
    %6833 = vmatprep.subr.bf16.mxu0 0
    %6834 = vmatpush1.bf16.msra.mxu0 %v5497
    %6835 = vmatprep.subr.bf16.mxu0 0
    %6836 = vmatpush1.bf16.msra.mxu0 %v5498
    %6837 = vmatprep.subr.bf16.mxu0 0
    %6838 = vmatpush1.bf16.msra.mxu0 %v5499
    %6839 = vmatprep.subr.bf16.mxu0 0
    %6840 = vmatpush1.bf16.msra.mxu0 %v5500
    %6841 = vmatprep.subr.bf16.mxu0 0
    %6842 = vmatpush1.bf16.msra.mxu0 %v5501
    %6843 = vmatprep.subr.bf16.mxu0 0
    %6844 = vmatpush1.bf16.msra.mxu0 %v5502
    %6845 = vmatprep.subr.bf16.mxu0 0
    %6846 = vmatpush1.bf16.msra.mxu0 %v5503
    %6847 = vmatprep.subr.bf16.mxu0 0
    %6848 = vmatpush1.bf16.msra.mxu0 %v5504
    %6849 = vmatprep.subr.bf16.mxu0 0
    %6850 = vmatpush1.bf16.msra.mxu0 %v5505
    %6851 = vmatprep.subr.bf16.mxu0 0
    %6852 = vmatpush1.bf16.msra.mxu0 %v5506
    %6853 = vmatprep.subr.bf16.mxu0 0
    %6854 = vmatpush1.bf16.msra.mxu0 %v5507
    %6855 = vmatprep.subr.bf16.mxu0 0
    %6856 = vmatpush1.bf16.msra.mxu0 %v5508
    %6857 = vmatprep.subr.bf16.mxu0 0
    %6858 = vmatpush1.bf16.msra.mxu0 %v5509
    %6859 = vmatprep.subr.bf16.mxu0 0
    %6860 = vmatpush1.bf16.msra.mxu0 %v5510
    %6861 = vmatprep.subr.bf16.mxu0 0
    %6862 = vmatpush1.bf16.msra.mxu0 %v5511
    %6863 = vmatprep.subr.bf16.mxu0 0
    %6864 = vmatpush1.bf16.msra.mxu0 %v5512
    %6865 = vmatprep.mubr.bf16.mxu0 %v3140
    %6866 = vmatmul.mubr.bf16.gmra.mrb[0].mxu0 %v3139
    %v6867 = vpop.f32.mrb[0].mxu0
    %v6868 = vadd.f32 %v6828, %v6867
    %v6869 = vpop.f32.mrb[0].mxu0
    %v6870 = vpop.f32.mrb[0].mxu0
    %v6871 = vpop.f32.mrb[0].mxu0
    %6872 = vdwg.mxu0
    %6873 = vmatprep.subr.bf16.mxu0 0
    %6874 = vmatpush1.bf16.msra.mxu0 %v5513
    %6875 = vmatprep.subr.bf16.mxu0 0
    %6876 = vmatpush1.bf16.msra.mxu0 %v5514
    %6877 = vmatprep.subr.bf16.mxu0 0
    %6878 = vmatpush1.bf16.msra.mxu0 %v5515
    %6879 = vmatprep.subr.bf16.mxu0 0
    %6880 = vmatpush1.bf16.msra.mxu0 %v5516
    %6881 = vmatprep.subr.bf16.mxu0 0
    %6882 = vmatpush1.bf16.msra.mxu0 %v5517
    %6883 = vmatprep.subr.bf16.mxu0 0
    %6884 = vmatpush1.bf16.msra.mxu0 %v5518
    %6885 = vmatprep.subr.bf16.mxu0 0
    %6886 = vmatpush1.bf16.msra.mxu0 %v5519
    %6887 = vmatprep.subr.bf16.mxu0 0
    %6888 = vmatpush1.bf16.msra.mxu0 %v5520
    %6889 = vmatprep.subr.bf16.mxu0 0
    %6890 = vmatpush1.bf16.msra.mxu0 %v5521
    %6891 = vmatprep.subr.bf16.mxu0 0
    %6892 = vmatpush1.bf16.msra.mxu0 %v5522
    %6893 = vmatprep.subr.bf16.mxu0 0
    %6894 = vmatpush1.bf16.msra.mxu0 %v5523
    %6895 = vmatprep.subr.bf16.mxu0 0
    %6896 = vmatpush1.bf16.msra.mxu0 %v5524
    %6897 = vmatprep.subr.bf16.mxu0 0
    %6898 = vmatpush1.bf16.msra.mxu0 %v5525
    %6899 = vmatprep.subr.bf16.mxu0 0
    %6900 = vmatpush1.bf16.msra.mxu0 %v5526
    %6901 = vmatprep.subr.bf16.mxu0 0
    %6902 = vmatpush1.bf16.msra.mxu0 %v5527
    %6903 = vmatprep.subr.bf16.mxu0 0
    %6904 = vmatpush1.bf16.msra.mxu0 %v5528
    %6905 = vmatprep.mubr.bf16.mxu0 %v3142
    %6906 = vmatmul.mubr.bf16.gmra.mrb[0].mxu0 %v3141
    %v6907 = vpop.f32.mrb[0].mxu0
    %v6908 = vadd.f32 %v6868, %v6907
    %v6909 = vpop.f32.mrb[0].mxu0
    %v6910 = vpop.f32.mrb[0].mxu0
    %v6911 = vpop.f32.mrb[0].mxu0
    %6912 = vdwg.mxu0
    %6913 = vmatprep.subr.bf16.mxu0 0
    %6914 = vmatpush1.bf16.msra.mxu0 %v5529
    %6915 = vmatprep.subr.bf16.mxu0 0
    %6916 = vmatpush1.bf16.msra.mxu0 %v5530
    %6917 = vmatprep.subr.bf16.mxu0 0
    %6918 = vmatpush1.bf16.msra.mxu0 %v5531
    %6919 = vmatprep.subr.bf16.mxu0 0
    %6920 = vmatpush1.bf16.msra.mxu0 %v5532
    %6921 = vmatprep.subr.bf16.mxu0 0
    %6922 = vmatpush1.bf16.msra.mxu0 %v5533
    %6923 = vmatprep.subr.bf16.mxu0 0
    %6924 = vmatpush1.bf16.msra.mxu0 %v5534
    %6925 = vmatprep.subr.bf16.mxu0 0
    %6926 = vmatpush1.bf16.msra.mxu0 %v5535
    %6927 = vmatprep.subr.bf16.mxu0 0
    %6928 = vmatpush1.bf16.msra.mxu0 %v5536
    %6929 = vmatprep.subr.bf16.mxu0 0
    %6930 = vmatpush1.bf16.msra.mxu0 %v5537
    %6931 = vmatprep.subr.bf16.mxu0 0
    %6932 = vmatpush1.bf16.msra.mxu0 %v5538
    %6933 = vmatprep.subr.bf16.mxu0 0
    %6934 = vmatpush1.bf16.msra.mxu0 %v5539
    %6935 = vmatprep.subr.bf16.mxu0 0
    %6936 = vmatpush1.bf16.msra.mxu0 %v5540
    %6937 = vmatprep.subr.bf16.mxu0 0
    %6938 = vmatpush1.bf16.msra.mxu0 %v5541
    %6939 = vmatprep.subr.bf16.mxu0 0
    %6940 = vmatpush1.bf16.msra.mxu0 %v5542
    %6941 = vmatprep.subr.bf16.mxu0 0
    %6942 = vmatpush1.bf16.msra.mxu0 %v5543
    %6943 = vmatprep.subr.bf16.mxu0 0
    %6944 = vmatpush1.bf16.msra.mxu0 %v5544
    %6945 = vmatprep.mubr.bf16.mxu0 %v3144
    %6946 = vmatmul.mubr.bf16.gmra.mrb[0].mxu0 %v3143
    %v6947 = vpop.f32.mrb[0].mxu0
    %v6948 = vadd.f32 %v6908, %v6947
    %v6949 = vpop.f32.mrb[0].mxu0
    %v6950 = vpop.f32.mrb[0].mxu0
    %v6951 = vpop.f32.mrb[0].mxu0
    %6952 = vdwg.mxu0
    %6953 = vmatprep.subr.bf16.mxu0 0
    %6954 = vmatpush1.bf16.msra.mxu0 %v5545
    %6955 = vmatprep.subr.bf16.mxu0 0
    %6956 = vmatpush1.bf16.msra.mxu0 %v5546
    %6957 = vmatprep.subr.bf16.mxu0 0
    %6958 = vmatpush1.bf16.msra.mxu0 %v5547
    %6959 = vmatprep.subr.bf16.mxu0 0
    %6960 = vmatpush1.bf16.msra.mxu0 %v5548
    %6961 = vmatprep.subr.bf16.mxu0 0
    %6962 = vmatpush1.bf16.msra.mxu0 %v5549
    %6963 = vmatprep.subr.bf16.mxu0 0
    %6964 = vmatpush1.bf16.msra.mxu0 %v5550
    %6965 = vmatprep.subr.bf16.mxu0 0
    %6966 = vmatpush1.bf16.msra.mxu0 %v5551
    %6967 = vmatprep.subr.bf16.mxu0 0
    %6968 = vmatpush1.bf16.msra.mxu0 %v5552
    %6969 = vmatprep.subr.bf16.mxu0 0
    %6970 = vmatpush1.bf16.msra.mxu0 %v5553
    %6971 = vmatprep.subr.bf16.mxu0 0
    %6972 = vmatpush1.bf16.msra.mxu0 %v5554
    %6973 = vmatprep.subr.bf16.mxu0 0
    %6974 = vmatpush1.bf16.msra.mxu0 %v5555
    %6975 = vmatprep.subr.bf16.mxu0 0
    %6976 = vmatpush1.bf16.msra.mxu0 %v5556
    %6977 = vmatprep.subr.bf16.mxu0 0
    %6978 = vmatpush1.bf16.msra.mxu0 %v5557
    %6979 = vmatprep.subr.bf16.mxu0 0
    %6980 = vmatpush1.bf16.msra.mxu0 %v5558
    %6981 = vmatprep.subr.bf16.mxu0 0
    %6982 = vmatpush1.bf16.msra.mxu0 %v5559
    %6983 = vmatprep.subr.bf16.mxu0 0
    %6984 = vmatpush1.bf16.msra.mxu0 %v5560
    %6985 = vmatprep.mubr.bf16.mxu0 %v3146
    %6986 = vmatmul.mubr.bf16.gmra.mrb[0].mxu0 %v3145
    %v6987 = vpop.f32.mrb[0].mxu0
    %v6988 = vadd.f32 %v6948, %v6987
    %v6989 = vpop.f32.mrb[0].mxu0
    %v6990 = vpop.f32.mrb[0].mxu0
    %v6991 = vpop.f32.mrb[0].mxu0
    %6992 = vdwg.mxu0
    %6993 = vmatprep.subr.bf16.mxu0 0
    %6994 = vmatpush1.bf16.msra.mxu0 %v5561
    %6995 = vmatprep.subr.bf16.mxu0 0
    %6996 = vmatpush1.bf16.msra.mxu0 %v5562
    %6997 = vmatprep.subr.bf16.mxu0 0
    %6998 = vmatpush1.bf16.msra.mxu0 %v5563
    %6999 = vmatprep.subr.bf16.mxu0 0
    %7000 = vmatpush1.bf16.msra.mxu0 %v5564
    %7001 = vmatprep.subr.bf16.mxu0 0
    %7002 = vmatpush1.bf16.msra.mxu0 %v5565
    %7003 = vmatprep.subr.bf16.mxu0 0
    %7004 = vmatpush1.bf16.msra.mxu0 %v5566
    %7005 = vmatprep.subr.bf16.mxu0 0
    %7006 = vmatpush1.bf16.msra.mxu0 %v5567
    %7007 = vmatprep.subr.bf16.mxu0 0
    %7008 = vmatpush1.bf16.msra.mxu0 %v5568
    %7009 = vmatprep.subr.bf16.mxu0 0
    %7010 = vmatpush1.bf16.msra.mxu0 %v5569
    %7011 = vmatprep.subr.bf16.mxu0 0
    %7012 = vmatpush1.bf16.msra.mxu0 %v5570
    %7013 = vmatprep.subr.bf16.mxu0 0
    %7014 = vmatpush1.bf16.msra.mxu0 %v5571
    %7015 = vmatprep.subr.bf16.mxu0 0
    %7016 = vmatpush1.bf16.msra.mxu0 %v5572
    %7017 = vmatprep.subr.bf16.mxu0 0
    %7018 = vmatpush1.bf16.msra.mxu0 %v5573
    %7019 = vmatprep.subr.bf16.mxu0 0
    %7020 = vmatpush1.bf16.msra.mxu0 %v5574
    %7021 = vmatprep.subr.bf16.mxu0 0
    %7022 = vmatpush1.bf16.msra.mxu0 %v5575
    %7023 = vmatprep.subr.bf16.mxu0 0
    %7024 = vmatpush1.bf16.msra.mxu0 %v5576
    %7025 = vmatprep.mubr.bf16.mxu0 %v3148
    %7026 = vmatmul.mubr.bf16.gmra.mrb[0].mxu0 %v3147
    %v7027 = vpop.f32.mrb[0].mxu0
    %v7028 = vadd.f32 %v6988, %v7027
    %v7029 = vpop.f32.mrb[0].mxu0
    %v7030 = vpop.f32.mrb[0].mxu0
    %v7031 = vpop.f32.mrb[0].mxu0
    %7032 = vdwg.mxu0
    %7033 = vmatprep.subr.bf16.mxu0 0
    %7034 = vmatpush1.bf16.msra.mxu0 %v5577
    %7035 = vmatprep.subr.bf16.mxu0 0
    %7036 = vmatpush1.bf16.msra.mxu0 %v5578
    %7037 = vmatprep.subr.bf16.mxu0 0
    %7038 = vmatpush1.bf16.msra.mxu0 %v5579
    %7039 = vmatprep.subr.bf16.mxu0 0
    %7040 = vmatpush1.bf16.msra.mxu0 %v5580
    %7041 = vmatprep.subr.bf16.mxu0 0
    %7042 = vmatpush1.bf16.msra.mxu0 %v5581
    %7043 = vmatprep.subr.bf16.mxu0 0
    %7044 = vmatpush1.bf16.msra.mxu0 %v5582
    %7045 = vmatprep.subr.bf16.mxu0 0
    %7046 = vmatpush1.bf16.msra.mxu0 %v5583
    %7047 = vmatprep.subr.bf16.mxu0 0
    %7048 = vmatpush1.bf16.msra.mxu0 %v5584
    %7049 = vmatprep.subr.bf16.mxu0 0
    %7050 = vmatpush1.bf16.msra.mxu0 %v5585
    %7051 = vmatprep.subr.bf16.mxu0 0
    %7052 = vmatpush1.bf16.msra.mxu0 %v5586
    %7053 = vmatprep.subr.bf16.mxu0 0
    %7054 = vmatpush1.bf16.msra.mxu0 %v5587
    %7055 = vmatprep.subr.bf16.mxu0 0
    %7056 = vmatpush1.bf16.msra.mxu0 %v5588
    %7057 = vmatprep.subr.bf16.mxu0 0
    %7058 = vmatpush1.bf16.msra.mxu0 %v5589
    %7059 = vmatprep.subr.bf16.mxu0 0
    %7060 = vmatpush1.bf16.msra.mxu0 %v5590
    %7061 = vmatprep.subr.bf16.mxu0 0
    %7062 = vmatpush1.bf16.msra.mxu0 %v5591
    %7063 = vmatprep.subr.bf16.mxu0 0
    %7064 = vmatpush1.bf16.msra.mxu0 %v5592
    %7065 = vmatprep.mubr.bf16.mxu0 %v3150
    %7066 = vmatmul.mubr.bf16.gmra.mrb[0].mxu0 %v3149
    %v7067 = vpop.f32.mrb[0].mxu0
    %v7068 = vadd.f32 %v7028, %v7067
    %v7069 = vpop.f32.mrb[0].mxu0
    %v7070 = vpop.f32.mrb[0].mxu0
    %v7071 = vpop.f32.mrb[0].mxu0
    %7072 = vdwg.mxu0
    %7073 = vmatprep.subr.bf16.mxu0 0
    %7074 = vmatpush1.bf16.msra.mxu0 %v5593
    %7075 = vmatprep.subr.bf16.mxu0 0
    %7076 = vmatpush1.bf16.msra.mxu0 %v5594
    %7077 = vmatprep.subr.bf16.mxu0 0
    %7078 = vmatpush1.bf16.msra.mxu0 %v5595
    %7079 = vmatprep.subr.bf16.mxu0 0
    %7080 = vmatpush1.bf16.msra.mxu0 %v5596
    %7081 = vmatprep.subr.bf16.mxu0 0
    %7082 = vmatpush1.bf16.msra.mxu0 %v5597
    %7083 = vmatprep.subr.bf16.mxu0 0
    %7084 = vmatpush1.bf16.msra.mxu0 %v5598
    %7085 = vmatprep.subr.bf16.mxu0 0
    %7086 = vmatpush1.bf16.msra.mxu0 %v5599
    %7087 = vmatprep.subr.bf16.mxu0 0
    %7088 = vmatpush1.bf16.msra.mxu0 %v5600
    %7089 = vmatprep.subr.bf16.mxu0 0
    %7090 = vmatpush1.bf16.msra.mxu0 %v5601
    %7091 = vmatprep.subr.bf16.mxu0 0
    %7092 = vmatpush1.bf16.msra.mxu0 %v5602
    %7093 = vmatprep.subr.bf16.mxu0 0
    %7094 = vmatpush1.bf16.msra.mxu0 %v5603
    %7095 = vmatprep.subr.bf16.mxu0 0
    %7096 = vmatpush1.bf16.msra.mxu0 %v5604
    %7097 = vmatprep.subr.bf16.mxu0 0
    %7098 = vmatpush1.bf16.msra.mxu0 %v5605
    %7099 = vmatprep.subr.bf16.mxu0 0
    %7100 = vmatpush1.bf16.msra.mxu0 %v5606
    %7101 = vmatprep.subr.bf16.mxu0 0
    %7102 = vmatpush1.bf16.msra.mxu0 %v5607
    %7103 = vmatprep.subr.bf16.mxu0 0
    %7104 = vmatpush1.bf16.msra.mxu0 %v5608
    %7105 = vmatprep.mubr.bf16.mxu0 %v3152
    %7106 = vmatmul.mubr.bf16.gmra.mrb[0].mxu0 %v3151
    %v7107 = vpop.f32.mrb[0].mxu0
    %v7108 = vadd.f32 %v7068, %v7107
    %v7109 = vpop.f32.mrb[0].mxu0
    %v7110 = vpop.f32.mrb[0].mxu0
    %v7111 = vpop.f32.mrb[0].mxu0
    %7112 = vdwg.mxu0
    %7113 = vmatprep.subr.bf16.mxu0 0
    %7114 = vmatpush1.bf16.msra.mxu0 %v5609
    %7115 = vmatprep.subr.bf16.mxu0 0
    %7116 = vmatpush1.bf16.msra.mxu0 %v5610
    %7117 = vmatprep.subr.bf16.mxu0 0
    %7118 = vmatpush1.bf16.msra.mxu0 %v5611
    %7119 = vmatprep.subr.bf16.mxu0 0
    %7120 = vmatpush1.bf16.msra.mxu0 %v5612
    %7121 = vmatprep.subr.bf16.mxu0 0
    %7122 = vmatpush1.bf16.msra.mxu0 %v5613
    %7123 = vmatprep.subr.bf16.mxu0 0
    %7124 = vmatpush1.bf16.msra.mxu0 %v5614
    %7125 = vmatprep.subr.bf16.mxu0 0
    %7126 = vmatpush1.bf16.msra.mxu0 %v5615
    %7127 = vmatprep.subr.bf16.mxu0 0
    %7128 = vmatpush1.bf16.msra.mxu0 %v5616
    %7129 = vmatprep.subr.bf16.mxu0 0
    %7130 = vmatpush1.bf16.msra.mxu0 %v5617
    %7131 = vmatprep.subr.bf16.mxu0 0
    %7132 = vmatpush1.bf16.msra.mxu0 %v5618
    %7133 = vmatprep.subr.bf16.mxu0 0
    %7134 = vmatpush1.bf16.msra.mxu0 %v5619
    %7135 = vmatprep.subr.bf16.mxu0 0
    %7136 = vmatpush1.bf16.msra.mxu0 %v5620
    %7137 = vmatprep.subr.bf16.mxu0 0
    %7138 = vmatpush1.bf16.msra.mxu0 %v5621
    %7139 = vmatprep.subr.bf16.mxu0 0
    %7140 = vmatpush1.bf16.msra.mxu0 %v5622
    %7141 = vmatprep.subr.bf16.mxu0 0
    %7142 = vmatpush1.bf16.msra.mxu0 %v5623
    %7143 = vmatprep.subr.bf16.mxu0 0
    %7144 = vmatpush1.bf16.msra.mxu0 %v5624
    %7145 = vmatprep.mubr.bf16.mxu0 %v3154
    %7146 = vmatmul.mubr.bf16.gmra.mrb[0].mxu0 %v3153
    %v7147 = vpop.f32.mrb[0].mxu0
    %v7148 = vadd.f32 %v7108, %v7147
    %v7149 = vpop.f32.mrb[0].mxu0
    %v7150 = vpop.f32.mrb[0].mxu0
    %v7151 = vpop.f32.mrb[0].mxu0
    %7152 = vdwg.mxu0
    %7153 = vmatprep.subr.bf16.mxu0 0
    %7154 = vmatpush1.bf16.msra.mxu0 %v5625
    %7155 = vmatprep.subr.bf16.mxu0 0
    %7156 = vmatpush1.bf16.msra.mxu0 %v5626
    %7157 = vmatprep.subr.bf16.mxu0 0
    %7158 = vmatpush1.bf16.msra.mxu0 %v5627
    %7159 = vmatprep.subr.bf16.mxu0 0
    %7160 = vmatpush1.bf16.msra.mxu0 %v5628
    %7161 = vmatprep.subr.bf16.mxu0 0
    %7162 = vmatpush1.bf16.msra.mxu0 %v5629
    %7163 = vmatprep.subr.bf16.mxu0 0
    %7164 = vmatpush1.bf16.msra.mxu0 %v5630
    %7165 = vmatprep.subr.bf16.mxu0 0
    %7166 = vmatpush1.bf16.msra.mxu0 %v5631
    %7167 = vmatprep.subr.bf16.mxu0 0
    %7168 = vmatpush1.bf16.msra.mxu0 %v5632
    %7169 = vmatprep.subr.bf16.mxu0 0
    %7170 = vmatpush1.bf16.msra.mxu0 %v5633
    %7171 = vmatprep.subr.bf16.mxu0 0
    %7172 = vmatpush1.bf16.msra.mxu0 %v5634
    %7173 = vmatprep.subr.bf16.mxu0 0
    %7174 = vmatpush1.bf16.msra.mxu0 %v5635
    %7175 = vmatprep.subr.bf16.mxu0 0
    %7176 = vmatpush1.bf16.msra.mxu0 %v5636
    %7177 = vmatprep.subr.bf16.mxu0 0
    %7178 = vmatpush1.bf16.msra.mxu0 %v5637
    %7179 = vmatprep.subr.bf16.mxu0 0
    %7180 = vmatpush1.bf16.msra.mxu0 %v5638
    %7181 = vmatprep.subr.bf16.mxu0 0
    %7182 = vmatpush1.bf16.msra.mxu0 %v5639
    %7183 = vmatprep.subr.bf16.mxu0 0
    %7184 = vmatpush1.bf16.msra.mxu0 %v5640
    %7185 = vmatprep.mubr.bf16.mxu0 %v3156
    %7186 = vmatmul.mubr.bf16.gmra.mrb[0].mxu0 %v3155
    %v7187 = vpop.f32.mrb[0].mxu0
    %v7188 = vadd.f32 %v7148, %v7187
    %v7189 = vpop.f32.mrb[0].mxu0
    %v7190 = vpop.f32.mrb[0].mxu0
    %v7191 = vpop.f32.mrb[0].mxu0
    %7192 = vdwg.mxu0
    %7193 = vmatprep.subr.bf16.mxu0 0
    %7194 = vmatpush1.bf16.msra.mxu0 %v5641
    %7195 = vmatprep.subr.bf16.mxu0 0
    %7196 = vmatpush1.bf16.msra.mxu0 %v5642
    %7197 = vmatprep.subr.bf16.mxu0 0
    %7198 = vmatpush1.bf16.msra.mxu0 %v5643
    %7199 = vmatprep.subr.bf16.mxu0 0
    %7200 = vmatpush1.bf16.msra.mxu0 %v5644
    %7201 = vmatprep.subr.bf16.mxu0 0
    %7202 = vmatpush1.bf16.msra.mxu0 %v5645
    %7203 = vmatprep.subr.bf16.mxu0 0
    %7204 = vmatpush1.bf16.msra.mxu0 %v5646
    %7205 = vmatprep.subr.bf16.mxu0 0
    %7206 = vmatpush1.bf16.msra.mxu0 %v5647
    %7207 = vmatprep.subr.bf16.mxu0 0
    %7208 = vmatpush1.bf16.msra.mxu0 %v5648
    %7209 = vmatprep.subr.bf16.mxu0 0
    %7210 = vmatpush1.bf16.msra.mxu0 %v5649
    %7211 = vmatprep.subr.bf16.mxu0 0
    %7212 = vmatpush1.bf16.msra.mxu0 %v5650
    %7213 = vmatprep.subr.bf16.mxu0 0
    %7214 = vmatpush1.bf16.msra.mxu0 %v5651
    %7215 = vmatprep.subr.bf16.mxu0 0
    %7216 = vmatpush1.bf16.msra.mxu0 %v5652
    %7217 = vmatprep.subr.bf16.mxu0 0
    %7218 = vmatpush1.bf16.msra.mxu0 %v5653
    %7219 = vmatprep.subr.bf16.mxu0 0
    %7220 = vmatpush1.bf16.msra.mxu0 %v5654
    %7221 = vmatprep.subr.bf16.mxu0 0
    %7222 = vmatpush1.bf16.msra.mxu0 %v5655
    %7223 = vmatprep.subr.bf16.mxu0 0
    %7224 = vmatpush1.bf16.msra.mxu0 %v5656
    %7225 = vmatprep.mubr.bf16.mxu0 %v3158
    %7226 = vmatmul.mubr.bf16.gmra.mrb[0].mxu0 %v3157
    %v7227 = vpop.f32.mrb[0].mxu0
    %v7228 = vadd.f32 %v7188, %v7227
    %v7229 = vpop.f32.mrb[0].mxu0
    %v7230 = vpop.f32.mrb[0].mxu0
    %v7231 = vpop.f32.mrb[0].mxu0
    %7232 = vdwg.mxu0
    %7233 = vmatprep.subr.bf16.mxu0 0
    %7234 = vmatpush1.bf16.msra.mxu0 %v5657
    %7235 = vmatprep.subr.bf16.mxu0 0
    %7236 = vmatpush1.bf16.msra.mxu0 %v5658
    %7237 = vmatprep.subr.bf16.mxu0 0
    %7238 = vmatpush1.bf16.msra.mxu0 %v5659
    %7239 = vmatprep.subr.bf16.mxu0 0
    %7240 = vmatpush1.bf16.msra.mxu0 %v5660
    %7241 = vmatprep.subr.bf16.mxu0 0
    %7242 = vmatpush1.bf16.msra.mxu0 %v5661
    %7243 = vmatprep.subr.bf16.mxu0 0
    %7244 = vmatpush1.bf16.msra.mxu0 %v5662
    %7245 = vmatprep.subr.bf16.mxu0 0
    %7246 = vmatpush1.bf16.msra.mxu0 %v5663
    %7247 = vmatprep.subr.bf16.mxu0 0
    %7248 = vmatpush1.bf16.msra.mxu0 %v5664
    %7249 = vmatprep.subr.bf16.mxu0 0
    %7250 = vmatpush1.bf16.msra.mxu0 %v5665
    %7251 = vmatprep.subr.bf16.mxu0 0
    %7252 = vmatpush1.bf16.msra.mxu0 %v5666
    %7253 = vmatprep.subr.bf16.mxu0 0
    %7254 = vmatpush1.bf16.msra.mxu0 %v5667
    %7255 = vmatprep.subr.bf16.mxu0 0
    %7256 = vmatpush1.bf16.msra.mxu0 %v5668
    %7257 = vmatprep.subr.bf16.mxu0 0
    %7258 = vmatpush1.bf16.msra.mxu0 %v5669
    %7259 = vmatprep.subr.bf16.mxu0 0
    %7260 = vmatpush1.bf16.msra.mxu0 %v5670
    %7261 = vmatprep.subr.bf16.mxu0 0
    %7262 = vmatpush1.bf16.msra.mxu0 %v5671
    %7263 = vmatprep.subr.bf16.mxu0 0
    %7264 = vmatpush1.bf16.msra.mxu0 %v5672
    %7265 = vmatprep.mubr.bf16.mxu0 %v3160
    %7266 = vmatmul.mubr.bf16.gmra.mrb[0].mxu0 %v3159
    %v7267 = vpop.f32.mrb[0].mxu0
    %v7268 = vadd.f32 %v7228, %v7267
    %v7269 = vpop.f32.mrb[0].mxu0
    %v7270 = vpop.f32.mrb[0].mxu0
    %v7271 = vpop.f32.mrb[0].mxu0
    %7272 = vdwg.mxu0
    %7273 = vmatprep.subr.bf16.mxu0 0
    %7274 = vmatpush1.bf16.msra.mxu0 %v5673
    %7275 = vmatprep.subr.bf16.mxu0 0
    %7276 = vmatpush1.bf16.msra.mxu0 %v5674
    %7277 = vmatprep.subr.bf16.mxu0 0
    %7278 = vmatpush1.bf16.msra.mxu0 %v5675
    %7279 = vmatprep.subr.bf16.mxu0 0
    %7280 = vmatpush1.bf16.msra.mxu0 %v5676
    %7281 = vmatprep.subr.bf16.mxu0 0
    %7282 = vmatpush1.bf16.msra.mxu0 %v5677
    %7283 = vmatprep.subr.bf16.mxu0 0
    %7284 = vmatpush1.bf16.msra.mxu0 %v5678
    %7285 = vmatprep.subr.bf16.mxu0 0
    %7286 = vmatpush1.bf16.msra.mxu0 %v5679
    %7287 = vmatprep.subr.bf16.mxu0 0
    %7288 = vmatpush1.bf16.msra.mxu0 %v5680
    %7289 = vmatprep.subr.bf16.mxu0 0
    %7290 = vmatpush1.bf16.msra.mxu0 %v5681
    %7291 = vmatprep.subr.bf16.mxu0 0
    %7292 = vmatpush1.bf16.msra.mxu0 %v5682
    %7293 = vmatprep.subr.bf16.mxu0 0
    %7294 = vmatpush1.bf16.msra.mxu0 %v5683
    %7295 = vmatprep.subr.bf16.mxu0 0
    %7296 = vmatpush1.bf16.msra.mxu0 %v5684
    %7297 = vmatprep.subr.bf16.mxu0 0
    %7298 = vmatpush1.bf16.msra.mxu0 %v5685
    %7299 = vmatprep.subr.bf16.mxu0 0
    %7300 = vmatpush1.bf16.msra.mxu0 %v5686
    %7301 = vmatprep.subr.bf16.mxu0 0
    %7302 = vmatpush1.bf16.msra.mxu0 %v5687
    %7303 = vmatprep.subr.bf16.mxu0 0
    %7304 = vmatpush1.bf16.msra.mxu0 %v5688
    %7305 = vmatprep.mubr.bf16.mxu0 %v3162
    %7306 = vmatmul.mubr.bf16.gmra.mrb[0].mxu0 %v3161
    %v7307 = vpop.f32.mrb[0].mxu0
    %v7308 = vadd.f32 %v7268, %v7307
    %v7309 = vpop.f32.mrb[0].mxu0
    %v7310 = vpop.f32.mrb[0].mxu0
    %v7311 = vpop.f32.mrb[0].mxu0
    %7312 = vdwg.mxu0
    %7313 = vmatprep.subr.bf16.mxu0 0
    %7314 = vmatpush1.bf16.msra.mxu0 %v5689
    %7315 = vmatprep.subr.bf16.mxu0 0
    %7316 = vmatpush1.bf16.msra.mxu0 %v5690
    %7317 = vmatprep.subr.bf16.mxu0 0
    %7318 = vmatpush1.bf16.msra.mxu0 %v5691
    %7319 = vmatprep.subr.bf16.mxu0 0
    %7320 = vmatpush1.bf16.msra.mxu0 %v5692
    %7321 = vmatprep.subr.bf16.mxu0 0
    %7322 = vmatpush1.bf16.msra.mxu0 %v5693
    %7323 = vmatprep.subr.bf16.mxu0 0
    %7324 = vmatpush1.bf16.msra.mxu0 %v5694
    %7325 = vmatprep.subr.bf16.mxu0 0
    %7326 = vmatpush1.bf16.msra.mxu0 %v5695
    %7327 = vmatprep.subr.bf16.mxu0 0
    %7328 = vmatpush1.bf16.msra.mxu0 %v5696
    %7329 = vmatprep.subr.bf16.mxu0 0
    %7330 = vmatpush1.bf16.msra.mxu0 %v5697
    %7331 = vmatprep.subr.bf16.mxu0 0
    %7332 = vmatpush1.bf16.msra.mxu0 %v5698
    %7333 = vmatprep.subr.bf16.mxu0 0
    %7334 = vmatpush1.bf16.msra.mxu0 %v5699
    %7335 = vmatprep.subr.bf16.mxu0 0
    %7336 = vmatpush1.bf16.msra.mxu0 %v5700
    %7337 = vmatprep.subr.bf16.mxu0 0
    %7338 = vmatpush1.bf16.msra.mxu0 %v5701
    %7339 = vmatprep.subr.bf16.mxu0 0
    %7340 = vmatpush1.bf16.msra.mxu0 %v5702
    %7341 = vmatprep.subr.bf16.mxu0 0
    %7342 = vmatpush1.bf16.msra.mxu0 %v5703
    %7343 = vmatprep.subr.bf16.mxu0 0
    %7344 = vmatpush1.bf16.msra.mxu0 %v5704
    %7345 = vmatprep.mubr.bf16.mxu0 %v3164
    %7346 = vmatmul.mubr.bf16.gmra.mrb[0].mxu0 %v3163
    %v7347 = vpop.f32.mrb[0].mxu0
    %v7348 = vadd.f32 %v7308, %v7347
    %v7349 = vpop.f32.mrb[0].mxu0
    %v7350 = vpop.f32.mrb[0].mxu0
    %v7351 = vpop.f32.mrb[0].mxu0
    %7352 = vdwg.mxu0
    %7353 = vmatprep.subr.bf16.mxu0 0
    %7354 = vmatpush1.bf16.msra.mxu0 %v5705
    %7355 = vmatprep.subr.bf16.mxu0 0
    %7356 = vmatpush1.bf16.msra.mxu0 %v5706
    %7357 = vmatprep.subr.bf16.mxu0 0
    %7358 = vmatpush1.bf16.msra.mxu0 %v5707
    %7359 = vmatprep.subr.bf16.mxu0 0
    %7360 = vmatpush1.bf16.msra.mxu0 %v5708
    %7361 = vmatprep.subr.bf16.mxu0 0
    %7362 = vmatpush1.bf16.msra.mxu0 %v5709
    %7363 = vmatprep.subr.bf16.mxu0 0
    %7364 = vmatpush1.bf16.msra.mxu0 %v5710
    %7365 = vmatprep.subr.bf16.mxu0 0
    %7366 = vmatpush1.bf16.msra.mxu0 %v5711
    %7367 = vmatprep.subr.bf16.mxu0 0
    %7368 = vmatpush1.bf16.msra.mxu0 %v5712
    %7369 = vmatprep.subr.bf16.mxu0 0
    %7370 = vmatpush1.bf16.msra.mxu0 %v5713
    %7371 = vmatprep.subr.bf16.mxu0 0
    %7372 = vmatpush1.bf16.msra.mxu0 %v5714
    %7373 = vmatprep.subr.bf16.mxu0 0
    %7374 = vmatpush1.bf16.msra.mxu0 %v5715
    %7375 = vmatprep.subr.bf16.mxu0 0
    %7376 = vmatpush1.bf16.msra.mxu0 %v5716
    %7377 = vmatprep.subr.bf16.mxu0 0
    %7378 = vmatpush1.bf16.msra.mxu0 %v5717
    %7379 = vmatprep.subr.bf16.mxu0 0
    %7380 = vmatpush1.bf16.msra.mxu0 %v5718
    %7381 = vmatprep.subr.bf16.mxu0 0
    %7382 = vmatpush1.bf16.msra.mxu0 %v5719
    %7383 = vmatprep.subr.bf16.mxu0 0
    %7384 = vmatpush1.bf16.msra.mxu0 %v5720
    %7385 = vmatprep.mubr.bf16.mxu0 %v3166
    %7386 = vmatmul.mubr.bf16.gmra.mrb[0].mxu0 %v3165
    %v7387 = vpop.f32.mrb[0].mxu0
    %v7388 = vadd.f32 %v7348, %v7387
    %v7389 = vpop.f32.mrb[0].mxu0
    %v7390 = vpop.f32.mrb[0].mxu0
    %v7391 = vpop.f32.mrb[0].mxu0
    %7392 = vdwg.mxu0
    %7393 = vmatprep.subr.bf16.mxu0 0
    %7394 = vmatpush1.bf16.msra.mxu0 %v5721
    %7395 = vmatprep.subr.bf16.mxu0 0
    %7396 = vmatpush1.bf16.msra.mxu0 %v5722
    %7397 = vmatprep.subr.bf16.mxu0 0
    %7398 = vmatpush1.bf16.msra.mxu0 %v5723
    %7399 = vmatprep.subr.bf16.mxu0 0
    %7400 = vmatpush1.bf16.msra.mxu0 %v5724
    %7401 = vmatprep.subr.bf16.mxu0 0
    %7402 = vmatpush1.bf16.msra.mxu0 %v5725
    %7403 = vmatprep.subr.bf16.mxu0 0
    %7404 = vmatpush1.bf16.msra.mxu0 %v5726
    %7405 = vmatprep.subr.bf16.mxu0 0
    %7406 = vmatpush1.bf16.msra.mxu0 %v5727
    %7407 = vmatprep.subr.bf16.mxu0 0
    %7408 = vmatpush1.bf16.msra.mxu0 %v5728
    %7409 = vmatprep.subr.bf16.mxu0 0
    %7410 = vmatpush1.bf16.msra.mxu0 %v5729
    %7411 = vmatprep.subr.bf16.mxu0 0
    %7412 = vmatpush1.bf16.msra.mxu0 %v5730
    %7413 = vmatprep.subr.bf16.mxu0 0
    %7414 = vmatpush1.bf16.msra.mxu0 %v5731
    %7415 = vmatprep.subr.bf16.mxu0 0
    %7416 = vmatpush1.bf16.msra.mxu0 %v5732
    %7417 = vmatprep.subr.bf16.mxu0 0
    %7418 = vmatpush1.bf16.msra.mxu0 %v5733
    %7419 = vmatprep.subr.bf16.mxu0 0
    %7420 = vmatpush1.bf16.msra.mxu0 %v5734
    %7421 = vmatprep.subr.bf16.mxu0 0
    %7422 = vmatpush1.bf16.msra.mxu0 %v5735
    %7423 = vmatprep.subr.bf16.mxu0 0
    %7424 = vmatpush1.bf16.msra.mxu0 %v5736
    %7425 = vmatprep.mubr.bf16.mxu0 %v3168
    %7426 = vmatmul.mubr.bf16.gmra.mrb[0].mxu0 %v3167
    %v7427 = vpop.f32.mrb[0].mxu0
    %v7428 = vadd.f32 %v7388, %v7427
    %v7429 = vpop.f32.mrb[0].mxu0
    %v7430 = vpop.f32.mrb[0].mxu0
    %v7431 = vpop.f32.mrb[0].mxu0
    %7432 = vdwg.mxu0
    %7433 = vmatprep.subr.bf16.mxu0 0
    %7434 = vmatpush1.bf16.msra.mxu0 %v5737
    %7435 = vmatprep.subr.bf16.mxu0 0
    %7436 = vmatpush1.bf16.msra.mxu0 %v5738
    %7437 = vmatprep.subr.bf16.mxu0 0
    %7438 = vmatpush1.bf16.msra.mxu0 %v5739
    %7439 = vmatprep.subr.bf16.mxu0 0
    %7440 = vmatpush1.bf16.msra.mxu0 %v5740
    %7441 = vmatprep.subr.bf16.mxu0 0
    %7442 = vmatpush1.bf16.msra.mxu0 %v5741
    %7443 = vmatprep.subr.bf16.mxu0 0
    %7444 = vmatpush1.bf16.msra.mxu0 %v5742
    %7445 = vmatprep.subr.bf16.mxu0 0
    %7446 = vmatpush1.bf16.msra.mxu0 %v5743
    %7447 = vmatprep.subr.bf16.mxu0 0
    %7448 = vmatpush1.bf16.msra.mxu0 %v5744
    %7449 = vmatprep.subr.bf16.mxu0 0
    %7450 = vmatpush1.bf16.msra.mxu0 %v5745
    %7451 = vmatprep.subr.bf16.mxu0 0
    %7452 = vmatpush1.bf16.msra.mxu0 %v5746
    %7453 = vmatprep.subr.bf16.mxu0 0
    %7454 = vmatpush1.bf16.msra.mxu0 %v5747
    %7455 = vmatprep.subr.bf16.mxu0 0
    %7456 = vmatpush1.bf16.msra.mxu0 %v5748
    %7457 = vmatprep.subr.bf16.mxu0 0
    %7458 = vmatpush1.bf16.msra.mxu0 %v5749
    %7459 = vmatprep.subr.bf16.mxu0 0
    %7460 = vmatpush1.bf16.msra.mxu0 %v5750
    %7461 = vmatprep.subr.bf16.mxu0 0
    %7462 = vmatpush1.bf16.msra.mxu0 %v5751
    %7463 = vmatprep.subr.bf16.mxu0 0
    %7464 = vmatpush1.bf16.msra.mxu0 %v5752
    %7465 = vmatprep.mubr.bf16.mxu0 %v3170
    %7466 = vmatmul.mubr.bf16.gmra.mrb[0].mxu0 %v3169
    %v7467 = vpop.f32.mrb[0].mxu0
    %v7468 = vadd.f32 %v7428, %v7467
    %v7469 = vpop.f32.mrb[0].mxu0
    %v7470 = vpop.f32.mrb[0].mxu0
    %v7471 = vpop.f32.mrb[0].mxu0
    %7472 = vdwg.mxu0
    %7473 = vmatprep.subr.bf16.mxu0 0
    %7474 = vmatpush1.bf16.msra.mxu0 %v5753
    %7475 = vmatprep.subr.bf16.mxu0 0
    %7476 = vmatpush1.bf16.msra.mxu0 %v5754
    %7477 = vmatprep.subr.bf16.mxu0 0
    %7478 = vmatpush1.bf16.msra.mxu0 %v5755
    %7479 = vmatprep.subr.bf16.mxu0 0
    %7480 = vmatpush1.bf16.msra.mxu0 %v5756
    %7481 = vmatprep.subr.bf16.mxu0 0
    %7482 = vmatpush1.bf16.msra.mxu0 %v5757
    %7483 = vmatprep.subr.bf16.mxu0 0
    %7484 = vmatpush1.bf16.msra.mxu0 %v5758
    %7485 = vmatprep.subr.bf16.mxu0 0
    %7486 = vmatpush1.bf16.msra.mxu0 %v5759
    %7487 = vmatprep.subr.bf16.mxu0 0
    %7488 = vmatpush1.bf16.msra.mxu0 %v5760
    %7489 = vmatprep.subr.bf16.mxu0 0
    %7490 = vmatpush1.bf16.msra.mxu0 %v5761
    %7491 = vmatprep.subr.bf16.mxu0 0
    %7492 = vmatpush1.bf16.msra.mxu0 %v5762
    %7493 = vmatprep.subr.bf16.mxu0 0
    %7494 = vmatpush1.bf16.msra.mxu0 %v5763
    %7495 = vmatprep.subr.bf16.mxu0 0
    %7496 = vmatpush1.bf16.msra.mxu0 %v5764
    %7497 = vmatprep.subr.bf16.mxu0 0
    %7498 = vmatpush1.bf16.msra.mxu0 %v5765
    %7499 = vmatprep.subr.bf16.mxu0 0
    %7500 = vmatpush1.bf16.msra.mxu0 %v5766
    %7501 = vmatprep.subr.bf16.mxu0 0
    %7502 = vmatpush1.bf16.msra.mxu0 %v5767
    %7503 = vmatprep.subr.bf16.mxu0 0
    %7504 = vmatpush1.bf16.msra.mxu0 %v5768
    %7505 = vmatprep.mubr.bf16.mxu0 %v3172
    %7506 = vmatmul.mubr.bf16.gmra.mrb[0].mxu0 %v3171
    %v7507 = vpop.f32.mrb[0].mxu0
    %v7508 = vadd.f32 %v7468, %v7507
    %v7509 = vpop.f32.mrb[0].mxu0
    %v7510 = vpop.f32.mrb[0].mxu0
    %v7511 = vpop.f32.mrb[0].mxu0
    %7512 = vdwg.mxu0
    %7513 = vmatprep.subr.bf16.mxu0 0
    %7514 = vmatpush1.bf16.msra.mxu0 %v5769
    %7515 = vmatprep.subr.bf16.mxu0 0
    %7516 = vmatpush1.bf16.msra.mxu0 %v5770
    %7517 = vmatprep.subr.bf16.mxu0 0
    %7518 = vmatpush1.bf16.msra.mxu0 %v5771
    %7519 = vmatprep.subr.bf16.mxu0 0
    %7520 = vmatpush1.bf16.msra.mxu0 %v5772
    %7521 = vmatprep.subr.bf16.mxu0 0
    %7522 = vmatpush1.bf16.msra.mxu0 %v5773
    %7523 = vmatprep.subr.bf16.mxu0 0
    %7524 = vmatpush1.bf16.msra.mxu0 %v5774
    %7525 = vmatprep.subr.bf16.mxu0 0
    %7526 = vmatpush1.bf16.msra.mxu0 %v5775
    %7527 = vmatprep.subr.bf16.mxu0 0
    %7528 = vmatpush1.bf16.msra.mxu0 %v5776
    %7529 = vmatprep.subr.bf16.mxu0 0
    %7530 = vmatpush1.bf16.msra.mxu0 %v5777
    %7531 = vmatprep.subr.bf16.mxu0 0
    %7532 = vmatpush1.bf16.msra.mxu0 %v5778
    %7533 = vmatprep.subr.bf16.mxu0 0
    %7534 = vmatpush1.bf16.msra.mxu0 %v5779
    %7535 = vmatprep.subr.bf16.mxu0 0
    %7536 = vmatpush1.bf16.msra.mxu0 %v5780
    %7537 = vmatprep.subr.bf16.mxu0 0
    %7538 = vmatpush1.bf16.msra.mxu0 %v5781
    %7539 = vmatprep.subr.bf16.mxu0 0
    %7540 = vmatpush1.bf16.msra.mxu0 %v5782
    %7541 = vmatprep.subr.bf16.mxu0 0
    %7542 = vmatpush1.bf16.msra.mxu0 %v5783
    %7543 = vmatprep.subr.bf16.mxu0 0
    %7544 = vmatpush1.bf16.msra.mxu0 %v5784
    %7545 = vmatprep.mubr.bf16.mxu0 %v3174
    %7546 = vmatmul.mubr.bf16.gmra.mrb[0].mxu0 %v3173
    %v7547 = vpop.f32.mrb[0].mxu0
    %v7548 = vadd.f32 %v7508, %v7547
    %v7549 = vpop.f32.mrb[0].mxu0
    %v7550 = vpop.f32.mrb[0].mxu0
    %v7551 = vpop.f32.mrb[0].mxu0
    %7552 = vdwg.mxu0
    %7553 = vmatprep.subr.bf16.mxu0 0
    %7554 = vmatpush1.bf16.msra.mxu0 %v5785
    %7555 = vmatprep.subr.bf16.mxu0 0
    %7556 = vmatpush1.bf16.msra.mxu0 %v5786
    %7557 = vmatprep.subr.bf16.mxu0 0
    %7558 = vmatpush1.bf16.msra.mxu0 %v5787
    %7559 = vmatprep.subr.bf16.mxu0 0
    %7560 = vmatpush1.bf16.msra.mxu0 %v5788
    %7561 = vmatprep.subr.bf16.mxu0 0
    %7562 = vmatpush1.bf16.msra.mxu0 %v5789
    %7563 = vmatprep.subr.bf16.mxu0 0
    %7564 = vmatpush1.bf16.msra.mxu0 %v5790
    %7565 = vmatprep.subr.bf16.mxu0 0
    %7566 = vmatpush1.bf16.msra.mxu0 %v5791
    %7567 = vmatprep.subr.bf16.mxu0 0
    %7568 = vmatpush1.bf16.msra.mxu0 %v5792
    %7569 = vmatprep.subr.bf16.mxu0 0
    %7570 = vmatpush1.bf16.msra.mxu0 %v5793
    %7571 = vmatprep.subr.bf16.mxu0 0
    %7572 = vmatpush1.bf16.msra.mxu0 %v5794
    %7573 = vmatprep.subr.bf16.mxu0 0
    %7574 = vmatpush1.bf16.msra.mxu0 %v5795
    %7575 = vmatprep.subr.bf16.mxu0 0
    %7576 = vmatpush1.bf16.msra.mxu0 %v5796
    %7577 = vmatprep.subr.bf16.mxu0 0
    %7578 = vmatpush1.bf16.msra.mxu0 %v5797
    %7579 = vmatprep.subr.bf16.mxu0 0
    %7580 = vmatpush1.bf16.msra.mxu0 %v5798
    %7581 = vmatprep.subr.bf16.mxu0 0
    %7582 = vmatpush1.bf16.msra.mxu0 %v5799
    %7583 = vmatprep.subr.bf16.mxu0 0
    %7584 = vmatpush1.bf16.msra.mxu0 %v5800
    %7585 = vmatprep.mubr.bf16.mxu0 %v3176
    %7586 = vmatmul.mubr.bf16.gmra.mrb[0].mxu0 %v3175
    %v7587 = vpop.f32.mrb[0].mxu0
    %v7588 = vadd.f32 %v7548, %v7587
    %v7589 = vpop.f32.mrb[0].mxu0
    %v7590 = vpop.f32.mrb[0].mxu0
    %v7591 = vpop.f32.mrb[0].mxu0
    %7592 = vdwg.mxu0
    %7593 = vst [vmem:[#allocation13] sm:$0xff] %v7588
    // Predicated region
    $region42: #{tpu_custom_call.1} parent=1 // pred_check
      _
    $region43: #{tpu_custom_call.1} parent=1 // pred_check_branch
      %7595 = sbr.rel (0) target = $region45
    $region44: #{tpu_custom_call.1} parent=1 // pred_region
      %s7597 = ssub.s32 128, 128
      %7598 = vsyncadd [#allocation5], %s7597
      %s7600 = sshll.u32 [#allocation13], 4
      %s7601 = int_to_ptr.vmem [resolvable:$true] %s7600
      %7603 = dma.vmem_to_hbm [thread:$0]  %s7601, 128, %s5, [#allocation5]
    $region45: #{tpu_custom_call.1} parent=1 // pred_fallthru
      _
    // Predicated region
    $region46: #{tpu_custom_call.1} parent=1 // pred_check
      _
    $region47: #{tpu_custom_call.1} parent=1 // pred_check_branch
      %7605 = sbr.rel (0) target = $region49
    $region48: #{tpu_custom_call.1} parent=1 // pred_region
      %7606 = dma.done [#allocation5], 128
    $region49: #{tpu_custom_call.1} parent=1 // pred_fallthru
      _
    %7607 = vsyncpa [#allocation4], 1
    %7608 = vsyncpa [#allocation11], 1
    %7609 = vsyncpa [#allocation5], 1
    %7610 = vsyncpa [#allocation6], 1
    %7611 = vsyncpa [#allocation8], 1

</llo_original>
